<compile_context>
chip_gen: v5e
topology: v5e:2x2
jax: 0.10.0
libtpu: 0.0.40
codegen_flags: <defaults>
</compile_context>

<pallas_src>
import jax
import jax.numpy as jnp
from jax.experimental import pallas as pl


def _mlp2(x, w1, b1, w2, b2):
    """PyG MLP([Cin, H, H], norm=None) at inference: Linear -> ReLU -> Linear.

    x: (M, Cin) flat channel-last activations. Intermediate dropout is 0.0 /
    eval mode, i.e. a no-op.
    """
    if x.shape[1] == 1:
        # K=1 matmul degenerates into a broadcasted multiply (VPU).
        h = x * w1 + b1
    else:
        h = jnp.dot(x, w1, preferred_element_type=jnp.float32) + b1
    h = jnp.maximum(h, 0.0)
    return jnp.dot(h, w2, preferred_element_type=jnp.float32) + b2


def _per_channel_matmul(a4, d4):
    """A[b,i,j,c] = sum_k a4[b,i,k,c] * d4[b,k,j,c].

    Unrolled over the (small, static) contraction index k with size-1 slices
    and sublane / leading-dim broadcasts -> plain VPU multiply-adds.
    """
    n = a4.shape[1]
    acc = a4[:, :, 0:1, :] * d4[:, 0:1, :, :]
    for k in range(1, n):
        acc = acc + a4[:, :, k:k + 1, :] * d4[:, k:k + 1, :, :]
    return acc


def deep_diff_forward(adj, diff, conv_params, mlp_params):
    """Fused DeepDiff forward.  adj, diff: (B, N, N) float32."""
    B, N, _ = adj.shape
    H = mlp_params[0].shape[0]
    O = mlp_params[2].shape[1]
    M = B * N * N
    num_layers = len(conv_params)

    # Flatten to (M, 1) outside the kernel (free in HBM) so the channel dim is
    # already minor; inside the kernel the first linear is a lane broadcast.
    inputs = [adj.reshape(M, 1), diff.reshape(M, 1)]
    for layer in conv_params:
        inputs.extend(layer)
    inputs.extend(mlp_params)

    def kernel(*refs):
        adj_ref, diff_ref = refs[0], refs[1]
        out_ref = refs[-1]
        p = refs[2:-1]

        inv_n = 1.0 / N
        x_a = adj_ref[...]            # (M, 1)
        x_d = diff_ref[...]           # (M, 1)
        A4 = None
        for l in range(num_layers):
            base = 8 * l
            aw1, ab1, aw2, ab2 = (p[base + t][...] for t in range(4))
            dw1, db1, dw2, db2 = (p[base + 4 + t][...] for t in range(4))

            a = _mlp2(x_a, aw1, ab1, aw2, ab2)            # (M, H)  MXU
            d = _mlp2(x_d, dw1, db1, dw2, db2)            # (M, H)  MXU

            # Layout-preserving reshapes (minor dim H unchanged, second-minor
            # stays a multiple of the 8-sublane tile).
            a4 = a.reshape(B, N, N, H)
            d4 = d.reshape(B, N, N, H)
            A4 = _per_channel_matmul(a4, d4) * inv_n      # (B, N, N, H)
            if l + 1 < num_layers:
                x_a = (a4 + A4).reshape(M, H)
                x_d = (d4 + A4).reshape(M, H)

        fw1 = p[8 * num_layers + 0][...]
        fb1 = p[8 * num_layers + 1][...]
        fw2 = p[8 * num_layers + 2][...]
        fb2 = p[8 * num_layers + 3][...]

        # A.sum(dim=[1,2]) -> (B, H): single sublane-axis reduction.
        s = jnp.sum(A4.reshape(B, N * N, H), axis=1)
        h = jnp.maximum(
            jnp.dot(s, fw1, preferred_element_type=jnp.float32) + fb1, 0.0)
        # TODO(synk): head-MLP dropout(p=0.5) is a no-op at inference (eval).
        out = jnp.dot(h, fw2, preferred_element_type=jnp.float32) + fb2
        out_ref[...] = out.astype(out_ref.dtype)

    # Single fused, gridless call: all operands fit comfortably in VMEM at
    # these sizes, so default whole-array blocks are used (no grid/BlockSpecs).
    # TODO(synk): for large N the O(N^2*H) working set would need node-tiling
    # of the per-channel matmul instead of whole-array mapping (v7x 64 MiB VMEM).
    return pl.pallas_call(
        kernel,
        out_shape=jax.ShapeDtypeStruct((B, O), adj.dtype),
    )(*inputs)


def _reference_forward(adj, diff, conv_params, mlp_params):
    """Pure-JAX (XLA) reference mirroring PyTorch DeepDiff.forward."""
    n = adj.shape[1]
    a = adj[..., None]
    d = diff[..., None]
    A = None
    for (aw1, ab1, aw2, ab2, dw1, db1, dw2, db2) in conv_params:
        a = jnp.maximum(a @ aw1 + ab1, 0.0) @ aw2 + ab2
        d = jnp.maximum(d @ dw1 + db1, 0.0) @ dw2 + db2
        A = jnp.einsum("bikh,bkjh->bijh", a, d) / n
        a = a + A
        d = d + A
    fw1, fb1, fw2, fb2 = mlp_params
    s = A.sum(axis=(1, 2))
    h = jnp.maximum(s @ fw1 + fb1, 0.0)
    return h @ fw2 + fb2


if __name__ == "__main__":
    B, N = 2, 16
    hidden, out_ch, num_layers = 32, 8, 2

    key_it = iter(jax.random.split(jax.random.PRNGKey(0), 64))

    def nk():
        return next(key_it)

    def glorot(shape):
        fan_in, fan_out = shape
        limit = (6.0 / (fan_in + fan_out)) ** 0.5
        return jax.random.uniform(nk(), shape, jnp.float32, -limit, limit)

    adj = (jax.random.uniform(nk(), (B, N, N)) > 0.5).astype(jnp.float32)
    diff = jax.random.normal(nk(), (B, N, N), jnp.float32)

    conv_params = []
    c_in = 1
    for _ in range(num_layers):
        layer = (
            glorot((c_in, hidden)),
            0.1 * jax.random.normal(nk(), (1, hidden), jnp.float32),
            glorot((hidden, hidden)),
            0.1 * jax.random.normal(nk(), (1, hidden), jnp.float32),
            glorot((c_in, hidden)),
            0.1 * jax.random.normal(nk(), (1, hidden), jnp.float32),
            glorot((hidden, hidden)),
            0.1 * jax.random.normal(nk(), (1, hidden), jnp.float32),
        )
        conv_params.append(layer)
        c_in = hidden

    mlp_params = (
        glorot((hidden, hidden)),
        0.1 * jax.random.normal(nk(), (1, hidden), jnp.float32),
        glorot((hidden, out_ch)),
        0.1 * jax.random.normal(nk(), (1, out_ch), jnp.float32),
    )

    out = deep_diff_forward(adj, diff, conv_params, mlp_params)
    out = jax.block_until_ready(out)

    ref = _reference_forward(adj, diff, conv_params, mlp_params)
    assert out.shape == (B, out_ch)
    assert bool(jnp.all(jnp.isfinite(out)))
    rel_err = float(jnp.max(jnp.abs(out - ref)) / (jnp.max(jnp.abs(ref)) + 1e-6))
    assert rel_err < 3e-2, f"kernel/reference mismatch: rel_err={rel_err}"
    print("KERNEL_OK")
</pallas_src>

<mosaic_0001>
module attributes {stable_mosaic.version = 11 : i64} {
  func.func @kernel(%arg0: memref<512x1xf32, #tpu.memory_space<vmem>>, %arg1: memref<512x1xf32, #tpu.memory_space<vmem>>, %arg2: memref<1x32xf32, #tpu.memory_space<vmem>>, %arg3: memref<1x32xf32, #tpu.memory_space<vmem>>, %arg4: memref<32x32xf32, #tpu.memory_space<vmem>>, %arg5: memref<1x32xf32, #tpu.memory_space<vmem>>, %arg6: memref<1x32xf32, #tpu.memory_space<vmem>>, %arg7: memref<1x32xf32, #tpu.memory_space<vmem>>, %arg8: memref<32x32xf32, #tpu.memory_space<vmem>>, %arg9: memref<1x32xf32, #tpu.memory_space<vmem>>, %arg10: memref<32x32xf32, #tpu.memory_space<vmem>>, %arg11: memref<1x32xf32, #tpu.memory_space<vmem>>, %arg12: memref<32x32xf32, #tpu.memory_space<vmem>>, %arg13: memref<1x32xf32, #tpu.memory_space<vmem>>, %arg14: memref<32x32xf32, #tpu.memory_space<vmem>>, %arg15: memref<1x32xf32, #tpu.memory_space<vmem>>, %arg16: memref<32x32xf32, #tpu.memory_space<vmem>>, %arg17: memref<1x32xf32, #tpu.memory_space<vmem>>, %arg18: memref<32x32xf32, #tpu.memory_space<vmem>>, %arg19: memref<1x32xf32, #tpu.memory_space<vmem>>, %arg20: memref<32x8xf32, #tpu.memory_space<vmem>>, %arg21: memref<1x8xf32, #tpu.memory_space<vmem>>, %arg22: memref<2x8xf32, #tpu.memory_space<vmem>>) attributes {dimension_semantics = [], scalar_prefetch = 0 : i64, scratch_operands = 0 : i64, tpu.core_type = #tpu.core_type<tc>} {
    %c0 = arith.constant 0 : index
    %c0_0 = arith.constant 0 : index
    %0 = vector.load %arg0[%c0, %c0_0] : memref<512x1xf32, #tpu.memory_space<vmem>>, vector<512x1xf32>
    %c0_1 = arith.constant 0 : index
    %c0_2 = arith.constant 0 : index
    %1 = vector.load %arg1[%c0_1, %c0_2] : memref<512x1xf32, #tpu.memory_space<vmem>>, vector<512x1xf32>
    %c0_3 = arith.constant 0 : index
    %c0_4 = arith.constant 0 : index
    %2 = vector.load %arg2[%c0_3, %c0_4] : memref<1x32xf32, #tpu.memory_space<vmem>>, vector<1x32xf32>
    %c0_5 = arith.constant 0 : index
    %c0_6 = arith.constant 0 : index
    %3 = vector.load %arg3[%c0_5, %c0_6] : memref<1x32xf32, #tpu.memory_space<vmem>>, vector<1x32xf32>
    %c0_7 = arith.constant 0 : index
    %c0_8 = arith.constant 0 : index
    %4 = vector.load %arg4[%c0_7, %c0_8] : memref<32x32xf32, #tpu.memory_space<vmem>>, vector<32x32xf32>
    %c0_9 = arith.constant 0 : index
    %c0_10 = arith.constant 0 : index
    %5 = vector.load %arg5[%c0_9, %c0_10] : memref<1x32xf32, #tpu.memory_space<vmem>>, vector<1x32xf32>
    %c0_11 = arith.constant 0 : index
    %c0_12 = arith.constant 0 : index
    %6 = vector.load %arg6[%c0_11, %c0_12] : memref<1x32xf32, #tpu.memory_space<vmem>>, vector<1x32xf32>
    %c0_13 = arith.constant 0 : index
    %c0_14 = arith.constant 0 : index
    %7 = vector.load %arg7[%c0_13, %c0_14] : memref<1x32xf32, #tpu.memory_space<vmem>>, vector<1x32xf32>
    %c0_15 = arith.constant 0 : index
    %c0_16 = arith.constant 0 : index
    %8 = vector.load %arg8[%c0_15, %c0_16] : memref<32x32xf32, #tpu.memory_space<vmem>>, vector<32x32xf32>
    %c0_17 = arith.constant 0 : index
    %c0_18 = arith.constant 0 : index
    %9 = vector.load %arg9[%c0_17, %c0_18] : memref<1x32xf32, #tpu.memory_space<vmem>>, vector<1x32xf32>
    %10 = vector.broadcast %0 : vector<512x1xf32> to vector<512x32xf32>
    %11 = vector.broadcast %2 : vector<1x32xf32> to vector<512x32xf32>
    %12 = arith.mulf %10, %11 : vector<512x32xf32>
    %13 = vector.broadcast %3 : vector<1x32xf32> to vector<512x32xf32>
    %14 = arith.addf %12, %13 : vector<512x32xf32>
    %cst = arith.constant 0.000000e+00 : f32
    %15 = vector.broadcast %cst : f32 to vector<512x32xf32>
    %16 = arith.maximumf %14, %15 : vector<512x32xf32>
    %cst_19 = arith.constant dense<0.000000e+00> : vector<512x32xf32>
    %17 = tpu.matmul %16, %4, %cst_19 {dimension_numbers = #tpu.dot_dimension_numbers<[1], [0], [0], [1], [0, 0, 1, 1], [], []>} : vector<512x32xf32>, vector<32x32xf32>, vector<512x32xf32> -> vector<512x32xf32>
    %18 = vector.broadcast %5 : vector<1x32xf32> to vector<512x32xf32>
    %19 = arith.addf %17, %18 : vector<512x32xf32>
    %20 = vector.broadcast %1 : vector<512x1xf32> to vector<512x32xf32>
    %21 = vector.broadcast %6 : vector<1x32xf32> to vector<512x32xf32>
    %22 = arith.mulf %20, %21 : vector<512x32xf32>
    %23 = vector.broadcast %7 : vector<1x32xf32> to vector<512x32xf32>
    %24 = arith.addf %22, %23 : vector<512x32xf32>
    %cst_20 = arith.constant 0.000000e+00 : f32
    %25 = vector.broadcast %cst_20 : f32 to vector<512x32xf32>
    %26 = arith.maximumf %24, %25 : vector<512x32xf32>
    %cst_21 = arith.constant dense<0.000000e+00> : vector<512x32xf32>
    %27 = tpu.matmul %26, %8, %cst_21 {dimension_numbers = #tpu.dot_dimension_numbers<[1], [0], [0], [1], [0, 0, 1, 1], [], []>} : vector<512x32xf32>, vector<32x32xf32>, vector<512x32xf32> -> vector<512x32xf32>
    %28 = vector.broadcast %9 : vector<1x32xf32> to vector<512x32xf32>
    %29 = arith.addf %27, %28 : vector<512x32xf32>
    %30 = vector.shape_cast %19 : vector<512x32xf32> to vector<2x16x16x32xf32>
    %31 = vector.shape_cast %29 : vector<512x32xf32> to vector<2x16x16x32xf32>
    %32 = vector.extract_strided_slice %30 {offsets = [0, 0, 0, 0], sizes = [2, 16, 1, 32], strides = [1, 1, 1, 1]} : vector<2x16x16x32xf32> to vector<2x16x1x32xf32>
    %33 = vector.extract_strided_slice %31 {offsets = [0, 0, 0, 0], sizes = [2, 1, 16, 32], strides = [1, 1, 1, 1]} : vector<2x16x16x32xf32> to vector<2x1x16x32xf32>
    %34 = vector.broadcast %32 : vector<2x16x1x32xf32> to vector<2x16x16x32xf32>
    %35 = vector.broadcast %33 : vector<2x1x16x32xf32> to vector<2x16x16x32xf32>
    %36 = arith.mulf %34, %35 : vector<2x16x16x32xf32>
    %37 = vector.extract_strided_slice %30 {offsets = [0, 0, 1, 0], sizes = [2, 16, 1, 32], strides = [1, 1, 1, 1]} : vector<2x16x16x32xf32> to vector<2x16x1x32xf32>
    %38 = vector.extract_strided_slice %31 {offsets = [0, 1, 0, 0], sizes = [2, 1, 16, 32], strides = [1, 1, 1, 1]} : vector<2x16x16x32xf32> to vector<2x1x16x32xf32>
    %39 = vector.broadcast %37 : vector<2x16x1x32xf32> to vector<2x16x16x32xf32>
    %40 = vector.broadcast %38 : vector<2x1x16x32xf32> to vector<2x16x16x32xf32>
    %41 = arith.mulf %39, %40 : vector<2x16x16x32xf32>
    %42 = arith.addf %36, %41 : vector<2x16x16x32xf32>
    %43 = vector.extract_strided_slice %30 {offsets = [0, 0, 2, 0], sizes = [2, 16, 1, 32], strides = [1, 1, 1, 1]} : vector<2x16x16x32xf32> to vector<2x16x1x32xf32>
    %44 = vector.extract_strided_slice %31 {offsets = [0, 2, 0, 0], sizes = [2, 1, 16, 32], strides = [1, 1, 1, 1]} : vector<2x16x16x32xf32> to vector<2x1x16x32xf32>
    %45 = vector.broadcast %43 : vector<2x16x1x32xf32> to vector<2x16x16x32xf32>
    %46 = vector.broadcast %44 : vector<2x1x16x32xf32> to vector<2x16x16x32xf32>
    %47 = arith.mulf %45, %46 : vector<2x16x16x32xf32>
    %48 = arith.addf %42, %47 : vector<2x16x16x32xf32>
    %49 = vector.extract_strided_slice %30 {offsets = [0, 0, 3, 0], sizes = [2, 16, 1, 32], strides = [1, 1, 1, 1]} : vector<2x16x16x32xf32> to vector<2x16x1x32xf32>
    %50 = vector.extract_strided_slice %31 {offsets = [0, 3, 0, 0], sizes = [2, 1, 16, 32], strides = [1, 1, 1, 1]} : vector<2x16x16x32xf32> to vector<2x1x16x32xf32>
    %51 = vector.broadcast %49 : vector<2x16x1x32xf32> to vector<2x16x16x32xf32>
    %52 = vector.broadcast %50 : vector<2x1x16x32xf32> to vector<2x16x16x32xf32>
    %53 = arith.mulf %51, %52 : vector<2x16x16x32xf32>
    %54 = arith.addf %48, %53 : vector<2x16x16x32xf32>
    %55 = vector.extract_strided_slice %30 {offsets = [0, 0, 4, 0], sizes = [2, 16, 1, 32], strides = [1, 1, 1, 1]} : vector<2x16x16x32xf32> to vector<2x16x1x32xf32>
    %56 = vector.extract_strided_slice %31 {offsets = [0, 4, 0, 0], sizes = [2, 1, 16, 32], strides = [1, 1, 1, 1]} : vector<2x16x16x32xf32> to vector<2x1x16x32xf32>
    %57 = vector.broadcast %55 : vector<2x16x1x32xf32> to vector<2x16x16x32xf32>
    %58 = vector.broadcast %56 : vector<2x1x16x32xf32> to vector<2x16x16x32xf32>
    %59 = arith.mulf %57, %58 : vector<2x16x16x32xf32>
    %60 = arith.addf %54, %59 : vector<2x16x16x32xf32>
    %61 = vector.extract_strided_slice %30 {offsets = [0, 0, 5, 0], sizes = [2, 16, 1, 32], strides = [1, 1, 1, 1]} : vector<2x16x16x32xf32> to vector<2x16x1x32xf32>
    %62 = vector.extract_strided_slice %31 {offsets = [0, 5, 0, 0], sizes = [2, 1, 16, 32], strides = [1, 1, 1, 1]} : vector<2x16x16x32xf32> to vector<2x1x16x32xf32>
    %63 = vector.broadcast %61 : vector<2x16x1x32xf32> to vector<2x16x16x32xf32>
    %64 = vector.broadcast %62 : vector<2x1x16x32xf32> to vector<2x16x16x32xf32>
    %65 = arith.mulf %63, %64 : vector<2x16x16x32xf32>
    %66 = arith.addf %60, %65 : vector<2x16x16x32xf32>
    %67 = vector.extract_strided_slice %30 {offsets = [0, 0, 6, 0], sizes = [2, 16, 1, 32], strides = [1, 1, 1, 1]} : vector<2x16x16x32xf32> to vector<2x16x1x32xf32>
    %68 = vector.extract_strided_slice %31 {offsets = [0, 6, 0, 0], sizes = [2, 1, 16, 32], strides = [1, 1, 1, 1]} : vector<2x16x16x32xf32> to vector<2x1x16x32xf32>
    %69 = vector.broadcast %67 : vector<2x16x1x32xf32> to vector<2x16x16x32xf32>
    %70 = vector.broadcast %68 : vector<2x1x16x32xf32> to vector<2x16x16x32xf32>
    %71 = arith.mulf %69, %70 : vector<2x16x16x32xf32>
    %72 = arith.addf %66, %71 : vector<2x16x16x32xf32>
    %73 = vector.extract_strided_slice %30 {offsets = [0, 0, 7, 0], sizes = [2, 16, 1, 32], strides = [1, 1, 1, 1]} : vector<2x16x16x32xf32> to vector<2x16x1x32xf32>
    %74 = vector.extract_strided_slice %31 {offsets = [0, 7, 0, 0], sizes = [2, 1, 16, 32], strides = [1, 1, 1, 1]} : vector<2x16x16x32xf32> to vector<2x1x16x32xf32>
    %75 = vector.broadcast %73 : vector<2x16x1x32xf32> to vector<2x16x16x32xf32>
    %76 = vector.broadcast %74 : vector<2x1x16x32xf32> to vector<2x16x16x32xf32>
    %77 = arith.mulf %75, %76 : vector<2x16x16x32xf32>
    %78 = arith.addf %72, %77 : vector<2x16x16x32xf32>
    %79 = vector.extract_strided_slice %30 {offsets = [0, 0, 8, 0], sizes = [2, 16, 1, 32], strides = [1, 1, 1, 1]} : vector<2x16x16x32xf32> to vector<2x16x1x32xf32>
    %80 = vector.extract_strided_slice %31 {offsets = [0, 8, 0, 0], sizes = [2, 1, 16, 32], strides = [1, 1, 1, 1]} : vector<2x16x16x32xf32> to vector<2x1x16x32xf32>
    %81 = vector.broadcast %79 : vector<2x16x1x32xf32> to vector<2x16x16x32xf32>
    %82 = vector.broadcast %80 : vector<2x1x16x32xf32> to vector<2x16x16x32xf32>
    %83 = arith.mulf %81, %82 : vector<2x16x16x32xf32>
    %84 = arith.addf %78, %83 : vector<2x16x16x32xf32>
    %85 = vector.extract_strided_slice %30 {offsets = [0, 0, 9, 0], sizes = [2, 16, 1, 32], strides = [1, 1, 1, 1]} : vector<2x16x16x32xf32> to vector<2x16x1x32xf32>
    %86 = vector.extract_strided_slice %31 {offsets = [0, 9, 0, 0], sizes = [2, 1, 16, 32], strides = [1, 1, 1, 1]} : vector<2x16x16x32xf32> to vector<2x1x16x32xf32>
    %87 = vector.broadcast %85 : vector<2x16x1x32xf32> to vector<2x16x16x32xf32>
    %88 = vector.broadcast %86 : vector<2x1x16x32xf32> to vector<2x16x16x32xf32>
    %89 = arith.mulf %87, %88 : vector<2x16x16x32xf32>
    %90 = arith.addf %84, %89 : vector<2x16x16x32xf32>
    %91 = vector.extract_strided_slice %30 {offsets = [0, 0, 10, 0], sizes = [2, 16, 1, 32], strides = [1, 1, 1, 1]} : vector<2x16x16x32xf32> to vector<2x16x1x32xf32>
    %92 = vector.extract_strided_slice %31 {offsets = [0, 10, 0, 0], sizes = [2, 1, 16, 32], strides = [1, 1, 1, 1]} : vector<2x16x16x32xf32> to vector<2x1x16x32xf32>
    %93 = vector.broadcast %91 : vector<2x16x1x32xf32> to vector<2x16x16x32xf32>
    %94 = vector.broadcast %92 : vector<2x1x16x32xf32> to vector<2x16x16x32xf32>
    %95 = arith.mulf %93, %94 : vector<2x16x16x32xf32>
    %96 = arith.addf %90, %95 : vector<2x16x16x32xf32>
    %97 = vector.extract_strided_slice %30 {offsets = [0, 0, 11, 0], sizes = [2, 16, 1, 32], strides = [1, 1, 1, 1]} : vector<2x16x16x32xf32> to vector<2x16x1x32xf32>
    %98 = vector.extract_strided_slice %31 {offsets = [0, 11, 0, 0], sizes = [2, 1, 16, 32], strides = [1, 1, 1, 1]} : vector<2x16x16x32xf32> to vector<2x1x16x32xf32>
    %99 = vector.broadcast %97 : vector<2x16x1x32xf32> to vector<2x16x16x32xf32>
    %100 = vector.broadcast %98 : vector<2x1x16x32xf32> to vector<2x16x16x32xf32>
    %101 = arith.mulf %99, %100 : vector<2x16x16x32xf32>
    %102 = arith.addf %96, %101 : vector<2x16x16x32xf32>
    %103 = vector.extract_strided_slice %30 {offsets = [0, 0, 12, 0], sizes = [2, 16, 1, 32], strides = [1, 1, 1, 1]} : vector<2x16x16x32xf32> to vector<2x16x1x32xf32>
    %104 = vector.extract_strided_slice %31 {offsets = [0, 12, 0, 0], sizes = [2, 1, 16, 32], strides = [1, 1, 1, 1]} : vector<2x16x16x32xf32> to vector<2x1x16x32xf32>
    %105 = vector.broadcast %103 : vector<2x16x1x32xf32> to vector<2x16x16x32xf32>
    %106 = vector.broadcast %104 : vector<2x1x16x32xf32> to vector<2x16x16x32xf32>
    %107 = arith.mulf %105, %106 : vector<2x16x16x32xf32>
    %108 = arith.addf %102, %107 : vector<2x16x16x32xf32>
    %109 = vector.extract_strided_slice %30 {offsets = [0, 0, 13, 0], sizes = [2, 16, 1, 32], strides = [1, 1, 1, 1]} : vector<2x16x16x32xf32> to vector<2x16x1x32xf32>
    %110 = vector.extract_strided_slice %31 {offsets = [0, 13, 0, 0], sizes = [2, 1, 16, 32], strides = [1, 1, 1, 1]} : vector<2x16x16x32xf32> to vector<2x1x16x32xf32>
    %111 = vector.broadcast %109 : vector<2x16x1x32xf32> to vector<2x16x16x32xf32>
    %112 = vector.broadcast %110 : vector<2x1x16x32xf32> to vector<2x16x16x32xf32>
    %113 = arith.mulf %111, %112 : vector<2x16x16x32xf32>
    %114 = arith.addf %108, %113 : vector<2x16x16x32xf32>
    %115 = vector.extract_strided_slice %30 {offsets = [0, 0, 14, 0], sizes = [2, 16, 1, 32], strides = [1, 1, 1, 1]} : vector<2x16x16x32xf32> to vector<2x16x1x32xf32>
    %116 = vector.extract_strided_slice %31 {offsets = [0, 14, 0, 0], sizes = [2, 1, 16, 32], strides = [1, 1, 1, 1]} : vector<2x16x16x32xf32> to vector<2x1x16x32xf32>
    %117 = vector.broadcast %115 : vector<2x16x1x32xf32> to vector<2x16x16x32xf32>
    %118 = vector.broadcast %116 : vector<2x1x16x32xf32> to vector<2x16x16x32xf32>
    %119 = arith.mulf %117, %118 : vector<2x16x16x32xf32>
    %120 = arith.addf %114, %119 : vector<2x16x16x32xf32>
    %121 = vector.extract_strided_slice %30 {offsets = [0, 0, 15, 0], sizes = [2, 16, 1, 32], strides = [1, 1, 1, 1]} : vector<2x16x16x32xf32> to vector<2x16x1x32xf32>
    %122 = vector.extract_strided_slice %31 {offsets = [0, 15, 0, 0], sizes = [2, 1, 16, 32], strides = [1, 1, 1, 1]} : vector<2x16x16x32xf32> to vector<2x1x16x32xf32>
    %123 = vector.broadcast %121 : vector<2x16x1x32xf32> to vector<2x16x16x32xf32>
    %124 = vector.broadcast %122 : vector<2x1x16x32xf32> to vector<2x16x16x32xf32>
    %125 = arith.mulf %123, %124 : vector<2x16x16x32xf32>
    %126 = arith.addf %120, %125 : vector<2x16x16x32xf32>
    %cst_22 = arith.constant 6.250000e-02 : f32
    %127 = vector.broadcast %cst_22 : f32 to vector<2x16x16x32xf32>
    %128 = arith.mulf %126, %127 : vector<2x16x16x32xf32>
    %129 = arith.addf %30, %128 : vector<2x16x16x32xf32>
    %130 = vector.shape_cast %129 : vector<2x16x16x32xf32> to vector<512x32xf32>
    %131 = arith.addf %31, %128 : vector<2x16x16x32xf32>
    %132 = vector.shape_cast %131 : vector<2x16x16x32xf32> to vector<512x32xf32>
    %c0_23 = arith.constant 0 : index
    %c0_24 = arith.constant 0 : index
    %133 = vector.load %arg10[%c0_23, %c0_24] : memref<32x32xf32, #tpu.memory_space<vmem>>, vector<32x32xf32>
    %c0_25 = arith.constant 0 : index
    %c0_26 = arith.constant 0 : index
    %134 = vector.load %arg11[%c0_25, %c0_26] : memref<1x32xf32, #tpu.memory_space<vmem>>, vector<1x32xf32>
    %c0_27 = arith.constant 0 : index
    %c0_28 = arith.constant 0 : index
    %135 = vector.load %arg12[%c0_27, %c0_28] : memref<32x32xf32, #tpu.memory_space<vmem>>, vector<32x32xf32>
    %c0_29 = arith.constant 0 : index
    %c0_30 = arith.constant 0 : index
    %136 = vector.load %arg13[%c0_29, %c0_30] : memref<1x32xf32, #tpu.memory_space<vmem>>, vector<1x32xf32>
    %c0_31 = arith.constant 0 : index
    %c0_32 = arith.constant 0 : index
    %137 = vector.load %arg14[%c0_31, %c0_32] : memref<32x32xf32, #tpu.memory_space<vmem>>, vector<32x32xf32>
    %c0_33 = arith.constant 0 : index
    %c0_34 = arith.constant 0 : index
    %138 = vector.load %arg15[%c0_33, %c0_34] : memref<1x32xf32, #tpu.memory_space<vmem>>, vector<1x32xf32>
    %c0_35 = arith.constant 0 : index
    %c0_36 = arith.constant 0 : index
    %139 = vector.load %arg16[%c0_35, %c0_36] : memref<32x32xf32, #tpu.memory_space<vmem>>, vector<32x32xf32>
    %c0_37 = arith.constant 0 : index
    %c0_38 = arith.constant 0 : index
    %140 = vector.load %arg17[%c0_37, %c0_38] : memref<1x32xf32, #tpu.memory_space<vmem>>, vector<1x32xf32>
    %cst_39 = arith.constant dense<0.000000e+00> : vector<512x32xf32>
    %141 = tpu.matmul %130, %133, %cst_39 {dimension_numbers = #tpu.dot_dimension_numbers<[1], [0], [0], [1], [0, 0, 1, 1], [], []>} : vector<512x32xf32>, vector<32x32xf32>, vector<512x32xf32> -> vector<512x32xf32>
    %142 = vector.broadcast %134 : vector<1x32xf32> to vector<512x32xf32>
    %143 = arith.addf %141, %142 : vector<512x32xf32>
    %cst_40 = arith.constant 0.000000e+00 : f32
    %144 = vector.broadcast %cst_40 : f32 to vector<512x32xf32>
    %145 = arith.maximumf %143, %144 : vector<512x32xf32>
    %cst_41 = arith.constant dense<0.000000e+00> : vector<512x32xf32>
    %146 = tpu.matmul %145, %135, %cst_41 {dimension_numbers = #tpu.dot_dimension_numbers<[1], [0], [0], [1], [0, 0, 1, 1], [], []>} : vector<512x32xf32>, vector<32x32xf32>, vector<512x32xf32> -> vector<512x32xf32>
    %147 = vector.broadcast %136 : vector<1x32xf32> to vector<512x32xf32>
    %148 = arith.addf %146, %147 : vector<512x32xf32>
    %cst_42 = arith.constant dense<0.000000e+00> : vector<512x32xf32>
    %149 = tpu.matmul %132, %137, %cst_42 {dimension_numbers = #tpu.dot_dimension_numbers<[1], [0], [0], [1], [0, 0, 1, 1], [], []>} : vector<512x32xf32>, vector<32x32xf32>, vector<512x32xf32> -> vector<512x32xf32>
    %150 = vector.broadcast %138 : vector<1x32xf32> to vector<512x32xf32>
    %151 = arith.addf %149, %150 : vector<512x32xf32>
    %cst_43 = arith.constant 0.000000e+00 : f32
    %152 = vector.broadcast %cst_43 : f32 to vector<512x32xf32>
    %153 = arith.maximumf %151, %152 : vector<512x32xf32>
    %cst_44 = arith.constant dense<0.000000e+00> : vector<512x32xf32>
    %154 = tpu.matmul %153, %139, %cst_44 {dimension_numbers = #tpu.dot_dimension_numbers<[1], [0], [0], [1], [0, 0, 1, 1], [], []>} : vector<512x32xf32>, vector<32x32xf32>, vector<512x32xf32> -> vector<512x32xf32>
    %155 = vector.broadcast %140 : vector<1x32xf32> to vector<512x32xf32>
    %156 = arith.addf %154, %155 : vector<512x32xf32>
    %157 = vector.shape_cast %148 : vector<512x32xf32> to vector<2x16x16x32xf32>
    %158 = vector.shape_cast %156 : vector<512x32xf32> to vector<2x16x16x32xf32>
    %159 = vector.extract_strided_slice %157 {offsets = [0, 0, 0, 0], sizes = [2, 16, 1, 32], strides = [1, 1, 1, 1]} : vector<2x16x16x32xf32> to vector<2x16x1x32xf32>
    %160 = vector.extract_strided_slice %158 {offsets = [0, 0, 0, 0], sizes = [2, 1, 16, 32], strides = [1, 1, 1, 1]} : vector<2x16x16x32xf32> to vector<2x1x16x32xf32>
    %161 = vector.broadcast %159 : vector<2x16x1x32xf32> to vector<2x16x16x32xf32>
    %162 = vector.broadcast %160 : vector<2x1x16x32xf32> to vector<2x16x16x32xf32>
    %163 = arith.mulf %161, %162 : vector<2x16x16x32xf32>
    %164 = vector.extract_strided_slice %157 {offsets = [0, 0, 1, 0], sizes = [2, 16, 1, 32], strides = [1, 1, 1, 1]} : vector<2x16x16x32xf32> to vector<2x16x1x32xf32>
    %165 = vector.extract_strided_slice %158 {offsets = [0, 1, 0, 0], sizes = [2, 1, 16, 32], strides = [1, 1, 1, 1]} : vector<2x16x16x32xf32> to vector<2x1x16x32xf32>
    %166 = vector.broadcast %164 : vector<2x16x1x32xf32> to vector<2x16x16x32xf32>
    %167 = vector.broadcast %165 : vector<2x1x16x32xf32> to vector<2x16x16x32xf32>
    %168 = arith.mulf %166, %167 : vector<2x16x16x32xf32>
    %169 = arith.addf %163, %168 : vector<2x16x16x32xf32>
    %170 = vector.extract_strided_slice %157 {offsets = [0, 0, 2, 0], sizes = [2, 16, 1, 32], strides = [1, 1, 1, 1]} : vector<2x16x16x32xf32> to vector<2x16x1x32xf32>
    %171 = vector.extract_strided_slice %158 {offsets = [0, 2, 0, 0], sizes = [2, 1, 16, 32], strides = [1, 1, 1, 1]} : vector<2x16x16x32xf32> to vector<2x1x16x32xf32>
    %172 = vector.broadcast %170 : vector<2x16x1x32xf32> to vector<2x16x16x32xf32>
    %173 = vector.broadcast %171 : vector<2x1x16x32xf32> to vector<2x16x16x32xf32>
    %174 = arith.mulf %172, %173 : vector<2x16x16x32xf32>
    %175 = arith.addf %169, %174 : vector<2x16x16x32xf32>
    %176 = vector.extract_strided_slice %157 {offsets = [0, 0, 3, 0], sizes = [2, 16, 1, 32], strides = [1, 1, 1, 1]} : vector<2x16x16x32xf32> to vector<2x16x1x32xf32>
    %177 = vector.extract_strided_slice %158 {offsets = [0, 3, 0, 0], sizes = [2, 1, 16, 32], strides = [1, 1, 1, 1]} : vector<2x16x16x32xf32> to vector<2x1x16x32xf32>
    %178 = vector.broadcast %176 : vector<2x16x1x32xf32> to vector<2x16x16x32xf32>
    %179 = vector.broadcast %177 : vector<2x1x16x32xf32> to vector<2x16x16x32xf32>
    %180 = arith.mulf %178, %179 : vector<2x16x16x32xf32>
    %181 = arith.addf %175, %180 : vector<2x16x16x32xf32>
    %182 = vector.extract_strided_slice %157 {offsets = [0, 0, 4, 0], sizes = [2, 16, 1, 32], strides = [1, 1, 1, 1]} : vector<2x16x16x32xf32> to vector<2x16x1x32xf32>
    %183 = vector.extract_strided_slice %158 {offsets = [0, 4, 0, 0], sizes = [2, 1, 16, 32], strides = [1, 1, 1, 1]} : vector<2x16x16x32xf32> to vector<2x1x16x32xf32>
    %184 = vector.broadcast %182 : vector<2x16x1x32xf32> to vector<2x16x16x32xf32>
    %185 = vector.broadcast %183 : vector<2x1x16x32xf32> to vector<2x16x16x32xf32>
    %186 = arith.mulf %184, %185 : vector<2x16x16x32xf32>
    %187 = arith.addf %181, %186 : vector<2x16x16x32xf32>
    %188 = vector.extract_strided_slice %157 {offsets = [0, 0, 5, 0], sizes = [2, 16, 1, 32], strides = [1, 1, 1, 1]} : vector<2x16x16x32xf32> to vector<2x16x1x32xf32>
    %189 = vector.extract_strided_slice %158 {offsets = [0, 5, 0, 0], sizes = [2, 1, 16, 32], strides = [1, 1, 1, 1]} : vector<2x16x16x32xf32> to vector<2x1x16x32xf32>
    %190 = vector.broadcast %188 : vector<2x16x1x32xf32> to vector<2x16x16x32xf32>
    %191 = vector.broadcast %189 : vector<2x1x16x32xf32> to vector<2x16x16x32xf32>
    %192 = arith.mulf %190, %191 : vector<2x16x16x32xf32>
    %193 = arith.addf %187, %192 : vector<2x16x16x32xf32>
    %194 = vector.extract_strided_slice %157 {offsets = [0, 0, 6, 0], sizes = [2, 16, 1, 32], strides = [1, 1, 1, 1]} : vector<2x16x16x32xf32> to vector<2x16x1x32xf32>
    %195 = vector.extract_strided_slice %158 {offsets = [0, 6, 0, 0], sizes = [2, 1, 16, 32], strides = [1, 1, 1, 1]} : vector<2x16x16x32xf32> to vector<2x1x16x32xf32>
    %196 = vector.broadcast %194 : vector<2x16x1x32xf32> to vector<2x16x16x32xf32>
    %197 = vector.broadcast %195 : vector<2x1x16x32xf32> to vector<2x16x16x32xf32>
    %198 = arith.mulf %196, %197 : vector<2x16x16x32xf32>
    %199 = arith.addf %193, %198 : vector<2x16x16x32xf32>
    %200 = vector.extract_strided_slice %157 {offsets = [0, 0, 7, 0], sizes = [2, 16, 1, 32], strides = [1, 1, 1, 1]} : vector<2x16x16x32xf32> to vector<2x16x1x32xf32>
    %201 = vector.extract_strided_slice %158 {offsets = [0, 7, 0, 0], sizes = [2, 1, 16, 32], strides = [1, 1, 1, 1]} : vector<2x16x16x32xf32> to vector<2x1x16x32xf32>
    %202 = vector.broadcast %200 : vector<2x16x1x32xf32> to vector<2x16x16x32xf32>
    %203 = vector.broadcast %201 : vector<2x1x16x32xf32> to vector<2x16x16x32xf32>
    %204 = arith.mulf %202, %203 : vector<2x16x16x32xf32>
    %205 = arith.addf %199, %204 : vector<2x16x16x32xf32>
    %206 = vector.extract_strided_slice %157 {offsets = [0, 0, 8, 0], sizes = [2, 16, 1, 32], strides = [1, 1, 1, 1]} : vector<2x16x16x32xf32> to vector<2x16x1x32xf32>
    %207 = vector.extract_strided_slice %158 {offsets = [0, 8, 0, 0], sizes = [2, 1, 16, 32], strides = [1, 1, 1, 1]} : vector<2x16x16x32xf32> to vector<2x1x16x32xf32>
    %208 = vector.broadcast %206 : vector<2x16x1x32xf32> to vector<2x16x16x32xf32>
    %209 = vector.broadcast %207 : vector<2x1x16x32xf32> to vector<2x16x16x32xf32>
    %210 = arith.mulf %208, %209 : vector<2x16x16x32xf32>
    %211 = arith.addf %205, %210 : vector<2x16x16x32xf32>
    %212 = vector.extract_strided_slice %157 {offsets = [0, 0, 9, 0], sizes = [2, 16, 1, 32], strides = [1, 1, 1, 1]} : vector<2x16x16x32xf32> to vector<2x16x1x32xf32>
    %213 = vector.extract_strided_slice %158 {offsets = [0, 9, 0, 0], sizes = [2, 1, 16, 32], strides = [1, 1, 1, 1]} : vector<2x16x16x32xf32> to vector<2x1x16x32xf32>
    %214 = vector.broadcast %212 : vector<2x16x1x32xf32> to vector<2x16x16x32xf32>
    %215 = vector.broadcast %213 : vector<2x1x16x32xf32> to vector<2x16x16x32xf32>
    %216 = arith.mulf %214, %215 : vector<2x16x16x32xf32>
    %217 = arith.addf %211, %216 : vector<2x16x16x32xf32>
    %218 = vector.extract_strided_slice %157 {offsets = [0, 0, 10, 0], sizes = [2, 16, 1, 32], strides = [1, 1, 1, 1]} : vector<2x16x16x32xf32> to vector<2x16x1x32xf32>
    %219 = vector.extract_strided_slice %158 {offsets = [0, 10, 0, 0], sizes = [2, 1, 16, 32], strides = [1, 1, 1, 1]} : vector<2x16x16x32xf32> to vector<2x1x16x32xf32>
    %220 = vector.broadcast %218 : vector<2x16x1x32xf32> to vector<2x16x16x32xf32>
    %221 = vector.broadcast %219 : vector<2x1x16x32xf32> to vector<2x16x16x32xf32>
    %222 = arith.mulf %220, %221 : vector<2x16x16x32xf32>
    %223 = arith.addf %217, %222 : vector<2x16x16x32xf32>
    %224 = vector.extract_strided_slice %157 {offsets = [0, 0, 11, 0], sizes = [2, 16, 1, 32], strides = [1, 1, 1, 1]} : vector<2x16x16x32xf32> to vector<2x16x1x32xf32>
    %225 = vector.extract_strided_slice %158 {offsets = [0, 11, 0, 0], sizes = [2, 1, 16, 32], strides = [1, 1, 1, 1]} : vector<2x16x16x32xf32> to vector<2x1x16x32xf32>
    %226 = vector.broadcast %224 : vector<2x16x1x32xf32> to vector<2x16x16x32xf32>
    %227 = vector.broadcast %225 : vector<2x1x16x32xf32> to vector<2x16x16x32xf32>
    %228 = arith.mulf %226, %227 : vector<2x16x16x32xf32>
    %229 = arith.addf %223, %228 : vector<2x16x16x32xf32>
    %230 = vector.extract_strided_slice %157 {offsets = [0, 0, 12, 0], sizes = [2, 16, 1, 32], strides = [1, 1, 1, 1]} : vector<2x16x16x32xf32> to vector<2x16x1x32xf32>
    %231 = vector.extract_strided_slice %158 {offsets = [0, 12, 0, 0], sizes = [2, 1, 16, 32], strides = [1, 1, 1, 1]} : vector<2x16x16x32xf32> to vector<2x1x16x32xf32>
    %232 = vector.broadcast %230 : vector<2x16x1x32xf32> to vector<2x16x16x32xf32>
    %233 = vector.broadcast %231 : vector<2x1x16x32xf32> to vector<2x16x16x32xf32>
    %234 = arith.mulf %232, %233 : vector<2x16x16x32xf32>
    %235 = arith.addf %229, %234 : vector<2x16x16x32xf32>
    %236 = vector.extract_strided_slice %157 {offsets = [0, 0, 13, 0], sizes = [2, 16, 1, 32], strides = [1, 1, 1, 1]} : vector<2x16x16x32xf32> to vector<2x16x1x32xf32>
    %237 = vector.extract_strided_slice %158 {offsets = [0, 13, 0, 0], sizes = [2, 1, 16, 32], strides = [1, 1, 1, 1]} : vector<2x16x16x32xf32> to vector<2x1x16x32xf32>
    %238 = vector.broadcast %236 : vector<2x16x1x32xf32> to vector<2x16x16x32xf32>
    %239 = vector.broadcast %237 : vector<2x1x16x32xf32> to vector<2x16x16x32xf32>
    %240 = arith.mulf %238, %239 : vector<2x16x16x32xf32>
    %241 = arith.addf %235, %240 : vector<2x16x16x32xf32>
    %242 = vector.extract_strided_slice %157 {offsets = [0, 0, 14, 0], sizes = [2, 16, 1, 32], strides = [1, 1, 1, 1]} : vector<2x16x16x32xf32> to vector<2x16x1x32xf32>
    %243 = vector.extract_strided_slice %158 {offsets = [0, 14, 0, 0], sizes = [2, 1, 16, 32], strides = [1, 1, 1, 1]} : vector<2x16x16x32xf32> to vector<2x1x16x32xf32>
    %244 = vector.broadcast %242 : vector<2x16x1x32xf32> to vector<2x16x16x32xf32>
    %245 = vector.broadcast %243 : vector<2x1x16x32xf32> to vector<2x16x16x32xf32>
    %246 = arith.mulf %244, %245 : vector<2x16x16x32xf32>
    %247 = arith.addf %241, %246 : vector<2x16x16x32xf32>
    %248 = vector.extract_strided_slice %157 {offsets = [0, 0, 15, 0], sizes = [2, 16, 1, 32], strides = [1, 1, 1, 1]} : vector<2x16x16x32xf32> to vector<2x16x1x32xf32>
    %249 = vector.extract_strided_slice %158 {offsets = [0, 15, 0, 0], sizes = [2, 1, 16, 32], strides = [1, 1, 1, 1]} : vector<2x16x16x32xf32> to vector<2x1x16x32xf32>
    %250 = vector.broadcast %248 : vector<2x16x1x32xf32> to vector<2x16x16x32xf32>
    %251 = vector.broadcast %249 : vector<2x1x16x32xf32> to vector<2x16x16x32xf32>
    %252 = arith.mulf %250, %251 : vector<2x16x16x32xf32>
    %253 = arith.addf %247, %252 : vector<2x16x16x32xf32>
    %cst_45 = arith.constant 6.250000e-02 : f32
    %254 = vector.broadcast %cst_45 : f32 to vector<2x16x16x32xf32>
    %255 = arith.mulf %253, %254 : vector<2x16x16x32xf32>
    %c0_46 = arith.constant 0 : index
    %c0_47 = arith.constant 0 : index
    %256 = vector.load %arg18[%c0_46, %c0_47] : memref<32x32xf32, #tpu.memory_space<vmem>>, vector<32x32xf32>
    %c0_48 = arith.constant 0 : index
    %c0_49 = arith.constant 0 : index
    %257 = vector.load %arg19[%c0_48, %c0_49] : memref<1x32xf32, #tpu.memory_space<vmem>>, vector<1x32xf32>
    %c0_50 = arith.constant 0 : index
    %c0_51 = arith.constant 0 : index
    %258 = vector.load %arg20[%c0_50, %c0_51] : memref<32x8xf32, #tpu.memory_space<vmem>>, vector<32x8xf32>
    %c0_52 = arith.constant 0 : index
    %c0_53 = arith.constant 0 : index
    %259 = vector.load %arg21[%c0_52, %c0_53] : memref<1x8xf32, #tpu.memory_space<vmem>>, vector<1x8xf32>
    %260 = vector.shape_cast %255 : vector<2x16x16x32xf32> to vector<2x256x32xf32>
    %cst_54 = arith.constant dense<0.000000e+00> : vector<2x32xf32>
    %261 = vector.multi_reduction <add>, %260, %cst_54 [1] : vector<2x256x32xf32> to vector<2x32xf32>
    %cst_55 = arith.constant dense<0.000000e+00> : vector<2x32xf32>
    %262 = tpu.matmul %261, %256, %cst_55 {dimension_numbers = #tpu.dot_dimension_numbers<[1], [0], [0], [1], [0, 0, 1, 1], [], []>} : vector<2x32xf32>, vector<32x32xf32>, vector<2x32xf32> -> vector<2x32xf32>
    %263 = vector.broadcast %257 : vector<1x32xf32> to vector<2x32xf32>
    %264 = arith.addf %262, %263 : vector<2x32xf32>
    %cst_56 = arith.constant 0.000000e+00 : f32
    %265 = vector.broadcast %cst_56 : f32 to vector<2x32xf32>
    %266 = arith.maximumf %264, %265 : vector<2x32xf32>
    %cst_57 = arith.constant dense<0.000000e+00> : vector<2x8xf32>
    %267 = tpu.matmul %266, %258, %cst_57 {dimension_numbers = #tpu.dot_dimension_numbers<[1], [0], [0], [1], [0, 0, 1, 1], [], []>} : vector<2x32xf32>, vector<32x8xf32>, vector<2x8xf32> -> vector<2x8xf32>
    %268 = vector.broadcast %259 : vector<1x8xf32> to vector<2x8xf32>
    %269 = arith.addf %267, %268 : vector<2x8xf32>
    %c0_58 = arith.constant 0 : index
    %c0_59 = arith.constant 0 : index
    %270 = vector.load %arg22[%c0_58, %c0_59] : memref<2x8xf32, #tpu.memory_space<vmem>>, vector<2x8xf32>
    tpu.vector_store %arg22[%c0_58, %c0_59], %269 {strides = array<i32>} : memref<2x8xf32, #tpu.memory_space<vmem>>, vector<2x8xf32>,
    return
  }
}

</mosaic_0001>

<llo_original>
// kernel: tpu_custom_call.1
$region0: #{tpu_custom_call.1}
  #allocation0 [shape = 'u32[]', space=smem, size = 0x4, offset = 0x4, fixed_abs, tag = 'smem constant byte address 0x4 - core index']
  #allocation1 [shape = 'u32[72,128]{1,0:T(1,128)}', space=vmem, size = 0x9000, scoped, tag = 'internal scratch']
  %s0 = inlined_call_operand.vmem [shape: f32[512,1], index: 0, kind: input, shape index: {}]
  %s1 = inlined_call_operand.vmem [shape: f32[512,1], index: 1, kind: input, shape index: {}]
  %s2 = inlined_call_operand.vmem [shape: f32[1,32], index: 2, kind: input, shape index: {}]
  %s3 = inlined_call_operand.vmem [shape: f32[1,32], index: 3, kind: input, shape index: {}]
  %s4 = inlined_call_operand.vmem [shape: f32[32,32], index: 4, kind: input, shape index: {}]
  %s5 = inlined_call_operand.vmem [shape: f32[1,32], index: 5, kind: input, shape index: {}]
  %s6 = inlined_call_operand.vmem [shape: f32[1,32], index: 6, kind: input, shape index: {}]
  %s7 = inlined_call_operand.vmem [shape: f32[1,32], index: 7, kind: input, shape index: {}]
  %s8 = inlined_call_operand.vmem [shape: f32[32,32], index: 8, kind: input, shape index: {}]
  %s9 = inlined_call_operand.vmem [shape: f32[1,32], index: 9, kind: input, shape index: {}]
  %s10 = inlined_call_operand.vmem [shape: f32[32,32], index: 10, kind: input, shape index: {}]
  %s11 = inlined_call_operand.vmem [shape: f32[1,32], index: 11, kind: input, shape index: {}]
  %s12 = inlined_call_operand.vmem [shape: f32[32,32], index: 12, kind: input, shape index: {}]
  %s13 = inlined_call_operand.vmem [shape: f32[1,32], index: 13, kind: input, shape index: {}]
  %s14 = inlined_call_operand.vmem [shape: f32[32,32], index: 14, kind: input, shape index: {}]
  %s15 = inlined_call_operand.vmem [shape: f32[1,32], index: 15, kind: input, shape index: {}]
  %s16 = inlined_call_operand.vmem [shape: f32[32,32], index: 16, kind: input, shape index: {}]
  %s17 = inlined_call_operand.vmem [shape: f32[1,32], index: 17, kind: input, shape index: {}]
  %s18 = inlined_call_operand.vmem [shape: f32[32,32], index: 18, kind: input, shape index: {}]
  %s19 = inlined_call_operand.vmem [shape: f32[1,32], index: 19, kind: input, shape index: {}]
  %s20 = inlined_call_operand.vmem [shape: f32[32,8], index: 20, kind: input, shape index: {}]
  %s21 = inlined_call_operand.vmem [shape: f32[1,8], index: 21, kind: input, shape index: {}]
  %s22 = inlined_call_operand.hbm [shape: f32[2,8], index: 22, kind: output, shape index: {}]
  %s23 = sld [smem:[#allocation0]]
  $region98: #{tpu_custom_call.1} parent=0
    _
  %s25 = ssub.s32 1, %s23
  %s26 = scalar_select 0, %s25, %s23
  $region1: #{tpu_custom_call.1} parent=0
    #allocation2 [shape = 'u8[1024]{0}', space=vmem, size = 0x400, scoped, tag = 'output window, operand 0, single buffered']
    #allocation3 [shape = 's32[1]{0}', space=sflag, size = 0x4, scoped, tag = 'scoped memory for tpu_custom_call.1']
    %27 = vsyncpa [#allocation3], 0
    // Predicated region
    $region2: #{tpu_custom_call.1} parent=1 // pred_check
      _
    $region3: #{tpu_custom_call.1} parent=1 // pred_check_branch
      %29 = sbr.rel (0) target = $region5
    $region4: #{tpu_custom_call.1} parent=1 // pred_region
      _
    $region5: #{tpu_custom_call.1} parent=1 // pred_fallthru
      _
    // Predicated region
    $region6: #{tpu_custom_call.1} parent=1 // pred_check
      _
    $region7: #{tpu_custom_call.1} parent=1 // pred_check_branch
      %31 = sbr.rel (0) target = $region9
    $region8: #{tpu_custom_call.1} parent=1 // pred_region
      _
    $region9: #{tpu_custom_call.1} parent=1 // pred_fallthru
      _
    // Predicated region
    $region10: #{tpu_custom_call.1} parent=1 // pred_check
      _
    $region11: #{tpu_custom_call.1} parent=1 // pred_check_branch
      %33 = sbr.rel (0) target = $region13
    $region12: #{tpu_custom_call.1} parent=1 // pred_region
      _
    $region13: #{tpu_custom_call.1} parent=1 // pred_fallthru
      _
    // Predicated region
    $region14: #{tpu_custom_call.1} parent=1 // pred_check
      _
    $region15: #{tpu_custom_call.1} parent=1 // pred_check_branch
      %35 = sbr.rel (0) target = $region17
    $region16: #{tpu_custom_call.1} parent=1 // pred_region
      _
    $region17: #{tpu_custom_call.1} parent=1 // pred_fallthru
      _
    // Predicated region
    $region18: #{tpu_custom_call.1} parent=1 // pred_check
      _
    $region19: #{tpu_custom_call.1} parent=1 // pred_check_branch
      %37 = sbr.rel (0) target = $region21
    $region20: #{tpu_custom_call.1} parent=1 // pred_region
      _
    $region21: #{tpu_custom_call.1} parent=1 // pred_fallthru
      _
    // Predicated region
    $region22: #{tpu_custom_call.1} parent=1 // pred_check
      _
    $region23: #{tpu_custom_call.1} parent=1 // pred_check_branch
      %39 = sbr.rel (0) target = $region25
    $region24: #{tpu_custom_call.1} parent=1 // pred_region
      _
    $region25: #{tpu_custom_call.1} parent=1 // pred_fallthru
      _
    // Predicated region
    $region26: #{tpu_custom_call.1} parent=1 // pred_check
      _
    $region27: #{tpu_custom_call.1} parent=1 // pred_check_branch
      %41 = sbr.rel (0) target = $region29
    $region28: #{tpu_custom_call.1} parent=1 // pred_region
      _
    $region29: #{tpu_custom_call.1} parent=1 // pred_fallthru
      _
    // Predicated region
    $region30: #{tpu_custom_call.1} parent=1 // pred_check
      _
    $region31: #{tpu_custom_call.1} parent=1 // pred_check_branch
      %43 = sbr.rel (0) target = $region33
    $region32: #{tpu_custom_call.1} parent=1 // pred_region
      _
    $region33: #{tpu_custom_call.1} parent=1 // pred_fallthru
      _
    // Predicated region
    $region34: #{tpu_custom_call.1} parent=1 // pred_check
      _
    $region35: #{tpu_custom_call.1} parent=1 // pred_check_branch
      %45 = sbr.rel (0) target = $region37
    $region36: #{tpu_custom_call.1} parent=1 // pred_region
      _
    $region37: #{tpu_custom_call.1} parent=1 // pred_fallthru
      _
    // Predicated region
    $region38: #{tpu_custom_call.1} parent=1 // pred_check
      _
    $region39: #{tpu_custom_call.1} parent=1 // pred_check_branch
      %47 = sbr.rel (0) target = $region41
    $region40: #{tpu_custom_call.1} parent=1 // pred_region
      _
    $region41: #{tpu_custom_call.1} parent=1 // pred_fallthru
      _
    // Predicated region
    $region42: #{tpu_custom_call.1} parent=1 // pred_check
      _
    $region43: #{tpu_custom_call.1} parent=1 // pred_check_branch
      %49 = sbr.rel (0) target = $region45
    $region44: #{tpu_custom_call.1} parent=1 // pred_region
      _
    $region45: #{tpu_custom_call.1} parent=1 // pred_fallthru
      _
    // Predicated region
    $region46: #{tpu_custom_call.1} parent=1 // pred_check
      _
    $region47: #{tpu_custom_call.1} parent=1 // pred_check_branch
      %51 = sbr.rel (0) target = $region49
    $region48: #{tpu_custom_call.1} parent=1 // pred_region
      _
    $region49: #{tpu_custom_call.1} parent=1 // pred_fallthru
      _
    // Predicated region
    $region50: #{tpu_custom_call.1} parent=1 // pred_check
      _
    $region51: #{tpu_custom_call.1} parent=1 // pred_check_branch
      %53 = sbr.rel (0) target = $region53
    $region52: #{tpu_custom_call.1} parent=1 // pred_region
      _
    $region53: #{tpu_custom_call.1} parent=1 // pred_fallthru
      _
    // Predicated region
    $region54: #{tpu_custom_call.1} parent=1 // pred_check
      _
    $region55: #{tpu_custom_call.1} parent=1 // pred_check_branch
      %55 = sbr.rel (0) target = $region57
    $region56: #{tpu_custom_call.1} parent=1 // pred_region
      _
    $region57: #{tpu_custom_call.1} parent=1 // pred_fallthru
      _
    // Predicated region
    $region58: #{tpu_custom_call.1} parent=1 // pred_check
      _
    $region59: #{tpu_custom_call.1} parent=1 // pred_check_branch
      %57 = sbr.rel (0) target = $region61
    $region60: #{tpu_custom_call.1} parent=1 // pred_region
      _
    $region61: #{tpu_custom_call.1} parent=1 // pred_fallthru
      _
    // Predicated region
    $region62: #{tpu_custom_call.1} parent=1 // pred_check
      _
    $region63: #{tpu_custom_call.1} parent=1 // pred_check_branch
      %59 = sbr.rel (0) target = $region65
    $region64: #{tpu_custom_call.1} parent=1 // pred_region
      _
    $region65: #{tpu_custom_call.1} parent=1 // pred_fallthru
      _
    // Predicated region
    $region66: #{tpu_custom_call.1} parent=1 // pred_check
      _
    $region67: #{tpu_custom_call.1} parent=1 // pred_check_branch
      %61 = sbr.rel (0) target = $region69
    $region68: #{tpu_custom_call.1} parent=1 // pred_region
      _
    $region69: #{tpu_custom_call.1} parent=1 // pred_fallthru
      _
    // Predicated region
    $region70: #{tpu_custom_call.1} parent=1 // pred_check
      _
    $region71: #{tpu_custom_call.1} parent=1 // pred_check_branch
      %63 = sbr.rel (0) target = $region73
    $region72: #{tpu_custom_call.1} parent=1 // pred_region
      _
    $region73: #{tpu_custom_call.1} parent=1 // pred_fallthru
      _
    // Predicated region
    $region74: #{tpu_custom_call.1} parent=1 // pred_check
      _
    $region75: #{tpu_custom_call.1} parent=1 // pred_check_branch
      %65 = sbr.rel (0) target = $region77
    $region76: #{tpu_custom_call.1} parent=1 // pred_region
      _
    $region77: #{tpu_custom_call.1} parent=1 // pred_fallthru
      _
    // Predicated region
    $region78: #{tpu_custom_call.1} parent=1 // pred_check
      _
    $region79: #{tpu_custom_call.1} parent=1 // pred_check_branch
      %67 = sbr.rel (0) target = $region81
    $region80: #{tpu_custom_call.1} parent=1 // pred_region
      _
    $region81: #{tpu_custom_call.1} parent=1 // pred_fallthru
      _
    // Predicated region
    $region82: #{tpu_custom_call.1} parent=1 // pred_check
      _
    $region83: #{tpu_custom_call.1} parent=1 // pred_check_branch
      %69 = sbr.rel (0) target = $region85
    $region84: #{tpu_custom_call.1} parent=1 // pred_region
      _
    $region85: #{tpu_custom_call.1} parent=1 // pred_fallthru
      _
    // Predicated region
    $region86: #{tpu_custom_call.1} parent=1 // pred_check
      _
    $region87: #{tpu_custom_call.1} parent=1 // pred_check_branch
      %71 = sbr.rel (0) target = $region89
    $region88: #{tpu_custom_call.1} parent=1 // pred_region
      _
    $region89: #{tpu_custom_call.1} parent=1 // pred_fallthru
      _
    %v72 = vld [vmem:[%s0] sm:$0xff]
    %v73 = vld [vmem:[%s0 + $0x8] sm:$0xff]
    %v74 = vld [vmem:[%s0 + $0x10] sm:$0xff]
    %v75 = vld [vmem:[%s0 + $0x18] sm:$0xff]
    %v76 = vld [vmem:[%s0 + $0x20] sm:$0xff]
    %v77 = vld [vmem:[%s0 + $0x28] sm:$0xff]
    %v78 = vld [vmem:[%s0 + $0x30] sm:$0xff]
    %v79 = vld [vmem:[%s0 + $0x38] sm:$0xff]
    %v80 = vld [vmem:[%s0 + $0x40] sm:$0xff]
    %v81 = vld [vmem:[%s0 + $0x48] sm:$0xff]
    %v82 = vld [vmem:[%s0 + $0x50] sm:$0xff]
    %v83 = vld [vmem:[%s0 + $0x58] sm:$0xff]
    %v84 = vld [vmem:[%s0 + $0x60] sm:$0xff]
    %v85 = vld [vmem:[%s0 + $0x68] sm:$0xff]
    %v86 = vld [vmem:[%s0 + $0x70] sm:$0xff]
    %v87 = vld [vmem:[%s0 + $0x78] sm:$0xff]
    %v88 = vld [vmem:[%s0 + $0x80] sm:$0xff]
    %v89 = vld [vmem:[%s0 + $0x88] sm:$0xff]
    %v90 = vld [vmem:[%s0 + $0x90] sm:$0xff]
    %v91 = vld [vmem:[%s0 + $0x98] sm:$0xff]
    %v92 = vld [vmem:[%s0 + $0xa0] sm:$0xff]
    %v93 = vld [vmem:[%s0 + $0xa8] sm:$0xff]
    %v94 = vld [vmem:[%s0 + $0xb0] sm:$0xff]
    %v95 = vld [vmem:[%s0 + $0xb8] sm:$0xff]
    %v96 = vld [vmem:[%s0 + $0xc0] sm:$0xff]
    %v97 = vld [vmem:[%s0 + $0xc8] sm:$0xff]
    %v98 = vld [vmem:[%s0 + $0xd0] sm:$0xff]
    %v99 = vld [vmem:[%s0 + $0xd8] sm:$0xff]
    %v100 = vld [vmem:[%s0 + $0xe0] sm:$0xff]
    %v101 = vld [vmem:[%s0 + $0xe8] sm:$0xff]
    %v102 = vld [vmem:[%s0 + $0xf0] sm:$0xff]
    %v103 = vld [vmem:[%s0 + $0xf8] sm:$0xff]
    %v104 = vld [vmem:[%s0 + $0x100] sm:$0xff]
    %v105 = vld [vmem:[%s0 + $0x108] sm:$0xff]
    %v106 = vld [vmem:[%s0 + $0x110] sm:$0xff]
    %v107 = vld [vmem:[%s0 + $0x118] sm:$0xff]
    %v108 = vld [vmem:[%s0 + $0x120] sm:$0xff]
    %v109 = vld [vmem:[%s0 + $0x128] sm:$0xff]
    %v110 = vld [vmem:[%s0 + $0x130] sm:$0xff]
    %v111 = vld [vmem:[%s0 + $0x138] sm:$0xff]
    %v112 = vld [vmem:[%s0 + $0x140] sm:$0xff]
    %v113 = vld [vmem:[%s0 + $0x148] sm:$0xff]
    %v114 = vld [vmem:[%s0 + $0x150] sm:$0xff]
    %v115 = vld [vmem:[%s0 + $0x158] sm:$0xff]
    %v116 = vld [vmem:[%s0 + $0x160] sm:$0xff]
    %v117 = vld [vmem:[%s0 + $0x168] sm:$0xff]
    %v118 = vld [vmem:[%s0 + $0x170] sm:$0xff]
    %v119 = vld [vmem:[%s0 + $0x178] sm:$0xff]
    %v120 = vld [vmem:[%s0 + $0x180] sm:$0xff]
    %v121 = vld [vmem:[%s0 + $0x188] sm:$0xff]
    %v122 = vld [vmem:[%s0 + $0x190] sm:$0xff]
    %v123 = vld [vmem:[%s0 + $0x198] sm:$0xff]
    %v124 = vld [vmem:[%s0 + $0x1a0] sm:$0xff]
    %v125 = vld [vmem:[%s0 + $0x1a8] sm:$0xff]
    %v126 = vld [vmem:[%s0 + $0x1b0] sm:$0xff]
    %v127 = vld [vmem:[%s0 + $0x1b8] sm:$0xff]
    %v128 = vld [vmem:[%s0 + $0x1c0] sm:$0xff]
    %v129 = vld [vmem:[%s0 + $0x1c8] sm:$0xff]
    %v130 = vld [vmem:[%s0 + $0x1d0] sm:$0xff]
    %v131 = vld [vmem:[%s0 + $0x1d8] sm:$0xff]
    %v132 = vld [vmem:[%s0 + $0x1e0] sm:$0xff]
    %v133 = vld [vmem:[%s0 + $0x1e8] sm:$0xff]
    %v134 = vld [vmem:[%s0 + $0x1f0] sm:$0xff]
    %v135 = vld [vmem:[%s0 + $0x1f8] sm:$0xff]
    %v136 = vld [vmem:[%s1] sm:$0xff]
    %v137 = vld [vmem:[%s1 + $0x8] sm:$0xff]
    %v138 = vld [vmem:[%s1 + $0x10] sm:$0xff]
    %v139 = vld [vmem:[%s1 + $0x18] sm:$0xff]
    %v140 = vld [vmem:[%s1 + $0x20] sm:$0xff]
    %v141 = vld [vmem:[%s1 + $0x28] sm:$0xff]
    %v142 = vld [vmem:[%s1 + $0x30] sm:$0xff]
    %v143 = vld [vmem:[%s1 + $0x38] sm:$0xff]
    %v144 = vld [vmem:[%s1 + $0x40] sm:$0xff]
    %v145 = vld [vmem:[%s1 + $0x48] sm:$0xff]
    %v146 = vld [vmem:[%s1 + $0x50] sm:$0xff]
    %v147 = vld [vmem:[%s1 + $0x58] sm:$0xff]
    %v148 = vld [vmem:[%s1 + $0x60] sm:$0xff]
    %v149 = vld [vmem:[%s1 + $0x68] sm:$0xff]
    %v150 = vld [vmem:[%s1 + $0x70] sm:$0xff]
    %v151 = vld [vmem:[%s1 + $0x78] sm:$0xff]
    %v152 = vld [vmem:[%s1 + $0x80] sm:$0xff]
    %v153 = vld [vmem:[%s1 + $0x88] sm:$0xff]
    %v154 = vld [vmem:[%s1 + $0x90] sm:$0xff]
    %v155 = vld [vmem:[%s1 + $0x98] sm:$0xff]
    %v156 = vld [vmem:[%s1 + $0xa0] sm:$0xff]
    %v157 = vld [vmem:[%s1 + $0xa8] sm:$0xff]
    %v158 = vld [vmem:[%s1 + $0xb0] sm:$0xff]
    %v159 = vld [vmem:[%s1 + $0xb8] sm:$0xff]
    %v160 = vld [vmem:[%s1 + $0xc0] sm:$0xff]
    %v161 = vld [vmem:[%s1 + $0xc8] sm:$0xff]
    %v162 = vld [vmem:[%s1 + $0xd0] sm:$0xff]
    %v163 = vld [vmem:[%s1 + $0xd8] sm:$0xff]
    %v164 = vld [vmem:[%s1 + $0xe0] sm:$0xff]
    %v165 = vld [vmem:[%s1 + $0xe8] sm:$0xff]
    %v166 = vld [vmem:[%s1 + $0xf0] sm:$0xff]
    %v167 = vld [vmem:[%s1 + $0xf8] sm:$0xff]
    %v168 = vld [vmem:[%s1 + $0x100] sm:$0xff]
    %v169 = vld [vmem:[%s1 + $0x108] sm:$0xff]
    %v170 = vld [vmem:[%s1 + $0x110] sm:$0xff]
    %v171 = vld [vmem:[%s1 + $0x118] sm:$0xff]
    %v172 = vld [vmem:[%s1 + $0x120] sm:$0xff]
    %v173 = vld [vmem:[%s1 + $0x128] sm:$0xff]
    %v174 = vld [vmem:[%s1 + $0x130] sm:$0xff]
    %v175 = vld [vmem:[%s1 + $0x138] sm:$0xff]
    %v176 = vld [vmem:[%s1 + $0x140] sm:$0xff]
    %v177 = vld [vmem:[%s1 + $0x148] sm:$0xff]
    %v178 = vld [vmem:[%s1 + $0x150] sm:$0xff]
    %v179 = vld [vmem:[%s1 + $0x158] sm:$0xff]
    %v180 = vld [vmem:[%s1 + $0x160] sm:$0xff]
    %v181 = vld [vmem:[%s1 + $0x168] sm:$0xff]
    %v182 = vld [vmem:[%s1 + $0x170] sm:$0xff]
    %v183 = vld [vmem:[%s1 + $0x178] sm:$0xff]
    %v184 = vld [vmem:[%s1 + $0x180] sm:$0xff]
    %v185 = vld [vmem:[%s1 + $0x188] sm:$0xff]
    %v186 = vld [vmem:[%s1 + $0x190] sm:$0xff]
    %v187 = vld [vmem:[%s1 + $0x198] sm:$0xff]
    %v188 = vld [vmem:[%s1 + $0x1a0] sm:$0xff]
    %v189 = vld [vmem:[%s1 + $0x1a8] sm:$0xff]
    %v190 = vld [vmem:[%s1 + $0x1b0] sm:$0xff]
    %v191 = vld [vmem:[%s1 + $0x1b8] sm:$0xff]
    %v192 = vld [vmem:[%s1 + $0x1c0] sm:$0xff]
    %v193 = vld [vmem:[%s1 + $0x1c8] sm:$0xff]
    %v194 = vld [vmem:[%s1 + $0x1d0] sm:$0xff]
    %v195 = vld [vmem:[%s1 + $0x1d8] sm:$0xff]
    %v196 = vld [vmem:[%s1 + $0x1e0] sm:$0xff]
    %v197 = vld [vmem:[%s1 + $0x1e8] sm:$0xff]
    %v198 = vld [vmem:[%s1 + $0x1f0] sm:$0xff]
    %v199 = vld [vmem:[%s1 + $0x1f8] sm:$0xff]
    %v200 = vld [vmem:[%s2] sm:$0x1]
    %v201 = vld [vmem:[%s3] sm:$0x1]
    %v202 = vld [vmem:[%s4] sm:$0xff]
    %v203 = vld [vmem:[%s4 + $0x8] sm:$0xff]
    %v204 = vld [vmem:[%s4 + $0x10] sm:$0xff]
    %v205 = vld [vmem:[%s4 + $0x18] sm:$0xff]
    %v206 = vld [vmem:[%s5] sm:$0x1]
    %v207 = vld [vmem:[%s6] sm:$0x1]
    %v208 = vld [vmem:[%s7] sm:$0x1]
    %v209 = vld [vmem:[%s8] sm:$0xff]
    %v210 = vld [vmem:[%s8 + $0x8] sm:$0xff]
    %v211 = vld [vmem:[%s8 + $0x10] sm:$0xff]
    %v212 = vld [vmem:[%s8 + $0x18] sm:$0xff]
    %v213 = vld [vmem:[%s9] sm:$0x1]
    %215 = vset.pattern.permute.xlu0 0
    %216 = vperm.xlu0 %215, %v72
    %v217 = vpop.permute.xlu0 %216
    %220 = vset.pattern.permute.xlu0 0
    %221 = vperm.xlu0 %220, %v73
    %v222 = vpop.permute.xlu0 %221
    %225 = vset.pattern.permute.xlu0 0
    %226 = vperm.xlu0 %225, %v74
    %v227 = vpop.permute.xlu0 %226
    %230 = vset.pattern.permute.xlu0 0
    %231 = vperm.xlu0 %230, %v75
    %v232 = vpop.permute.xlu0 %231
    %235 = vset.pattern.permute.xlu0 0
    %236 = vperm.xlu0 %235, %v76
    %v237 = vpop.permute.xlu0 %236
    %240 = vset.pattern.permute.xlu0 0
    %241 = vperm.xlu0 %240, %v77
    %v242 = vpop.permute.xlu0 %241
    %245 = vset.pattern.permute.xlu0 0
    %246 = vperm.xlu0 %245, %v78
    %v247 = vpop.permute.xlu0 %246
    %250 = vset.pattern.permute.xlu0 0
    %251 = vperm.xlu0 %250, %v79
    %v252 = vpop.permute.xlu0 %251
    %255 = vset.pattern.permute.xlu0 0
    %256 = vperm.xlu0 %255, %v80
    %v257 = vpop.permute.xlu0 %256
    %260 = vset.pattern.permute.xlu0 0
    %261 = vperm.xlu0 %260, %v81
    %v262 = vpop.permute.xlu0 %261
    %265 = vset.pattern.permute.xlu0 0
    %266 = vperm.xlu0 %265, %v82
    %v267 = vpop.permute.xlu0 %266
    %270 = vset.pattern.permute.xlu0 0
    %271 = vperm.xlu0 %270, %v83
    %v272 = vpop.permute.xlu0 %271
    %275 = vset.pattern.permute.xlu0 0
    %276 = vperm.xlu0 %275, %v84
    %v277 = vpop.permute.xlu0 %276
    %280 = vset.pattern.permute.xlu0 0
    %281 = vperm.xlu0 %280, %v85
    %v282 = vpop.permute.xlu0 %281
    %285 = vset.pattern.permute.xlu0 0
    %286 = vperm.xlu0 %285, %v86
    %v287 = vpop.permute.xlu0 %286
    %290 = vset.pattern.permute.xlu0 0
    %291 = vperm.xlu0 %290, %v87
    %v292 = vpop.permute.xlu0 %291
    %295 = vset.pattern.permute.xlu0 0
    %296 = vperm.xlu0 %295, %v88
    %v297 = vpop.permute.xlu0 %296
    %300 = vset.pattern.permute.xlu0 0
    %301 = vperm.xlu0 %300, %v89
    %v302 = vpop.permute.xlu0 %301
    %305 = vset.pattern.permute.xlu0 0
    %306 = vperm.xlu0 %305, %v90
    %v307 = vpop.permute.xlu0 %306
    %310 = vset.pattern.permute.xlu0 0
    %311 = vperm.xlu0 %310, %v91
    %v312 = vpop.permute.xlu0 %311
    %315 = vset.pattern.permute.xlu0 0
    %316 = vperm.xlu0 %315, %v92
    %v317 = vpop.permute.xlu0 %316
    %320 = vset.pattern.permute.xlu0 0
    %321 = vperm.xlu0 %320, %v93
    %v322 = vpop.permute.xlu0 %321
    %325 = vset.pattern.permute.xlu0 0
    %326 = vperm.xlu0 %325, %v94
    %v327 = vpop.permute.xlu0 %326
    %330 = vset.pattern.permute.xlu0 0
    %331 = vperm.xlu0 %330, %v95
    %v332 = vpop.permute.xlu0 %331
    %335 = vset.pattern.permute.xlu0 0
    %336 = vperm.xlu0 %335, %v96
    %v337 = vpop.permute.xlu0 %336
    %340 = vset.pattern.permute.xlu0 0
    %341 = vperm.xlu0 %340, %v97
    %v342 = vpop.permute.xlu0 %341
    %345 = vset.pattern.permute.xlu0 0
    %346 = vperm.xlu0 %345, %v98
    %v347 = vpop.permute.xlu0 %346
    %350 = vset.pattern.permute.xlu0 0
    %351 = vperm.xlu0 %350, %v99
    %v352 = vpop.permute.xlu0 %351
    %355 = vset.pattern.permute.xlu0 0
    %356 = vperm.xlu0 %355, %v100
    %v357 = vpop.permute.xlu0 %356
    %360 = vset.pattern.permute.xlu0 0
    %361 = vperm.xlu0 %360, %v101
    %v362 = vpop.permute.xlu0 %361
    %365 = vset.pattern.permute.xlu0 0
    %366 = vperm.xlu0 %365, %v102
    %v367 = vpop.permute.xlu0 %366
    %370 = vset.pattern.permute.xlu0 0
    %371 = vperm.xlu0 %370, %v103
    %v372 = vpop.permute.xlu0 %371
    %375 = vset.pattern.permute.xlu0 0
    %376 = vperm.xlu0 %375, %v104
    %v377 = vpop.permute.xlu0 %376
    %380 = vset.pattern.permute.xlu0 0
    %381 = vperm.xlu0 %380, %v105
    %v382 = vpop.permute.xlu0 %381
    %385 = vset.pattern.permute.xlu0 0
    %386 = vperm.xlu0 %385, %v106
    %v387 = vpop.permute.xlu0 %386
    %390 = vset.pattern.permute.xlu0 0
    %391 = vperm.xlu0 %390, %v107
    %v392 = vpop.permute.xlu0 %391
    %395 = vset.pattern.permute.xlu0 0
    %396 = vperm.xlu0 %395, %v108
    %v397 = vpop.permute.xlu0 %396
    %400 = vset.pattern.permute.xlu0 0
    %401 = vperm.xlu0 %400, %v109
    %v402 = vpop.permute.xlu0 %401
    %405 = vset.pattern.permute.xlu0 0
    %406 = vperm.xlu0 %405, %v110
    %v407 = vpop.permute.xlu0 %406
    %410 = vset.pattern.permute.xlu0 0
    %411 = vperm.xlu0 %410, %v111
    %v412 = vpop.permute.xlu0 %411
    %415 = vset.pattern.permute.xlu0 0
    %416 = vperm.xlu0 %415, %v112
    %v417 = vpop.permute.xlu0 %416
    %420 = vset.pattern.permute.xlu0 0
    %421 = vperm.xlu0 %420, %v113
    %v422 = vpop.permute.xlu0 %421
    %425 = vset.pattern.permute.xlu0 0
    %426 = vperm.xlu0 %425, %v114
    %v427 = vpop.permute.xlu0 %426
    %430 = vset.pattern.permute.xlu0 0
    %431 = vperm.xlu0 %430, %v115
    %v432 = vpop.permute.xlu0 %431
    %435 = vset.pattern.permute.xlu0 0
    %436 = vperm.xlu0 %435, %v116
    %v437 = vpop.permute.xlu0 %436
    %440 = vset.pattern.permute.xlu0 0
    %441 = vperm.xlu0 %440, %v117
    %v442 = vpop.permute.xlu0 %441
    %445 = vset.pattern.permute.xlu0 0
    %446 = vperm.xlu0 %445, %v118
    %v447 = vpop.permute.xlu0 %446
    %450 = vset.pattern.permute.xlu0 0
    %451 = vperm.xlu0 %450, %v119
    %v452 = vpop.permute.xlu0 %451
    %455 = vset.pattern.permute.xlu0 0
    %456 = vperm.xlu0 %455, %v120
    %v457 = vpop.permute.xlu0 %456
    %460 = vset.pattern.permute.xlu0 0
    %461 = vperm.xlu0 %460, %v121
    %v462 = vpop.permute.xlu0 %461
    %465 = vset.pattern.permute.xlu0 0
    %466 = vperm.xlu0 %465, %v122
    %v467 = vpop.permute.xlu0 %466
    %470 = vset.pattern.permute.xlu0 0
    %471 = vperm.xlu0 %470, %v123
    %v472 = vpop.permute.xlu0 %471
    %475 = vset.pattern.permute.xlu0 0
    %476 = vperm.xlu0 %475, %v124
    %v477 = vpop.permute.xlu0 %476
    %480 = vset.pattern.permute.xlu0 0
    %481 = vperm.xlu0 %480, %v125
    %v482 = vpop.permute.xlu0 %481
    %485 = vset.pattern.permute.xlu0 0
    %486 = vperm.xlu0 %485, %v126
    %v487 = vpop.permute.xlu0 %486
    %490 = vset.pattern.permute.xlu0 0
    %491 = vperm.xlu0 %490, %v127
    %v492 = vpop.permute.xlu0 %491
    %495 = vset.pattern.permute.xlu0 0
    %496 = vperm.xlu0 %495, %v128
    %v497 = vpop.permute.xlu0 %496
    %500 = vset.pattern.permute.xlu0 0
    %501 = vperm.xlu0 %500, %v129
    %v502 = vpop.permute.xlu0 %501
    %505 = vset.pattern.permute.xlu0 0
    %506 = vperm.xlu0 %505, %v130
    %v507 = vpop.permute.xlu0 %506
    %510 = vset.pattern.permute.xlu0 0
    %511 = vperm.xlu0 %510, %v131
    %v512 = vpop.permute.xlu0 %511
    %515 = vset.pattern.permute.xlu0 0
    %516 = vperm.xlu0 %515, %v132
    %v517 = vpop.permute.xlu0 %516
    %520 = vset.pattern.permute.xlu0 0
    %521 = vperm.xlu0 %520, %v133
    %v522 = vpop.permute.xlu0 %521
    %525 = vset.pattern.permute.xlu0 0
    %526 = vperm.xlu0 %525, %v134
    %v527 = vpop.permute.xlu0 %526
    %530 = vset.pattern.permute.xlu0 0
    %531 = vperm.xlu0 %530, %v135
    %v532 = vpop.permute.xlu0 %531
    %v535 = vperm.slane %v200, 0
    %v537 = vmul.f32 %v217, %v535
    %v538 = vmul.f32 %v222, %v535
    %v539 = vmul.f32 %v227, %v535
    %v540 = vmul.f32 %v232, %v535
    %v541 = vmul.f32 %v237, %v535
    %v542 = vmul.f32 %v242, %v535
    %v543 = vmul.f32 %v247, %v535
    %v544 = vmul.f32 %v252, %v535
    %v545 = vmul.f32 %v257, %v535
    %v546 = vmul.f32 %v262, %v535
    %v547 = vmul.f32 %v267, %v535
    %v548 = vmul.f32 %v272, %v535
    %v549 = vmul.f32 %v277, %v535
    %v550 = vmul.f32 %v282, %v535
    %v551 = vmul.f32 %v287, %v535
    %v552 = vmul.f32 %v292, %v535
    %v553 = vmul.f32 %v297, %v535
    %v554 = vmul.f32 %v302, %v535
    %v555 = vmul.f32 %v307, %v535
    %v556 = vmul.f32 %v312, %v535
    %v557 = vmul.f32 %v317, %v535
    %v558 = vmul.f32 %v322, %v535
    %v559 = vmul.f32 %v327, %v535
    %v560 = vmul.f32 %v332, %v535
    %v561 = vmul.f32 %v337, %v535
    %v562 = vmul.f32 %v342, %v535
    %v563 = vmul.f32 %v347, %v535
    %v564 = vmul.f32 %v352, %v535
    %v565 = vmul.f32 %v357, %v535
    %v566 = vmul.f32 %v362, %v535
    %v567 = vmul.f32 %v367, %v535
    %v568 = vmul.f32 %v372, %v535
    %v569 = vmul.f32 %v377, %v535
    %v570 = vmul.f32 %v382, %v535
    %v571 = vmul.f32 %v387, %v535
    %v572 = vmul.f32 %v392, %v535
    %v573 = vmul.f32 %v397, %v535
    %v574 = vmul.f32 %v402, %v535
    %v575 = vmul.f32 %v407, %v535
    %v576 = vmul.f32 %v412, %v535
    %v577 = vmul.f32 %v417, %v535
    %v578 = vmul.f32 %v422, %v535
    %v579 = vmul.f32 %v427, %v535
    %v580 = vmul.f32 %v432, %v535
    %v581 = vmul.f32 %v437, %v535
    %v582 = vmul.f32 %v442, %v535
    %v583 = vmul.f32 %v447, %v535
    %v584 = vmul.f32 %v452, %v535
    %v585 = vmul.f32 %v457, %v535
    %v586 = vmul.f32 %v462, %v535
    %v587 = vmul.f32 %v467, %v535
    %v588 = vmul.f32 %v472, %v535
    %v589 = vmul.f32 %v477, %v535
    %v590 = vmul.f32 %v482, %v535
    %v591 = vmul.f32 %v487, %v535
    %v592 = vmul.f32 %v492, %v535
    %v593 = vmul.f32 %v497, %v535
    %v594 = vmul.f32 %v502, %v535
    %v595 = vmul.f32 %v507, %v535
    %v596 = vmul.f32 %v512, %v535
    %v597 = vmul.f32 %v517, %v535
    %v598 = vmul.f32 %v522, %v535
    %v599 = vmul.f32 %v527, %v535
    %v600 = vmul.f32 %v532, %v535
    %v602 = vperm.slane %v201, 0
    %v604 = vadd.f32 %v537, %v602
    %v605 = vadd.f32 %v538, %v602
    %v606 = vadd.f32 %v539, %v602
    %v607 = vadd.f32 %v540, %v602
    %v608 = vadd.f32 %v541, %v602
    %v609 = vadd.f32 %v542, %v602
    %v610 = vadd.f32 %v543, %v602
    %v611 = vadd.f32 %v544, %v602
    %v612 = vadd.f32 %v545, %v602
    %v613 = vadd.f32 %v546, %v602
    %v614 = vadd.f32 %v547, %v602
    %v615 = vadd.f32 %v548, %v602
    %v616 = vadd.f32 %v549, %v602
    %v617 = vadd.f32 %v550, %v602
    %v618 = vadd.f32 %v551, %v602
    %v619 = vadd.f32 %v552, %v602
    %v620 = vadd.f32 %v553, %v602
    %v621 = vadd.f32 %v554, %v602
    %v622 = vadd.f32 %v555, %v602
    %v623 = vadd.f32 %v556, %v602
    %v624 = vadd.f32 %v557, %v602
    %v625 = vadd.f32 %v558, %v602
    %v626 = vadd.f32 %v559, %v602
    %v627 = vadd.f32 %v560, %v602
    %v628 = vadd.f32 %v561, %v602
    %v629 = vadd.f32 %v562, %v602
    %v630 = vadd.f32 %v563, %v602
    %v631 = vadd.f32 %v564, %v602
    %v632 = vadd.f32 %v565, %v602
    %v633 = vadd.f32 %v566, %v602
    %v634 = vadd.f32 %v567, %v602
    %v635 = vadd.f32 %v568, %v602
    %v636 = vadd.f32 %v569, %v602
    %v637 = vadd.f32 %v570, %v602
    %v638 = vadd.f32 %v571, %v602
    %v639 = vadd.f32 %v572, %v602
    %v640 = vadd.f32 %v573, %v602
    %v641 = vadd.f32 %v574, %v602
    %v642 = vadd.f32 %v575, %v602
    %v643 = vadd.f32 %v576, %v602
    %v644 = vadd.f32 %v577, %v602
    %v645 = vadd.f32 %v578, %v602
    %v646 = vadd.f32 %v579, %v602
    %v647 = vadd.f32 %v580, %v602
    %v648 = vadd.f32 %v581, %v602
    %v649 = vadd.f32 %v582, %v602
    %v650 = vadd.f32 %v583, %v602
    %v651 = vadd.f32 %v584, %v602
    %v652 = vadd.f32 %v585, %v602
    %v653 = vadd.f32 %v586, %v602
    %v654 = vadd.f32 %v587, %v602
    %v655 = vadd.f32 %v588, %v602
    %v656 = vadd.f32 %v589, %v602
    %v657 = vadd.f32 %v590, %v602
    %v658 = vadd.f32 %v591, %v602
    %v659 = vadd.f32 %v592, %v602
    %v660 = vadd.f32 %v593, %v602
    %v661 = vadd.f32 %v594, %v602
    %v662 = vadd.f32 %v595, %v602
    %v663 = vadd.f32 %v596, %v602
    %v664 = vadd.f32 %v597, %v602
    %v665 = vadd.f32 %v598, %v602
    %v666 = vadd.f32 %v599, %v602
    %v667 = vadd.f32 %v600, %v602
    %v668 = vmax.f32 %v604, 0.0
    %v669 = vmax.f32 %v605, 0.0
    %v670 = vmax.f32 %v606, 0.0
    %v671 = vmax.f32 %v607, 0.0
    %v672 = vmax.f32 %v608, 0.0
    %v673 = vmax.f32 %v609, 0.0
    %v674 = vmax.f32 %v610, 0.0
    %v675 = vmax.f32 %v611, 0.0
    %v676 = vmax.f32 %v612, 0.0
    %v677 = vmax.f32 %v613, 0.0
    %v678 = vmax.f32 %v614, 0.0
    %v679 = vmax.f32 %v615, 0.0
    %v680 = vmax.f32 %v616, 0.0
    %v681 = vmax.f32 %v617, 0.0
    %v682 = vmax.f32 %v618, 0.0
    %v683 = vmax.f32 %v619, 0.0
    %v684 = vmax.f32 %v620, 0.0
    %v685 = vmax.f32 %v621, 0.0
    %v686 = vmax.f32 %v622, 0.0
    %v687 = vmax.f32 %v623, 0.0
    %v688 = vmax.f32 %v624, 0.0
    %v689 = vmax.f32 %v625, 0.0
    %v690 = vmax.f32 %v626, 0.0
    %v691 = vmax.f32 %v627, 0.0
    %v692 = vmax.f32 %v628, 0.0
    %v693 = vmax.f32 %v629, 0.0
    %v694 = vmax.f32 %v630, 0.0
    %v695 = vmax.f32 %v631, 0.0
    %v696 = vmax.f32 %v632, 0.0
    %v697 = vmax.f32 %v633, 0.0
    %v698 = vmax.f32 %v634, 0.0
    %v699 = vmax.f32 %v635, 0.0
    %v700 = vmax.f32 %v636, 0.0
    %v701 = vmax.f32 %v637, 0.0
    %v702 = vmax.f32 %v638, 0.0
    %v703 = vmax.f32 %v639, 0.0
    %v704 = vmax.f32 %v640, 0.0
    %v705 = vmax.f32 %v641, 0.0
    %v706 = vmax.f32 %v642, 0.0
    %v707 = vmax.f32 %v643, 0.0
    %v708 = vmax.f32 %v644, 0.0
    %v709 = vmax.f32 %v645, 0.0
    %v710 = vmax.f32 %v646, 0.0
    %v711 = vmax.f32 %v647, 0.0
    %v712 = vmax.f32 %v648, 0.0
    %v713 = vmax.f32 %v649, 0.0
    %v714 = vmax.f32 %v650, 0.0
    %v715 = vmax.f32 %v651, 0.0
    %v716 = vmax.f32 %v652, 0.0
    %v717 = vmax.f32 %v653, 0.0
    %v718 = vmax.f32 %v654, 0.0
    %v719 = vmax.f32 %v655, 0.0
    %v720 = vmax.f32 %v656, 0.0
    %v721 = vmax.f32 %v657, 0.0
    %v722 = vmax.f32 %v658, 0.0
    %v723 = vmax.f32 %v659, 0.0
    %v724 = vmax.f32 %v660, 0.0
    %v725 = vmax.f32 %v661, 0.0
    %v726 = vmax.f32 %v662, 0.0
    %v727 = vmax.f32 %v663, 0.0
    %v728 = vmax.f32 %v664, 0.0
    %v729 = vmax.f32 %v665, 0.0
    %v730 = vmax.f32 %v666, 0.0
    %v731 = vmax.f32 %v667, 0.0
    %v733 = vperm.slane %v206, 0
    %vm735 = vcmask 261120
    %v737 = vsel %vm735, %v668, 0
    %v740 = vsel %vm735, %v669, 0
    %v743 = vsel %vm735, %v670, 0
    %v746 = vsel %vm735, %v671, 0
    %v749 = vsel %vm735, %v672, 0
    %v752 = vsel %vm735, %v673, 0
    %v755 = vsel %vm735, %v674, 0
    %v758 = vsel %vm735, %v675, 0
    %v761 = vsel %vm735, %v676, 0
    %v764 = vsel %vm735, %v677, 0
    %v767 = vsel %vm735, %v678, 0
    %v770 = vsel %vm735, %v679, 0
    %v773 = vsel %vm735, %v680, 0
    %v776 = vsel %vm735, %v681, 0
    %v779 = vsel %vm735, %v682, 0
    %v782 = vsel %vm735, %v683, 0
    %v785 = vsel %vm735, %v684, 0
    %v788 = vsel %vm735, %v685, 0
    %v791 = vsel %vm735, %v686, 0
    %v794 = vsel %vm735, %v687, 0
    %v797 = vsel %vm735, %v688, 0
    %v800 = vsel %vm735, %v689, 0
    %v803 = vsel %vm735, %v690, 0
    %v806 = vsel %vm735, %v691, 0
    %v809 = vsel %vm735, %v692, 0
    %v812 = vsel %vm735, %v693, 0
    %v815 = vsel %vm735, %v694, 0
    %v818 = vsel %vm735, %v695, 0
    %v821 = vsel %vm735, %v696, 0
    %v824 = vsel %vm735, %v697, 0
    %v827 = vsel %vm735, %v698, 0
    %v830 = vsel %vm735, %v699, 0
    %v833 = vsel %vm735, %v700, 0
    %v836 = vsel %vm735, %v701, 0
    %v839 = vsel %vm735, %v702, 0
    %v842 = vsel %vm735, %v703, 0
    %v845 = vsel %vm735, %v704, 0
    %v848 = vsel %vm735, %v705, 0
    %v851 = vsel %vm735, %v706, 0
    %v854 = vsel %vm735, %v707, 0
    %v857 = vsel %vm735, %v708, 0
    %v860 = vsel %vm735, %v709, 0
    %v863 = vsel %vm735, %v710, 0
    %v866 = vsel %vm735, %v711, 0
    %v869 = vsel %vm735, %v712, 0
    %v872 = vsel %vm735, %v713, 0
    %v875 = vsel %vm735, %v714, 0
    %v878 = vsel %vm735, %v715, 0
    %v881 = vsel %vm735, %v716, 0
    %v884 = vsel %vm735, %v717, 0
    %v887 = vsel %vm735, %v718, 0
    %v890 = vsel %vm735, %v719, 0
    %v893 = vsel %vm735, %v720, 0
    %v896 = vsel %vm735, %v721, 0
    %v899 = vsel %vm735, %v722, 0
    %v902 = vsel %vm735, %v723, 0
    %v905 = vsel %vm735, %v724, 0
    %v908 = vsel %vm735, %v725, 0
    %v911 = vsel %vm735, %v726, 0
    %v914 = vsel %vm735, %v727, 0
    %v917 = vsel %vm735, %v728, 0
    %v920 = vsel %vm735, %v729, 0
    %v923 = vsel %vm735, %v730, 0
    %v926 = vsel %vm735, %v731, 0
    %928 = vmatpush.msra.mxu0 0.0
    %929 = vmatpush.msra.mxu0 0.0
    %930 = vmatpush.msra.mxu0 0.0
    %931 = vmatpush.msra.mxu0 0.0
    %932 = vmatpush.msra.mxu0 0.0
    %933 = vmatpush.msra.mxu0 0.0
    %934 = vmatpush.msra.mxu0 0.0
    %935 = vmatpush.msra.mxu0 0.0
    %936 = vmatpush.msra.mxu0 0.0
    %937 = vmatpush.msra.mxu0 0.0
    %938 = vmatpush.msra.mxu0 0.0
    %939 = vmatpush.msra.mxu0 0.0
    %940 = vmatpush.msra.mxu0 %v205
    %941 = vmatpush.msra.mxu0 %v204
    %942 = vmatpush.msra.mxu0 %v203
    %943 = vmatpush.msra.mxu0 %v202
    %944 = vmatmul.f32.gmra.mxu0 %v737
    %v945 = vpop.f32.mrf.mxu0
    %v946 = vadd.f32 %v733, %v945
    %947 = vmatmul.f32.gmra.mxu0 %v740
    %v948 = vpop.f32.mrf.mxu0
    %v949 = vadd.f32 %v733, %v948
    %950 = vmatmul.f32.gmra.mxu0 %v743
    %v951 = vpop.f32.mrf.mxu0
    %v952 = vadd.f32 %v733, %v951
    %953 = vmatmul.f32.gmra.mxu0 %v746
    %v954 = vpop.f32.mrf.mxu0
    %v955 = vadd.f32 %v733, %v954
    %956 = vmatmul.f32.gmra.mxu0 %v749
    %v957 = vpop.f32.mrf.mxu0
    %v958 = vadd.f32 %v733, %v957
    %959 = vmatmul.f32.gmra.mxu0 %v752
    %v960 = vpop.f32.mrf.mxu0
    %v961 = vadd.f32 %v733, %v960
    %962 = vmatmul.f32.gmra.mxu0 %v755
    %v963 = vpop.f32.mrf.mxu0
    %v964 = vadd.f32 %v733, %v963
    %965 = vmatmul.f32.gmra.mxu0 %v758
    %v966 = vpop.f32.mrf.mxu0
    %v967 = vadd.f32 %v733, %v966
    %968 = vmatmul.f32.gmra.mxu0 %v761
    %v969 = vpop.f32.mrf.mxu0
    %v970 = vadd.f32 %v733, %v969
    %971 = vmatmul.f32.gmra.mxu0 %v764
    %v972 = vpop.f32.mrf.mxu0
    %v973 = vadd.f32 %v733, %v972
    %974 = vmatmul.f32.gmra.mxu0 %v767
    %v975 = vpop.f32.mrf.mxu0
    %v976 = vadd.f32 %v733, %v975
    %977 = vmatmul.f32.gmra.mxu0 %v770
    %v978 = vpop.f32.mrf.mxu0
    %v979 = vadd.f32 %v733, %v978
    %980 = vmatmul.f32.gmra.mxu0 %v773
    %v981 = vpop.f32.mrf.mxu0
    %v982 = vadd.f32 %v733, %v981
    %983 = vmatmul.f32.gmra.mxu0 %v776
    %v984 = vpop.f32.mrf.mxu0
    %v985 = vadd.f32 %v733, %v984
    %986 = vmatmul.f32.gmra.mxu0 %v779
    %v987 = vpop.f32.mrf.mxu0
    %v988 = vadd.f32 %v733, %v987
    %989 = vmatmul.f32.gmra.mxu0 %v782
    %v990 = vpop.f32.mrf.mxu0
    %v991 = vadd.f32 %v733, %v990
    %992 = vmatmul.f32.gmra.mxu0 %v785
    %v993 = vpop.f32.mrf.mxu0
    %v994 = vadd.f32 %v733, %v993
    %995 = vmatmul.f32.gmra.mxu0 %v788
    %v996 = vpop.f32.mrf.mxu0
    %v997 = vadd.f32 %v733, %v996
    %998 = vmatmul.f32.gmra.mxu0 %v791
    %v999 = vpop.f32.mrf.mxu0
    %v1000 = vadd.f32 %v733, %v999
    %1001 = vmatmul.f32.gmra.mxu0 %v794
    %v1002 = vpop.f32.mrf.mxu0
    %v1003 = vadd.f32 %v733, %v1002
    %1004 = vmatmul.f32.gmra.mxu0 %v797
    %v1005 = vpop.f32.mrf.mxu0
    %v1006 = vadd.f32 %v733, %v1005
    %1007 = vmatmul.f32.gmra.mxu0 %v800
    %v1008 = vpop.f32.mrf.mxu0
    %v1009 = vadd.f32 %v733, %v1008
    %1010 = vmatmul.f32.gmra.mxu0 %v803
    %v1011 = vpop.f32.mrf.mxu0
    %v1012 = vadd.f32 %v733, %v1011
    %1013 = vmatmul.f32.gmra.mxu0 %v806
    %v1014 = vpop.f32.mrf.mxu0
    %v1015 = vadd.f32 %v733, %v1014
    %1016 = vmatmul.f32.gmra.mxu0 %v809
    %v1017 = vpop.f32.mrf.mxu0
    %v1018 = vadd.f32 %v733, %v1017
    %1019 = vmatmul.f32.gmra.mxu0 %v812
    %v1020 = vpop.f32.mrf.mxu0
    %v1021 = vadd.f32 %v733, %v1020
    %1022 = vmatmul.f32.gmra.mxu0 %v815
    %v1023 = vpop.f32.mrf.mxu0
    %v1024 = vadd.f32 %v733, %v1023
    %1025 = vmatmul.f32.gmra.mxu0 %v818
    %v1026 = vpop.f32.mrf.mxu0
    %v1027 = vadd.f32 %v733, %v1026
    %1028 = vmatmul.f32.gmra.mxu0 %v821
    %v1029 = vpop.f32.mrf.mxu0
    %v1030 = vadd.f32 %v733, %v1029
    %1031 = vmatmul.f32.gmra.mxu0 %v824
    %v1032 = vpop.f32.mrf.mxu0
    %v1033 = vadd.f32 %v733, %v1032
    %1034 = vmatmul.f32.gmra.mxu0 %v827
    %v1035 = vpop.f32.mrf.mxu0
    %v1036 = vadd.f32 %v733, %v1035
    %1037 = vmatmul.f32.gmra.mxu0 %v830
    %v1038 = vpop.f32.mrf.mxu0
    %v1039 = vadd.f32 %v733, %v1038
    %1040 = vmatmul.f32.gmra.mxu0 %v833
    %v1041 = vpop.f32.mrf.mxu0
    %v1042 = vadd.f32 %v733, %v1041
    %1043 = vmatmul.f32.gmra.mxu0 %v836
    %v1044 = vpop.f32.mrf.mxu0
    %v1045 = vadd.f32 %v733, %v1044
    %1046 = vmatmul.f32.gmra.mxu0 %v839
    %v1047 = vpop.f32.mrf.mxu0
    %v1048 = vadd.f32 %v733, %v1047
    %1049 = vmatmul.f32.gmra.mxu0 %v842
    %v1050 = vpop.f32.mrf.mxu0
    %v1051 = vadd.f32 %v733, %v1050
    %1052 = vmatmul.f32.gmra.mxu0 %v845
    %v1053 = vpop.f32.mrf.mxu0
    %v1054 = vadd.f32 %v733, %v1053
    %1055 = vmatmul.f32.gmra.mxu0 %v848
    %v1056 = vpop.f32.mrf.mxu0
    %v1057 = vadd.f32 %v733, %v1056
    %1058 = vmatmul.f32.gmra.mxu0 %v851
    %v1059 = vpop.f32.mrf.mxu0
    %v1060 = vadd.f32 %v733, %v1059
    %1061 = vmatmul.f32.gmra.mxu0 %v854
    %v1062 = vpop.f32.mrf.mxu0
    %v1063 = vadd.f32 %v733, %v1062
    %1064 = vmatmul.f32.gmra.mxu0 %v857
    %v1065 = vpop.f32.mrf.mxu0
    %v1066 = vadd.f32 %v733, %v1065
    %1067 = vmatmul.f32.gmra.mxu0 %v860
    %v1068 = vpop.f32.mrf.mxu0
    %v1069 = vadd.f32 %v733, %v1068
    %1070 = vmatmul.f32.gmra.mxu0 %v863
    %v1071 = vpop.f32.mrf.mxu0
    %v1072 = vadd.f32 %v733, %v1071
    %1073 = vmatmul.f32.gmra.mxu0 %v866
    %v1074 = vpop.f32.mrf.mxu0
    %v1075 = vadd.f32 %v733, %v1074
    %1076 = vmatmul.f32.gmra.mxu0 %v869
    %v1077 = vpop.f32.mrf.mxu0
    %v1078 = vadd.f32 %v733, %v1077
    %1079 = vmatmul.f32.gmra.mxu0 %v872
    %v1080 = vpop.f32.mrf.mxu0
    %v1081 = vadd.f32 %v733, %v1080
    %1082 = vmatmul.f32.gmra.mxu0 %v875
    %v1083 = vpop.f32.mrf.mxu0
    %v1084 = vadd.f32 %v733, %v1083
    %1085 = vmatmul.f32.gmra.mxu0 %v878
    %v1086 = vpop.f32.mrf.mxu0
    %v1087 = vadd.f32 %v733, %v1086
    %1088 = vmatmul.f32.gmra.mxu0 %v881
    %v1089 = vpop.f32.mrf.mxu0
    %v1090 = vadd.f32 %v733, %v1089
    %1091 = vmatmul.f32.gmra.mxu0 %v884
    %v1092 = vpop.f32.mrf.mxu0
    %v1093 = vadd.f32 %v733, %v1092
    %1094 = vmatmul.f32.gmra.mxu0 %v887
    %v1095 = vpop.f32.mrf.mxu0
    %v1096 = vadd.f32 %v733, %v1095
    %1097 = vmatmul.f32.gmra.mxu0 %v890
    %v1098 = vpop.f32.mrf.mxu0
    %v1099 = vadd.f32 %v733, %v1098
    %1100 = vmatmul.f32.gmra.mxu0 %v893
    %v1101 = vpop.f32.mrf.mxu0
    %v1102 = vadd.f32 %v733, %v1101
    %1103 = vmatmul.f32.gmra.mxu0 %v896
    %v1104 = vpop.f32.mrf.mxu0
    %v1105 = vadd.f32 %v733, %v1104
    %1106 = vmatmul.f32.gmra.mxu0 %v899
    %v1107 = vpop.f32.mrf.mxu0
    %v1108 = vadd.f32 %v733, %v1107
    %1109 = vmatmul.f32.gmra.mxu0 %v902
    %v1110 = vpop.f32.mrf.mxu0
    %v1111 = vadd.f32 %v733, %v1110
    %1112 = vmatmul.f32.gmra.mxu0 %v905
    %v1113 = vpop.f32.mrf.mxu0
    %v1114 = vadd.f32 %v733, %v1113
    %1115 = vmatmul.f32.gmra.mxu0 %v908
    %v1116 = vpop.f32.mrf.mxu0
    %v1117 = vadd.f32 %v733, %v1116
    %1118 = vmatmul.f32.gmra.mxu0 %v911
    %v1119 = vpop.f32.mrf.mxu0
    %v1120 = vadd.f32 %v733, %v1119
    %1121 = vmatmul.f32.gmra.mxu0 %v914
    %v1122 = vpop.f32.mrf.mxu0
    %v1123 = vadd.f32 %v733, %v1122
    %1124 = vmatmul.f32.gmra.mxu0 %v917
    %v1125 = vpop.f32.mrf.mxu0
    %v1126 = vadd.f32 %v733, %v1125
    %1127 = vmatmul.f32.gmra.mxu0 %v920
    %v1128 = vpop.f32.mrf.mxu0
    %v1129 = vadd.f32 %v733, %v1128
    %1130 = vmatmul.f32.gmra.mxu0 %v923
    %v1131 = vpop.f32.mrf.mxu0
    %v1132 = vadd.f32 %v733, %v1131
    %1133 = vmatmul.f32.gmra.mxu0 %v926
    %v1134 = vpop.f32.mrf.mxu0
    %v1135 = vadd.f32 %v733, %v1134
    %1136 = vdwg.mxu0
    %1138 = vset.pattern.permute.xlu0 0
    %1139 = vperm.xlu0 %1138, %v136
    %v1140 = vpop.permute.xlu0 %1139
    %1143 = vset.pattern.permute.xlu0 0
    %1144 = vperm.xlu0 %1143, %v137
    %v1145 = vpop.permute.xlu0 %1144
    %1148 = vset.pattern.permute.xlu0 0
    %1149 = vperm.xlu0 %1148, %v138
    %v1150 = vpop.permute.xlu0 %1149
    %1153 = vset.pattern.permute.xlu0 0
    %1154 = vperm.xlu0 %1153, %v139
    %v1155 = vpop.permute.xlu0 %1154
    %1158 = vset.pattern.permute.xlu0 0
    %1159 = vperm.xlu0 %1158, %v140
    %v1160 = vpop.permute.xlu0 %1159
    %1163 = vset.pattern.permute.xlu0 0
    %1164 = vperm.xlu0 %1163, %v141
    %v1165 = vpop.permute.xlu0 %1164
    %1168 = vset.pattern.permute.xlu0 0
    %1169 = vperm.xlu0 %1168, %v142
    %v1170 = vpop.permute.xlu0 %1169
    %1173 = vset.pattern.permute.xlu0 0
    %1174 = vperm.xlu0 %1173, %v143
    %v1175 = vpop.permute.xlu0 %1174
    %1178 = vset.pattern.permute.xlu0 0
    %1179 = vperm.xlu0 %1178, %v144
    %v1180 = vpop.permute.xlu0 %1179
    %1183 = vset.pattern.permute.xlu0 0
    %1184 = vperm.xlu0 %1183, %v145
    %v1185 = vpop.permute.xlu0 %1184
    %1188 = vset.pattern.permute.xlu0 0
    %1189 = vperm.xlu0 %1188, %v146
    %v1190 = vpop.permute.xlu0 %1189
    %1193 = vset.pattern.permute.xlu0 0
    %1194 = vperm.xlu0 %1193, %v147
    %v1195 = vpop.permute.xlu0 %1194
    %1198 = vset.pattern.permute.xlu0 0
    %1199 = vperm.xlu0 %1198, %v148
    %v1200 = vpop.permute.xlu0 %1199
    %1203 = vset.pattern.permute.xlu0 0
    %1204 = vperm.xlu0 %1203, %v149
    %v1205 = vpop.permute.xlu0 %1204
    %1208 = vset.pattern.permute.xlu0 0
    %1209 = vperm.xlu0 %1208, %v150
    %v1210 = vpop.permute.xlu0 %1209
    %1213 = vset.pattern.permute.xlu0 0
    %1214 = vperm.xlu0 %1213, %v151
    %v1215 = vpop.permute.xlu0 %1214
    %1218 = vset.pattern.permute.xlu0 0
    %1219 = vperm.xlu0 %1218, %v152
    %v1220 = vpop.permute.xlu0 %1219
    %1223 = vset.pattern.permute.xlu0 0
    %1224 = vperm.xlu0 %1223, %v153
    %v1225 = vpop.permute.xlu0 %1224
    %1228 = vset.pattern.permute.xlu0 0
    %1229 = vperm.xlu0 %1228, %v154
    %v1230 = vpop.permute.xlu0 %1229
    %1233 = vset.pattern.permute.xlu0 0
    %1234 = vperm.xlu0 %1233, %v155
    %v1235 = vpop.permute.xlu0 %1234
    %1238 = vset.pattern.permute.xlu0 0
    %1239 = vperm.xlu0 %1238, %v156
    %v1240 = vpop.permute.xlu0 %1239
    %1243 = vset.pattern.permute.xlu0 0
    %1244 = vperm.xlu0 %1243, %v157
    %v1245 = vpop.permute.xlu0 %1244
    %1248 = vset.pattern.permute.xlu0 0
    %1249 = vperm.xlu0 %1248, %v158
    %v1250 = vpop.permute.xlu0 %1249
    %1253 = vset.pattern.permute.xlu0 0
    %1254 = vperm.xlu0 %1253, %v159
    %v1255 = vpop.permute.xlu0 %1254
    %1258 = vset.pattern.permute.xlu0 0
    %1259 = vperm.xlu0 %1258, %v160
    %v1260 = vpop.permute.xlu0 %1259
    %1263 = vset.pattern.permute.xlu0 0
    %1264 = vperm.xlu0 %1263, %v161
    %v1265 = vpop.permute.xlu0 %1264
    %1268 = vset.pattern.permute.xlu0 0
    %1269 = vperm.xlu0 %1268, %v162
    %v1270 = vpop.permute.xlu0 %1269
    %1273 = vset.pattern.permute.xlu0 0
    %1274 = vperm.xlu0 %1273, %v163
    %v1275 = vpop.permute.xlu0 %1274
    %1278 = vset.pattern.permute.xlu0 0
    %1279 = vperm.xlu0 %1278, %v164
    %v1280 = vpop.permute.xlu0 %1279
    %1283 = vset.pattern.permute.xlu0 0
    %1284 = vperm.xlu0 %1283, %v165
    %v1285 = vpop.permute.xlu0 %1284
    %1288 = vset.pattern.permute.xlu0 0
    %1289 = vperm.xlu0 %1288, %v166
    %v1290 = vpop.permute.xlu0 %1289
    %1293 = vset.pattern.permute.xlu0 0
    %1294 = vperm.xlu0 %1293, %v167
    %v1295 = vpop.permute.xlu0 %1294
    %1298 = vset.pattern.permute.xlu0 0
    %1299 = vperm.xlu0 %1298, %v168
    %v1300 = vpop.permute.xlu0 %1299
    %1303 = vset.pattern.permute.xlu0 0
    %1304 = vperm.xlu0 %1303, %v169
    %v1305 = vpop.permute.xlu0 %1304
    %1308 = vset.pattern.permute.xlu0 0
    %1309 = vperm.xlu0 %1308, %v170
    %v1310 = vpop.permute.xlu0 %1309
    %1313 = vset.pattern.permute.xlu0 0
    %1314 = vperm.xlu0 %1313, %v171
    %v1315 = vpop.permute.xlu0 %1314
    %1318 = vset.pattern.permute.xlu0 0
    %1319 = vperm.xlu0 %1318, %v172
    %v1320 = vpop.permute.xlu0 %1319
    %1323 = vset.pattern.permute.xlu0 0
    %1324 = vperm.xlu0 %1323, %v173
    %v1325 = vpop.permute.xlu0 %1324
    %1328 = vset.pattern.permute.xlu0 0
    %1329 = vperm.xlu0 %1328, %v174
    %v1330 = vpop.permute.xlu0 %1329
    %1333 = vset.pattern.permute.xlu0 0
    %1334 = vperm.xlu0 %1333, %v175
    %v1335 = vpop.permute.xlu0 %1334
    %1338 = vset.pattern.permute.xlu0 0
    %1339 = vperm.xlu0 %1338, %v176
    %v1340 = vpop.permute.xlu0 %1339
    %1343 = vset.pattern.permute.xlu0 0
    %1344 = vperm.xlu0 %1343, %v177
    %v1345 = vpop.permute.xlu0 %1344
    %1348 = vset.pattern.permute.xlu0 0
    %1349 = vperm.xlu0 %1348, %v178
    %v1350 = vpop.permute.xlu0 %1349
    %1353 = vset.pattern.permute.xlu0 0
    %1354 = vperm.xlu0 %1353, %v179
    %v1355 = vpop.permute.xlu0 %1354
    %1358 = vset.pattern.permute.xlu0 0
    %1359 = vperm.xlu0 %1358, %v180
    %v1360 = vpop.permute.xlu0 %1359
    %1363 = vset.pattern.permute.xlu0 0
    %1364 = vperm.xlu0 %1363, %v181
    %v1365 = vpop.permute.xlu0 %1364
    %1368 = vset.pattern.permute.xlu0 0
    %1369 = vperm.xlu0 %1368, %v182
    %v1370 = vpop.permute.xlu0 %1369
    %1373 = vset.pattern.permute.xlu0 0
    %1374 = vperm.xlu0 %1373, %v183
    %v1375 = vpop.permute.xlu0 %1374
    %1378 = vset.pattern.permute.xlu0 0
    %1379 = vperm.xlu0 %1378, %v184
    %v1380 = vpop.permute.xlu0 %1379
    %1383 = vset.pattern.permute.xlu0 0
    %1384 = vperm.xlu0 %1383, %v185
    %v1385 = vpop.permute.xlu0 %1384
    %1388 = vset.pattern.permute.xlu0 0
    %1389 = vperm.xlu0 %1388, %v186
    %v1390 = vpop.permute.xlu0 %1389
    %1393 = vset.pattern.permute.xlu0 0
    %1394 = vperm.xlu0 %1393, %v187
    %v1395 = vpop.permute.xlu0 %1394
    %1398 = vset.pattern.permute.xlu0 0
    %1399 = vperm.xlu0 %1398, %v188
    %v1400 = vpop.permute.xlu0 %1399
    %1403 = vset.pattern.permute.xlu0 0
    %1404 = vperm.xlu0 %1403, %v189
    %v1405 = vpop.permute.xlu0 %1404
    %1408 = vset.pattern.permute.xlu0 0
    %1409 = vperm.xlu0 %1408, %v190
    %v1410 = vpop.permute.xlu0 %1409
    %1413 = vset.pattern.permute.xlu0 0
    %1414 = vperm.xlu0 %1413, %v191
    %v1415 = vpop.permute.xlu0 %1414
    %1418 = vset.pattern.permute.xlu0 0
    %1419 = vperm.xlu0 %1418, %v192
    %v1420 = vpop.permute.xlu0 %1419
    %1423 = vset.pattern.permute.xlu0 0
    %1424 = vperm.xlu0 %1423, %v193
    %v1425 = vpop.permute.xlu0 %1424
    %1428 = vset.pattern.permute.xlu0 0
    %1429 = vperm.xlu0 %1428, %v194
    %v1430 = vpop.permute.xlu0 %1429
    %1433 = vset.pattern.permute.xlu0 0
    %1434 = vperm.xlu0 %1433, %v195
    %v1435 = vpop.permute.xlu0 %1434
    %1438 = vset.pattern.permute.xlu0 0
    %1439 = vperm.xlu0 %1438, %v196
    %v1440 = vpop.permute.xlu0 %1439
    %1443 = vset.pattern.permute.xlu0 0
    %1444 = vperm.xlu0 %1443, %v197
    %v1445 = vpop.permute.xlu0 %1444
    %1448 = vset.pattern.permute.xlu0 0
    %1449 = vperm.xlu0 %1448, %v198
    %v1450 = vpop.permute.xlu0 %1449
    %1453 = vset.pattern.permute.xlu0 0
    %1454 = vperm.xlu0 %1453, %v199
    %v1455 = vpop.permute.xlu0 %1454
    %v1458 = vperm.slane %v207, 0
    %v1460 = vmul.f32 %v1140, %v1458
    %v1461 = vmul.f32 %v1145, %v1458
    %v1462 = vmul.f32 %v1150, %v1458
    %v1463 = vmul.f32 %v1155, %v1458
    %v1464 = vmul.f32 %v1160, %v1458
    %v1465 = vmul.f32 %v1165, %v1458
    %v1466 = vmul.f32 %v1170, %v1458
    %v1467 = vmul.f32 %v1175, %v1458
    %v1468 = vmul.f32 %v1180, %v1458
    %v1469 = vmul.f32 %v1185, %v1458
    %v1470 = vmul.f32 %v1190, %v1458
    %v1471 = vmul.f32 %v1195, %v1458
    %v1472 = vmul.f32 %v1200, %v1458
    %v1473 = vmul.f32 %v1205, %v1458
    %v1474 = vmul.f32 %v1210, %v1458
    %v1475 = vmul.f32 %v1215, %v1458
    %v1476 = vmul.f32 %v1220, %v1458
    %v1477 = vmul.f32 %v1225, %v1458
    %v1478 = vmul.f32 %v1230, %v1458
    %v1479 = vmul.f32 %v1235, %v1458
    %v1480 = vmul.f32 %v1240, %v1458
    %v1481 = vmul.f32 %v1245, %v1458
    %v1482 = vmul.f32 %v1250, %v1458
    %v1483 = vmul.f32 %v1255, %v1458
    %v1484 = vmul.f32 %v1260, %v1458
    %v1485 = vmul.f32 %v1265, %v1458
    %v1486 = vmul.f32 %v1270, %v1458
    %v1487 = vmul.f32 %v1275, %v1458
    %v1488 = vmul.f32 %v1280, %v1458
    %v1489 = vmul.f32 %v1285, %v1458
    %v1490 = vmul.f32 %v1290, %v1458
    %v1491 = vmul.f32 %v1295, %v1458
    %v1492 = vmul.f32 %v1300, %v1458
    %v1493 = vmul.f32 %v1305, %v1458
    %v1494 = vmul.f32 %v1310, %v1458
    %v1495 = vmul.f32 %v1315, %v1458
    %v1496 = vmul.f32 %v1320, %v1458
    %v1497 = vmul.f32 %v1325, %v1458
    %v1498 = vmul.f32 %v1330, %v1458
    %v1499 = vmul.f32 %v1335, %v1458
    %v1500 = vmul.f32 %v1340, %v1458
    %v1501 = vmul.f32 %v1345, %v1458
    %v1502 = vmul.f32 %v1350, %v1458
    %v1503 = vmul.f32 %v1355, %v1458
    %v1504 = vmul.f32 %v1360, %v1458
    %v1505 = vmul.f32 %v1365, %v1458
    %v1506 = vmul.f32 %v1370, %v1458
    %v1507 = vmul.f32 %v1375, %v1458
    %v1508 = vmul.f32 %v1380, %v1458
    %v1509 = vmul.f32 %v1385, %v1458
    %v1510 = vmul.f32 %v1390, %v1458
    %v1511 = vmul.f32 %v1395, %v1458
    %v1512 = vmul.f32 %v1400, %v1458
    %v1513 = vmul.f32 %v1405, %v1458
    %v1514 = vmul.f32 %v1410, %v1458
    %v1515 = vmul.f32 %v1415, %v1458
    %v1516 = vmul.f32 %v1420, %v1458
    %v1517 = vmul.f32 %v1425, %v1458
    %v1518 = vmul.f32 %v1430, %v1458
    %v1519 = vmul.f32 %v1435, %v1458
    %v1520 = vmul.f32 %v1440, %v1458
    %v1521 = vmul.f32 %v1445, %v1458
    %v1522 = vmul.f32 %v1450, %v1458
    %v1523 = vmul.f32 %v1455, %v1458
    %v1525 = vperm.slane %v208, 0
    %v1527 = vadd.f32 %v1460, %v1525
    %v1528 = vadd.f32 %v1461, %v1525
    %v1529 = vadd.f32 %v1462, %v1525
    %v1530 = vadd.f32 %v1463, %v1525
    %v1531 = vadd.f32 %v1464, %v1525
    %v1532 = vadd.f32 %v1465, %v1525
    %v1533 = vadd.f32 %v1466, %v1525
    %v1534 = vadd.f32 %v1467, %v1525
    %v1535 = vadd.f32 %v1468, %v1525
    %v1536 = vadd.f32 %v1469, %v1525
    %v1537 = vadd.f32 %v1470, %v1525
    %v1538 = vadd.f32 %v1471, %v1525
    %v1539 = vadd.f32 %v1472, %v1525
    %v1540 = vadd.f32 %v1473, %v1525
    %v1541 = vadd.f32 %v1474, %v1525
    %v1542 = vadd.f32 %v1475, %v1525
    %v1543 = vadd.f32 %v1476, %v1525
    %v1544 = vadd.f32 %v1477, %v1525
    %v1545 = vadd.f32 %v1478, %v1525
    %v1546 = vadd.f32 %v1479, %v1525
    %v1547 = vadd.f32 %v1480, %v1525
    %v1548 = vadd.f32 %v1481, %v1525
    %v1549 = vadd.f32 %v1482, %v1525
    %v1550 = vadd.f32 %v1483, %v1525
    %v1551 = vadd.f32 %v1484, %v1525
    %v1552 = vadd.f32 %v1485, %v1525
    %v1553 = vadd.f32 %v1486, %v1525
    %v1554 = vadd.f32 %v1487, %v1525
    %v1555 = vadd.f32 %v1488, %v1525
    %v1556 = vadd.f32 %v1489, %v1525
    %v1557 = vadd.f32 %v1490, %v1525
    %v1558 = vadd.f32 %v1491, %v1525
    %v1559 = vadd.f32 %v1492, %v1525
    %v1560 = vadd.f32 %v1493, %v1525
    %v1561 = vadd.f32 %v1494, %v1525
    %v1562 = vadd.f32 %v1495, %v1525
    %v1563 = vadd.f32 %v1496, %v1525
    %v1564 = vadd.f32 %v1497, %v1525
    %v1565 = vadd.f32 %v1498, %v1525
    %v1566 = vadd.f32 %v1499, %v1525
    %v1567 = vadd.f32 %v1500, %v1525
    %v1568 = vadd.f32 %v1501, %v1525
    %v1569 = vadd.f32 %v1502, %v1525
    %v1570 = vadd.f32 %v1503, %v1525
    %v1571 = vadd.f32 %v1504, %v1525
    %v1572 = vadd.f32 %v1505, %v1525
    %v1573 = vadd.f32 %v1506, %v1525
    %v1574 = vadd.f32 %v1507, %v1525
    %v1575 = vadd.f32 %v1508, %v1525
    %v1576 = vadd.f32 %v1509, %v1525
    %v1577 = vadd.f32 %v1510, %v1525
    %v1578 = vadd.f32 %v1511, %v1525
    %v1579 = vadd.f32 %v1512, %v1525
    %v1580 = vadd.f32 %v1513, %v1525
    %v1581 = vadd.f32 %v1514, %v1525
    %v1582 = vadd.f32 %v1515, %v1525
    %v1583 = vadd.f32 %v1516, %v1525
    %v1584 = vadd.f32 %v1517, %v1525
    %v1585 = vadd.f32 %v1518, %v1525
    %v1586 = vadd.f32 %v1519, %v1525
    %v1587 = vadd.f32 %v1520, %v1525
    %v1588 = vadd.f32 %v1521, %v1525
    %v1589 = vadd.f32 %v1522, %v1525
    %v1590 = vadd.f32 %v1523, %v1525
    %v1591 = vmax.f32 %v1527, 0.0
    %v1592 = vmax.f32 %v1528, 0.0
    %v1593 = vmax.f32 %v1529, 0.0
    %v1594 = vmax.f32 %v1530, 0.0
    %v1595 = vmax.f32 %v1531, 0.0
    %v1596 = vmax.f32 %v1532, 0.0
    %v1597 = vmax.f32 %v1533, 0.0
    %v1598 = vmax.f32 %v1534, 0.0
    %v1599 = vmax.f32 %v1535, 0.0
    %v1600 = vmax.f32 %v1536, 0.0
    %v1601 = vmax.f32 %v1537, 0.0
    %v1602 = vmax.f32 %v1538, 0.0
    %v1603 = vmax.f32 %v1539, 0.0
    %v1604 = vmax.f32 %v1540, 0.0
    %v1605 = vmax.f32 %v1541, 0.0
    %v1606 = vmax.f32 %v1542, 0.0
    %v1607 = vmax.f32 %v1543, 0.0
    %v1608 = vmax.f32 %v1544, 0.0
    %v1609 = vmax.f32 %v1545, 0.0
    %v1610 = vmax.f32 %v1546, 0.0
    %v1611 = vmax.f32 %v1547, 0.0
    %v1612 = vmax.f32 %v1548, 0.0
    %v1613 = vmax.f32 %v1549, 0.0
    %v1614 = vmax.f32 %v1550, 0.0
    %v1615 = vmax.f32 %v1551, 0.0
    %v1616 = vmax.f32 %v1552, 0.0
    %v1617 = vmax.f32 %v1553, 0.0
    %v1618 = vmax.f32 %v1554, 0.0
    %v1619 = vmax.f32 %v1555, 0.0
    %v1620 = vmax.f32 %v1556, 0.0
    %v1621 = vmax.f32 %v1557, 0.0
    %v1622 = vmax.f32 %v1558, 0.0
    %v1623 = vmax.f32 %v1559, 0.0
    %v1624 = vmax.f32 %v1560, 0.0
    %v1625 = vmax.f32 %v1561, 0.0
    %v1626 = vmax.f32 %v1562, 0.0
    %v1627 = vmax.f32 %v1563, 0.0
    %v1628 = vmax.f32 %v1564, 0.0
    %v1629 = vmax.f32 %v1565, 0.0
    %v1630 = vmax.f32 %v1566, 0.0
    %v1631 = vmax.f32 %v1567, 0.0
    %v1632 = vmax.f32 %v1568, 0.0
    %v1633 = vmax.f32 %v1569, 0.0
    %v1634 = vmax.f32 %v1570, 0.0
    %v1635 = vmax.f32 %v1571, 0.0
    %v1636 = vmax.f32 %v1572, 0.0
    %v1637 = vmax.f32 %v1573, 0.0
    %v1638 = vmax.f32 %v1574, 0.0
    %v1639 = vmax.f32 %v1575, 0.0
    %v1640 = vmax.f32 %v1576, 0.0
    %v1641 = vmax.f32 %v1577, 0.0
    %v1642 = vmax.f32 %v1578, 0.0
    %v1643 = vmax.f32 %v1579, 0.0
    %v1644 = vmax.f32 %v1580, 0.0
    %v1645 = vmax.f32 %v1581, 0.0
    %v1646 = vmax.f32 %v1582, 0.0
    %v1647 = vmax.f32 %v1583, 0.0
    %v1648 = vmax.f32 %v1584, 0.0
    %v1649 = vmax.f32 %v1585, 0.0
    %v1650 = vmax.f32 %v1586, 0.0
    %v1651 = vmax.f32 %v1587, 0.0
    %v1652 = vmax.f32 %v1588, 0.0
    %v1653 = vmax.f32 %v1589, 0.0
    %v1654 = vmax.f32 %v1590, 0.0
    %v1656 = vperm.slane %v213, 0
    %v1659 = vsel %vm735, %v1591, 0
    %v1662 = vsel %vm735, %v1592, 0
    %v1665 = vsel %vm735, %v1593, 0
    %v1668 = vsel %vm735, %v1594, 0
    %v1671 = vsel %vm735, %v1595, 0
    %v1674 = vsel %vm735, %v1596, 0
    %v1677 = vsel %vm735, %v1597, 0
    %v1680 = vsel %vm735, %v1598, 0
    %v1683 = vsel %vm735, %v1599, 0
    %v1686 = vsel %vm735, %v1600, 0
    %v1689 = vsel %vm735, %v1601, 0
    %v1692 = vsel %vm735, %v1602, 0
    %v1695 = vsel %vm735, %v1603, 0
    %v1698 = vsel %vm735, %v1604, 0
    %v1701 = vsel %vm735, %v1605, 0
    %v1704 = vsel %vm735, %v1606, 0
    %v1707 = vsel %vm735, %v1607, 0
    %v1710 = vsel %vm735, %v1608, 0
    %v1713 = vsel %vm735, %v1609, 0
    %v1716 = vsel %vm735, %v1610, 0
    %v1719 = vsel %vm735, %v1611, 0
    %v1722 = vsel %vm735, %v1612, 0
    %v1725 = vsel %vm735, %v1613, 0
    %v1728 = vsel %vm735, %v1614, 0
    %v1731 = vsel %vm735, %v1615, 0
    %v1734 = vsel %vm735, %v1616, 0
    %v1737 = vsel %vm735, %v1617, 0
    %v1740 = vsel %vm735, %v1618, 0
    %v1743 = vsel %vm735, %v1619, 0
    %v1746 = vsel %vm735, %v1620, 0
    %v1749 = vsel %vm735, %v1621, 0
    %v1752 = vsel %vm735, %v1622, 0
    %v1755 = vsel %vm735, %v1623, 0
    %v1758 = vsel %vm735, %v1624, 0
    %v1761 = vsel %vm735, %v1625, 0
    %v1764 = vsel %vm735, %v1626, 0
    %v1767 = vsel %vm735, %v1627, 0
    %v1770 = vsel %vm735, %v1628, 0
    %v1773 = vsel %vm735, %v1629, 0
    %v1776 = vsel %vm735, %v1630, 0
    %v1779 = vsel %vm735, %v1631, 0
    %v1782 = vsel %vm735, %v1632, 0
    %v1785 = vsel %vm735, %v1633, 0
    %v1788 = vsel %vm735, %v1634, 0
    %v1791 = vsel %vm735, %v1635, 0
    %v1794 = vsel %vm735, %v1636, 0
    %v1797 = vsel %vm735, %v1637, 0
    %v1800 = vsel %vm735, %v1638, 0
    %v1803 = vsel %vm735, %v1639, 0
    %v1806 = vsel %vm735, %v1640, 0
    %v1809 = vsel %vm735, %v1641, 0
    %v1812 = vsel %vm735, %v1642, 0
    %v1815 = vsel %vm735, %v1643, 0
    %v1818 = vsel %vm735, %v1644, 0
    %v1821 = vsel %vm735, %v1645, 0
    %v1824 = vsel %vm735, %v1646, 0
    %v1827 = vsel %vm735, %v1647, 0
    %v1830 = vsel %vm735, %v1648, 0
    %v1833 = vsel %vm735, %v1649, 0
    %v1836 = vsel %vm735, %v1650, 0
    %v1839 = vsel %vm735, %v1651, 0
    %v1842 = vsel %vm735, %v1652, 0
    %v1845 = vsel %vm735, %v1653, 0
    %v1848 = vsel %vm735, %v1654, 0
    %1850 = vmatpush.msra.mxu0 0.0
    %1851 = vmatpush.msra.mxu0 0.0
    %1852 = vmatpush.msra.mxu0 0.0
    %1853 = vmatpush.msra.mxu0 0.0
    %1854 = vmatpush.msra.mxu0 0.0
    %1855 = vmatpush.msra.mxu0 0.0
    %1856 = vmatpush.msra.mxu0 0.0
    %1857 = vmatpush.msra.mxu0 0.0
    %1858 = vmatpush.msra.mxu0 0.0
    %1859 = vmatpush.msra.mxu0 0.0
    %1860 = vmatpush.msra.mxu0 0.0
    %1861 = vmatpush.msra.mxu0 0.0
    %1862 = vmatpush.msra.mxu0 %v212
    %1863 = vmatpush.msra.mxu0 %v211
    %1864 = vmatpush.msra.mxu0 %v210
    %1865 = vmatpush.msra.mxu0 %v209
    %1866 = vmatmul.f32.gmra.mxu0 %v1659
    %v1867 = vpop.f32.mrf.mxu0
    %v1868 = vadd.f32 %v1656, %v1867
    %1869 = vmatmul.f32.gmra.mxu0 %v1662
    %v1870 = vpop.f32.mrf.mxu0
    %v1871 = vadd.f32 %v1656, %v1870
    %1872 = vmatmul.f32.gmra.mxu0 %v1665
    %v1873 = vpop.f32.mrf.mxu0
    %v1874 = vadd.f32 %v1656, %v1873
    %1875 = vmatmul.f32.gmra.mxu0 %v1668
    %v1876 = vpop.f32.mrf.mxu0
    %v1877 = vadd.f32 %v1656, %v1876
    %1878 = vmatmul.f32.gmra.mxu0 %v1671
    %v1879 = vpop.f32.mrf.mxu0
    %v1880 = vadd.f32 %v1656, %v1879
    %1881 = vmatmul.f32.gmra.mxu0 %v1674
    %v1882 = vpop.f32.mrf.mxu0
    %v1883 = vadd.f32 %v1656, %v1882
    %1884 = vmatmul.f32.gmra.mxu0 %v1677
    %v1885 = vpop.f32.mrf.mxu0
    %v1886 = vadd.f32 %v1656, %v1885
    %1887 = vmatmul.f32.gmra.mxu0 %v1680
    %v1888 = vpop.f32.mrf.mxu0
    %v1889 = vadd.f32 %v1656, %v1888
    %1890 = vmatmul.f32.gmra.mxu0 %v1683
    %v1891 = vpop.f32.mrf.mxu0
    %v1892 = vadd.f32 %v1656, %v1891
    %1893 = vmatmul.f32.gmra.mxu0 %v1686
    %v1894 = vpop.f32.mrf.mxu0
    %v1895 = vadd.f32 %v1656, %v1894
    %1896 = vmatmul.f32.gmra.mxu0 %v1689
    %v1897 = vpop.f32.mrf.mxu0
    %v1898 = vadd.f32 %v1656, %v1897
    %1899 = vmatmul.f32.gmra.mxu0 %v1692
    %v1900 = vpop.f32.mrf.mxu0
    %v1901 = vadd.f32 %v1656, %v1900
    %1902 = vmatmul.f32.gmra.mxu0 %v1695
    %v1903 = vpop.f32.mrf.mxu0
    %v1904 = vadd.f32 %v1656, %v1903
    %1905 = vmatmul.f32.gmra.mxu0 %v1698
    %v1906 = vpop.f32.mrf.mxu0
    %v1907 = vadd.f32 %v1656, %v1906
    %1908 = vmatmul.f32.gmra.mxu0 %v1701
    %v1909 = vpop.f32.mrf.mxu0
    %v1910 = vadd.f32 %v1656, %v1909
    %1911 = vmatmul.f32.gmra.mxu0 %v1704
    %v1912 = vpop.f32.mrf.mxu0
    %v1913 = vadd.f32 %v1656, %v1912
    %1914 = vmatmul.f32.gmra.mxu0 %v1707
    %v1915 = vpop.f32.mrf.mxu0
    %v1916 = vadd.f32 %v1656, %v1915
    %1917 = vmatmul.f32.gmra.mxu0 %v1710
    %v1918 = vpop.f32.mrf.mxu0
    %v1919 = vadd.f32 %v1656, %v1918
    %1920 = vmatmul.f32.gmra.mxu0 %v1713
    %v1921 = vpop.f32.mrf.mxu0
    %v1922 = vadd.f32 %v1656, %v1921
    %1923 = vmatmul.f32.gmra.mxu0 %v1716
    %v1924 = vpop.f32.mrf.mxu0
    %v1925 = vadd.f32 %v1656, %v1924
    %1926 = vmatmul.f32.gmra.mxu0 %v1719
    %v1927 = vpop.f32.mrf.mxu0
    %v1928 = vadd.f32 %v1656, %v1927
    %1929 = vmatmul.f32.gmra.mxu0 %v1722
    %v1930 = vpop.f32.mrf.mxu0
    %v1931 = vadd.f32 %v1656, %v1930
    %1932 = vmatmul.f32.gmra.mxu0 %v1725
    %v1933 = vpop.f32.mrf.mxu0
    %v1934 = vadd.f32 %v1656, %v1933
    %1935 = vmatmul.f32.gmra.mxu0 %v1728
    %v1936 = vpop.f32.mrf.mxu0
    %v1937 = vadd.f32 %v1656, %v1936
    %1938 = vmatmul.f32.gmra.mxu0 %v1731
    %v1939 = vpop.f32.mrf.mxu0
    %v1940 = vadd.f32 %v1656, %v1939
    %1941 = vmatmul.f32.gmra.mxu0 %v1734
    %v1942 = vpop.f32.mrf.mxu0
    %v1943 = vadd.f32 %v1656, %v1942
    %1944 = vmatmul.f32.gmra.mxu0 %v1737
    %v1945 = vpop.f32.mrf.mxu0
    %v1946 = vadd.f32 %v1656, %v1945
    %1947 = vmatmul.f32.gmra.mxu0 %v1740
    %v1948 = vpop.f32.mrf.mxu0
    %v1949 = vadd.f32 %v1656, %v1948
    %1950 = vmatmul.f32.gmra.mxu0 %v1743
    %v1951 = vpop.f32.mrf.mxu0
    %v1952 = vadd.f32 %v1656, %v1951
    %1953 = vmatmul.f32.gmra.mxu0 %v1746
    %v1954 = vpop.f32.mrf.mxu0
    %v1955 = vadd.f32 %v1656, %v1954
    %1956 = vmatmul.f32.gmra.mxu0 %v1749
    %v1957 = vpop.f32.mrf.mxu0
    %v1958 = vadd.f32 %v1656, %v1957
    %1959 = vmatmul.f32.gmra.mxu0 %v1752
    %v1960 = vpop.f32.mrf.mxu0
    %v1961 = vadd.f32 %v1656, %v1960
    %1962 = vmatmul.f32.gmra.mxu0 %v1755
    %v1963 = vpop.f32.mrf.mxu0
    %v1964 = vadd.f32 %v1656, %v1963
    %1965 = vmatmul.f32.gmra.mxu0 %v1758
    %v1966 = vpop.f32.mrf.mxu0
    %v1967 = vadd.f32 %v1656, %v1966
    %1968 = vmatmul.f32.gmra.mxu0 %v1761
    %v1969 = vpop.f32.mrf.mxu0
    %v1970 = vadd.f32 %v1656, %v1969
    %1971 = vmatmul.f32.gmra.mxu0 %v1764
    %v1972 = vpop.f32.mrf.mxu0
    %v1973 = vadd.f32 %v1656, %v1972
    %1974 = vmatmul.f32.gmra.mxu0 %v1767
    %v1975 = vpop.f32.mrf.mxu0
    %v1976 = vadd.f32 %v1656, %v1975
    %1977 = vmatmul.f32.gmra.mxu0 %v1770
    %v1978 = vpop.f32.mrf.mxu0
    %v1979 = vadd.f32 %v1656, %v1978
    %1980 = vmatmul.f32.gmra.mxu0 %v1773
    %v1981 = vpop.f32.mrf.mxu0
    %v1982 = vadd.f32 %v1656, %v1981
    %1983 = vmatmul.f32.gmra.mxu0 %v1776
    %v1984 = vpop.f32.mrf.mxu0
    %v1985 = vadd.f32 %v1656, %v1984
    %1986 = vmatmul.f32.gmra.mxu0 %v1779
    %v1987 = vpop.f32.mrf.mxu0
    %v1988 = vadd.f32 %v1656, %v1987
    %1989 = vmatmul.f32.gmra.mxu0 %v1782
    %v1990 = vpop.f32.mrf.mxu0
    %v1991 = vadd.f32 %v1656, %v1990
    %1992 = vmatmul.f32.gmra.mxu0 %v1785
    %v1993 = vpop.f32.mrf.mxu0
    %v1994 = vadd.f32 %v1656, %v1993
    %1995 = vmatmul.f32.gmra.mxu0 %v1788
    %v1996 = vpop.f32.mrf.mxu0
    %v1997 = vadd.f32 %v1656, %v1996
    %1998 = vmatmul.f32.gmra.mxu0 %v1791
    %v1999 = vpop.f32.mrf.mxu0
    %v2000 = vadd.f32 %v1656, %v1999
    %2001 = vmatmul.f32.gmra.mxu0 %v1794
    %v2002 = vpop.f32.mrf.mxu0
    %v2003 = vadd.f32 %v1656, %v2002
    %2004 = vmatmul.f32.gmra.mxu0 %v1797
    %v2005 = vpop.f32.mrf.mxu0
    %v2006 = vadd.f32 %v1656, %v2005
    %2007 = vmatmul.f32.gmra.mxu0 %v1800
    %v2008 = vpop.f32.mrf.mxu0
    %v2009 = vadd.f32 %v1656, %v2008
    %2010 = vmatmul.f32.gmra.mxu0 %v1803
    %v2011 = vpop.f32.mrf.mxu0
    %v2012 = vadd.f32 %v1656, %v2011
    %2013 = vmatmul.f32.gmra.mxu0 %v1806
    %v2014 = vpop.f32.mrf.mxu0
    %v2015 = vadd.f32 %v1656, %v2014
    %2016 = vmatmul.f32.gmra.mxu0 %v1809
    %v2017 = vpop.f32.mrf.mxu0
    %v2018 = vadd.f32 %v1656, %v2017
    %2019 = vmatmul.f32.gmra.mxu0 %v1812
    %v2020 = vpop.f32.mrf.mxu0
    %v2021 = vadd.f32 %v1656, %v2020
    %2022 = vmatmul.f32.gmra.mxu0 %v1815
    %v2023 = vpop.f32.mrf.mxu0
    %v2024 = vadd.f32 %v1656, %v2023
    %2025 = vmatmul.f32.gmra.mxu0 %v1818
    %v2026 = vpop.f32.mrf.mxu0
    %v2027 = vadd.f32 %v1656, %v2026
    %2028 = vmatmul.f32.gmra.mxu0 %v1821
    %v2029 = vpop.f32.mrf.mxu0
    %v2030 = vadd.f32 %v1656, %v2029
    %2031 = vmatmul.f32.gmra.mxu0 %v1824
    %v2032 = vpop.f32.mrf.mxu0
    %v2033 = vadd.f32 %v1656, %v2032
    %2034 = vmatmul.f32.gmra.mxu0 %v1827
    %v2035 = vpop.f32.mrf.mxu0
    %v2036 = vadd.f32 %v1656, %v2035
    %2037 = vmatmul.f32.gmra.mxu0 %v1830
    %v2038 = vpop.f32.mrf.mxu0
    %v2039 = vadd.f32 %v1656, %v2038
    %2040 = vmatmul.f32.gmra.mxu0 %v1833
    %v2041 = vpop.f32.mrf.mxu0
    %v2042 = vadd.f32 %v1656, %v2041
    %2043 = vmatmul.f32.gmra.mxu0 %v1836
    %v2044 = vpop.f32.mrf.mxu0
    %v2045 = vadd.f32 %v1656, %v2044
    %2046 = vmatmul.f32.gmra.mxu0 %v1839
    %v2047 = vpop.f32.mrf.mxu0
    %v2048 = vadd.f32 %v1656, %v2047
    %2049 = vmatmul.f32.gmra.mxu0 %v1842
    %v2050 = vpop.f32.mrf.mxu0
    %v2051 = vadd.f32 %v1656, %v2050
    %2052 = vmatmul.f32.gmra.mxu0 %v1845
    %v2053 = vpop.f32.mrf.mxu0
    %v2054 = vadd.f32 %v1656, %v2053
    %2055 = vmatmul.f32.gmra.mxu0 %v1848
    %v2056 = vpop.f32.mrf.mxu0
    %v2057 = vadd.f32 %v1656, %v2056
    %2058 = vdwg.mxu0
    %v2059 = vperm.slane %v946, 0
    %v2060 = vperm.slane %v952, 0
    %v2061 = vperm.slane %v958, 0
    %v2062 = vperm.slane %v964, 0
    %v2063 = vperm.slane %v970, 0
    %v2064 = vperm.slane %v976, 0
    %v2065 = vperm.slane %v982, 0
    %v2066 = vperm.slane %v988, 0
    %v2067 = vperm.slane %v994, 0
    %v2068 = vperm.slane %v1000, 0
    %v2069 = vperm.slane %v1006, 0
    %v2070 = vperm.slane %v1012, 0
    %v2071 = vperm.slane %v1018, 0
    %v2072 = vperm.slane %v1024, 0
    %v2073 = vperm.slane %v1030, 0
    %v2074 = vperm.slane %v1036, 0
    %v2075 = vperm.slane %v1042, 0
    %v2076 = vperm.slane %v1048, 0
    %v2077 = vperm.slane %v1054, 0
    %v2078 = vperm.slane %v1060, 0
    %v2079 = vperm.slane %v1066, 0
    %v2080 = vperm.slane %v1072, 0
    %v2081 = vperm.slane %v1078, 0
    %v2082 = vperm.slane %v1084, 0
    %v2083 = vperm.slane %v1090, 0
    %v2084 = vperm.slane %v1096, 0
    %v2085 = vperm.slane %v1102, 0
    %v2086 = vperm.slane %v1108, 0
    %v2087 = vperm.slane %v1114, 0
    %v2088 = vperm.slane %v1120, 0
    %v2089 = vperm.slane %v1126, 0
    %v2090 = vperm.slane %v1132, 0
    %v2091 = vmul.f32 %v2059, %v1868
    %v2092 = vmul.f32 %v2059, %v1871
    %v2093 = vmul.f32 %v2060, %v1868
    %v2094 = vmul.f32 %v2060, %v1871
    %v2095 = vmul.f32 %v2061, %v1868
    %v2096 = vmul.f32 %v2061, %v1871
    %v2097 = vmul.f32 %v2062, %v1868
    %v2098 = vmul.f32 %v2062, %v1871
    %v2099 = vmul.f32 %v2063, %v1868
    %v2100 = vmul.f32 %v2063, %v1871
    %v2101 = vmul.f32 %v2064, %v1868
    %v2102 = vmul.f32 %v2064, %v1871
    %v2103 = vmul.f32 %v2065, %v1868
    %v2104 = vmul.f32 %v2065, %v1871
    %v2105 = vmul.f32 %v2066, %v1868
    %v2106 = vmul.f32 %v2066, %v1871
    %v2107 = vmul.f32 %v2067, %v1868
    %v2108 = vmul.f32 %v2067, %v1871
    %v2109 = vmul.f32 %v2068, %v1868
    %v2110 = vmul.f32 %v2068, %v1871
    %v2111 = vmul.f32 %v2069, %v1868
    %v2112 = vmul.f32 %v2069, %v1871
    %v2113 = vmul.f32 %v2070, %v1868
    %v2114 = vmul.f32 %v2070, %v1871
    %v2115 = vmul.f32 %v2071, %v1868
    %v2116 = vmul.f32 %v2071, %v1871
    %v2117 = vmul.f32 %v2072, %v1868
    %v2118 = vmul.f32 %v2072, %v1871
    %v2119 = vmul.f32 %v2073, %v1868
    %v2120 = vmul.f32 %v2073, %v1871
    %v2121 = vmul.f32 %v2074, %v1868
    %v2122 = vmul.f32 %v2074, %v1871
    %v2123 = vmul.f32 %v2075, %v1964
    %v2124 = vmul.f32 %v2075, %v1967
    %v2125 = vmul.f32 %v2076, %v1964
    %v2126 = vmul.f32 %v2076, %v1967
    %v2127 = vmul.f32 %v2077, %v1964
    %v2128 = vmul.f32 %v2077, %v1967
    %v2129 = vmul.f32 %v2078, %v1964
    %v2130 = vmul.f32 %v2078, %v1967
    %v2131 = vmul.f32 %v2079, %v1964
    %v2132 = vmul.f32 %v2079, %v1967
    %v2133 = vmul.f32 %v2080, %v1964
    %v2134 = vmul.f32 %v2080, %v1967
    %v2135 = vmul.f32 %v2081, %v1964
    %v2136 = vmul.f32 %v2081, %v1967
    %v2137 = vmul.f32 %v2082, %v1964
    %v2138 = vmul.f32 %v2082, %v1967
    %v2139 = vmul.f32 %v2083, %v1964
    %v2140 = vmul.f32 %v2083, %v1967
    %v2141 = vmul.f32 %v2084, %v1964
    %v2142 = vmul.f32 %v2084, %v1967
    %v2143 = vmul.f32 %v2085, %v1964
    %v2144 = vmul.f32 %v2085, %v1967
    %v2145 = vmul.f32 %v2086, %v1964
    %v2146 = vmul.f32 %v2086, %v1967
    %v2147 = vmul.f32 %v2087, %v1964
    %v2148 = vmul.f32 %v2087, %v1967
    %v2149 = vmul.f32 %v2088, %v1964
    %v2150 = vmul.f32 %v2088, %v1967
    %v2151 = vmul.f32 %v2089, %v1964
    %v2152 = vmul.f32 %v2089, %v1967
    %v2153 = vmul.f32 %v2090, %v1964
    %v2154 = vmul.f32 %v2090, %v1967
    %v2155 = vperm.slane %v946, 1
    %v2156 = vperm.slane %v952, 1
    %v2157 = vperm.slane %v958, 1
    %v2158 = vperm.slane %v964, 1
    %v2159 = vperm.slane %v970, 1
    %v2160 = vperm.slane %v976, 1
    %v2161 = vperm.slane %v982, 1
    %v2162 = vperm.slane %v988, 1
    %v2163 = vperm.slane %v994, 1
    %v2164 = vperm.slane %v1000, 1
    %v2165 = vperm.slane %v1006, 1
    %v2166 = vperm.slane %v1012, 1
    %v2167 = vperm.slane %v1018, 1
    %v2168 = vperm.slane %v1024, 1
    %v2169 = vperm.slane %v1030, 1
    %v2170 = vperm.slane %v1036, 1
    %v2171 = vperm.slane %v1042, 1
    %v2172 = vperm.slane %v1048, 1
    %v2173 = vperm.slane %v1054, 1
    %v2174 = vperm.slane %v1060, 1
    %v2175 = vperm.slane %v1066, 1
    %v2176 = vperm.slane %v1072, 1
    %v2177 = vperm.slane %v1078, 1
    %v2178 = vperm.slane %v1084, 1
    %v2179 = vperm.slane %v1090, 1
    %v2180 = vperm.slane %v1096, 1
    %v2181 = vperm.slane %v1102, 1
    %v2182 = vperm.slane %v1108, 1
    %v2183 = vperm.slane %v1114, 1
    %v2184 = vperm.slane %v1120, 1
    %v2185 = vperm.slane %v1126, 1
    %v2186 = vperm.slane %v1132, 1
    %v2187 = vmul.f32 %v2155, %v1874
    %v2188 = vmul.f32 %v2155, %v1877
    %v2189 = vmul.f32 %v2156, %v1874
    %v2190 = vmul.f32 %v2156, %v1877
    %v2191 = vmul.f32 %v2157, %v1874
    %v2192 = vmul.f32 %v2157, %v1877
    %v2193 = vmul.f32 %v2158, %v1874
    %v2194 = vmul.f32 %v2158, %v1877
    %v2195 = vmul.f32 %v2159, %v1874
    %v2196 = vmul.f32 %v2159, %v1877
    %v2197 = vmul.f32 %v2160, %v1874
    %v2198 = vmul.f32 %v2160, %v1877
    %v2199 = vmul.f32 %v2161, %v1874
    %v2200 = vmul.f32 %v2161, %v1877
    %v2201 = vmul.f32 %v2162, %v1874
    %v2202 = vmul.f32 %v2162, %v1877
    %v2203 = vmul.f32 %v2163, %v1874
    %v2204 = vmul.f32 %v2163, %v1877
    %v2205 = vmul.f32 %v2164, %v1874
    %v2206 = vmul.f32 %v2164, %v1877
    %v2207 = vmul.f32 %v2165, %v1874
    %v2208 = vmul.f32 %v2165, %v1877
    %v2209 = vmul.f32 %v2166, %v1874
    %v2210 = vmul.f32 %v2166, %v1877
    %v2211 = vmul.f32 %v2167, %v1874
    %v2212 = vmul.f32 %v2167, %v1877
    %v2213 = vmul.f32 %v2168, %v1874
    %v2214 = vmul.f32 %v2168, %v1877
    %v2215 = vmul.f32 %v2169, %v1874
    %v2216 = vmul.f32 %v2169, %v1877
    %v2217 = vmul.f32 %v2170, %v1874
    %v2218 = vmul.f32 %v2170, %v1877
    %v2219 = vmul.f32 %v2171, %v1970
    %v2220 = vmul.f32 %v2171, %v1973
    %v2221 = vmul.f32 %v2172, %v1970
    %v2222 = vmul.f32 %v2172, %v1973
    %v2223 = vmul.f32 %v2173, %v1970
    %v2224 = vmul.f32 %v2173, %v1973
    %v2225 = vmul.f32 %v2174, %v1970
    %v2226 = vmul.f32 %v2174, %v1973
    %v2227 = vmul.f32 %v2175, %v1970
    %v2228 = vmul.f32 %v2175, %v1973
    %v2229 = vmul.f32 %v2176, %v1970
    %v2230 = vmul.f32 %v2176, %v1973
    %v2231 = vmul.f32 %v2177, %v1970
    %v2232 = vmul.f32 %v2177, %v1973
    %v2233 = vmul.f32 %v2178, %v1970
    %v2234 = vmul.f32 %v2178, %v1973
    %v2235 = vmul.f32 %v2179, %v1970
    %v2236 = vmul.f32 %v2179, %v1973
    %v2237 = vmul.f32 %v2180, %v1970
    %v2238 = vmul.f32 %v2180, %v1973
    %v2239 = vmul.f32 %v2181, %v1970
    %v2240 = vmul.f32 %v2181, %v1973
    %v2241 = vmul.f32 %v2182, %v1970
    %v2242 = vmul.f32 %v2182, %v1973
    %v2243 = vmul.f32 %v2183, %v1970
    %v2244 = vmul.f32 %v2183, %v1973
    %v2245 = vmul.f32 %v2184, %v1970
    %v2246 = vmul.f32 %v2184, %v1973
    %v2247 = vmul.f32 %v2185, %v1970
    %v2248 = vmul.f32 %v2185, %v1973
    %v2249 = vmul.f32 %v2186, %v1970
    %v2250 = vmul.f32 %v2186, %v1973
    %v2251 = vadd.f32 %v2091, %v2187
    %v2252 = vadd.f32 %v2092, %v2188
    %v2253 = vadd.f32 %v2093, %v2189
    %v2254 = vadd.f32 %v2094, %v2190
    %v2255 = vadd.f32 %v2095, %v2191
    %v2256 = vadd.f32 %v2096, %v2192
    %v2257 = vadd.f32 %v2097, %v2193
    %v2258 = vadd.f32 %v2098, %v2194
    %v2259 = vadd.f32 %v2099, %v2195
    %v2260 = vadd.f32 %v2100, %v2196
    %v2261 = vadd.f32 %v2101, %v2197
    %v2262 = vadd.f32 %v2102, %v2198
    %v2263 = vadd.f32 %v2103, %v2199
    %v2264 = vadd.f32 %v2104, %v2200
    %v2265 = vadd.f32 %v2105, %v2201
    %v2266 = vadd.f32 %v2106, %v2202
    %v2267 = vadd.f32 %v2107, %v2203
    %v2268 = vadd.f32 %v2108, %v2204
    %v2269 = vadd.f32 %v2109, %v2205
    %v2270 = vadd.f32 %v2110, %v2206
    %v2271 = vadd.f32 %v2111, %v2207
    %v2272 = vadd.f32 %v2112, %v2208
    %v2273 = vadd.f32 %v2113, %v2209
    %v2274 = vadd.f32 %v2114, %v2210
    %v2275 = vadd.f32 %v2115, %v2211
    %v2276 = vadd.f32 %v2116, %v2212
    %v2277 = vadd.f32 %v2117, %v2213
    %v2278 = vadd.f32 %v2118, %v2214
    %v2279 = vadd.f32 %v2119, %v2215
    %v2280 = vadd.f32 %v2120, %v2216
    %v2281 = vadd.f32 %v2121, %v2217
    %v2282 = vadd.f32 %v2122, %v2218
    %v2283 = vadd.f32 %v2123, %v2219
    %v2284 = vadd.f32 %v2124, %v2220
    %v2285 = vadd.f32 %v2125, %v2221
    %v2286 = vadd.f32 %v2126, %v2222
    %v2287 = vadd.f32 %v2127, %v2223
    %v2288 = vadd.f32 %v2128, %v2224
    %v2289 = vadd.f32 %v2129, %v2225
    %v2290 = vadd.f32 %v2130, %v2226
    %v2291 = vadd.f32 %v2131, %v2227
    %v2292 = vadd.f32 %v2132, %v2228
    %v2293 = vadd.f32 %v2133, %v2229
    %v2294 = vadd.f32 %v2134, %v2230
    %v2295 = vadd.f32 %v2135, %v2231
    %v2296 = vadd.f32 %v2136, %v2232
    %v2297 = vadd.f32 %v2137, %v2233
    %v2298 = vadd.f32 %v2138, %v2234
    %v2299 = vadd.f32 %v2139, %v2235
    %v2300 = vadd.f32 %v2140, %v2236
    %v2301 = vadd.f32 %v2141, %v2237
    %v2302 = vadd.f32 %v2142, %v2238
    %v2303 = vadd.f32 %v2143, %v2239
    %v2304 = vadd.f32 %v2144, %v2240
    %v2305 = vadd.f32 %v2145, %v2241
    %v2306 = vadd.f32 %v2146, %v2242
    %v2307 = vadd.f32 %v2147, %v2243
    %v2308 = vadd.f32 %v2148, %v2244
    %v2309 = vadd.f32 %v2149, %v2245
    %v2310 = vadd.f32 %v2150, %v2246
    %v2311 = vadd.f32 %v2151, %v2247
    %v2312 = vadd.f32 %v2152, %v2248
    %v2313 = vadd.f32 %v2153, %v2249
    %v2314 = vadd.f32 %v2154, %v2250
    %v2315 = vperm.slane %v946, 2
    %v2316 = vperm.slane %v952, 2
    %v2317 = vperm.slane %v958, 2
    %v2318 = vperm.slane %v964, 2
    %v2319 = vperm.slane %v970, 2
    %v2320 = vperm.slane %v976, 2
    %v2321 = vperm.slane %v982, 2
    %v2322 = vperm.slane %v988, 2
    %v2323 = vperm.slane %v994, 2
    %v2324 = vperm.slane %v1000, 2
    %v2325 = vperm.slane %v1006, 2
    %v2326 = vperm.slane %v1012, 2
    %v2327 = vperm.slane %v1018, 2
    %v2328 = vperm.slane %v1024, 2
    %v2329 = vperm.slane %v1030, 2
    %v2330 = vperm.slane %v1036, 2
    %v2331 = vperm.slane %v1042, 2
    %v2332 = vperm.slane %v1048, 2
    %v2333 = vperm.slane %v1054, 2
    %v2334 = vperm.slane %v1060, 2
    %v2335 = vperm.slane %v1066, 2
    %v2336 = vperm.slane %v1072, 2
    %v2337 = vperm.slane %v1078, 2
    %v2338 = vperm.slane %v1084, 2
    %v2339 = vperm.slane %v1090, 2
    %v2340 = vperm.slane %v1096, 2
    %v2341 = vperm.slane %v1102, 2
    %v2342 = vperm.slane %v1108, 2
    %v2343 = vperm.slane %v1114, 2
    %v2344 = vperm.slane %v1120, 2
    %v2345 = vperm.slane %v1126, 2
    %v2346 = vperm.slane %v1132, 2
    %v2347 = vmul.f32 %v2315, %v1880
    %v2348 = vmul.f32 %v2315, %v1883
    %v2349 = vmul.f32 %v2316, %v1880
    %v2350 = vmul.f32 %v2316, %v1883
    %v2351 = vmul.f32 %v2317, %v1880
    %v2352 = vmul.f32 %v2317, %v1883
    %v2353 = vmul.f32 %v2318, %v1880
    %v2354 = vmul.f32 %v2318, %v1883
    %v2355 = vmul.f32 %v2319, %v1880
    %v2356 = vmul.f32 %v2319, %v1883
    %v2357 = vmul.f32 %v2320, %v1880
    %v2358 = vmul.f32 %v2320, %v1883
    %v2359 = vmul.f32 %v2321, %v1880
    %v2360 = vmul.f32 %v2321, %v1883
    %v2361 = vmul.f32 %v2322, %v1880
    %v2362 = vmul.f32 %v2322, %v1883
    %v2363 = vmul.f32 %v2323, %v1880
    %v2364 = vmul.f32 %v2323, %v1883
    %v2365 = vmul.f32 %v2324, %v1880
    %v2366 = vmul.f32 %v2324, %v1883
    %v2367 = vmul.f32 %v2325, %v1880
    %v2368 = vmul.f32 %v2325, %v1883
    %v2369 = vmul.f32 %v2326, %v1880
    %v2370 = vmul.f32 %v2326, %v1883
    %v2371 = vmul.f32 %v2327, %v1880
    %v2372 = vmul.f32 %v2327, %v1883
    %v2373 = vmul.f32 %v2328, %v1880
    %v2374 = vmul.f32 %v2328, %v1883
    %v2375 = vmul.f32 %v2329, %v1880
    %v2376 = vmul.f32 %v2329, %v1883
    %v2377 = vmul.f32 %v2330, %v1880
    %v2378 = vmul.f32 %v2330, %v1883
    %v2379 = vmul.f32 %v2331, %v1976
    %v2380 = vmul.f32 %v2331, %v1979
    %v2381 = vmul.f32 %v2332, %v1976
    %v2382 = vmul.f32 %v2332, %v1979
    %v2383 = vmul.f32 %v2333, %v1976
    %v2384 = vmul.f32 %v2333, %v1979
    %v2385 = vmul.f32 %v2334, %v1976
    %v2386 = vmul.f32 %v2334, %v1979
    %v2387 = vmul.f32 %v2335, %v1976
    %v2388 = vmul.f32 %v2335, %v1979
    %v2389 = vmul.f32 %v2336, %v1976
    %v2390 = vmul.f32 %v2336, %v1979
    %v2391 = vmul.f32 %v2337, %v1976
    %v2392 = vmul.f32 %v2337, %v1979
    %v2393 = vmul.f32 %v2338, %v1976
    %v2394 = vmul.f32 %v2338, %v1979
    %v2395 = vmul.f32 %v2339, %v1976
    %v2396 = vmul.f32 %v2339, %v1979
    %v2397 = vmul.f32 %v2340, %v1976
    %v2398 = vmul.f32 %v2340, %v1979
    %v2399 = vmul.f32 %v2341, %v1976
    %v2400 = vmul.f32 %v2341, %v1979
    %v2401 = vmul.f32 %v2342, %v1976
    %v2402 = vmul.f32 %v2342, %v1979
    %v2403 = vmul.f32 %v2343, %v1976
    %v2404 = vmul.f32 %v2343, %v1979
    %v2405 = vmul.f32 %v2344, %v1976
    %v2406 = vmul.f32 %v2344, %v1979
    %v2407 = vmul.f32 %v2345, %v1976
    %v2408 = vmul.f32 %v2345, %v1979
    %v2409 = vmul.f32 %v2346, %v1976
    %v2410 = vmul.f32 %v2346, %v1979
    %v2411 = vadd.f32 %v2251, %v2347
    %v2412 = vadd.f32 %v2252, %v2348
    %v2413 = vadd.f32 %v2253, %v2349
    %v2414 = vadd.f32 %v2254, %v2350
    %v2415 = vadd.f32 %v2255, %v2351
    %v2416 = vadd.f32 %v2256, %v2352
    %v2417 = vadd.f32 %v2257, %v2353
    %v2418 = vadd.f32 %v2258, %v2354
    %v2419 = vadd.f32 %v2259, %v2355
    %v2420 = vadd.f32 %v2260, %v2356
    %v2421 = vadd.f32 %v2261, %v2357
    %v2422 = vadd.f32 %v2262, %v2358
    %v2423 = vadd.f32 %v2263, %v2359
    %v2424 = vadd.f32 %v2264, %v2360
    %v2425 = vadd.f32 %v2265, %v2361
    %v2426 = vadd.f32 %v2266, %v2362
    %v2427 = vadd.f32 %v2267, %v2363
    %v2428 = vadd.f32 %v2268, %v2364
    %v2429 = vadd.f32 %v2269, %v2365
    %v2430 = vadd.f32 %v2270, %v2366
    %v2431 = vadd.f32 %v2271, %v2367
    %v2432 = vadd.f32 %v2272, %v2368
    %v2433 = vadd.f32 %v2273, %v2369
    %v2434 = vadd.f32 %v2274, %v2370
    %v2435 = vadd.f32 %v2275, %v2371
    %v2436 = vadd.f32 %v2276, %v2372
    %v2437 = vadd.f32 %v2277, %v2373
    %v2438 = vadd.f32 %v2278, %v2374
    %v2439 = vadd.f32 %v2279, %v2375
    %v2440 = vadd.f32 %v2280, %v2376
    %v2441 = vadd.f32 %v2281, %v2377
    %v2442 = vadd.f32 %v2282, %v2378
    %v2443 = vadd.f32 %v2283, %v2379
    %v2444 = vadd.f32 %v2284, %v2380
    %v2445 = vadd.f32 %v2285, %v2381
    %v2446 = vadd.f32 %v2286, %v2382
    %v2447 = vadd.f32 %v2287, %v2383
    %v2448 = vadd.f32 %v2288, %v2384
    %v2449 = vadd.f32 %v2289, %v2385
    %v2450 = vadd.f32 %v2290, %v2386
    %v2451 = vadd.f32 %v2291, %v2387
    %v2452 = vadd.f32 %v2292, %v2388
    %v2453 = vadd.f32 %v2293, %v2389
    %v2454 = vadd.f32 %v2294, %v2390
    %v2455 = vadd.f32 %v2295, %v2391
    %v2456 = vadd.f32 %v2296, %v2392
    %v2457 = vadd.f32 %v2297, %v2393
    %v2458 = vadd.f32 %v2298, %v2394
    %v2459 = vadd.f32 %v2299, %v2395
    %v2460 = vadd.f32 %v2300, %v2396
    %v2461 = vadd.f32 %v2301, %v2397
    %v2462 = vadd.f32 %v2302, %v2398
    %v2463 = vadd.f32 %v2303, %v2399
    %v2464 = vadd.f32 %v2304, %v2400
    %v2465 = vadd.f32 %v2305, %v2401
    %v2466 = vadd.f32 %v2306, %v2402
    %v2467 = vadd.f32 %v2307, %v2403
    %v2468 = vadd.f32 %v2308, %v2404
    %v2469 = vadd.f32 %v2309, %v2405
    %v2470 = vadd.f32 %v2310, %v2406
    %v2471 = vadd.f32 %v2311, %v2407
    %v2472 = vadd.f32 %v2312, %v2408
    %v2473 = vadd.f32 %v2313, %v2409
    %v2474 = vadd.f32 %v2314, %v2410
    %v2475 = vperm.slane %v946, 3
    %v2476 = vperm.slane %v952, 3
    %v2477 = vperm.slane %v958, 3
    %v2478 = vperm.slane %v964, 3
    %v2479 = vperm.slane %v970, 3
    %v2480 = vperm.slane %v976, 3
    %v2481 = vperm.slane %v982, 3
    %v2482 = vperm.slane %v988, 3
    %v2483 = vperm.slane %v994, 3
    %v2484 = vperm.slane %v1000, 3
    %v2485 = vperm.slane %v1006, 3
    %v2486 = vperm.slane %v1012, 3
    %v2487 = vperm.slane %v1018, 3
    %v2488 = vperm.slane %v1024, 3
    %v2489 = vperm.slane %v1030, 3
    %v2490 = vperm.slane %v1036, 3
    %v2491 = vperm.slane %v1042, 3
    %v2492 = vperm.slane %v1048, 3
    %v2493 = vperm.slane %v1054, 3
    %v2494 = vperm.slane %v1060, 3
    %v2495 = vperm.slane %v1066, 3
    %v2496 = vperm.slane %v1072, 3
    %v2497 = vperm.slane %v1078, 3
    %v2498 = vperm.slane %v1084, 3
    %v2499 = vperm.slane %v1090, 3
    %v2500 = vperm.slane %v1096, 3
    %v2501 = vperm.slane %v1102, 3
    %v2502 = vperm.slane %v1108, 3
    %v2503 = vperm.slane %v1114, 3
    %v2504 = vperm.slane %v1120, 3
    %v2505 = vperm.slane %v1126, 3
    %v2506 = vperm.slane %v1132, 3
    %v2507 = vmul.f32 %v2475, %v1886
    %v2508 = vmul.f32 %v2475, %v1889
    %v2509 = vmul.f32 %v2476, %v1886
    %v2510 = vmul.f32 %v2476, %v1889
    %v2511 = vmul.f32 %v2477, %v1886
    %v2512 = vmul.f32 %v2477, %v1889
    %v2513 = vmul.f32 %v2478, %v1886
    %v2514 = vmul.f32 %v2478, %v1889
    %v2515 = vmul.f32 %v2479, %v1886
    %v2516 = vmul.f32 %v2479, %v1889
    %v2517 = vmul.f32 %v2480, %v1886
    %v2518 = vmul.f32 %v2480, %v1889
    %v2519 = vmul.f32 %v2481, %v1886
    %v2520 = vmul.f32 %v2481, %v1889
    %v2521 = vmul.f32 %v2482, %v1886
    %v2522 = vmul.f32 %v2482, %v1889
    %v2523 = vmul.f32 %v2483, %v1886
    %v2524 = vmul.f32 %v2483, %v1889
    %v2525 = vmul.f32 %v2484, %v1886
    %v2526 = vmul.f32 %v2484, %v1889
    %v2527 = vmul.f32 %v2485, %v1886
    %v2528 = vmul.f32 %v2485, %v1889
    %v2529 = vmul.f32 %v2486, %v1886
    %v2530 = vmul.f32 %v2486, %v1889
    %v2531 = vmul.f32 %v2487, %v1886
    %v2532 = vmul.f32 %v2487, %v1889
    %v2533 = vmul.f32 %v2488, %v1886
    %v2534 = vmul.f32 %v2488, %v1889
    %v2535 = vmul.f32 %v2489, %v1886
    %v2536 = vmul.f32 %v2489, %v1889
    %v2537 = vmul.f32 %v2490, %v1886
    %v2538 = vmul.f32 %v2490, %v1889
    %v2539 = vmul.f32 %v2491, %v1982
    %v2540 = vmul.f32 %v2491, %v1985
    %v2541 = vmul.f32 %v2492, %v1982
    %v2542 = vmul.f32 %v2492, %v1985
    %v2543 = vmul.f32 %v2493, %v1982
    %v2544 = vmul.f32 %v2493, %v1985
    %v2545 = vmul.f32 %v2494, %v1982
    %v2546 = vmul.f32 %v2494, %v1985
    %v2547 = vmul.f32 %v2495, %v1982
    %v2548 = vmul.f32 %v2495, %v1985
    %v2549 = vmul.f32 %v2496, %v1982
    %v2550 = vmul.f32 %v2496, %v1985
    %v2551 = vmul.f32 %v2497, %v1982
    %v2552 = vmul.f32 %v2497, %v1985
    %v2553 = vmul.f32 %v2498, %v1982
    %v2554 = vmul.f32 %v2498, %v1985
    %v2555 = vmul.f32 %v2499, %v1982
    %v2556 = vmul.f32 %v2499, %v1985
    %v2557 = vmul.f32 %v2500, %v1982
    %v2558 = vmul.f32 %v2500, %v1985
    %v2559 = vmul.f32 %v2501, %v1982
    %v2560 = vmul.f32 %v2501, %v1985
    %v2561 = vmul.f32 %v2502, %v1982
    %v2562 = vmul.f32 %v2502, %v1985
    %v2563 = vmul.f32 %v2503, %v1982
    %v2564 = vmul.f32 %v2503, %v1985
    %v2565 = vmul.f32 %v2504, %v1982
    %v2566 = vmul.f32 %v2504, %v1985
    %v2567 = vmul.f32 %v2505, %v1982
    %v2568 = vmul.f32 %v2505, %v1985
    %v2569 = vmul.f32 %v2506, %v1982
    %v2570 = vmul.f32 %v2506, %v1985
    %v2571 = vadd.f32 %v2411, %v2507
    %v2572 = vadd.f32 %v2412, %v2508
    %v2573 = vadd.f32 %v2413, %v2509
    %v2574 = vadd.f32 %v2414, %v2510
    %v2575 = vadd.f32 %v2415, %v2511
    %v2576 = vadd.f32 %v2416, %v2512
    %v2577 = vadd.f32 %v2417, %v2513
    %v2578 = vadd.f32 %v2418, %v2514
    %v2579 = vadd.f32 %v2419, %v2515
    %v2580 = vadd.f32 %v2420, %v2516
    %v2581 = vadd.f32 %v2421, %v2517
    %v2582 = vadd.f32 %v2422, %v2518
    %v2583 = vadd.f32 %v2423, %v2519
    %v2584 = vadd.f32 %v2424, %v2520
    %v2585 = vadd.f32 %v2425, %v2521
    %v2586 = vadd.f32 %v2426, %v2522
    %v2587 = vadd.f32 %v2427, %v2523
    %v2588 = vadd.f32 %v2428, %v2524
    %v2589 = vadd.f32 %v2429, %v2525
    %v2590 = vadd.f32 %v2430, %v2526
    %v2591 = vadd.f32 %v2431, %v2527
    %v2592 = vadd.f32 %v2432, %v2528
    %v2593 = vadd.f32 %v2433, %v2529
    %v2594 = vadd.f32 %v2434, %v2530
    %v2595 = vadd.f32 %v2435, %v2531
    %v2596 = vadd.f32 %v2436, %v2532
    %v2597 = vadd.f32 %v2437, %v2533
    %v2598 = vadd.f32 %v2438, %v2534
    %v2599 = vadd.f32 %v2439, %v2535
    %v2600 = vadd.f32 %v2440, %v2536
    %v2601 = vadd.f32 %v2441, %v2537
    %v2602 = vadd.f32 %v2442, %v2538
    %v2603 = vadd.f32 %v2443, %v2539
    %v2604 = vadd.f32 %v2444, %v2540
    %v2605 = vadd.f32 %v2445, %v2541
    %v2606 = vadd.f32 %v2446, %v2542
    %v2607 = vadd.f32 %v2447, %v2543
    %v2608 = vadd.f32 %v2448, %v2544
    %v2609 = vadd.f32 %v2449, %v2545
    %v2610 = vadd.f32 %v2450, %v2546
    %v2611 = vadd.f32 %v2451, %v2547
    %v2612 = vadd.f32 %v2452, %v2548
    %v2613 = vadd.f32 %v2453, %v2549
    %v2614 = vadd.f32 %v2454, %v2550
    %v2615 = vadd.f32 %v2455, %v2551
    %v2616 = vadd.f32 %v2456, %v2552
    %v2617 = vadd.f32 %v2457, %v2553
    %v2618 = vadd.f32 %v2458, %v2554
    %v2619 = vadd.f32 %v2459, %v2555
    %v2620 = vadd.f32 %v2460, %v2556
    %v2621 = vadd.f32 %v2461, %v2557
    %v2622 = vadd.f32 %v2462, %v2558
    %v2623 = vadd.f32 %v2463, %v2559
    %v2624 = vadd.f32 %v2464, %v2560
    %v2625 = vadd.f32 %v2465, %v2561
    %v2626 = vadd.f32 %v2466, %v2562
    %v2627 = vadd.f32 %v2467, %v2563
    %v2628 = vadd.f32 %v2468, %v2564
    %v2629 = vadd.f32 %v2469, %v2565
    %v2630 = vadd.f32 %v2470, %v2566
    %v2631 = vadd.f32 %v2471, %v2567
    %v2632 = vadd.f32 %v2472, %v2568
    %v2633 = vadd.f32 %v2473, %v2569
    %v2634 = vadd.f32 %v2474, %v2570
    %v2635 = vperm.slane %v946, 4
    %v2636 = vperm.slane %v952, 4
    %v2637 = vperm.slane %v958, 4
    %v2638 = vperm.slane %v964, 4
    %v2639 = vperm.slane %v970, 4
    %v2640 = vperm.slane %v976, 4
    %v2641 = vperm.slane %v982, 4
    %v2642 = vperm.slane %v988, 4
    %v2643 = vperm.slane %v994, 4
    %v2644 = vperm.slane %v1000, 4
    %v2645 = vperm.slane %v1006, 4
    %v2646 = vperm.slane %v1012, 4
    %v2647 = vperm.slane %v1018, 4
    %v2648 = vperm.slane %v1024, 4
    %v2649 = vperm.slane %v1030, 4
    %v2650 = vperm.slane %v1036, 4
    %v2651 = vperm.slane %v1042, 4
    %v2652 = vperm.slane %v1048, 4
    %v2653 = vperm.slane %v1054, 4
    %v2654 = vperm.slane %v1060, 4
    %v2655 = vperm.slane %v1066, 4
    %v2656 = vperm.slane %v1072, 4
    %v2657 = vperm.slane %v1078, 4
    %v2658 = vperm.slane %v1084, 4
    %v2659 = vperm.slane %v1090, 4
    %v2660 = vperm.slane %v1096, 4
    %v2661 = vperm.slane %v1102, 4
    %v2662 = vperm.slane %v1108, 4
    %v2663 = vperm.slane %v1114, 4
    %v2664 = vperm.slane %v1120, 4
    %v2665 = vperm.slane %v1126, 4
    %v2666 = vperm.slane %v1132, 4
    %v2667 = vmul.f32 %v2635, %v1892
    %v2668 = vmul.f32 %v2635, %v1895
    %v2669 = vmul.f32 %v2636, %v1892
    %v2670 = vmul.f32 %v2636, %v1895
    %v2671 = vmul.f32 %v2637, %v1892
    %v2672 = vmul.f32 %v2637, %v1895
    %v2673 = vmul.f32 %v2638, %v1892
    %v2674 = vmul.f32 %v2638, %v1895
    %v2675 = vmul.f32 %v2639, %v1892
    %v2676 = vmul.f32 %v2639, %v1895
    %v2677 = vmul.f32 %v2640, %v1892
    %v2678 = vmul.f32 %v2640, %v1895
    %v2679 = vmul.f32 %v2641, %v1892
    %v2680 = vmul.f32 %v2641, %v1895
    %v2681 = vmul.f32 %v2642, %v1892
    %v2682 = vmul.f32 %v2642, %v1895
    %v2683 = vmul.f32 %v2643, %v1892
    %v2684 = vmul.f32 %v2643, %v1895
    %v2685 = vmul.f32 %v2644, %v1892
    %v2686 = vmul.f32 %v2644, %v1895
    %v2687 = vmul.f32 %v2645, %v1892
    %v2688 = vmul.f32 %v2645, %v1895
    %v2689 = vmul.f32 %v2646, %v1892
    %v2690 = vmul.f32 %v2646, %v1895
    %v2691 = vmul.f32 %v2647, %v1892
    %v2692 = vmul.f32 %v2647, %v1895
    %v2693 = vmul.f32 %v2648, %v1892
    %v2694 = vmul.f32 %v2648, %v1895
    %v2695 = vmul.f32 %v2649, %v1892
    %v2696 = vmul.f32 %v2649, %v1895
    %v2697 = vmul.f32 %v2650, %v1892
    %v2698 = vmul.f32 %v2650, %v1895
    %v2699 = vmul.f32 %v2651, %v1988
    %v2700 = vmul.f32 %v2651, %v1991
    %v2701 = vmul.f32 %v2652, %v1988
    %v2702 = vmul.f32 %v2652, %v1991
    %v2703 = vmul.f32 %v2653, %v1988
    %v2704 = vmul.f32 %v2653, %v1991
    %v2705 = vmul.f32 %v2654, %v1988
    %v2706 = vmul.f32 %v2654, %v1991
    %v2707 = vmul.f32 %v2655, %v1988
    %v2708 = vmul.f32 %v2655, %v1991
    %v2709 = vmul.f32 %v2656, %v1988
    %v2710 = vmul.f32 %v2656, %v1991
    %v2711 = vmul.f32 %v2657, %v1988
    %v2712 = vmul.f32 %v2657, %v1991
    %v2713 = vmul.f32 %v2658, %v1988
    %v2714 = vmul.f32 %v2658, %v1991
    %v2715 = vmul.f32 %v2659, %v1988
    %v2716 = vmul.f32 %v2659, %v1991
    %v2717 = vmul.f32 %v2660, %v1988
    %v2718 = vmul.f32 %v2660, %v1991
    %v2719 = vmul.f32 %v2661, %v1988
    %v2720 = vmul.f32 %v2661, %v1991
    %v2721 = vmul.f32 %v2662, %v1988
    %v2722 = vmul.f32 %v2662, %v1991
    %v2723 = vmul.f32 %v2663, %v1988
    %v2724 = vmul.f32 %v2663, %v1991
    %v2725 = vmul.f32 %v2664, %v1988
    %v2726 = vmul.f32 %v2664, %v1991
    %v2727 = vmul.f32 %v2665, %v1988
    %v2728 = vmul.f32 %v2665, %v1991
    %v2729 = vmul.f32 %v2666, %v1988
    %v2730 = vmul.f32 %v2666, %v1991
    %v2731 = vadd.f32 %v2571, %v2667
    %v2732 = vadd.f32 %v2572, %v2668
    %v2733 = vadd.f32 %v2573, %v2669
    %v2734 = vadd.f32 %v2574, %v2670
    %v2735 = vadd.f32 %v2575, %v2671
    %v2736 = vadd.f32 %v2576, %v2672
    %v2737 = vadd.f32 %v2577, %v2673
    %v2738 = vadd.f32 %v2578, %v2674
    %v2739 = vadd.f32 %v2579, %v2675
    %v2740 = vadd.f32 %v2580, %v2676
    %v2741 = vadd.f32 %v2581, %v2677
    %v2742 = vadd.f32 %v2582, %v2678
    %v2743 = vadd.f32 %v2583, %v2679
    %v2744 = vadd.f32 %v2584, %v2680
    %v2745 = vadd.f32 %v2585, %v2681
    %v2746 = vadd.f32 %v2586, %v2682
    %v2747 = vadd.f32 %v2587, %v2683
    %v2748 = vadd.f32 %v2588, %v2684
    %v2749 = vadd.f32 %v2589, %v2685
    %v2750 = vadd.f32 %v2590, %v2686
    %v2751 = vadd.f32 %v2591, %v2687
    %v2752 = vadd.f32 %v2592, %v2688
    %v2753 = vadd.f32 %v2593, %v2689
    %v2754 = vadd.f32 %v2594, %v2690
    %v2755 = vadd.f32 %v2595, %v2691
    %v2756 = vadd.f32 %v2596, %v2692
    %v2757 = vadd.f32 %v2597, %v2693
    %v2758 = vadd.f32 %v2598, %v2694
    %v2759 = vadd.f32 %v2599, %v2695
    %v2760 = vadd.f32 %v2600, %v2696
    %v2761 = vadd.f32 %v2601, %v2697
    %v2762 = vadd.f32 %v2602, %v2698
    %v2763 = vadd.f32 %v2603, %v2699
    %v2764 = vadd.f32 %v2604, %v2700
    %v2765 = vadd.f32 %v2605, %v2701
    %v2766 = vadd.f32 %v2606, %v2702
    %v2767 = vadd.f32 %v2607, %v2703
    %v2768 = vadd.f32 %v2608, %v2704
    %v2769 = vadd.f32 %v2609, %v2705
    %v2770 = vadd.f32 %v2610, %v2706
    %v2771 = vadd.f32 %v2611, %v2707
    %v2772 = vadd.f32 %v2612, %v2708
    %v2773 = vadd.f32 %v2613, %v2709
    %v2774 = vadd.f32 %v2614, %v2710
    %v2775 = vadd.f32 %v2615, %v2711
    %v2776 = vadd.f32 %v2616, %v2712
    %v2777 = vadd.f32 %v2617, %v2713
    %v2778 = vadd.f32 %v2618, %v2714
    %v2779 = vadd.f32 %v2619, %v2715
    %v2780 = vadd.f32 %v2620, %v2716
    %v2781 = vadd.f32 %v2621, %v2717
    %v2782 = vadd.f32 %v2622, %v2718
    %v2783 = vadd.f32 %v2623, %v2719
    %v2784 = vadd.f32 %v2624, %v2720
    %v2785 = vadd.f32 %v2625, %v2721
    %v2786 = vadd.f32 %v2626, %v2722
    %v2787 = vadd.f32 %v2627, %v2723
    %v2788 = vadd.f32 %v2628, %v2724
    %v2789 = vadd.f32 %v2629, %v2725
    %v2790 = vadd.f32 %v2630, %v2726
    %v2791 = vadd.f32 %v2631, %v2727
    %v2792 = vadd.f32 %v2632, %v2728
    %v2793 = vadd.f32 %v2633, %v2729
    %v2794 = vadd.f32 %v2634, %v2730
    %v2795 = vperm.slane %v946, 5
    %v2796 = vperm.slane %v952, 5
    %v2797 = vperm.slane %v958, 5
    %v2798 = vperm.slane %v964, 5
    %v2799 = vperm.slane %v970, 5
    %v2800 = vperm.slane %v976, 5
    %v2801 = vperm.slane %v982, 5
    %v2802 = vperm.slane %v988, 5
    %v2803 = vperm.slane %v994, 5
    %v2804 = vperm.slane %v1000, 5
    %v2805 = vperm.slane %v1006, 5
    %v2806 = vperm.slane %v1012, 5
    %v2807 = vperm.slane %v1018, 5
    %v2808 = vperm.slane %v1024, 5
    %v2809 = vperm.slane %v1030, 5
    %v2810 = vperm.slane %v1036, 5
    %v2811 = vperm.slane %v1042, 5
    %v2812 = vperm.slane %v1048, 5
    %v2813 = vperm.slane %v1054, 5
    %v2814 = vperm.slane %v1060, 5
    %v2815 = vperm.slane %v1066, 5
    %v2816 = vperm.slane %v1072, 5
    %v2817 = vperm.slane %v1078, 5
    %v2818 = vperm.slane %v1084, 5
    %v2819 = vperm.slane %v1090, 5
    %v2820 = vperm.slane %v1096, 5
    %v2821 = vperm.slane %v1102, 5
    %v2822 = vperm.slane %v1108, 5
    %v2823 = vperm.slane %v1114, 5
    %v2824 = vperm.slane %v1120, 5
    %v2825 = vperm.slane %v1126, 5
    %v2826 = vperm.slane %v1132, 5
    %v2827 = vmul.f32 %v2795, %v1898
    %v2828 = vmul.f32 %v2795, %v1901
    %v2829 = vmul.f32 %v2796, %v1898
    %v2830 = vmul.f32 %v2796, %v1901
    %v2831 = vmul.f32 %v2797, %v1898
    %v2832 = vmul.f32 %v2797, %v1901
    %v2833 = vmul.f32 %v2798, %v1898
    %v2834 = vmul.f32 %v2798, %v1901
    %v2835 = vmul.f32 %v2799, %v1898
    %v2836 = vmul.f32 %v2799, %v1901
    %v2837 = vmul.f32 %v2800, %v1898
    %v2838 = vmul.f32 %v2800, %v1901
    %v2839 = vmul.f32 %v2801, %v1898
    %v2840 = vmul.f32 %v2801, %v1901
    %v2841 = vmul.f32 %v2802, %v1898
    %v2842 = vmul.f32 %v2802, %v1901
    %v2843 = vmul.f32 %v2803, %v1898
    %v2844 = vmul.f32 %v2803, %v1901
    %v2845 = vmul.f32 %v2804, %v1898
    %v2846 = vmul.f32 %v2804, %v1901
    %v2847 = vmul.f32 %v2805, %v1898
    %v2848 = vmul.f32 %v2805, %v1901
    %v2849 = vmul.f32 %v2806, %v1898
    %v2850 = vmul.f32 %v2806, %v1901
    %v2851 = vmul.f32 %v2807, %v1898
    %v2852 = vmul.f32 %v2807, %v1901
    %v2853 = vmul.f32 %v2808, %v1898
    %v2854 = vmul.f32 %v2808, %v1901
    %v2855 = vmul.f32 %v2809, %v1898
    %v2856 = vmul.f32 %v2809, %v1901
    %v2857 = vmul.f32 %v2810, %v1898
    %v2858 = vmul.f32 %v2810, %v1901
    %v2859 = vmul.f32 %v2811, %v1994
    %v2860 = vmul.f32 %v2811, %v1997
    %v2861 = vmul.f32 %v2812, %v1994
    %v2862 = vmul.f32 %v2812, %v1997
    %v2863 = vmul.f32 %v2813, %v1994
    %v2864 = vmul.f32 %v2813, %v1997
    %v2865 = vmul.f32 %v2814, %v1994
    %v2866 = vmul.f32 %v2814, %v1997
    %v2867 = vmul.f32 %v2815, %v1994
    %v2868 = vmul.f32 %v2815, %v1997
    %v2869 = vmul.f32 %v2816, %v1994
    %v2870 = vmul.f32 %v2816, %v1997
    %v2871 = vmul.f32 %v2817, %v1994
    %v2872 = vmul.f32 %v2817, %v1997
    %v2873 = vmul.f32 %v2818, %v1994
    %v2874 = vmul.f32 %v2818, %v1997
    %v2875 = vmul.f32 %v2819, %v1994
    %v2876 = vmul.f32 %v2819, %v1997
    %v2877 = vmul.f32 %v2820, %v1994
    %v2878 = vmul.f32 %v2820, %v1997
    %v2879 = vmul.f32 %v2821, %v1994
    %v2880 = vmul.f32 %v2821, %v1997
    %v2881 = vmul.f32 %v2822, %v1994
    %v2882 = vmul.f32 %v2822, %v1997
    %v2883 = vmul.f32 %v2823, %v1994
    %v2884 = vmul.f32 %v2823, %v1997
    %v2885 = vmul.f32 %v2824, %v1994
    %v2886 = vmul.f32 %v2824, %v1997
    %v2887 = vmul.f32 %v2825, %v1994
    %v2888 = vmul.f32 %v2825, %v1997
    %v2889 = vmul.f32 %v2826, %v1994
    %v2890 = vmul.f32 %v2826, %v1997
    %v2891 = vadd.f32 %v2731, %v2827
    %v2892 = vadd.f32 %v2732, %v2828
    %v2893 = vadd.f32 %v2733, %v2829
    %v2894 = vadd.f32 %v2734, %v2830
    %v2895 = vadd.f32 %v2735, %v2831
    %v2896 = vadd.f32 %v2736, %v2832
    %v2897 = vadd.f32 %v2737, %v2833
    %v2898 = vadd.f32 %v2738, %v2834
    %v2899 = vadd.f32 %v2739, %v2835
    %v2900 = vadd.f32 %v2740, %v2836
    %v2901 = vadd.f32 %v2741, %v2837
    %v2902 = vadd.f32 %v2742, %v2838
    %v2903 = vadd.f32 %v2743, %v2839
    %v2904 = vadd.f32 %v2744, %v2840
    %v2905 = vadd.f32 %v2745, %v2841
    %v2906 = vadd.f32 %v2746, %v2842
    %v2907 = vadd.f32 %v2747, %v2843
    %v2908 = vadd.f32 %v2748, %v2844
    %v2909 = vadd.f32 %v2749, %v2845
    %v2910 = vadd.f32 %v2750, %v2846
    %v2911 = vadd.f32 %v2751, %v2847
    %v2912 = vadd.f32 %v2752, %v2848
    %v2913 = vadd.f32 %v2753, %v2849
    %v2914 = vadd.f32 %v2754, %v2850
    %v2915 = vadd.f32 %v2755, %v2851
    %v2916 = vadd.f32 %v2756, %v2852
    %v2917 = vadd.f32 %v2757, %v2853
    %v2918 = vadd.f32 %v2758, %v2854
    %v2919 = vadd.f32 %v2759, %v2855
    %v2920 = vadd.f32 %v2760, %v2856
    %v2921 = vadd.f32 %v2761, %v2857
    %v2922 = vadd.f32 %v2762, %v2858
    %v2923 = vadd.f32 %v2763, %v2859
    %v2924 = vadd.f32 %v2764, %v2860
    %v2925 = vadd.f32 %v2765, %v2861
    %v2926 = vadd.f32 %v2766, %v2862
    %v2927 = vadd.f32 %v2767, %v2863
    %v2928 = vadd.f32 %v2768, %v2864
    %v2929 = vadd.f32 %v2769, %v2865
    %v2930 = vadd.f32 %v2770, %v2866
    %v2931 = vadd.f32 %v2771, %v2867
    %v2932 = vadd.f32 %v2772, %v2868
    %v2933 = vadd.f32 %v2773, %v2869
    %v2934 = vadd.f32 %v2774, %v2870
    %v2935 = vadd.f32 %v2775, %v2871
    %v2936 = vadd.f32 %v2776, %v2872
    %v2937 = vadd.f32 %v2777, %v2873
    %v2938 = vadd.f32 %v2778, %v2874
    %v2939 = vadd.f32 %v2779, %v2875
    %v2940 = vadd.f32 %v2780, %v2876
    %v2941 = vadd.f32 %v2781, %v2877
    %v2942 = vadd.f32 %v2782, %v2878
    %v2943 = vadd.f32 %v2783, %v2879
    %v2944 = vadd.f32 %v2784, %v2880
    %v2945 = vadd.f32 %v2785, %v2881
    %v2946 = vadd.f32 %v2786, %v2882
    %v2947 = vadd.f32 %v2787, %v2883
    %v2948 = vadd.f32 %v2788, %v2884
    %v2949 = vadd.f32 %v2789, %v2885
    %v2950 = vadd.f32 %v2790, %v2886
    %v2951 = vadd.f32 %v2791, %v2887
    %v2952 = vadd.f32 %v2792, %v2888
    %v2953 = vadd.f32 %v2793, %v2889
    %v2954 = vadd.f32 %v2794, %v2890
    %v2955 = vperm.slane %v946, 6
    %v2956 = vperm.slane %v952, 6
    %v2957 = vperm.slane %v958, 6
    %v2958 = vperm.slane %v964, 6
    %v2959 = vperm.slane %v970, 6
    %v2960 = vperm.slane %v976, 6
    %v2961 = vperm.slane %v982, 6
    %v2962 = vperm.slane %v988, 6
    %v2963 = vperm.slane %v994, 6
    %v2964 = vperm.slane %v1000, 6
    %v2965 = vperm.slane %v1006, 6
    %v2966 = vperm.slane %v1012, 6
    %v2967 = vperm.slane %v1018, 6
    %v2968 = vperm.slane %v1024, 6
    %v2969 = vperm.slane %v1030, 6
    %v2970 = vperm.slane %v1036, 6
    %v2971 = vperm.slane %v1042, 6
    %v2972 = vperm.slane %v1048, 6
    %v2973 = vperm.slane %v1054, 6
    %v2974 = vperm.slane %v1060, 6
    %v2975 = vperm.slane %v1066, 6
    %v2976 = vperm.slane %v1072, 6
    %v2977 = vperm.slane %v1078, 6
    %v2978 = vperm.slane %v1084, 6
    %v2979 = vperm.slane %v1090, 6
    %v2980 = vperm.slane %v1096, 6
    %v2981 = vperm.slane %v1102, 6
    %v2982 = vperm.slane %v1108, 6
    %v2983 = vperm.slane %v1114, 6
    %v2984 = vperm.slane %v1120, 6
    %v2985 = vperm.slane %v1126, 6
    %v2986 = vperm.slane %v1132, 6
    %v2987 = vmul.f32 %v2955, %v1904
    %v2988 = vmul.f32 %v2955, %v1907
    %v2989 = vmul.f32 %v2956, %v1904
    %v2990 = vmul.f32 %v2956, %v1907
    %v2991 = vmul.f32 %v2957, %v1904
    %v2992 = vmul.f32 %v2957, %v1907
    %v2993 = vmul.f32 %v2958, %v1904
    %v2994 = vmul.f32 %v2958, %v1907
    %v2995 = vmul.f32 %v2959, %v1904
    %v2996 = vmul.f32 %v2959, %v1907
    %v2997 = vmul.f32 %v2960, %v1904
    %v2998 = vmul.f32 %v2960, %v1907
    %v2999 = vmul.f32 %v2961, %v1904
    %v3000 = vmul.f32 %v2961, %v1907
    %v3001 = vmul.f32 %v2962, %v1904
    %v3002 = vmul.f32 %v2962, %v1907
    %v3003 = vmul.f32 %v2963, %v1904
    %v3004 = vmul.f32 %v2963, %v1907
    %v3005 = vmul.f32 %v2964, %v1904
    %v3006 = vmul.f32 %v2964, %v1907
    %v3007 = vmul.f32 %v2965, %v1904
    %v3008 = vmul.f32 %v2965, %v1907
    %v3009 = vmul.f32 %v2966, %v1904
    %v3010 = vmul.f32 %v2966, %v1907
    %v3011 = vmul.f32 %v2967, %v1904
    %v3012 = vmul.f32 %v2967, %v1907
    %v3013 = vmul.f32 %v2968, %v1904
    %v3014 = vmul.f32 %v2968, %v1907
    %v3015 = vmul.f32 %v2969, %v1904
    %v3016 = vmul.f32 %v2969, %v1907
    %v3017 = vmul.f32 %v2970, %v1904
    %v3018 = vmul.f32 %v2970, %v1907
    %v3019 = vmul.f32 %v2971, %v2000
    %v3020 = vmul.f32 %v2971, %v2003
    %v3021 = vmul.f32 %v2972, %v2000
    %v3022 = vmul.f32 %v2972, %v2003
    %v3023 = vmul.f32 %v2973, %v2000
    %v3024 = vmul.f32 %v2973, %v2003
    %v3025 = vmul.f32 %v2974, %v2000
    %v3026 = vmul.f32 %v2974, %v2003
    %v3027 = vmul.f32 %v2975, %v2000
    %v3028 = vmul.f32 %v2975, %v2003
    %v3029 = vmul.f32 %v2976, %v2000
    %v3030 = vmul.f32 %v2976, %v2003
    %v3031 = vmul.f32 %v2977, %v2000
    %v3032 = vmul.f32 %v2977, %v2003
    %v3033 = vmul.f32 %v2978, %v2000
    %v3034 = vmul.f32 %v2978, %v2003
    %v3035 = vmul.f32 %v2979, %v2000
    %v3036 = vmul.f32 %v2979, %v2003
    %v3037 = vmul.f32 %v2980, %v2000
    %v3038 = vmul.f32 %v2980, %v2003
    %v3039 = vmul.f32 %v2981, %v2000
    %v3040 = vmul.f32 %v2981, %v2003
    %v3041 = vmul.f32 %v2982, %v2000
    %v3042 = vmul.f32 %v2982, %v2003
    %v3043 = vmul.f32 %v2983, %v2000
    %v3044 = vmul.f32 %v2983, %v2003
    %v3045 = vmul.f32 %v2984, %v2000
    %v3046 = vmul.f32 %v2984, %v2003
    %v3047 = vmul.f32 %v2985, %v2000
    %v3048 = vmul.f32 %v2985, %v2003
    %v3049 = vmul.f32 %v2986, %v2000
    %v3050 = vmul.f32 %v2986, %v2003
    %v3051 = vadd.f32 %v2891, %v2987
    %v3052 = vadd.f32 %v2892, %v2988
    %v3053 = vadd.f32 %v2893, %v2989
    %v3054 = vadd.f32 %v2894, %v2990
    %v3055 = vadd.f32 %v2895, %v2991
    %v3056 = vadd.f32 %v2896, %v2992
    %v3057 = vadd.f32 %v2897, %v2993
    %v3058 = vadd.f32 %v2898, %v2994
    %v3059 = vadd.f32 %v2899, %v2995
    %v3060 = vadd.f32 %v2900, %v2996
    %v3061 = vadd.f32 %v2901, %v2997
    %v3062 = vadd.f32 %v2902, %v2998
    %v3063 = vadd.f32 %v2903, %v2999
    %v3064 = vadd.f32 %v2904, %v3000
    %v3065 = vadd.f32 %v2905, %v3001
    %v3066 = vadd.f32 %v2906, %v3002
    %v3067 = vadd.f32 %v2907, %v3003
    %v3068 = vadd.f32 %v2908, %v3004
    %v3069 = vadd.f32 %v2909, %v3005
    %v3070 = vadd.f32 %v2910, %v3006
    %v3071 = vadd.f32 %v2911, %v3007
    %v3072 = vadd.f32 %v2912, %v3008
    %v3073 = vadd.f32 %v2913, %v3009
    %v3074 = vadd.f32 %v2914, %v3010
    %v3075 = vadd.f32 %v2915, %v3011
    %v3076 = vadd.f32 %v2916, %v3012
    %v3077 = vadd.f32 %v2917, %v3013
    %v3078 = vadd.f32 %v2918, %v3014
    %v3079 = vadd.f32 %v2919, %v3015
    %v3080 = vadd.f32 %v2920, %v3016
    %v3081 = vadd.f32 %v2921, %v3017
    %v3082 = vadd.f32 %v2922, %v3018
    %v3083 = vadd.f32 %v2923, %v3019
    %v3084 = vadd.f32 %v2924, %v3020
    %v3085 = vadd.f32 %v2925, %v3021
    %v3086 = vadd.f32 %v2926, %v3022
    %v3087 = vadd.f32 %v2927, %v3023
    %v3088 = vadd.f32 %v2928, %v3024
    %v3089 = vadd.f32 %v2929, %v3025
    %v3090 = vadd.f32 %v2930, %v3026
    %v3091 = vadd.f32 %v2931, %v3027
    %v3092 = vadd.f32 %v2932, %v3028
    %v3093 = vadd.f32 %v2933, %v3029
    %v3094 = vadd.f32 %v2934, %v3030
    %v3095 = vadd.f32 %v2935, %v3031
    %v3096 = vadd.f32 %v2936, %v3032
    %v3097 = vadd.f32 %v2937, %v3033
    %v3098 = vadd.f32 %v2938, %v3034
    %v3099 = vadd.f32 %v2939, %v3035
    %v3100 = vadd.f32 %v2940, %v3036
    %v3101 = vadd.f32 %v2941, %v3037
    %v3102 = vadd.f32 %v2942, %v3038
    %v3103 = vadd.f32 %v2943, %v3039
    %v3104 = vadd.f32 %v2944, %v3040
    %v3105 = vadd.f32 %v2945, %v3041
    %v3106 = vadd.f32 %v2946, %v3042
    %v3107 = vadd.f32 %v2947, %v3043
    %v3108 = vadd.f32 %v2948, %v3044
    %v3109 = vadd.f32 %v2949, %v3045
    %v3110 = vadd.f32 %v2950, %v3046
    %v3111 = vadd.f32 %v2951, %v3047
    %v3112 = vadd.f32 %v2952, %v3048
    %v3113 = vadd.f32 %v2953, %v3049
    %v3114 = vadd.f32 %v2954, %v3050
    %v3115 = vperm.slane %v946, 7
    %v3116 = vperm.slane %v952, 7
    %v3117 = vperm.slane %v958, 7
    %v3118 = vperm.slane %v964, 7
    %v3119 = vperm.slane %v970, 7
    %v3120 = vperm.slane %v976, 7
    %v3121 = vperm.slane %v982, 7
    %v3122 = vperm.slane %v988, 7
    %v3123 = vperm.slane %v994, 7
    %v3124 = vperm.slane %v1000, 7
    %v3125 = vperm.slane %v1006, 7
    %v3126 = vperm.slane %v1012, 7
    %v3127 = vperm.slane %v1018, 7
    %v3128 = vperm.slane %v1024, 7
    %v3129 = vperm.slane %v1030, 7
    %v3130 = vperm.slane %v1036, 7
    %v3131 = vperm.slane %v1042, 7
    %v3132 = vperm.slane %v1048, 7
    %v3133 = vperm.slane %v1054, 7
    %v3134 = vperm.slane %v1060, 7
    %v3135 = vperm.slane %v1066, 7
    %v3136 = vperm.slane %v1072, 7
    %v3137 = vperm.slane %v1078, 7
    %v3138 = vperm.slane %v1084, 7
    %v3139 = vperm.slane %v1090, 7
    %v3140 = vperm.slane %v1096, 7
    %v3141 = vperm.slane %v1102, 7
    %v3142 = vperm.slane %v1108, 7
    %v3143 = vperm.slane %v1114, 7
    %v3144 = vperm.slane %v1120, 7
    %v3145 = vperm.slane %v1126, 7
    %v3146 = vperm.slane %v1132, 7
    %v3147 = vmul.f32 %v3115, %v1910
    %v3148 = vmul.f32 %v3115, %v1913
    %v3149 = vmul.f32 %v3116, %v1910
    %v3150 = vmul.f32 %v3116, %v1913
    %v3151 = vmul.f32 %v3117, %v1910
    %v3152 = vmul.f32 %v3117, %v1913
    %v3153 = vmul.f32 %v3118, %v1910
    %v3154 = vmul.f32 %v3118, %v1913
    %v3155 = vmul.f32 %v3119, %v1910
    %v3156 = vmul.f32 %v3119, %v1913
    %v3157 = vmul.f32 %v3120, %v1910
    %v3158 = vmul.f32 %v3120, %v1913
    %v3159 = vmul.f32 %v3121, %v1910
    %v3160 = vmul.f32 %v3121, %v1913
    %v3161 = vmul.f32 %v3122, %v1910
    %v3162 = vmul.f32 %v3122, %v1913
    %v3163 = vmul.f32 %v3123, %v1910
    %v3164 = vmul.f32 %v3123, %v1913
    %v3165 = vmul.f32 %v3124, %v1910
    %v3166 = vmul.f32 %v3124, %v1913
    %v3167 = vmul.f32 %v3125, %v1910
    %v3168 = vmul.f32 %v3125, %v1913
    %v3169 = vmul.f32 %v3126, %v1910
    %v3170 = vmul.f32 %v3126, %v1913
    %v3171 = vmul.f32 %v3127, %v1910
    %v3172 = vmul.f32 %v3127, %v1913
    %v3173 = vmul.f32 %v3128, %v1910
    %v3174 = vmul.f32 %v3128, %v1913
    %v3175 = vmul.f32 %v3129, %v1910
    %v3176 = vmul.f32 %v3129, %v1913
    %v3177 = vmul.f32 %v3130, %v1910
    %v3178 = vmul.f32 %v3130, %v1913
    %v3179 = vmul.f32 %v3131, %v2006
    %v3180 = vmul.f32 %v3131, %v2009
    %v3181 = vmul.f32 %v3132, %v2006
    %v3182 = vmul.f32 %v3132, %v2009
    %v3183 = vmul.f32 %v3133, %v2006
    %v3184 = vmul.f32 %v3133, %v2009
    %v3185 = vmul.f32 %v3134, %v2006
    %v3186 = vmul.f32 %v3134, %v2009
    %v3187 = vmul.f32 %v3135, %v2006
    %v3188 = vmul.f32 %v3135, %v2009
    %v3189 = vmul.f32 %v3136, %v2006
    %v3190 = vmul.f32 %v3136, %v2009
    %v3191 = vmul.f32 %v3137, %v2006
    %v3192 = vmul.f32 %v3137, %v2009
    %v3193 = vmul.f32 %v3138, %v2006
    %v3194 = vmul.f32 %v3138, %v2009
    %v3195 = vmul.f32 %v3139, %v2006
    %v3196 = vmul.f32 %v3139, %v2009
    %v3197 = vmul.f32 %v3140, %v2006
    %v3198 = vmul.f32 %v3140, %v2009
    %v3199 = vmul.f32 %v3141, %v2006
    %v3200 = vmul.f32 %v3141, %v2009
    %v3201 = vmul.f32 %v3142, %v2006
    %v3202 = vmul.f32 %v3142, %v2009
    %v3203 = vmul.f32 %v3143, %v2006
    %v3204 = vmul.f32 %v3143, %v2009
    %v3205 = vmul.f32 %v3144, %v2006
    %v3206 = vmul.f32 %v3144, %v2009
    %v3207 = vmul.f32 %v3145, %v2006
    %v3208 = vmul.f32 %v3145, %v2009
    %v3209 = vmul.f32 %v3146, %v2006
    %v3210 = vmul.f32 %v3146, %v2009
    %v3211 = vadd.f32 %v3051, %v3147
    %v3212 = vadd.f32 %v3052, %v3148
    %v3213 = vadd.f32 %v3053, %v3149
    %v3214 = vadd.f32 %v3054, %v3150
    %v3215 = vadd.f32 %v3055, %v3151
    %v3216 = vadd.f32 %v3056, %v3152
    %v3217 = vadd.f32 %v3057, %v3153
    %v3218 = vadd.f32 %v3058, %v3154
    %v3219 = vadd.f32 %v3059, %v3155
    %v3220 = vadd.f32 %v3060, %v3156
    %v3221 = vadd.f32 %v3061, %v3157
    %v3222 = vadd.f32 %v3062, %v3158
    %v3223 = vadd.f32 %v3063, %v3159
    %v3224 = vadd.f32 %v3064, %v3160
    %v3225 = vadd.f32 %v3065, %v3161
    %v3226 = vadd.f32 %v3066, %v3162
    %v3227 = vadd.f32 %v3067, %v3163
    %v3228 = vadd.f32 %v3068, %v3164
    %v3229 = vadd.f32 %v3069, %v3165
    %v3230 = vadd.f32 %v3070, %v3166
    %v3231 = vadd.f32 %v3071, %v3167
    %v3232 = vadd.f32 %v3072, %v3168
    %v3233 = vadd.f32 %v3073, %v3169
    %v3234 = vadd.f32 %v3074, %v3170
    %v3235 = vadd.f32 %v3075, %v3171
    %v3236 = vadd.f32 %v3076, %v3172
    %v3237 = vadd.f32 %v3077, %v3173
    %v3238 = vadd.f32 %v3078, %v3174
    %v3239 = vadd.f32 %v3079, %v3175
    %v3240 = vadd.f32 %v3080, %v3176
    %v3241 = vadd.f32 %v3081, %v3177
    %v3242 = vadd.f32 %v3082, %v3178
    %v3243 = vadd.f32 %v3083, %v3179
    %v3244 = vadd.f32 %v3084, %v3180
    %v3245 = vadd.f32 %v3085, %v3181
    %v3246 = vadd.f32 %v3086, %v3182
    %v3247 = vadd.f32 %v3087, %v3183
    %v3248 = vadd.f32 %v3088, %v3184
    %v3249 = vadd.f32 %v3089, %v3185
    %v3250 = vadd.f32 %v3090, %v3186
    %v3251 = vadd.f32 %v3091, %v3187
    %v3252 = vadd.f32 %v3092, %v3188
    %v3253 = vadd.f32 %v3093, %v3189
    %v3254 = vadd.f32 %v3094, %v3190
    %v3255 = vadd.f32 %v3095, %v3191
    %v3256 = vadd.f32 %v3096, %v3192
    %v3257 = vadd.f32 %v3097, %v3193
    %v3258 = vadd.f32 %v3098, %v3194
    %v3259 = vadd.f32 %v3099, %v3195
    %v3260 = vadd.f32 %v3100, %v3196
    %v3261 = vadd.f32 %v3101, %v3197
    %v3262 = vadd.f32 %v3102, %v3198
    %v3263 = vadd.f32 %v3103, %v3199
    %v3264 = vadd.f32 %v3104, %v3200
    %v3265 = vadd.f32 %v3105, %v3201
    %v3266 = vadd.f32 %v3106, %v3202
    %v3267 = vadd.f32 %v3107, %v3203
    %v3268 = vadd.f32 %v3108, %v3204
    %v3269 = vadd.f32 %v3109, %v3205
    %v3270 = vadd.f32 %v3110, %v3206
    %v3271 = vadd.f32 %v3111, %v3207
    %v3272 = vadd.f32 %v3112, %v3208
    %v3273 = vadd.f32 %v3113, %v3209
    %v3274 = vadd.f32 %v3114, %v3210
    %v3275 = vperm.slane %v949, 0
    %v3276 = vperm.slane %v955, 0
    %v3277 = vperm.slane %v961, 0
    %v3278 = vperm.slane %v967, 0
    %v3279 = vperm.slane %v973, 0
    %v3280 = vperm.slane %v979, 0
    %v3281 = vperm.slane %v985, 0
    %v3282 = vperm.slane %v991, 0
    %v3283 = vperm.slane %v997, 0
    %v3284 = vperm.slane %v1003, 0
    %v3285 = vperm.slane %v1009, 0
    %v3286 = vperm.slane %v1015, 0
    %v3287 = vperm.slane %v1021, 0
    %v3288 = vperm.slane %v1027, 0
    %v3289 = vperm.slane %v1033, 0
    %v3290 = vperm.slane %v1039, 0
    %v3291 = vperm.slane %v1045, 0
    %v3292 = vperm.slane %v1051, 0
    %v3293 = vperm.slane %v1057, 0
    %v3294 = vperm.slane %v1063, 0
    %v3295 = vperm.slane %v1069, 0
    %v3296 = vperm.slane %v1075, 0
    %v3297 = vperm.slane %v1081, 0
    %v3298 = vperm.slane %v1087, 0
    %v3299 = vperm.slane %v1093, 0
    %v3300 = vperm.slane %v1099, 0
    %v3301 = vperm.slane %v1105, 0
    %v3302 = vperm.slane %v1111, 0
    %v3303 = vperm.slane %v1117, 0
    %v3304 = vperm.slane %v1123, 0
    %v3305 = vperm.slane %v1129, 0
    %v3306 = vperm.slane %v1135, 0
    %v3307 = vmul.f32 %v3275, %v1916
    %v3308 = vmul.f32 %v3275, %v1919
    %v3309 = vmul.f32 %v3276, %v1916
    %v3310 = vmul.f32 %v3276, %v1919
    %v3311 = vmul.f32 %v3277, %v1916
    %v3312 = vmul.f32 %v3277, %v1919
    %v3313 = vmul.f32 %v3278, %v1916
    %v3314 = vmul.f32 %v3278, %v1919
    %v3315 = vmul.f32 %v3279, %v1916
    %v3316 = vmul.f32 %v3279, %v1919
    %v3317 = vmul.f32 %v3280, %v1916
    %v3318 = vmul.f32 %v3280, %v1919
    %v3319 = vmul.f32 %v3281, %v1916
    %v3320 = vmul.f32 %v3281, %v1919
    %v3321 = vmul.f32 %v3282, %v1916
    %v3322 = vmul.f32 %v3282, %v1919
    %v3323 = vmul.f32 %v3283, %v1916
    %v3324 = vmul.f32 %v3283, %v1919
    %v3325 = vmul.f32 %v3284, %v1916
    %v3326 = vmul.f32 %v3284, %v1919
    %v3327 = vmul.f32 %v3285, %v1916
    %v3328 = vmul.f32 %v3285, %v1919
    %v3329 = vmul.f32 %v3286, %v1916
    %v3330 = vmul.f32 %v3286, %v1919
    %v3331 = vmul.f32 %v3287, %v1916
    %v3332 = vmul.f32 %v3287, %v1919
    %v3333 = vmul.f32 %v3288, %v1916
    %v3334 = vmul.f32 %v3288, %v1919
    %v3335 = vmul.f32 %v3289, %v1916
    %v3336 = vmul.f32 %v3289, %v1919
    %v3337 = vmul.f32 %v3290, %v1916
    %v3338 = vmul.f32 %v3290, %v1919
    %v3339 = vmul.f32 %v3291, %v2012
    %v3340 = vmul.f32 %v3291, %v2015
    %v3341 = vmul.f32 %v3292, %v2012
    %v3342 = vmul.f32 %v3292, %v2015
    %v3343 = vmul.f32 %v3293, %v2012
    %v3344 = vmul.f32 %v3293, %v2015
    %v3345 = vmul.f32 %v3294, %v2012
    %v3346 = vmul.f32 %v3294, %v2015
    %v3347 = vmul.f32 %v3295, %v2012
    %v3348 = vmul.f32 %v3295, %v2015
    %v3349 = vmul.f32 %v3296, %v2012
    %v3350 = vmul.f32 %v3296, %v2015
    %v3351 = vmul.f32 %v3297, %v2012
    %v3352 = vmul.f32 %v3297, %v2015
    %v3353 = vmul.f32 %v3298, %v2012
    %v3354 = vmul.f32 %v3298, %v2015
    %v3355 = vmul.f32 %v3299, %v2012
    %v3356 = vmul.f32 %v3299, %v2015
    %v3357 = vmul.f32 %v3300, %v2012
    %v3358 = vmul.f32 %v3300, %v2015
    %v3359 = vmul.f32 %v3301, %v2012
    %v3360 = vmul.f32 %v3301, %v2015
    %v3361 = vmul.f32 %v3302, %v2012
    %v3362 = vmul.f32 %v3302, %v2015
    %v3363 = vmul.f32 %v3303, %v2012
    %v3364 = vmul.f32 %v3303, %v2015
    %v3365 = vmul.f32 %v3304, %v2012
    %v3366 = vmul.f32 %v3304, %v2015
    %v3367 = vmul.f32 %v3305, %v2012
    %v3368 = vmul.f32 %v3305, %v2015
    %v3369 = vmul.f32 %v3306, %v2012
    %v3370 = vmul.f32 %v3306, %v2015
    %v3371 = vadd.f32 %v3211, %v3307
    %v3372 = vadd.f32 %v3212, %v3308
    %v3373 = vadd.f32 %v3213, %v3309
    %v3374 = vadd.f32 %v3214, %v3310
    %v3375 = vadd.f32 %v3215, %v3311
    %v3376 = vadd.f32 %v3216, %v3312
    %v3377 = vadd.f32 %v3217, %v3313
    %v3378 = vadd.f32 %v3218, %v3314
    %v3379 = vadd.f32 %v3219, %v3315
    %v3380 = vadd.f32 %v3220, %v3316
    %v3381 = vadd.f32 %v3221, %v3317
    %v3382 = vadd.f32 %v3222, %v3318
    %v3383 = vadd.f32 %v3223, %v3319
    %v3384 = vadd.f32 %v3224, %v3320
    %v3385 = vadd.f32 %v3225, %v3321
    %v3386 = vadd.f32 %v3226, %v3322
    %v3387 = vadd.f32 %v3227, %v3323
    %v3388 = vadd.f32 %v3228, %v3324
    %v3389 = vadd.f32 %v3229, %v3325
    %v3390 = vadd.f32 %v3230, %v3326
    %v3391 = vadd.f32 %v3231, %v3327
    %v3392 = vadd.f32 %v3232, %v3328
    %v3393 = vadd.f32 %v3233, %v3329
    %v3394 = vadd.f32 %v3234, %v3330
    %v3395 = vadd.f32 %v3235, %v3331
    %v3396 = vadd.f32 %v3236, %v3332
    %v3397 = vadd.f32 %v3237, %v3333
    %v3398 = vadd.f32 %v3238, %v3334
    %v3399 = vadd.f32 %v3239, %v3335
    %v3400 = vadd.f32 %v3240, %v3336
    %v3401 = vadd.f32 %v3241, %v3337
    %v3402 = vadd.f32 %v3242, %v3338
    %v3403 = vadd.f32 %v3243, %v3339
    %v3404 = vadd.f32 %v3244, %v3340
    %v3405 = vadd.f32 %v3245, %v3341
    %v3406 = vadd.f32 %v3246, %v3342
    %v3407 = vadd.f32 %v3247, %v3343
    %v3408 = vadd.f32 %v3248, %v3344
    %v3409 = vadd.f32 %v3249, %v3345
    %v3410 = vadd.f32 %v3250, %v3346
    %v3411 = vadd.f32 %v3251, %v3347
    %v3412 = vadd.f32 %v3252, %v3348
    %v3413 = vadd.f32 %v3253, %v3349
    %v3414 = vadd.f32 %v3254, %v3350
    %v3415 = vadd.f32 %v3255, %v3351
    %v3416 = vadd.f32 %v3256, %v3352
    %v3417 = vadd.f32 %v3257, %v3353
    %v3418 = vadd.f32 %v3258, %v3354
    %v3419 = vadd.f32 %v3259, %v3355
    %v3420 = vadd.f32 %v3260, %v3356
    %v3421 = vadd.f32 %v3261, %v3357
    %v3422 = vadd.f32 %v3262, %v3358
    %v3423 = vadd.f32 %v3263, %v3359
    %v3424 = vadd.f32 %v3264, %v3360
    %v3425 = vadd.f32 %v3265, %v3361
    %v3426 = vadd.f32 %v3266, %v3362
    %v3427 = vadd.f32 %v3267, %v3363
    %v3428 = vadd.f32 %v3268, %v3364
    %v3429 = vadd.f32 %v3269, %v3365
    %v3430 = vadd.f32 %v3270, %v3366
    %v3431 = vadd.f32 %v3271, %v3367
    %v3432 = vadd.f32 %v3272, %v3368
    %v3433 = vadd.f32 %v3273, %v3369
    %v3434 = vadd.f32 %v3274, %v3370
    %v3435 = vperm.slane %v949, 1
    %v3436 = vperm.slane %v955, 1
    %v3437 = vperm.slane %v961, 1
    %v3438 = vperm.slane %v967, 1
    %v3439 = vperm.slane %v973, 1
    %v3440 = vperm.slane %v979, 1
    %v3441 = vperm.slane %v985, 1
    %v3442 = vperm.slane %v991, 1
    %v3443 = vperm.slane %v997, 1
    %v3444 = vperm.slane %v1003, 1
    %v3445 = vperm.slane %v1009, 1
    %v3446 = vperm.slane %v1015, 1
    %v3447 = vperm.slane %v1021, 1
    %v3448 = vperm.slane %v1027, 1
    %v3449 = vperm.slane %v1033, 1
    %v3450 = vperm.slane %v1039, 1
    %v3451 = vperm.slane %v1045, 1
    %v3452 = vperm.slane %v1051, 1
    %v3453 = vperm.slane %v1057, 1
    %v3454 = vperm.slane %v1063, 1
    %v3455 = vperm.slane %v1069, 1
    %v3456 = vperm.slane %v1075, 1
    %v3457 = vperm.slane %v1081, 1
    %v3458 = vperm.slane %v1087, 1
    %v3459 = vperm.slane %v1093, 1
    %v3460 = vperm.slane %v1099, 1
    %v3461 = vperm.slane %v1105, 1
    %v3462 = vperm.slane %v1111, 1
    %v3463 = vperm.slane %v1117, 1
    %v3464 = vperm.slane %v1123, 1
    %v3465 = vperm.slane %v1129, 1
    %v3466 = vperm.slane %v1135, 1
    %v3467 = vmul.f32 %v3435, %v1922
    %v3468 = vmul.f32 %v3435, %v1925
    %v3469 = vmul.f32 %v3436, %v1922
    %v3470 = vmul.f32 %v3436, %v1925
    %v3471 = vmul.f32 %v3437, %v1922
    %v3472 = vmul.f32 %v3437, %v1925
    %v3473 = vmul.f32 %v3438, %v1922
    %v3474 = vmul.f32 %v3438, %v1925
    %v3475 = vmul.f32 %v3439, %v1922
    %v3476 = vmul.f32 %v3439, %v1925
    %v3477 = vmul.f32 %v3440, %v1922
    %v3478 = vmul.f32 %v3440, %v1925
    %v3479 = vmul.f32 %v3441, %v1922
    %v3480 = vmul.f32 %v3441, %v1925
    %v3481 = vmul.f32 %v3442, %v1922
    %v3482 = vmul.f32 %v3442, %v1925
    %v3483 = vmul.f32 %v3443, %v1922
    %v3484 = vmul.f32 %v3443, %v1925
    %v3485 = vmul.f32 %v3444, %v1922
    %v3486 = vmul.f32 %v3444, %v1925
    %v3487 = vmul.f32 %v3445, %v1922
    %v3488 = vmul.f32 %v3445, %v1925
    %v3489 = vmul.f32 %v3446, %v1922
    %v3490 = vmul.f32 %v3446, %v1925
    %v3491 = vmul.f32 %v3447, %v1922
    %v3492 = vmul.f32 %v3447, %v1925
    %v3493 = vmul.f32 %v3448, %v1922
    %v3494 = vmul.f32 %v3448, %v1925
    %v3495 = vmul.f32 %v3449, %v1922
    %v3496 = vmul.f32 %v3449, %v1925
    %v3497 = vmul.f32 %v3450, %v1922
    %v3498 = vmul.f32 %v3450, %v1925
    %v3499 = vmul.f32 %v3451, %v2018
    %v3500 = vmul.f32 %v3451, %v2021
    %v3501 = vmul.f32 %v3452, %v2018
    %v3502 = vmul.f32 %v3452, %v2021
    %v3503 = vmul.f32 %v3453, %v2018
    %v3504 = vmul.f32 %v3453, %v2021
    %v3505 = vmul.f32 %v3454, %v2018
    %v3506 = vmul.f32 %v3454, %v2021
    %v3507 = vmul.f32 %v3455, %v2018
    %v3508 = vmul.f32 %v3455, %v2021
    %v3509 = vmul.f32 %v3456, %v2018
    %v3510 = vmul.f32 %v3456, %v2021
    %v3511 = vmul.f32 %v3457, %v2018
    %v3512 = vmul.f32 %v3457, %v2021
    %v3513 = vmul.f32 %v3458, %v2018
    %v3514 = vmul.f32 %v3458, %v2021
    %v3515 = vmul.f32 %v3459, %v2018
    %v3516 = vmul.f32 %v3459, %v2021
    %v3517 = vmul.f32 %v3460, %v2018
    %v3518 = vmul.f32 %v3460, %v2021
    %v3519 = vmul.f32 %v3461, %v2018
    %v3520 = vmul.f32 %v3461, %v2021
    %v3521 = vmul.f32 %v3462, %v2018
    %v3522 = vmul.f32 %v3462, %v2021
    %v3523 = vmul.f32 %v3463, %v2018
    %v3524 = vmul.f32 %v3463, %v2021
    %v3525 = vmul.f32 %v3464, %v2018
    %v3526 = vmul.f32 %v3464, %v2021
    %v3527 = vmul.f32 %v3465, %v2018
    %v3528 = vmul.f32 %v3465, %v2021
    %v3529 = vmul.f32 %v3466, %v2018
    %v3530 = vmul.f32 %v3466, %v2021
    %v3531 = vadd.f32 %v3371, %v3467
    %v3532 = vadd.f32 %v3372, %v3468
    %v3533 = vadd.f32 %v3373, %v3469
    %v3534 = vadd.f32 %v3374, %v3470
    %v3535 = vadd.f32 %v3375, %v3471
    %v3536 = vadd.f32 %v3376, %v3472
    %v3537 = vadd.f32 %v3377, %v3473
    %v3538 = vadd.f32 %v3378, %v3474
    %v3539 = vadd.f32 %v3379, %v3475
    %v3540 = vadd.f32 %v3380, %v3476
    %v3541 = vadd.f32 %v3381, %v3477
    %v3542 = vadd.f32 %v3382, %v3478
    %v3543 = vadd.f32 %v3383, %v3479
    %v3544 = vadd.f32 %v3384, %v3480
    %v3545 = vadd.f32 %v3385, %v3481
    %v3546 = vadd.f32 %v3386, %v3482
    %v3547 = vadd.f32 %v3387, %v3483
    %v3548 = vadd.f32 %v3388, %v3484
    %v3549 = vadd.f32 %v3389, %v3485
    %v3550 = vadd.f32 %v3390, %v3486
    %v3551 = vadd.f32 %v3391, %v3487
    %v3552 = vadd.f32 %v3392, %v3488
    %v3553 = vadd.f32 %v3393, %v3489
    %v3554 = vadd.f32 %v3394, %v3490
    %v3555 = vadd.f32 %v3395, %v3491
    %v3556 = vadd.f32 %v3396, %v3492
    %v3557 = vadd.f32 %v3397, %v3493
    %v3558 = vadd.f32 %v3398, %v3494
    %v3559 = vadd.f32 %v3399, %v3495
    %v3560 = vadd.f32 %v3400, %v3496
    %v3561 = vadd.f32 %v3401, %v3497
    %v3562 = vadd.f32 %v3402, %v3498
    %v3563 = vadd.f32 %v3403, %v3499
    %v3564 = vadd.f32 %v3404, %v3500
    %v3565 = vadd.f32 %v3405, %v3501
    %v3566 = vadd.f32 %v3406, %v3502
    %v3567 = vadd.f32 %v3407, %v3503
    %v3568 = vadd.f32 %v3408, %v3504
    %v3569 = vadd.f32 %v3409, %v3505
    %v3570 = vadd.f32 %v3410, %v3506
    %v3571 = vadd.f32 %v3411, %v3507
    %v3572 = vadd.f32 %v3412, %v3508
    %v3573 = vadd.f32 %v3413, %v3509
    %v3574 = vadd.f32 %v3414, %v3510
    %v3575 = vadd.f32 %v3415, %v3511
    %v3576 = vadd.f32 %v3416, %v3512
    %v3577 = vadd.f32 %v3417, %v3513
    %v3578 = vadd.f32 %v3418, %v3514
    %v3579 = vadd.f32 %v3419, %v3515
    %v3580 = vadd.f32 %v3420, %v3516
    %v3581 = vadd.f32 %v3421, %v3517
    %v3582 = vadd.f32 %v3422, %v3518
    %v3583 = vadd.f32 %v3423, %v3519
    %v3584 = vadd.f32 %v3424, %v3520
    %v3585 = vadd.f32 %v3425, %v3521
    %v3586 = vadd.f32 %v3426, %v3522
    %v3587 = vadd.f32 %v3427, %v3523
    %v3588 = vadd.f32 %v3428, %v3524
    %v3589 = vadd.f32 %v3429, %v3525
    %v3590 = vadd.f32 %v3430, %v3526
    %v3591 = vadd.f32 %v3431, %v3527
    %v3592 = vadd.f32 %v3432, %v3528
    %v3593 = vadd.f32 %v3433, %v3529
    %v3594 = vadd.f32 %v3434, %v3530
    %v3595 = vperm.slane %v949, 2
    %v3596 = vperm.slane %v955, 2
    %v3597 = vperm.slane %v961, 2
    %v3598 = vperm.slane %v967, 2
    %v3599 = vperm.slane %v973, 2
    %v3600 = vperm.slane %v979, 2
    %v3601 = vperm.slane %v985, 2
    %v3602 = vperm.slane %v991, 2
    %v3603 = vperm.slane %v997, 2
    %v3604 = vperm.slane %v1003, 2
    %v3605 = vperm.slane %v1009, 2
    %v3606 = vperm.slane %v1015, 2
    %v3607 = vperm.slane %v1021, 2
    %v3608 = vperm.slane %v1027, 2
    %v3609 = vperm.slane %v1033, 2
    %v3610 = vperm.slane %v1039, 2
    %v3611 = vperm.slane %v1045, 2
    %v3612 = vperm.slane %v1051, 2
    %v3613 = vperm.slane %v1057, 2
    %v3614 = vperm.slane %v1063, 2
    %v3615 = vperm.slane %v1069, 2
    %v3616 = vperm.slane %v1075, 2
    %v3617 = vperm.slane %v1081, 2
    %v3618 = vperm.slane %v1087, 2
    %v3619 = vperm.slane %v1093, 2
    %v3620 = vperm.slane %v1099, 2
    %v3621 = vperm.slane %v1105, 2
    %v3622 = vperm.slane %v1111, 2
    %v3623 = vperm.slane %v1117, 2
    %v3624 = vperm.slane %v1123, 2
    %v3625 = vperm.slane %v1129, 2
    %v3626 = vperm.slane %v1135, 2
    %v3627 = vmul.f32 %v3595, %v1928
    %v3628 = vmul.f32 %v3595, %v1931
    %v3629 = vmul.f32 %v3596, %v1928
    %v3630 = vmul.f32 %v3596, %v1931
    %v3631 = vmul.f32 %v3597, %v1928
    %v3632 = vmul.f32 %v3597, %v1931
    %v3633 = vmul.f32 %v3598, %v1928
    %v3634 = vmul.f32 %v3598, %v1931
    %v3635 = vmul.f32 %v3599, %v1928
    %v3636 = vmul.f32 %v3599, %v1931
    %v3637 = vmul.f32 %v3600, %v1928
    %v3638 = vmul.f32 %v3600, %v1931
    %v3639 = vmul.f32 %v3601, %v1928
    %v3640 = vmul.f32 %v3601, %v1931
    %v3641 = vmul.f32 %v3602, %v1928
    %v3642 = vmul.f32 %v3602, %v1931
    %v3643 = vmul.f32 %v3603, %v1928
    %v3644 = vmul.f32 %v3603, %v1931
    %v3645 = vmul.f32 %v3604, %v1928
    %v3646 = vmul.f32 %v3604, %v1931
    %v3647 = vmul.f32 %v3605, %v1928
    %v3648 = vmul.f32 %v3605, %v1931
    %v3649 = vmul.f32 %v3606, %v1928
    %v3650 = vmul.f32 %v3606, %v1931
    %v3651 = vmul.f32 %v3607, %v1928
    %v3652 = vmul.f32 %v3607, %v1931
    %v3653 = vmul.f32 %v3608, %v1928
    %v3654 = vmul.f32 %v3608, %v1931
    %v3655 = vmul.f32 %v3609, %v1928
    %v3656 = vmul.f32 %v3609, %v1931
    %v3657 = vmul.f32 %v3610, %v1928
    %v3658 = vmul.f32 %v3610, %v1931
    %v3659 = vmul.f32 %v3611, %v2024
    %v3660 = vmul.f32 %v3611, %v2027
    %v3661 = vmul.f32 %v3612, %v2024
    %v3662 = vmul.f32 %v3612, %v2027
    %v3663 = vmul.f32 %v3613, %v2024
    %v3664 = vmul.f32 %v3613, %v2027
    %v3665 = vmul.f32 %v3614, %v2024
    %v3666 = vmul.f32 %v3614, %v2027
    %v3667 = vmul.f32 %v3615, %v2024
    %v3668 = vmul.f32 %v3615, %v2027
    %v3669 = vmul.f32 %v3616, %v2024
    %v3670 = vmul.f32 %v3616, %v2027
    %v3671 = vmul.f32 %v3617, %v2024
    %v3672 = vmul.f32 %v3617, %v2027
    %v3673 = vmul.f32 %v3618, %v2024
    %v3674 = vmul.f32 %v3618, %v2027
    %v3675 = vmul.f32 %v3619, %v2024
    %v3676 = vmul.f32 %v3619, %v2027
    %v3677 = vmul.f32 %v3620, %v2024
    %v3678 = vmul.f32 %v3620, %v2027
    %v3679 = vmul.f32 %v3621, %v2024
    %v3680 = vmul.f32 %v3621, %v2027
    %v3681 = vmul.f32 %v3622, %v2024
    %v3682 = vmul.f32 %v3622, %v2027
    %v3683 = vmul.f32 %v3623, %v2024
    %v3684 = vmul.f32 %v3623, %v2027
    %v3685 = vmul.f32 %v3624, %v2024
    %v3686 = vmul.f32 %v3624, %v2027
    %v3687 = vmul.f32 %v3625, %v2024
    %v3688 = vmul.f32 %v3625, %v2027
    %v3689 = vmul.f32 %v3626, %v2024
    %v3690 = vmul.f32 %v3626, %v2027
    %v3691 = vadd.f32 %v3531, %v3627
    %v3692 = vadd.f32 %v3532, %v3628
    %v3693 = vadd.f32 %v3533, %v3629
    %v3694 = vadd.f32 %v3534, %v3630
    %v3695 = vadd.f32 %v3535, %v3631
    %v3696 = vadd.f32 %v3536, %v3632
    %v3697 = vadd.f32 %v3537, %v3633
    %v3698 = vadd.f32 %v3538, %v3634
    %v3699 = vadd.f32 %v3539, %v3635
    %v3700 = vadd.f32 %v3540, %v3636
    %v3701 = vadd.f32 %v3541, %v3637
    %v3702 = vadd.f32 %v3542, %v3638
    %v3703 = vadd.f32 %v3543, %v3639
    %v3704 = vadd.f32 %v3544, %v3640
    %v3705 = vadd.f32 %v3545, %v3641
    %v3706 = vadd.f32 %v3546, %v3642
    %v3707 = vadd.f32 %v3547, %v3643
    %v3708 = vadd.f32 %v3548, %v3644
    %v3709 = vadd.f32 %v3549, %v3645
    %v3710 = vadd.f32 %v3550, %v3646
    %v3711 = vadd.f32 %v3551, %v3647
    %v3712 = vadd.f32 %v3552, %v3648
    %v3713 = vadd.f32 %v3553, %v3649
    %v3714 = vadd.f32 %v3554, %v3650
    %v3715 = vadd.f32 %v3555, %v3651
    %v3716 = vadd.f32 %v3556, %v3652
    %v3717 = vadd.f32 %v3557, %v3653
    %v3718 = vadd.f32 %v3558, %v3654
    %v3719 = vadd.f32 %v3559, %v3655
    %v3720 = vadd.f32 %v3560, %v3656
    %v3721 = vadd.f32 %v3561, %v3657
    %v3722 = vadd.f32 %v3562, %v3658
    %v3723 = vadd.f32 %v3563, %v3659
    %v3724 = vadd.f32 %v3564, %v3660
    %v3725 = vadd.f32 %v3565, %v3661
    %v3726 = vadd.f32 %v3566, %v3662
    %v3727 = vadd.f32 %v3567, %v3663
    %v3728 = vadd.f32 %v3568, %v3664
    %v3729 = vadd.f32 %v3569, %v3665
    %v3730 = vadd.f32 %v3570, %v3666
    %v3731 = vadd.f32 %v3571, %v3667
    %v3732 = vadd.f32 %v3572, %v3668
    %v3733 = vadd.f32 %v3573, %v3669
    %v3734 = vadd.f32 %v3574, %v3670
    %v3735 = vadd.f32 %v3575, %v3671
    %v3736 = vadd.f32 %v3576, %v3672
    %v3737 = vadd.f32 %v3577, %v3673
    %v3738 = vadd.f32 %v3578, %v3674
    %v3739 = vadd.f32 %v3579, %v3675
    %v3740 = vadd.f32 %v3580, %v3676
    %v3741 = vadd.f32 %v3581, %v3677
    %v3742 = vadd.f32 %v3582, %v3678
    %v3743 = vadd.f32 %v3583, %v3679
    %v3744 = vadd.f32 %v3584, %v3680
    %v3745 = vadd.f32 %v3585, %v3681
    %v3746 = vadd.f32 %v3586, %v3682
    %v3747 = vadd.f32 %v3587, %v3683
    %v3748 = vadd.f32 %v3588, %v3684
    %v3749 = vadd.f32 %v3589, %v3685
    %v3750 = vadd.f32 %v3590, %v3686
    %v3751 = vadd.f32 %v3591, %v3687
    %v3752 = vadd.f32 %v3592, %v3688
    %v3753 = vadd.f32 %v3593, %v3689
    %v3754 = vadd.f32 %v3594, %v3690
    %v3755 = vperm.slane %v949, 3
    %v3756 = vperm.slane %v955, 3
    %v3757 = vperm.slane %v961, 3
    %v3758 = vperm.slane %v967, 3
    %v3759 = vperm.slane %v973, 3
    %v3760 = vperm.slane %v979, 3
    %v3761 = vperm.slane %v985, 3
    %v3762 = vperm.slane %v991, 3
    %v3763 = vperm.slane %v997, 3
    %v3764 = vperm.slane %v1003, 3
    %v3765 = vperm.slane %v1009, 3
    %v3766 = vperm.slane %v1015, 3
    %v3767 = vperm.slane %v1021, 3
    %v3768 = vperm.slane %v1027, 3
    %v3769 = vperm.slane %v1033, 3
    %v3770 = vperm.slane %v1039, 3
    %v3771 = vperm.slane %v1045, 3
    %v3772 = vperm.slane %v1051, 3
    %v3773 = vperm.slane %v1057, 3
    %v3774 = vperm.slane %v1063, 3
    %v3775 = vperm.slane %v1069, 3
    %v3776 = vperm.slane %v1075, 3
    %v3777 = vperm.slane %v1081, 3
    %v3778 = vperm.slane %v1087, 3
    %v3779 = vperm.slane %v1093, 3
    %v3780 = vperm.slane %v1099, 3
    %v3781 = vperm.slane %v1105, 3
    %v3782 = vperm.slane %v1111, 3
    %v3783 = vperm.slane %v1117, 3
    %v3784 = vperm.slane %v1123, 3
    %v3785 = vperm.slane %v1129, 3
    %v3786 = vperm.slane %v1135, 3
    %v3787 = vmul.f32 %v3755, %v1934
    %v3788 = vmul.f32 %v3755, %v1937
    %v3789 = vmul.f32 %v3756, %v1934
    %v3790 = vmul.f32 %v3756, %v1937
    %v3791 = vmul.f32 %v3757, %v1934
    %v3792 = vmul.f32 %v3757, %v1937
    %v3793 = vmul.f32 %v3758, %v1934
    %v3794 = vmul.f32 %v3758, %v1937
    %v3795 = vmul.f32 %v3759, %v1934
    %v3796 = vmul.f32 %v3759, %v1937
    %v3797 = vmul.f32 %v3760, %v1934
    %v3798 = vmul.f32 %v3760, %v1937
    %v3799 = vmul.f32 %v3761, %v1934
    %v3800 = vmul.f32 %v3761, %v1937
    %v3801 = vmul.f32 %v3762, %v1934
    %v3802 = vmul.f32 %v3762, %v1937
    %v3803 = vmul.f32 %v3763, %v1934
    %v3804 = vmul.f32 %v3763, %v1937
    %v3805 = vmul.f32 %v3764, %v1934
    %v3806 = vmul.f32 %v3764, %v1937
    %v3807 = vmul.f32 %v3765, %v1934
    %v3808 = vmul.f32 %v3765, %v1937
    %v3809 = vmul.f32 %v3766, %v1934
    %v3810 = vmul.f32 %v3766, %v1937
    %v3811 = vmul.f32 %v3767, %v1934
    %v3812 = vmul.f32 %v3767, %v1937
    %v3813 = vmul.f32 %v3768, %v1934
    %v3814 = vmul.f32 %v3768, %v1937
    %v3815 = vmul.f32 %v3769, %v1934
    %v3816 = vmul.f32 %v3769, %v1937
    %v3817 = vmul.f32 %v3770, %v1934
    %v3818 = vmul.f32 %v3770, %v1937
    %v3819 = vmul.f32 %v3771, %v2030
    %v3820 = vmul.f32 %v3771, %v2033
    %v3821 = vmul.f32 %v3772, %v2030
    %v3822 = vmul.f32 %v3772, %v2033
    %v3823 = vmul.f32 %v3773, %v2030
    %v3824 = vmul.f32 %v3773, %v2033
    %v3825 = vmul.f32 %v3774, %v2030
    %v3826 = vmul.f32 %v3774, %v2033
    %v3827 = vmul.f32 %v3775, %v2030
    %v3828 = vmul.f32 %v3775, %v2033
    %v3829 = vmul.f32 %v3776, %v2030
    %v3830 = vmul.f32 %v3776, %v2033
    %v3831 = vmul.f32 %v3777, %v2030
    %v3832 = vmul.f32 %v3777, %v2033
    %v3833 = vmul.f32 %v3778, %v2030
    %v3834 = vmul.f32 %v3778, %v2033
    %v3835 = vmul.f32 %v3779, %v2030
    %v3836 = vmul.f32 %v3779, %v2033
    %v3837 = vmul.f32 %v3780, %v2030
    %v3838 = vmul.f32 %v3780, %v2033
    %v3839 = vmul.f32 %v3781, %v2030
    %v3840 = vmul.f32 %v3781, %v2033
    %v3841 = vmul.f32 %v3782, %v2030
    %v3842 = vmul.f32 %v3782, %v2033
    %v3843 = vmul.f32 %v3783, %v2030
    %v3844 = vmul.f32 %v3783, %v2033
    %v3845 = vmul.f32 %v3784, %v2030
    %v3846 = vmul.f32 %v3784, %v2033
    %v3847 = vmul.f32 %v3785, %v2030
    %v3848 = vmul.f32 %v3785, %v2033
    %v3849 = vmul.f32 %v3786, %v2030
    %v3850 = vmul.f32 %v3786, %v2033
    %v3851 = vadd.f32 %v3691, %v3787
    %v3852 = vadd.f32 %v3692, %v3788
    %v3853 = vadd.f32 %v3693, %v3789
    %v3854 = vadd.f32 %v3694, %v3790
    %v3855 = vadd.f32 %v3695, %v3791
    %v3856 = vadd.f32 %v3696, %v3792
    %v3857 = vadd.f32 %v3697, %v3793
    %v3858 = vadd.f32 %v3698, %v3794
    %v3859 = vadd.f32 %v3699, %v3795
    %v3860 = vadd.f32 %v3700, %v3796
    %v3861 = vadd.f32 %v3701, %v3797
    %v3862 = vadd.f32 %v3702, %v3798
    %v3863 = vadd.f32 %v3703, %v3799
    %v3864 = vadd.f32 %v3704, %v3800
    %v3865 = vadd.f32 %v3705, %v3801
    %v3866 = vadd.f32 %v3706, %v3802
    %v3867 = vadd.f32 %v3707, %v3803
    %v3868 = vadd.f32 %v3708, %v3804
    %v3869 = vadd.f32 %v3709, %v3805
    %v3870 = vadd.f32 %v3710, %v3806
    %v3871 = vadd.f32 %v3711, %v3807
    %v3872 = vadd.f32 %v3712, %v3808
    %v3873 = vadd.f32 %v3713, %v3809
    %v3874 = vadd.f32 %v3714, %v3810
    %v3875 = vadd.f32 %v3715, %v3811
    %v3876 = vadd.f32 %v3716, %v3812
    %v3877 = vadd.f32 %v3717, %v3813
    %v3878 = vadd.f32 %v3718, %v3814
    %v3879 = vadd.f32 %v3719, %v3815
    %v3880 = vadd.f32 %v3720, %v3816
    %v3881 = vadd.f32 %v3721, %v3817
    %v3882 = vadd.f32 %v3722, %v3818
    %v3883 = vadd.f32 %v3723, %v3819
    %v3884 = vadd.f32 %v3724, %v3820
    %v3885 = vadd.f32 %v3725, %v3821
    %v3886 = vadd.f32 %v3726, %v3822
    %v3887 = vadd.f32 %v3727, %v3823
    %v3888 = vadd.f32 %v3728, %v3824
    %v3889 = vadd.f32 %v3729, %v3825
    %v3890 = vadd.f32 %v3730, %v3826
    %v3891 = vadd.f32 %v3731, %v3827
    %v3892 = vadd.f32 %v3732, %v3828
    %v3893 = vadd.f32 %v3733, %v3829
    %v3894 = vadd.f32 %v3734, %v3830
    %v3895 = vadd.f32 %v3735, %v3831
    %v3896 = vadd.f32 %v3736, %v3832
    %v3897 = vadd.f32 %v3737, %v3833
    %v3898 = vadd.f32 %v3738, %v3834
    %v3899 = vadd.f32 %v3739, %v3835
    %v3900 = vadd.f32 %v3740, %v3836
    %v3901 = vadd.f32 %v3741, %v3837
    %v3902 = vadd.f32 %v3742, %v3838
    %v3903 = vadd.f32 %v3743, %v3839
    %v3904 = vadd.f32 %v3744, %v3840
    %v3905 = vadd.f32 %v3745, %v3841
    %v3906 = vadd.f32 %v3746, %v3842
    %v3907 = vadd.f32 %v3747, %v3843
    %v3908 = vadd.f32 %v3748, %v3844
    %v3909 = vadd.f32 %v3749, %v3845
    %v3910 = vadd.f32 %v3750, %v3846
    %v3911 = vadd.f32 %v3751, %v3847
    %v3912 = vadd.f32 %v3752, %v3848
    %v3913 = vadd.f32 %v3753, %v3849
    %v3914 = vadd.f32 %v3754, %v3850
    %v3915 = vperm.slane %v949, 4
    %v3916 = vperm.slane %v955, 4
    %v3917 = vperm.slane %v961, 4
    %v3918 = vperm.slane %v967, 4
    %v3919 = vperm.slane %v973, 4
    %v3920 = vperm.slane %v979, 4
    %v3921 = vperm.slane %v985, 4
    %v3922 = vperm.slane %v991, 4
    %v3923 = vperm.slane %v997, 4
    %v3924 = vperm.slane %v1003, 4
    %v3925 = vperm.slane %v1009, 4
    %v3926 = vperm.slane %v1015, 4
    %v3927 = vperm.slane %v1021, 4
    %v3928 = vperm.slane %v1027, 4
    %v3929 = vperm.slane %v1033, 4
    %v3930 = vperm.slane %v1039, 4
    %v3931 = vperm.slane %v1045, 4
    %v3932 = vperm.slane %v1051, 4
    %v3933 = vperm.slane %v1057, 4
    %v3934 = vperm.slane %v1063, 4
    %v3935 = vperm.slane %v1069, 4
    %v3936 = vperm.slane %v1075, 4
    %v3937 = vperm.slane %v1081, 4
    %v3938 = vperm.slane %v1087, 4
    %v3939 = vperm.slane %v1093, 4
    %v3940 = vperm.slane %v1099, 4
    %v3941 = vperm.slane %v1105, 4
    %v3942 = vperm.slane %v1111, 4
    %v3943 = vperm.slane %v1117, 4
    %v3944 = vperm.slane %v1123, 4
    %v3945 = vperm.slane %v1129, 4
    %v3946 = vperm.slane %v1135, 4
    %v3947 = vmul.f32 %v3915, %v1940
    %v3948 = vmul.f32 %v3915, %v1943
    %v3949 = vmul.f32 %v3916, %v1940
    %v3950 = vmul.f32 %v3916, %v1943
    %v3951 = vmul.f32 %v3917, %v1940
    %v3952 = vmul.f32 %v3917, %v1943
    %v3953 = vmul.f32 %v3918, %v1940
    %v3954 = vmul.f32 %v3918, %v1943
    %v3955 = vmul.f32 %v3919, %v1940
    %v3956 = vmul.f32 %v3919, %v1943
    %v3957 = vmul.f32 %v3920, %v1940
    %v3958 = vmul.f32 %v3920, %v1943
    %v3959 = vmul.f32 %v3921, %v1940
    %v3960 = vmul.f32 %v3921, %v1943
    %v3961 = vmul.f32 %v3922, %v1940
    %v3962 = vmul.f32 %v3922, %v1943
    %v3963 = vmul.f32 %v3923, %v1940
    %v3964 = vmul.f32 %v3923, %v1943
    %v3965 = vmul.f32 %v3924, %v1940
    %v3966 = vmul.f32 %v3924, %v1943
    %v3967 = vmul.f32 %v3925, %v1940
    %v3968 = vmul.f32 %v3925, %v1943
    %v3969 = vmul.f32 %v3926, %v1940
    %v3970 = vmul.f32 %v3926, %v1943
    %v3971 = vmul.f32 %v3927, %v1940
    %v3972 = vmul.f32 %v3927, %v1943
    %v3973 = vmul.f32 %v3928, %v1940
    %v3974 = vmul.f32 %v3928, %v1943
    %v3975 = vmul.f32 %v3929, %v1940
    %v3976 = vmul.f32 %v3929, %v1943
    %v3977 = vmul.f32 %v3930, %v1940
    %v3978 = vmul.f32 %v3930, %v1943
    %v3979 = vmul.f32 %v3931, %v2036
    %v3980 = vmul.f32 %v3931, %v2039
    %v3981 = vmul.f32 %v3932, %v2036
    %v3982 = vmul.f32 %v3932, %v2039
    %v3983 = vmul.f32 %v3933, %v2036
    %v3984 = vmul.f32 %v3933, %v2039
    %v3985 = vmul.f32 %v3934, %v2036
    %v3986 = vmul.f32 %v3934, %v2039
    %v3987 = vmul.f32 %v3935, %v2036
    %v3988 = vmul.f32 %v3935, %v2039
    %v3989 = vmul.f32 %v3936, %v2036
    %v3990 = vmul.f32 %v3936, %v2039
    %v3991 = vmul.f32 %v3937, %v2036
    %v3992 = vmul.f32 %v3937, %v2039
    %v3993 = vmul.f32 %v3938, %v2036
    %v3994 = vmul.f32 %v3938, %v2039
    %v3995 = vmul.f32 %v3939, %v2036
    %v3996 = vmul.f32 %v3939, %v2039
    %v3997 = vmul.f32 %v3940, %v2036
    %v3998 = vmul.f32 %v3940, %v2039
    %v3999 = vmul.f32 %v3941, %v2036
    %v4000 = vmul.f32 %v3941, %v2039
    %v4001 = vmul.f32 %v3942, %v2036
    %v4002 = vmul.f32 %v3942, %v2039
    %v4003 = vmul.f32 %v3943, %v2036
    %v4004 = vmul.f32 %v3943, %v2039
    %v4005 = vmul.f32 %v3944, %v2036
    %v4006 = vmul.f32 %v3944, %v2039
    %v4007 = vmul.f32 %v3945, %v2036
    %v4008 = vmul.f32 %v3945, %v2039
    %v4009 = vmul.f32 %v3946, %v2036
    %v4010 = vmul.f32 %v3946, %v2039
    %v4011 = vadd.f32 %v3851, %v3947
    %v4012 = vadd.f32 %v3852, %v3948
    %v4013 = vadd.f32 %v3853, %v3949
    %v4014 = vadd.f32 %v3854, %v3950
    %v4015 = vadd.f32 %v3855, %v3951
    %v4016 = vadd.f32 %v3856, %v3952
    %v4017 = vadd.f32 %v3857, %v3953
    %v4018 = vadd.f32 %v3858, %v3954
    %v4019 = vadd.f32 %v3859, %v3955
    %v4020 = vadd.f32 %v3860, %v3956
    %v4021 = vadd.f32 %v3861, %v3957
    %v4022 = vadd.f32 %v3862, %v3958
    %v4023 = vadd.f32 %v3863, %v3959
    %v4024 = vadd.f32 %v3864, %v3960
    %v4025 = vadd.f32 %v3865, %v3961
    %v4026 = vadd.f32 %v3866, %v3962
    %v4027 = vadd.f32 %v3867, %v3963
    %v4028 = vadd.f32 %v3868, %v3964
    %v4029 = vadd.f32 %v3869, %v3965
    %v4030 = vadd.f32 %v3870, %v3966
    %v4031 = vadd.f32 %v3871, %v3967
    %v4032 = vadd.f32 %v3872, %v3968
    %v4033 = vadd.f32 %v3873, %v3969
    %v4034 = vadd.f32 %v3874, %v3970
    %v4035 = vadd.f32 %v3875, %v3971
    %v4036 = vadd.f32 %v3876, %v3972
    %v4037 = vadd.f32 %v3877, %v3973
    %v4038 = vadd.f32 %v3878, %v3974
    %v4039 = vadd.f32 %v3879, %v3975
    %v4040 = vadd.f32 %v3880, %v3976
    %v4041 = vadd.f32 %v3881, %v3977
    %v4042 = vadd.f32 %v3882, %v3978
    %v4043 = vadd.f32 %v3883, %v3979
    %v4044 = vadd.f32 %v3884, %v3980
    %v4045 = vadd.f32 %v3885, %v3981
    %v4046 = vadd.f32 %v3886, %v3982
    %v4047 = vadd.f32 %v3887, %v3983
    %v4048 = vadd.f32 %v3888, %v3984
    %v4049 = vadd.f32 %v3889, %v3985
    %v4050 = vadd.f32 %v3890, %v3986
    %v4051 = vadd.f32 %v3891, %v3987
    %v4052 = vadd.f32 %v3892, %v3988
    %v4053 = vadd.f32 %v3893, %v3989
    %v4054 = vadd.f32 %v3894, %v3990
    %v4055 = vadd.f32 %v3895, %v3991
    %v4056 = vadd.f32 %v3896, %v3992
    %v4057 = vadd.f32 %v3897, %v3993
    %v4058 = vadd.f32 %v3898, %v3994
    %v4059 = vadd.f32 %v3899, %v3995
    %v4060 = vadd.f32 %v3900, %v3996
    %v4061 = vadd.f32 %v3901, %v3997
    %v4062 = vadd.f32 %v3902, %v3998
    %v4063 = vadd.f32 %v3903, %v3999
    %v4064 = vadd.f32 %v3904, %v4000
    %v4065 = vadd.f32 %v3905, %v4001
    %v4066 = vadd.f32 %v3906, %v4002
    %v4067 = vadd.f32 %v3907, %v4003
    %v4068 = vadd.f32 %v3908, %v4004
    %v4069 = vadd.f32 %v3909, %v4005
    %v4070 = vadd.f32 %v3910, %v4006
    %v4071 = vadd.f32 %v3911, %v4007
    %v4072 = vadd.f32 %v3912, %v4008
    %v4073 = vadd.f32 %v3913, %v4009
    %v4074 = vadd.f32 %v3914, %v4010
    %v4075 = vperm.slane %v949, 5
    %v4076 = vperm.slane %v955, 5
    %v4077 = vperm.slane %v961, 5
    %v4078 = vperm.slane %v967, 5
    %v4079 = vperm.slane %v973, 5
    %v4080 = vperm.slane %v979, 5
    %v4081 = vperm.slane %v985, 5
    %v4082 = vperm.slane %v991, 5
    %v4083 = vperm.slane %v997, 5
    %v4084 = vperm.slane %v1003, 5
    %v4085 = vperm.slane %v1009, 5
    %v4086 = vperm.slane %v1015, 5
    %v4087 = vperm.slane %v1021, 5
    %v4088 = vperm.slane %v1027, 5
    %v4089 = vperm.slane %v1033, 5
    %v4090 = vperm.slane %v1039, 5
    %v4091 = vperm.slane %v1045, 5
    %v4092 = vperm.slane %v1051, 5
    %v4093 = vperm.slane %v1057, 5
    %v4094 = vperm.slane %v1063, 5
    %v4095 = vperm.slane %v1069, 5
    %v4096 = vperm.slane %v1075, 5
    %v4097 = vperm.slane %v1081, 5
    %v4098 = vperm.slane %v1087, 5
    %v4099 = vperm.slane %v1093, 5
    %v4100 = vperm.slane %v1099, 5
    %v4101 = vperm.slane %v1105, 5
    %v4102 = vperm.slane %v1111, 5
    %v4103 = vperm.slane %v1117, 5
    %v4104 = vperm.slane %v1123, 5
    %v4105 = vperm.slane %v1129, 5
    %v4106 = vperm.slane %v1135, 5
    %v4107 = vmul.f32 %v4075, %v1946
    %v4108 = vmul.f32 %v4075, %v1949
    %v4109 = vmul.f32 %v4076, %v1946
    %v4110 = vmul.f32 %v4076, %v1949
    %v4111 = vmul.f32 %v4077, %v1946
    %v4112 = vmul.f32 %v4077, %v1949
    %v4113 = vmul.f32 %v4078, %v1946
    %v4114 = vmul.f32 %v4078, %v1949
    %v4115 = vmul.f32 %v4079, %v1946
    %v4116 = vmul.f32 %v4079, %v1949
    %v4117 = vmul.f32 %v4080, %v1946
    %v4118 = vmul.f32 %v4080, %v1949
    %v4119 = vmul.f32 %v4081, %v1946
    %v4120 = vmul.f32 %v4081, %v1949
    %v4121 = vmul.f32 %v4082, %v1946
    %v4122 = vmul.f32 %v4082, %v1949
    %v4123 = vmul.f32 %v4083, %v1946
    %v4124 = vmul.f32 %v4083, %v1949
    %v4125 = vmul.f32 %v4084, %v1946
    %v4126 = vmul.f32 %v4084, %v1949
    %v4127 = vmul.f32 %v4085, %v1946
    %v4128 = vmul.f32 %v4085, %v1949
    %v4129 = vmul.f32 %v4086, %v1946
    %v4130 = vmul.f32 %v4086, %v1949
    %v4131 = vmul.f32 %v4087, %v1946
    %v4132 = vmul.f32 %v4087, %v1949
    %v4133 = vmul.f32 %v4088, %v1946
    %v4134 = vmul.f32 %v4088, %v1949
    %v4135 = vmul.f32 %v4089, %v1946
    %v4136 = vmul.f32 %v4089, %v1949
    %v4137 = vmul.f32 %v4090, %v1946
    %v4138 = vmul.f32 %v4090, %v1949
    %v4139 = vmul.f32 %v4091, %v2042
    %v4140 = vmul.f32 %v4091, %v2045
    %v4141 = vmul.f32 %v4092, %v2042
    %v4142 = vmul.f32 %v4092, %v2045
    %v4143 = vmul.f32 %v4093, %v2042
    %v4144 = vmul.f32 %v4093, %v2045
    %v4145 = vmul.f32 %v4094, %v2042
    %v4146 = vmul.f32 %v4094, %v2045
    %v4147 = vmul.f32 %v4095, %v2042
    %v4148 = vmul.f32 %v4095, %v2045
    %v4149 = vmul.f32 %v4096, %v2042
    %v4150 = vmul.f32 %v4096, %v2045
    %v4151 = vmul.f32 %v4097, %v2042
    %v4152 = vmul.f32 %v4097, %v2045
    %v4153 = vmul.f32 %v4098, %v2042
    %v4154 = vmul.f32 %v4098, %v2045
    %v4155 = vmul.f32 %v4099, %v2042
    %v4156 = vmul.f32 %v4099, %v2045
    %v4157 = vmul.f32 %v4100, %v2042
    %v4158 = vmul.f32 %v4100, %v2045
    %v4159 = vmul.f32 %v4101, %v2042
    %v4160 = vmul.f32 %v4101, %v2045
    %v4161 = vmul.f32 %v4102, %v2042
    %v4162 = vmul.f32 %v4102, %v2045
    %v4163 = vmul.f32 %v4103, %v2042
    %v4164 = vmul.f32 %v4103, %v2045
    %v4165 = vmul.f32 %v4104, %v2042
    %v4166 = vmul.f32 %v4104, %v2045
    %v4167 = vmul.f32 %v4105, %v2042
    %v4168 = vmul.f32 %v4105, %v2045
    %v4169 = vmul.f32 %v4106, %v2042
    %v4170 = vmul.f32 %v4106, %v2045
    %v4171 = vadd.f32 %v4011, %v4107
    %v4172 = vadd.f32 %v4012, %v4108
    %v4173 = vadd.f32 %v4013, %v4109
    %v4174 = vadd.f32 %v4014, %v4110
    %v4175 = vadd.f32 %v4015, %v4111
    %v4176 = vadd.f32 %v4016, %v4112
    %v4177 = vadd.f32 %v4017, %v4113
    %v4178 = vadd.f32 %v4018, %v4114
    %v4179 = vadd.f32 %v4019, %v4115
    %v4180 = vadd.f32 %v4020, %v4116
    %v4181 = vadd.f32 %v4021, %v4117
    %v4182 = vadd.f32 %v4022, %v4118
    %v4183 = vadd.f32 %v4023, %v4119
    %v4184 = vadd.f32 %v4024, %v4120
    %v4185 = vadd.f32 %v4025, %v4121
    %v4186 = vadd.f32 %v4026, %v4122
    %v4187 = vadd.f32 %v4027, %v4123
    %v4188 = vadd.f32 %v4028, %v4124
    %v4189 = vadd.f32 %v4029, %v4125
    %v4190 = vadd.f32 %v4030, %v4126
    %v4191 = vadd.f32 %v4031, %v4127
    %v4192 = vadd.f32 %v4032, %v4128
    %v4193 = vadd.f32 %v4033, %v4129
    %v4194 = vadd.f32 %v4034, %v4130
    %v4195 = vadd.f32 %v4035, %v4131
    %v4196 = vadd.f32 %v4036, %v4132
    %v4197 = vadd.f32 %v4037, %v4133
    %v4198 = vadd.f32 %v4038, %v4134
    %v4199 = vadd.f32 %v4039, %v4135
    %v4200 = vadd.f32 %v4040, %v4136
    %v4201 = vadd.f32 %v4041, %v4137
    %v4202 = vadd.f32 %v4042, %v4138
    %v4203 = vadd.f32 %v4043, %v4139
    %v4204 = vadd.f32 %v4044, %v4140
    %v4205 = vadd.f32 %v4045, %v4141
    %v4206 = vadd.f32 %v4046, %v4142
    %v4207 = vadd.f32 %v4047, %v4143
    %v4208 = vadd.f32 %v4048, %v4144
    %v4209 = vadd.f32 %v4049, %v4145
    %v4210 = vadd.f32 %v4050, %v4146
    %v4211 = vadd.f32 %v4051, %v4147
    %v4212 = vadd.f32 %v4052, %v4148
    %v4213 = vadd.f32 %v4053, %v4149
    %v4214 = vadd.f32 %v4054, %v4150
    %v4215 = vadd.f32 %v4055, %v4151
    %v4216 = vadd.f32 %v4056, %v4152
    %v4217 = vadd.f32 %v4057, %v4153
    %v4218 = vadd.f32 %v4058, %v4154
    %v4219 = vadd.f32 %v4059, %v4155
    %v4220 = vadd.f32 %v4060, %v4156
    %v4221 = vadd.f32 %v4061, %v4157
    %v4222 = vadd.f32 %v4062, %v4158
    %v4223 = vadd.f32 %v4063, %v4159
    %v4224 = vadd.f32 %v4064, %v4160
    %v4225 = vadd.f32 %v4065, %v4161
    %v4226 = vadd.f32 %v4066, %v4162
    %v4227 = vadd.f32 %v4067, %v4163
    %v4228 = vadd.f32 %v4068, %v4164
    %v4229 = vadd.f32 %v4069, %v4165
    %v4230 = vadd.f32 %v4070, %v4166
    %v4231 = vadd.f32 %v4071, %v4167
    %v4232 = vadd.f32 %v4072, %v4168
    %v4233 = vadd.f32 %v4073, %v4169
    %v4234 = vadd.f32 %v4074, %v4170
    %v4235 = vperm.slane %v949, 6
    %v4236 = vperm.slane %v955, 6
    %v4237 = vperm.slane %v961, 6
    %v4238 = vperm.slane %v967, 6
    %v4239 = vperm.slane %v973, 6
    %v4240 = vperm.slane %v979, 6
    %v4241 = vperm.slane %v985, 6
    %v4242 = vperm.slane %v991, 6
    %v4243 = vperm.slane %v997, 6
    %v4244 = vperm.slane %v1003, 6
    %v4245 = vperm.slane %v1009, 6
    %v4246 = vperm.slane %v1015, 6
    %v4247 = vperm.slane %v1021, 6
    %v4248 = vperm.slane %v1027, 6
    %v4249 = vperm.slane %v1033, 6
    %v4250 = vperm.slane %v1039, 6
    %v4251 = vperm.slane %v1045, 6
    %v4252 = vperm.slane %v1051, 6
    %v4253 = vperm.slane %v1057, 6
    %v4254 = vperm.slane %v1063, 6
    %v4255 = vperm.slane %v1069, 6
    %v4256 = vperm.slane %v1075, 6
    %v4257 = vperm.slane %v1081, 6
    %v4258 = vperm.slane %v1087, 6
    %v4259 = vperm.slane %v1093, 6
    %v4260 = vperm.slane %v1099, 6
    %v4261 = vperm.slane %v1105, 6
    %v4262 = vperm.slane %v1111, 6
    %v4263 = vperm.slane %v1117, 6
    %v4264 = vperm.slane %v1123, 6
    %v4265 = vperm.slane %v1129, 6
    %v4266 = vperm.slane %v1135, 6
    %v4267 = vmul.f32 %v4235, %v1952
    %v4268 = vmul.f32 %v4235, %v1955
    %v4269 = vmul.f32 %v4236, %v1952
    %v4270 = vmul.f32 %v4236, %v1955
    %v4271 = vmul.f32 %v4237, %v1952
    %v4272 = vmul.f32 %v4237, %v1955
    %v4273 = vmul.f32 %v4238, %v1952
    %v4274 = vmul.f32 %v4238, %v1955
    %v4275 = vmul.f32 %v4239, %v1952
    %v4276 = vmul.f32 %v4239, %v1955
    %v4277 = vmul.f32 %v4240, %v1952
    %v4278 = vmul.f32 %v4240, %v1955
    %v4279 = vmul.f32 %v4241, %v1952
    %v4280 = vmul.f32 %v4241, %v1955
    %v4281 = vmul.f32 %v4242, %v1952
    %v4282 = vmul.f32 %v4242, %v1955
    %v4283 = vmul.f32 %v4243, %v1952
    %v4284 = vmul.f32 %v4243, %v1955
    %v4285 = vmul.f32 %v4244, %v1952
    %v4286 = vmul.f32 %v4244, %v1955
    %v4287 = vmul.f32 %v4245, %v1952
    %v4288 = vmul.f32 %v4245, %v1955
    %v4289 = vmul.f32 %v4246, %v1952
    %v4290 = vmul.f32 %v4246, %v1955
    %v4291 = vmul.f32 %v4247, %v1952
    %v4292 = vmul.f32 %v4247, %v1955
    %v4293 = vmul.f32 %v4248, %v1952
    %v4294 = vmul.f32 %v4248, %v1955
    %v4295 = vmul.f32 %v4249, %v1952
    %v4296 = vmul.f32 %v4249, %v1955
    %v4297 = vmul.f32 %v4250, %v1952
    %v4298 = vmul.f32 %v4250, %v1955
    %v4299 = vmul.f32 %v4251, %v2048
    %v4300 = vmul.f32 %v4251, %v2051
    %v4301 = vmul.f32 %v4252, %v2048
    %v4302 = vmul.f32 %v4252, %v2051
    %v4303 = vmul.f32 %v4253, %v2048
    %v4304 = vmul.f32 %v4253, %v2051
    %v4305 = vmul.f32 %v4254, %v2048
    %v4306 = vmul.f32 %v4254, %v2051
    %v4307 = vmul.f32 %v4255, %v2048
    %v4308 = vmul.f32 %v4255, %v2051
    %v4309 = vmul.f32 %v4256, %v2048
    %v4310 = vmul.f32 %v4256, %v2051
    %v4311 = vmul.f32 %v4257, %v2048
    %v4312 = vmul.f32 %v4257, %v2051
    %v4313 = vmul.f32 %v4258, %v2048
    %v4314 = vmul.f32 %v4258, %v2051
    %v4315 = vmul.f32 %v4259, %v2048
    %v4316 = vmul.f32 %v4259, %v2051
    %v4317 = vmul.f32 %v4260, %v2048
    %v4318 = vmul.f32 %v4260, %v2051
    %v4319 = vmul.f32 %v4261, %v2048
    %v4320 = vmul.f32 %v4261, %v2051
    %v4321 = vmul.f32 %v4262, %v2048
    %v4322 = vmul.f32 %v4262, %v2051
    %v4323 = vmul.f32 %v4263, %v2048
    %v4324 = vmul.f32 %v4263, %v2051
    %v4325 = vmul.f32 %v4264, %v2048
    %v4326 = vmul.f32 %v4264, %v2051
    %v4327 = vmul.f32 %v4265, %v2048
    %v4328 = vmul.f32 %v4265, %v2051
    %v4329 = vmul.f32 %v4266, %v2048
    %v4330 = vmul.f32 %v4266, %v2051
    %v4331 = vadd.f32 %v4171, %v4267
    %v4332 = vadd.f32 %v4172, %v4268
    %v4333 = vadd.f32 %v4173, %v4269
    %v4334 = vadd.f32 %v4174, %v4270
    %v4335 = vadd.f32 %v4175, %v4271
    %v4336 = vadd.f32 %v4176, %v4272
    %v4337 = vadd.f32 %v4177, %v4273
    %v4338 = vadd.f32 %v4178, %v4274
    %v4339 = vadd.f32 %v4179, %v4275
    %v4340 = vadd.f32 %v4180, %v4276
    %v4341 = vadd.f32 %v4181, %v4277
    %v4342 = vadd.f32 %v4182, %v4278
    %v4343 = vadd.f32 %v4183, %v4279
    %v4344 = vadd.f32 %v4184, %v4280
    %v4345 = vadd.f32 %v4185, %v4281
    %v4346 = vadd.f32 %v4186, %v4282
    %v4347 = vadd.f32 %v4187, %v4283
    %v4348 = vadd.f32 %v4188, %v4284
    %v4349 = vadd.f32 %v4189, %v4285
    %v4350 = vadd.f32 %v4190, %v4286
    %v4351 = vadd.f32 %v4191, %v4287
    %v4352 = vadd.f32 %v4192, %v4288
    %v4353 = vadd.f32 %v4193, %v4289
    %v4354 = vadd.f32 %v4194, %v4290
    %v4355 = vadd.f32 %v4195, %v4291
    %v4356 = vadd.f32 %v4196, %v4292
    %v4357 = vadd.f32 %v4197, %v4293
    %v4358 = vadd.f32 %v4198, %v4294
    %v4359 = vadd.f32 %v4199, %v4295
    %v4360 = vadd.f32 %v4200, %v4296
    %v4361 = vadd.f32 %v4201, %v4297
    %v4362 = vadd.f32 %v4202, %v4298
    %v4363 = vadd.f32 %v4203, %v4299
    %v4364 = vadd.f32 %v4204, %v4300
    %v4365 = vadd.f32 %v4205, %v4301
    %v4366 = vadd.f32 %v4206, %v4302
    %v4367 = vadd.f32 %v4207, %v4303
    %v4368 = vadd.f32 %v4208, %v4304
    %v4369 = vadd.f32 %v4209, %v4305
    %v4370 = vadd.f32 %v4210, %v4306
    %v4371 = vadd.f32 %v4211, %v4307
    %v4372 = vadd.f32 %v4212, %v4308
    %v4373 = vadd.f32 %v4213, %v4309
    %v4374 = vadd.f32 %v4214, %v4310
    %v4375 = vadd.f32 %v4215, %v4311
    %v4376 = vadd.f32 %v4216, %v4312
    %v4377 = vadd.f32 %v4217, %v4313
    %v4378 = vadd.f32 %v4218, %v4314
    %v4379 = vadd.f32 %v4219, %v4315
    %v4380 = vadd.f32 %v4220, %v4316
    %v4381 = vadd.f32 %v4221, %v4317
    %v4382 = vadd.f32 %v4222, %v4318
    %v4383 = vadd.f32 %v4223, %v4319
    %v4384 = vadd.f32 %v4224, %v4320
    %v4385 = vadd.f32 %v4225, %v4321
    %v4386 = vadd.f32 %v4226, %v4322
    %v4387 = vadd.f32 %v4227, %v4323
    %v4388 = vadd.f32 %v4228, %v4324
    %v4389 = vadd.f32 %v4229, %v4325
    %v4390 = vadd.f32 %v4230, %v4326
    %v4391 = vadd.f32 %v4231, %v4327
    %v4392 = vadd.f32 %v4232, %v4328
    %v4393 = vadd.f32 %v4233, %v4329
    %v4394 = vadd.f32 %v4234, %v4330
    %v4395 = vperm.slane %v949, 7
    %v4396 = vperm.slane %v955, 7
    %v4397 = vperm.slane %v961, 7
    %v4398 = vperm.slane %v967, 7
    %v4399 = vperm.slane %v973, 7
    %v4400 = vperm.slane %v979, 7
    %v4401 = vperm.slane %v985, 7
    %v4402 = vperm.slane %v991, 7
    %v4403 = vperm.slane %v997, 7
    %v4404 = vperm.slane %v1003, 7
    %v4405 = vperm.slane %v1009, 7
    %v4406 = vperm.slane %v1015, 7
    %v4407 = vperm.slane %v1021, 7
    %v4408 = vperm.slane %v1027, 7
    %v4409 = vperm.slane %v1033, 7
    %v4410 = vperm.slane %v1039, 7
    %v4411 = vperm.slane %v1045, 7
    %v4412 = vperm.slane %v1051, 7
    %v4413 = vperm.slane %v1057, 7
    %v4414 = vperm.slane %v1063, 7
    %v4415 = vperm.slane %v1069, 7
    %v4416 = vperm.slane %v1075, 7
    %v4417 = vperm.slane %v1081, 7
    %v4418 = vperm.slane %v1087, 7
    %v4419 = vperm.slane %v1093, 7
    %v4420 = vperm.slane %v1099, 7
    %v4421 = vperm.slane %v1105, 7
    %v4422 = vperm.slane %v1111, 7
    %v4423 = vperm.slane %v1117, 7
    %v4424 = vperm.slane %v1123, 7
    %v4425 = vperm.slane %v1129, 7
    %v4426 = vperm.slane %v1135, 7
    %v4427 = vmul.f32 %v4395, %v1958
    %v4428 = vmul.f32 %v4395, %v1961
    %v4429 = vmul.f32 %v4396, %v1958
    %v4430 = vmul.f32 %v4396, %v1961
    %v4431 = vmul.f32 %v4397, %v1958
    %v4432 = vmul.f32 %v4397, %v1961
    %v4433 = vmul.f32 %v4398, %v1958
    %v4434 = vmul.f32 %v4398, %v1961
    %v4435 = vmul.f32 %v4399, %v1958
    %v4436 = vmul.f32 %v4399, %v1961
    %v4437 = vmul.f32 %v4400, %v1958
    %v4438 = vmul.f32 %v4400, %v1961
    %v4439 = vmul.f32 %v4401, %v1958
    %v4440 = vmul.f32 %v4401, %v1961
    %v4441 = vmul.f32 %v4402, %v1958
    %v4442 = vmul.f32 %v4402, %v1961
    %v4443 = vmul.f32 %v4403, %v1958
    %v4444 = vmul.f32 %v4403, %v1961
    %v4445 = vmul.f32 %v4404, %v1958
    %v4446 = vmul.f32 %v4404, %v1961
    %v4447 = vmul.f32 %v4405, %v1958
    %v4448 = vmul.f32 %v4405, %v1961
    %v4449 = vmul.f32 %v4406, %v1958
    %v4450 = vmul.f32 %v4406, %v1961
    %v4451 = vmul.f32 %v4407, %v1958
    %v4452 = vmul.f32 %v4407, %v1961
    %v4453 = vmul.f32 %v4408, %v1958
    %v4454 = vmul.f32 %v4408, %v1961
    %v4455 = vmul.f32 %v4409, %v1958
    %v4456 = vmul.f32 %v4409, %v1961
    %v4457 = vmul.f32 %v4410, %v1958
    %v4458 = vmul.f32 %v4410, %v1961
    %v4459 = vmul.f32 %v4411, %v2054
    %v4460 = vmul.f32 %v4411, %v2057
    %v4461 = vmul.f32 %v4412, %v2054
    %v4462 = vmul.f32 %v4412, %v2057
    %v4463 = vmul.f32 %v4413, %v2054
    %v4464 = vmul.f32 %v4413, %v2057
    %v4465 = vmul.f32 %v4414, %v2054
    %v4466 = vmul.f32 %v4414, %v2057
    %v4467 = vmul.f32 %v4415, %v2054
    %v4468 = vmul.f32 %v4415, %v2057
    %v4469 = vmul.f32 %v4416, %v2054
    %v4470 = vmul.f32 %v4416, %v2057
    %v4471 = vmul.f32 %v4417, %v2054
    %v4472 = vmul.f32 %v4417, %v2057
    %v4473 = vmul.f32 %v4418, %v2054
    %v4474 = vmul.f32 %v4418, %v2057
    %v4475 = vmul.f32 %v4419, %v2054
    %v4476 = vmul.f32 %v4419, %v2057
    %v4477 = vmul.f32 %v4420, %v2054
    %v4478 = vmul.f32 %v4420, %v2057
    %v4479 = vmul.f32 %v4421, %v2054
    %v4480 = vmul.f32 %v4421, %v2057
    %v4481 = vmul.f32 %v4422, %v2054
    %v4482 = vmul.f32 %v4422, %v2057
    %v4483 = vmul.f32 %v4423, %v2054
    %v4484 = vmul.f32 %v4423, %v2057
    %v4485 = vmul.f32 %v4424, %v2054
    %v4486 = vmul.f32 %v4424, %v2057
    %v4487 = vmul.f32 %v4425, %v2054
    %v4488 = vmul.f32 %v4425, %v2057
    %v4489 = vmul.f32 %v4426, %v2054
    %v4490 = vmul.f32 %v4426, %v2057
    %v4491 = vadd.f32 %v4331, %v4427
    %v4492 = vadd.f32 %v4332, %v4428
    %v4493 = vadd.f32 %v4333, %v4429
    %v4494 = vadd.f32 %v4334, %v4430
    %v4495 = vadd.f32 %v4335, %v4431
    %v4496 = vadd.f32 %v4336, %v4432
    %v4497 = vadd.f32 %v4337, %v4433
    %v4498 = vadd.f32 %v4338, %v4434
    %v4499 = vadd.f32 %v4339, %v4435
    %v4500 = vadd.f32 %v4340, %v4436
    %v4501 = vadd.f32 %v4341, %v4437
    %v4502 = vadd.f32 %v4342, %v4438
    %v4503 = vadd.f32 %v4343, %v4439
    %v4504 = vadd.f32 %v4344, %v4440
    %v4505 = vadd.f32 %v4345, %v4441
    %v4506 = vadd.f32 %v4346, %v4442
    %v4507 = vadd.f32 %v4347, %v4443
    %v4508 = vadd.f32 %v4348, %v4444
    %v4509 = vadd.f32 %v4349, %v4445
    %v4510 = vadd.f32 %v4350, %v4446
    %v4511 = vadd.f32 %v4351, %v4447
    %v4512 = vadd.f32 %v4352, %v4448
    %v4513 = vadd.f32 %v4353, %v4449
    %v4514 = vadd.f32 %v4354, %v4450
    %v4515 = vadd.f32 %v4355, %v4451
    %v4516 = vadd.f32 %v4356, %v4452
    %v4517 = vadd.f32 %v4357, %v4453
    %v4518 = vadd.f32 %v4358, %v4454
    %v4519 = vadd.f32 %v4359, %v4455
    %v4520 = vadd.f32 %v4360, %v4456
    %v4521 = vadd.f32 %v4361, %v4457
    %v4522 = vadd.f32 %v4362, %v4458
    %v4523 = vadd.f32 %v4363, %v4459
    %v4524 = vadd.f32 %v4364, %v4460
    %v4525 = vadd.f32 %v4365, %v4461
    %v4526 = vadd.f32 %v4366, %v4462
    %v4527 = vadd.f32 %v4367, %v4463
    %v4528 = vadd.f32 %v4368, %v4464
    %v4529 = vadd.f32 %v4369, %v4465
    %v4530 = vadd.f32 %v4370, %v4466
    %v4531 = vadd.f32 %v4371, %v4467
    %v4532 = vadd.f32 %v4372, %v4468
    %v4533 = vadd.f32 %v4373, %v4469
    %v4534 = vadd.f32 %v4374, %v4470
    %v4535 = vadd.f32 %v4375, %v4471
    %v4536 = vadd.f32 %v4376, %v4472
    %v4537 = vadd.f32 %v4377, %v4473
    %v4538 = vadd.f32 %v4378, %v4474
    %v4539 = vadd.f32 %v4379, %v4475
    %v4540 = vadd.f32 %v4380, %v4476
    %v4541 = vadd.f32 %v4381, %v4477
    %v4542 = vadd.f32 %v4382, %v4478
    %v4543 = vadd.f32 %v4383, %v4479
    %v4544 = vadd.f32 %v4384, %v4480
    %v4545 = vadd.f32 %v4385, %v4481
    %v4546 = vadd.f32 %v4386, %v4482
    %v4547 = vadd.f32 %v4387, %v4483
    %v4548 = vadd.f32 %v4388, %v4484
    %v4549 = vadd.f32 %v4389, %v4485
    %v4550 = vadd.f32 %v4390, %v4486
    %v4551 = vadd.f32 %v4391, %v4487
    %v4552 = vadd.f32 %v4392, %v4488
    %v4553 = vadd.f32 %v4393, %v4489
    %v4554 = vadd.f32 %v4394, %v4490
    %v4555 = vmul.f32 %v4491, 0.0625
    %v4556 = vmul.f32 %v4492, 0.0625
    %v4557 = vmul.f32 %v4493, 0.0625
    %v4558 = vmul.f32 %v4494, 0.0625
    %v4559 = vmul.f32 %v4495, 0.0625
    %v4560 = vmul.f32 %v4496, 0.0625
    %v4561 = vmul.f32 %v4497, 0.0625
    %v4562 = vmul.f32 %v4498, 0.0625
    %v4563 = vmul.f32 %v4499, 0.0625
    %v4564 = vmul.f32 %v4500, 0.0625
    %v4565 = vmul.f32 %v4501, 0.0625
    %v4566 = vmul.f32 %v4502, 0.0625
    %v4567 = vmul.f32 %v4503, 0.0625
    %v4568 = vmul.f32 %v4504, 0.0625
    %v4569 = vmul.f32 %v4505, 0.0625
    %v4570 = vmul.f32 %v4506, 0.0625
    %v4571 = vmul.f32 %v4507, 0.0625
    %v4572 = vmul.f32 %v4508, 0.0625
    %v4573 = vmul.f32 %v4509, 0.0625
    %v4574 = vmul.f32 %v4510, 0.0625
    %v4575 = vmul.f32 %v4511, 0.0625
    %v4576 = vmul.f32 %v4512, 0.0625
    %v4577 = vmul.f32 %v4513, 0.0625
    %v4578 = vmul.f32 %v4514, 0.0625
    %v4579 = vmul.f32 %v4515, 0.0625
    %v4580 = vmul.f32 %v4516, 0.0625
    %v4581 = vmul.f32 %v4517, 0.0625
    %v4582 = vmul.f32 %v4518, 0.0625
    %v4583 = vmul.f32 %v4519, 0.0625
    %v4584 = vmul.f32 %v4520, 0.0625
    %v4585 = vmul.f32 %v4521, 0.0625
    %v4586 = vmul.f32 %v4522, 0.0625
    %v4587 = vmul.f32 %v4523, 0.0625
    %v4588 = vmul.f32 %v4524, 0.0625
    %v4589 = vmul.f32 %v4525, 0.0625
    %v4590 = vmul.f32 %v4526, 0.0625
    %v4591 = vmul.f32 %v4527, 0.0625
    %v4592 = vmul.f32 %v4528, 0.0625
    %v4593 = vmul.f32 %v4529, 0.0625
    %v4594 = vmul.f32 %v4530, 0.0625
    %v4595 = vmul.f32 %v4531, 0.0625
    %v4596 = vmul.f32 %v4532, 0.0625
    %v4597 = vmul.f32 %v4533, 0.0625
    %v4598 = vmul.f32 %v4534, 0.0625
    %v4599 = vmul.f32 %v4535, 0.0625
    %v4600 = vmul.f32 %v4536, 0.0625
    %v4601 = vmul.f32 %v4537, 0.0625
    %v4602 = vmul.f32 %v4538, 0.0625
    %v4603 = vmul.f32 %v4539, 0.0625
    %v4604 = vmul.f32 %v4540, 0.0625
    %v4605 = vmul.f32 %v4541, 0.0625
    %v4606 = vmul.f32 %v4542, 0.0625
    %v4607 = vmul.f32 %v4543, 0.0625
    %v4608 = vmul.f32 %v4544, 0.0625
    %v4609 = vmul.f32 %v4545, 0.0625
    %v4610 = vmul.f32 %v4546, 0.0625
    %v4611 = vmul.f32 %v4547, 0.0625
    %v4612 = vmul.f32 %v4548, 0.0625
    %v4613 = vmul.f32 %v4549, 0.0625
    %v4614 = vmul.f32 %v4550, 0.0625
    %v4615 = vmul.f32 %v4551, 0.0625
    %v4616 = vmul.f32 %v4552, 0.0625
    %v4617 = vmul.f32 %v4553, 0.0625
    %v4618 = vmul.f32 %v4554, 0.0625
    %v4619 = vadd.f32 %v946, %v4555
    %v4620 = vadd.f32 %v949, %v4556
    %v4621 = vadd.f32 %v952, %v4557
    %v4622 = vadd.f32 %v955, %v4558
    %v4623 = vadd.f32 %v958, %v4559
    %v4624 = vadd.f32 %v961, %v4560
    %v4625 = vadd.f32 %v964, %v4561
    %v4626 = vadd.f32 %v967, %v4562
    %v4627 = vadd.f32 %v970, %v4563
    %v4628 = vadd.f32 %v973, %v4564
    %v4629 = vadd.f32 %v976, %v4565
    %v4630 = vadd.f32 %v979, %v4566
    %v4631 = vadd.f32 %v982, %v4567
    %v4632 = vadd.f32 %v985, %v4568
    %v4633 = vadd.f32 %v988, %v4569
    %v4634 = vadd.f32 %v991, %v4570
    %v4635 = vadd.f32 %v994, %v4571
    %v4636 = vadd.f32 %v997, %v4572
    %v4637 = vadd.f32 %v1000, %v4573
    %v4638 = vadd.f32 %v1003, %v4574
    %v4639 = vadd.f32 %v1006, %v4575
    %v4640 = vadd.f32 %v1009, %v4576
    %v4641 = vadd.f32 %v1012, %v4577
    %v4642 = vadd.f32 %v1015, %v4578
    %v4643 = vadd.f32 %v1018, %v4579
    %v4644 = vadd.f32 %v1021, %v4580
    %v4645 = vadd.f32 %v1024, %v4581
    %v4646 = vadd.f32 %v1027, %v4582
    %v4647 = vadd.f32 %v1030, %v4583
    %v4648 = vadd.f32 %v1033, %v4584
    %v4649 = vadd.f32 %v1036, %v4585
    %v4650 = vadd.f32 %v1039, %v4586
    %v4651 = vadd.f32 %v1042, %v4587
    %v4652 = vadd.f32 %v1045, %v4588
    %v4653 = vadd.f32 %v1048, %v4589
    %v4654 = vadd.f32 %v1051, %v4590
    %v4655 = vadd.f32 %v1054, %v4591
    %v4656 = vadd.f32 %v1057, %v4592
    %v4657 = vadd.f32 %v1060, %v4593
    %v4658 = vadd.f32 %v1063, %v4594
    %v4659 = vadd.f32 %v1066, %v4595
    %v4660 = vadd.f32 %v1069, %v4596
    %v4661 = vadd.f32 %v1072, %v4597
    %v4662 = vadd.f32 %v1075, %v4598
    %v4663 = vadd.f32 %v1078, %v4599
    %v4664 = vadd.f32 %v1081, %v4600
    %v4665 = vadd.f32 %v1084, %v4601
    %v4666 = vadd.f32 %v1087, %v4602
    %v4667 = vadd.f32 %v1090, %v4603
    %v4668 = vadd.f32 %v1093, %v4604
    %v4669 = vadd.f32 %v1096, %v4605
    %v4670 = vadd.f32 %v1099, %v4606
    %v4671 = vadd.f32 %v1102, %v4607
    %v4672 = vadd.f32 %v1105, %v4608
    %v4673 = vadd.f32 %v1108, %v4609
    %v4674 = vadd.f32 %v1111, %v4610
    %v4675 = vadd.f32 %v1114, %v4611
    %v4676 = vadd.f32 %v1117, %v4612
    %v4677 = vadd.f32 %v1120, %v4613
    %v4678 = vadd.f32 %v1123, %v4614
    %v4679 = vadd.f32 %v1126, %v4615
    %v4680 = vadd.f32 %v1129, %v4616
    %v4681 = vadd.f32 %v1132, %v4617
    %v4682 = vadd.f32 %v1135, %v4618
    %v4683 = vadd.f32 %v1868, %v4555
    %v4684 = vadd.f32 %v1871, %v4556
    %v4685 = vadd.f32 %v1874, %v4557
    %v4686 = vadd.f32 %v1877, %v4558
    %v4687 = vadd.f32 %v1880, %v4559
    %v4688 = vadd.f32 %v1883, %v4560
    %v4689 = vadd.f32 %v1886, %v4561
    %v4690 = vadd.f32 %v1889, %v4562
    %v4691 = vadd.f32 %v1892, %v4563
    %v4692 = vadd.f32 %v1895, %v4564
    %v4693 = vadd.f32 %v1898, %v4565
    %v4694 = vadd.f32 %v1901, %v4566
    %v4695 = vadd.f32 %v1904, %v4567
    %v4696 = vadd.f32 %v1907, %v4568
    %v4697 = vadd.f32 %v1910, %v4569
    %v4698 = vadd.f32 %v1913, %v4570
    %v4699 = vadd.f32 %v1916, %v4571
    %v4700 = vadd.f32 %v1919, %v4572
    %v4701 = vadd.f32 %v1922, %v4573
    %v4702 = vadd.f32 %v1925, %v4574
    %v4703 = vadd.f32 %v1928, %v4575
    %v4704 = vadd.f32 %v1931, %v4576
    %v4705 = vadd.f32 %v1934, %v4577
    %v4706 = vadd.f32 %v1937, %v4578
    %v4707 = vadd.f32 %v1940, %v4579
    %v4708 = vadd.f32 %v1943, %v4580
    %v4709 = vadd.f32 %v1946, %v4581
    %v4710 = vadd.f32 %v1949, %v4582
    %v4711 = vadd.f32 %v1952, %v4583
    %v4712 = vadd.f32 %v1955, %v4584
    %v4713 = vadd.f32 %v1958, %v4585
    %v4714 = vadd.f32 %v1961, %v4586
    %v4715 = vadd.f32 %v1964, %v4587
    %v4716 = vadd.f32 %v1967, %v4588
    %v4717 = vadd.f32 %v1970, %v4589
    %v4718 = vadd.f32 %v1973, %v4590
    %v4719 = vadd.f32 %v1976, %v4591
    %v4720 = vadd.f32 %v1979, %v4592
    %v4721 = vadd.f32 %v1982, %v4593
    %v4722 = vadd.f32 %v1985, %v4594
    %v4723 = vadd.f32 %v1988, %v4595
    %v4724 = vadd.f32 %v1991, %v4596
    %v4725 = vadd.f32 %v1994, %v4597
    %v4726 = vadd.f32 %v1997, %v4598
    %v4727 = vadd.f32 %v2000, %v4599
    %v4728 = vadd.f32 %v2003, %v4600
    %v4729 = vadd.f32 %v2006, %v4601
    %v4730 = vadd.f32 %v2009, %v4602
    %v4731 = vadd.f32 %v2012, %v4603
    %v4732 = vadd.f32 %v2015, %v4604
    %v4733 = vadd.f32 %v2018, %v4605
    %v4734 = vadd.f32 %v2021, %v4606
    %v4735 = vadd.f32 %v2024, %v4607
    %v4736 = vadd.f32 %v2027, %v4608
    %v4737 = vadd.f32 %v2030, %v4609
    %v4738 = vadd.f32 %v2033, %v4610
    %v4739 = vadd.f32 %v2036, %v4611
    %v4740 = vadd.f32 %v2039, %v4612
    %v4741 = vadd.f32 %v2042, %v4613
    %v4742 = vadd.f32 %v2045, %v4614
    %v4743 = vadd.f32 %v2048, %v4615
    %v4744 = vadd.f32 %v2051, %v4616
    %v4745 = vadd.f32 %v2054, %v4617
    %v4746 = vadd.f32 %v2057, %v4618
    %v4747 = vld [vmem:[%s10] sm:$0xff]
    %v4748 = vld [vmem:[%s10 + $0x8] sm:$0xff]
    %v4749 = vld [vmem:[%s10 + $0x10] sm:$0xff]
    %v4750 = vld [vmem:[%s10 + $0x18] sm:$0xff]
    %v4751 = vld [vmem:[%s11] sm:$0x1]
    %v4752 = vld [vmem:[%s12] sm:$0xff]
    %v4753 = vld [vmem:[%s12 + $0x8] sm:$0xff]
    %v4754 = vld [vmem:[%s12 + $0x10] sm:$0xff]
    %v4755 = vld [vmem:[%s12 + $0x18] sm:$0xff]
    %v4756 = vld [vmem:[%s13] sm:$0x1]
    %v4757 = vld [vmem:[%s14] sm:$0xff]
    %v4758 = vld [vmem:[%s14 + $0x8] sm:$0xff]
    %v4759 = vld [vmem:[%s14 + $0x10] sm:$0xff]
    %v4760 = vld [vmem:[%s14 + $0x18] sm:$0xff]
    %v4761 = vld [vmem:[%s15] sm:$0x1]
    %v4762 = vld [vmem:[%s16] sm:$0xff]
    %v4763 = vld [vmem:[%s16 + $0x8] sm:$0xff]
    %v4764 = vld [vmem:[%s16 + $0x10] sm:$0xff]
    %v4765 = vld [vmem:[%s16 + $0x18] sm:$0xff]
    %v4766 = vld [vmem:[%s17] sm:$0x1]
    %v4768 = vperm.slane %v4751, 0
    %v4771 = vsel %vm735, %v4619, 0
    %v4774 = vsel %vm735, %v4620, 0
    %v4777 = vsel %vm735, %v4621, 0
    %v4780 = vsel %vm735, %v4622, 0
    %v4783 = vsel %vm735, %v4623, 0
    %v4786 = vsel %vm735, %v4624, 0
    %v4789 = vsel %vm735, %v4625, 0
    %v4792 = vsel %vm735, %v4626, 0
    %v4795 = vsel %vm735, %v4627, 0
    %v4798 = vsel %vm735, %v4628, 0
    %v4801 = vsel %vm735, %v4629, 0
    %v4804 = vsel %vm735, %v4630, 0
    %v4807 = vsel %vm735, %v4631, 0
    %v4810 = vsel %vm735, %v4632, 0
    %v4813 = vsel %vm735, %v4633, 0
    %v4816 = vsel %vm735, %v4634, 0
    %v4819 = vsel %vm735, %v4635, 0
    %v4822 = vsel %vm735, %v4636, 0
    %v4825 = vsel %vm735, %v4637, 0
    %v4828 = vsel %vm735, %v4638, 0
    %v4831 = vsel %vm735, %v4639, 0
    %v4834 = vsel %vm735, %v4640, 0
    %v4837 = vsel %vm735, %v4641, 0
    %v4840 = vsel %vm735, %v4642, 0
    %v4843 = vsel %vm735, %v4643, 0
    %v4846 = vsel %vm735, %v4644, 0
    %v4849 = vsel %vm735, %v4645, 0
    %v4852 = vsel %vm735, %v4646, 0
    %v4855 = vsel %vm735, %v4647, 0
    %v4858 = vsel %vm735, %v4648, 0
    %v4861 = vsel %vm735, %v4649, 0
    %v4864 = vsel %vm735, %v4650, 0
    %v4867 = vsel %vm735, %v4651, 0
    %v4870 = vsel %vm735, %v4652, 0
    %v4873 = vsel %vm735, %v4653, 0
    %v4876 = vsel %vm735, %v4654, 0
    %v4879 = vsel %vm735, %v4655, 0
    %v4882 = vsel %vm735, %v4656, 0
    %v4885 = vsel %vm735, %v4657, 0
    %v4888 = vsel %vm735, %v4658, 0
    %v4891 = vsel %vm735, %v4659, 0
    %v4894 = vsel %vm735, %v4660, 0
    %v4897 = vsel %vm735, %v4661, 0
    %v4900 = vsel %vm735, %v4662, 0
    %v4903 = vsel %vm735, %v4663, 0
    %v4906 = vsel %vm735, %v4664, 0
    %v4909 = vsel %vm735, %v4665, 0
    %v4912 = vsel %vm735, %v4666, 0
    %v4915 = vsel %vm735, %v4667, 0
    %v4918 = vsel %vm735, %v4668, 0
    %v4921 = vsel %vm735, %v4669, 0
    %v4924 = vsel %vm735, %v4670, 0
    %v4927 = vsel %vm735, %v4671, 0
    %v4930 = vsel %vm735, %v4672, 0
    %v4933 = vsel %vm735, %v4673, 0
    %v4936 = vsel %vm735, %v4674, 0
    %v4939 = vsel %vm735, %v4675, 0
    %v4942 = vsel %vm735, %v4676, 0
    %v4945 = vsel %vm735, %v4677, 0
    %v4948 = vsel %vm735, %v4678, 0
    %v4951 = vsel %vm735, %v4679, 0
    %v4954 = vsel %vm735, %v4680, 0
    %v4957 = vsel %vm735, %v4681, 0
    %v4960 = vsel %vm735, %v4682, 0
    %4962 = vmatpush.msra.mxu0 0.0
    %4963 = vmatpush.msra.mxu0 0.0
    %4964 = vmatpush.msra.mxu0 0.0
    %4965 = vmatpush.msra.mxu0 0.0
    %4966 = vmatpush.msra.mxu0 0.0
    %4967 = vmatpush.msra.mxu0 0.0
    %4968 = vmatpush.msra.mxu0 0.0
    %4969 = vmatpush.msra.mxu0 0.0
    %4970 = vmatpush.msra.mxu0 0.0
    %4971 = vmatpush.msra.mxu0 0.0
    %4972 = vmatpush.msra.mxu0 0.0
    %4973 = vmatpush.msra.mxu0 0.0
    %4974 = vmatpush.msra.mxu0 %v4750
    %4975 = vmatpush.msra.mxu0 %v4749
    %4976 = vmatpush.msra.mxu0 %v4748
    %4977 = vmatpush.msra.mxu0 %v4747
    %4978 = vmatmul.f32.gmra.mxu0 %v4771
    %v4979 = vpop.f32.mrf.mxu0
    %v4980 = vadd.f32 %v4768, %v4979
    %4981 = vmatmul.f32.gmra.mxu0 %v4774
    %v4982 = vpop.f32.mrf.mxu0
    %v4983 = vadd.f32 %v4768, %v4982
    %4984 = vmatmul.f32.gmra.mxu0 %v4777
    %v4985 = vpop.f32.mrf.mxu0
    %v4986 = vadd.f32 %v4768, %v4985
    %4987 = vmatmul.f32.gmra.mxu0 %v4780
    %v4988 = vpop.f32.mrf.mxu0
    %v4989 = vadd.f32 %v4768, %v4988
    %4990 = vmatmul.f32.gmra.mxu0 %v4783
    %v4991 = vpop.f32.mrf.mxu0
    %v4992 = vadd.f32 %v4768, %v4991
    %4993 = vmatmul.f32.gmra.mxu0 %v4786
    %v4994 = vpop.f32.mrf.mxu0
    %v4995 = vadd.f32 %v4768, %v4994
    %4996 = vmatmul.f32.gmra.mxu0 %v4789
    %v4997 = vpop.f32.mrf.mxu0
    %v4998 = vadd.f32 %v4768, %v4997
    %4999 = vmatmul.f32.gmra.mxu0 %v4792
    %v5000 = vpop.f32.mrf.mxu0
    %v5001 = vadd.f32 %v4768, %v5000
    %5002 = vmatmul.f32.gmra.mxu0 %v4795
    %v5003 = vpop.f32.mrf.mxu0
    %v5004 = vadd.f32 %v4768, %v5003
    %5005 = vmatmul.f32.gmra.mxu0 %v4798
    %v5006 = vpop.f32.mrf.mxu0
    %v5007 = vadd.f32 %v4768, %v5006
    %5008 = vmatmul.f32.gmra.mxu0 %v4801
    %v5009 = vpop.f32.mrf.mxu0
    %v5010 = vadd.f32 %v4768, %v5009
    %5011 = vmatmul.f32.gmra.mxu0 %v4804
    %v5012 = vpop.f32.mrf.mxu0
    %v5013 = vadd.f32 %v4768, %v5012
    %5014 = vmatmul.f32.gmra.mxu0 %v4807
    %v5015 = vpop.f32.mrf.mxu0
    %v5016 = vadd.f32 %v4768, %v5015
    %5017 = vmatmul.f32.gmra.mxu0 %v4810
    %v5018 = vpop.f32.mrf.mxu0
    %v5019 = vadd.f32 %v4768, %v5018
    %5020 = vmatmul.f32.gmra.mxu0 %v4813
    %v5021 = vpop.f32.mrf.mxu0
    %v5022 = vadd.f32 %v4768, %v5021
    %5023 = vmatmul.f32.gmra.mxu0 %v4816
    %v5024 = vpop.f32.mrf.mxu0
    %v5025 = vadd.f32 %v4768, %v5024
    %5026 = vmatmul.f32.gmra.mxu0 %v4819
    %v5027 = vpop.f32.mrf.mxu0
    %v5028 = vadd.f32 %v4768, %v5027
    %5029 = vmatmul.f32.gmra.mxu0 %v4822
    %v5030 = vpop.f32.mrf.mxu0
    %v5031 = vadd.f32 %v4768, %v5030
    %5032 = vmatmul.f32.gmra.mxu0 %v4825
    %v5033 = vpop.f32.mrf.mxu0
    %v5034 = vadd.f32 %v4768, %v5033
    %5035 = vmatmul.f32.gmra.mxu0 %v4828
    %v5036 = vpop.f32.mrf.mxu0
    %v5037 = vadd.f32 %v4768, %v5036
    %5038 = vmatmul.f32.gmra.mxu0 %v4831
    %v5039 = vpop.f32.mrf.mxu0
    %v5040 = vadd.f32 %v4768, %v5039
    %5041 = vmatmul.f32.gmra.mxu0 %v4834
    %v5042 = vpop.f32.mrf.mxu0
    %v5043 = vadd.f32 %v4768, %v5042
    %5044 = vmatmul.f32.gmra.mxu0 %v4837
    %v5045 = vpop.f32.mrf.mxu0
    %v5046 = vadd.f32 %v4768, %v5045
    %5047 = vmatmul.f32.gmra.mxu0 %v4840
    %v5048 = vpop.f32.mrf.mxu0
    %v5049 = vadd.f32 %v4768, %v5048
    %5050 = vmatmul.f32.gmra.mxu0 %v4843
    %v5051 = vpop.f32.mrf.mxu0
    %v5052 = vadd.f32 %v4768, %v5051
    %5053 = vmatmul.f32.gmra.mxu0 %v4846
    %v5054 = vpop.f32.mrf.mxu0
    %v5055 = vadd.f32 %v4768, %v5054
    %5056 = vmatmul.f32.gmra.mxu0 %v4849
    %v5057 = vpop.f32.mrf.mxu0
    %v5058 = vadd.f32 %v4768, %v5057
    %5059 = vmatmul.f32.gmra.mxu0 %v4852
    %v5060 = vpop.f32.mrf.mxu0
    %v5061 = vadd.f32 %v4768, %v5060
    %5062 = vmatmul.f32.gmra.mxu0 %v4855
    %v5063 = vpop.f32.mrf.mxu0
    %v5064 = vadd.f32 %v4768, %v5063
    %5065 = vmatmul.f32.gmra.mxu0 %v4858
    %v5066 = vpop.f32.mrf.mxu0
    %v5067 = vadd.f32 %v4768, %v5066
    %5068 = vmatmul.f32.gmra.mxu0 %v4861
    %v5069 = vpop.f32.mrf.mxu0
    %v5070 = vadd.f32 %v4768, %v5069
    %5071 = vmatmul.f32.gmra.mxu0 %v4864
    %v5072 = vpop.f32.mrf.mxu0
    %v5073 = vadd.f32 %v4768, %v5072
    %5074 = vmatmul.f32.gmra.mxu0 %v4867
    %v5075 = vpop.f32.mrf.mxu0
    %v5076 = vadd.f32 %v4768, %v5075
    %5077 = vmatmul.f32.gmra.mxu0 %v4870
    %v5078 = vpop.f32.mrf.mxu0
    %v5079 = vadd.f32 %v4768, %v5078
    %5080 = vmatmul.f32.gmra.mxu0 %v4873
    %v5081 = vpop.f32.mrf.mxu0
    %v5082 = vadd.f32 %v4768, %v5081
    %5083 = vmatmul.f32.gmra.mxu0 %v4876
    %v5084 = vpop.f32.mrf.mxu0
    %v5085 = vadd.f32 %v4768, %v5084
    %5086 = vmatmul.f32.gmra.mxu0 %v4879
    %v5087 = vpop.f32.mrf.mxu0
    %v5088 = vadd.f32 %v4768, %v5087
    %5089 = vmatmul.f32.gmra.mxu0 %v4882
    %v5090 = vpop.f32.mrf.mxu0
    %v5091 = vadd.f32 %v4768, %v5090
    %5092 = vmatmul.f32.gmra.mxu0 %v4885
    %v5093 = vpop.f32.mrf.mxu0
    %v5094 = vadd.f32 %v4768, %v5093
    %5095 = vmatmul.f32.gmra.mxu0 %v4888
    %v5096 = vpop.f32.mrf.mxu0
    %v5097 = vadd.f32 %v4768, %v5096
    %5098 = vmatmul.f32.gmra.mxu0 %v4891
    %v5099 = vpop.f32.mrf.mxu0
    %v5100 = vadd.f32 %v4768, %v5099
    %5101 = vmatmul.f32.gmra.mxu0 %v4894
    %v5102 = vpop.f32.mrf.mxu0
    %v5103 = vadd.f32 %v4768, %v5102
    %5104 = vmatmul.f32.gmra.mxu0 %v4897
    %v5105 = vpop.f32.mrf.mxu0
    %v5106 = vadd.f32 %v4768, %v5105
    %5107 = vmatmul.f32.gmra.mxu0 %v4900
    %v5108 = vpop.f32.mrf.mxu0
    %v5109 = vadd.f32 %v4768, %v5108
    %5110 = vmatmul.f32.gmra.mxu0 %v4903
    %v5111 = vpop.f32.mrf.mxu0
    %v5112 = vadd.f32 %v4768, %v5111
    %5113 = vmatmul.f32.gmra.mxu0 %v4906
    %v5114 = vpop.f32.mrf.mxu0
    %v5115 = vadd.f32 %v4768, %v5114
    %5116 = vmatmul.f32.gmra.mxu0 %v4909
    %v5117 = vpop.f32.mrf.mxu0
    %v5118 = vadd.f32 %v4768, %v5117
    %5119 = vmatmul.f32.gmra.mxu0 %v4912
    %v5120 = vpop.f32.mrf.mxu0
    %v5121 = vadd.f32 %v4768, %v5120
    %5122 = vmatmul.f32.gmra.mxu0 %v4915
    %v5123 = vpop.f32.mrf.mxu0
    %v5124 = vadd.f32 %v4768, %v5123
    %5125 = vmatmul.f32.gmra.mxu0 %v4918
    %v5126 = vpop.f32.mrf.mxu0
    %v5127 = vadd.f32 %v4768, %v5126
    %5128 = vmatmul.f32.gmra.mxu0 %v4921
    %v5129 = vpop.f32.mrf.mxu0
    %v5130 = vadd.f32 %v4768, %v5129
    %5131 = vmatmul.f32.gmra.mxu0 %v4924
    %v5132 = vpop.f32.mrf.mxu0
    %v5133 = vadd.f32 %v4768, %v5132
    %5134 = vmatmul.f32.gmra.mxu0 %v4927
    %v5135 = vpop.f32.mrf.mxu0
    %v5136 = vadd.f32 %v4768, %v5135
    %5137 = vmatmul.f32.gmra.mxu0 %v4930
    %v5138 = vpop.f32.mrf.mxu0
    %v5139 = vadd.f32 %v4768, %v5138
    %5140 = vmatmul.f32.gmra.mxu0 %v4933
    %v5141 = vpop.f32.mrf.mxu0
    %v5142 = vadd.f32 %v4768, %v5141
    %5143 = vmatmul.f32.gmra.mxu0 %v4936
    %v5144 = vpop.f32.mrf.mxu0
    %v5145 = vadd.f32 %v4768, %v5144
    %5146 = vmatmul.f32.gmra.mxu0 %v4939
    %v5147 = vpop.f32.mrf.mxu0
    %v5148 = vadd.f32 %v4768, %v5147
    %5149 = vmatmul.f32.gmra.mxu0 %v4942
    %v5150 = vpop.f32.mrf.mxu0
    %v5151 = vadd.f32 %v4768, %v5150
    %5152 = vmatmul.f32.gmra.mxu0 %v4945
    %v5153 = vpop.f32.mrf.mxu0
    %v5154 = vadd.f32 %v4768, %v5153
    %5155 = vmatmul.f32.gmra.mxu0 %v4948
    %v5156 = vpop.f32.mrf.mxu0
    %v5157 = vadd.f32 %v4768, %v5156
    %5158 = vmatmul.f32.gmra.mxu0 %v4951
    %v5159 = vpop.f32.mrf.mxu0
    %v5160 = vadd.f32 %v4768, %v5159
    %5161 = vmatmul.f32.gmra.mxu0 %v4954
    %v5162 = vpop.f32.mrf.mxu0
    %v5163 = vadd.f32 %v4768, %v5162
    %5164 = vmatmul.f32.gmra.mxu0 %v4957
    %v5165 = vpop.f32.mrf.mxu0
    %v5166 = vadd.f32 %v4768, %v5165
    %5167 = vmatmul.f32.gmra.mxu0 %v4960
    %v5168 = vpop.f32.mrf.mxu0
    %v5169 = vadd.f32 %v4768, %v5168
    %5170 = vdwg.mxu0
    %v5171 = vmax.f32 %v4980, 0.0
    %v5172 = vmax.f32 %v4983, 0.0
    %v5173 = vmax.f32 %v4986, 0.0
    %v5174 = vmax.f32 %v4989, 0.0
    %v5175 = vmax.f32 %v4992, 0.0
    %v5176 = vmax.f32 %v4995, 0.0
    %v5177 = vmax.f32 %v4998, 0.0
    %v5178 = vmax.f32 %v5001, 0.0
    %v5179 = vmax.f32 %v5004, 0.0
    %v5180 = vmax.f32 %v5007, 0.0
    %v5181 = vmax.f32 %v5010, 0.0
    %v5182 = vmax.f32 %v5013, 0.0
    %v5183 = vmax.f32 %v5016, 0.0
    %v5184 = vmax.f32 %v5019, 0.0
    %v5185 = vmax.f32 %v5022, 0.0
    %v5186 = vmax.f32 %v5025, 0.0
    %v5187 = vmax.f32 %v5028, 0.0
    %v5188 = vmax.f32 %v5031, 0.0
    %v5189 = vmax.f32 %v5034, 0.0
    %v5190 = vmax.f32 %v5037, 0.0
    %v5191 = vmax.f32 %v5040, 0.0
    %v5192 = vmax.f32 %v5043, 0.0
    %v5193 = vmax.f32 %v5046, 0.0
    %v5194 = vmax.f32 %v5049, 0.0
    %v5195 = vmax.f32 %v5052, 0.0
    %v5196 = vmax.f32 %v5055, 0.0
    %v5197 = vmax.f32 %v5058, 0.0
    %v5198 = vmax.f32 %v5061, 0.0
    %v5199 = vmax.f32 %v5064, 0.0
    %v5200 = vmax.f32 %v5067, 0.0
    %v5201 = vmax.f32 %v5070, 0.0
    %v5202 = vmax.f32 %v5073, 0.0
    %v5203 = vmax.f32 %v5076, 0.0
    %v5204 = vmax.f32 %v5079, 0.0
    %v5205 = vmax.f32 %v5082, 0.0
    %v5206 = vmax.f32 %v5085, 0.0
    %v5207 = vmax.f32 %v5088, 0.0
    %v5208 = vmax.f32 %v5091, 0.0
    %v5209 = vmax.f32 %v5094, 0.0
    %v5210 = vmax.f32 %v5097, 0.0
    %v5211 = vmax.f32 %v5100, 0.0
    %v5212 = vmax.f32 %v5103, 0.0
    %v5213 = vmax.f32 %v5106, 0.0
    %v5214 = vmax.f32 %v5109, 0.0
    %v5215 = vmax.f32 %v5112, 0.0
    %v5216 = vmax.f32 %v5115, 0.0
    %v5217 = vmax.f32 %v5118, 0.0
    %v5218 = vmax.f32 %v5121, 0.0
    %v5219 = vmax.f32 %v5124, 0.0
    %v5220 = vmax.f32 %v5127, 0.0
    %v5221 = vmax.f32 %v5130, 0.0
    %v5222 = vmax.f32 %v5133, 0.0
    %v5223 = vmax.f32 %v5136, 0.0
    %v5224 = vmax.f32 %v5139, 0.0
    %v5225 = vmax.f32 %v5142, 0.0
    %v5226 = vmax.f32 %v5145, 0.0
    %v5227 = vmax.f32 %v5148, 0.0
    %v5228 = vmax.f32 %v5151, 0.0
    %v5229 = vmax.f32 %v5154, 0.0
    %v5230 = vmax.f32 %v5157, 0.0
    %v5231 = vmax.f32 %v5160, 0.0
    %v5232 = vmax.f32 %v5163, 0.0
    %v5233 = vmax.f32 %v5166, 0.0
    %v5234 = vmax.f32 %v5169, 0.0
    %v5236 = vperm.slane %v4756, 0
    %v5239 = vsel %vm735, %v5171, 0
    %v5242 = vsel %vm735, %v5172, 0
    %v5245 = vsel %vm735, %v5173, 0
    %v5248 = vsel %vm735, %v5174, 0
    %v5251 = vsel %vm735, %v5175, 0
    %v5254 = vsel %vm735, %v5176, 0
    %v5257 = vsel %vm735, %v5177, 0
    %v5260 = vsel %vm735, %v5178, 0
    %v5263 = vsel %vm735, %v5179, 0
    %v5266 = vsel %vm735, %v5180, 0
    %v5269 = vsel %vm735, %v5181, 0
    %v5272 = vsel %vm735, %v5182, 0
    %v5275 = vsel %vm735, %v5183, 0
    %v5278 = vsel %vm735, %v5184, 0
    %v5281 = vsel %vm735, %v5185, 0
    %v5284 = vsel %vm735, %v5186, 0
    %v5287 = vsel %vm735, %v5187, 0
    %v5290 = vsel %vm735, %v5188, 0
    %v5293 = vsel %vm735, %v5189, 0
    %v5296 = vsel %vm735, %v5190, 0
    %v5299 = vsel %vm735, %v5191, 0
    %v5302 = vsel %vm735, %v5192, 0
    %v5305 = vsel %vm735, %v5193, 0
    %v5308 = vsel %vm735, %v5194, 0
    %v5311 = vsel %vm735, %v5195, 0
    %v5314 = vsel %vm735, %v5196, 0
    %v5317 = vsel %vm735, %v5197, 0
    %v5320 = vsel %vm735, %v5198, 0
    %v5323 = vsel %vm735, %v5199, 0
    %v5326 = vsel %vm735, %v5200, 0
    %v5329 = vsel %vm735, %v5201, 0
    %v5332 = vsel %vm735, %v5202, 0
    %v5335 = vsel %vm735, %v5203, 0
    %v5338 = vsel %vm735, %v5204, 0
    %v5341 = vsel %vm735, %v5205, 0
    %v5344 = vsel %vm735, %v5206, 0
    %v5347 = vsel %vm735, %v5207, 0
    %v5350 = vsel %vm735, %v5208, 0
    %v5353 = vsel %vm735, %v5209, 0
    %v5356 = vsel %vm735, %v5210, 0
    %v5359 = vsel %vm735, %v5211, 0
    %v5362 = vsel %vm735, %v5212, 0
    %v5365 = vsel %vm735, %v5213, 0
    %v5368 = vsel %vm735, %v5214, 0
    %v5371 = vsel %vm735, %v5215, 0
    %v5374 = vsel %vm735, %v5216, 0
    %v5377 = vsel %vm735, %v5217, 0
    %v5380 = vsel %vm735, %v5218, 0
    %v5383 = vsel %vm735, %v5219, 0
    %v5386 = vsel %vm735, %v5220, 0
    %v5389 = vsel %vm735, %v5221, 0
    %v5392 = vsel %vm735, %v5222, 0
    %v5395 = vsel %vm735, %v5223, 0
    %v5398 = vsel %vm735, %v5224, 0
    %v5401 = vsel %vm735, %v5225, 0
    %v5404 = vsel %vm735, %v5226, 0
    %v5407 = vsel %vm735, %v5227, 0
    %v5410 = vsel %vm735, %v5228, 0
    %v5413 = vsel %vm735, %v5229, 0
    %v5416 = vsel %vm735, %v5230, 0
    %v5419 = vsel %vm735, %v5231, 0
    %v5422 = vsel %vm735, %v5232, 0
    %v5425 = vsel %vm735, %v5233, 0
    %v5428 = vsel %vm735, %v5234, 0
    %5430 = vmatpush.msra.mxu0 0.0
    %5431 = vmatpush.msra.mxu0 0.0
    %5432 = vmatpush.msra.mxu0 0.0
    %5433 = vmatpush.msra.mxu0 0.0
    %5434 = vmatpush.msra.mxu0 0.0
    %5435 = vmatpush.msra.mxu0 0.0
    %5436 = vmatpush.msra.mxu0 0.0
    %5437 = vmatpush.msra.mxu0 0.0
    %5438 = vmatpush.msra.mxu0 0.0
    %5439 = vmatpush.msra.mxu0 0.0
    %5440 = vmatpush.msra.mxu0 0.0
    %5441 = vmatpush.msra.mxu0 0.0
    %5442 = vmatpush.msra.mxu0 %v4755
    %5443 = vmatpush.msra.mxu0 %v4754
    %5444 = vmatpush.msra.mxu0 %v4753
    %5445 = vmatpush.msra.mxu0 %v4752
    %5446 = vmatmul.f32.gmra.mxu0 %v5239
    %v5447 = vpop.f32.mrf.mxu0
    %v5448 = vadd.f32 %v5236, %v5447
    %5449 = vmatmul.f32.gmra.mxu0 %v5242
    %v5450 = vpop.f32.mrf.mxu0
    %v5451 = vadd.f32 %v5236, %v5450
    %5452 = vmatmul.f32.gmra.mxu0 %v5245
    %v5453 = vpop.f32.mrf.mxu0
    %v5454 = vadd.f32 %v5236, %v5453
    %5455 = vmatmul.f32.gmra.mxu0 %v5248
    %v5456 = vpop.f32.mrf.mxu0
    %v5457 = vadd.f32 %v5236, %v5456
    %5458 = vmatmul.f32.gmra.mxu0 %v5251
    %v5459 = vpop.f32.mrf.mxu0
    %v5460 = vadd.f32 %v5236, %v5459
    %5461 = vmatmul.f32.gmra.mxu0 %v5254
    %v5462 = vpop.f32.mrf.mxu0
    %v5463 = vadd.f32 %v5236, %v5462
    %5464 = vmatmul.f32.gmra.mxu0 %v5257
    %v5465 = vpop.f32.mrf.mxu0
    %v5466 = vadd.f32 %v5236, %v5465
    %5467 = vmatmul.f32.gmra.mxu0 %v5260
    %v5468 = vpop.f32.mrf.mxu0
    %v5469 = vadd.f32 %v5236, %v5468
    %5470 = vmatmul.f32.gmra.mxu0 %v5263
    %v5471 = vpop.f32.mrf.mxu0
    %v5472 = vadd.f32 %v5236, %v5471
    %5473 = vmatmul.f32.gmra.mxu0 %v5266
    %v5474 = vpop.f32.mrf.mxu0
    %v5475 = vadd.f32 %v5236, %v5474
    %5476 = vmatmul.f32.gmra.mxu0 %v5269
    %v5477 = vpop.f32.mrf.mxu0
    %v5478 = vadd.f32 %v5236, %v5477
    %5479 = vmatmul.f32.gmra.mxu0 %v5272
    %v5480 = vpop.f32.mrf.mxu0
    %v5481 = vadd.f32 %v5236, %v5480
    %5482 = vmatmul.f32.gmra.mxu0 %v5275
    %v5483 = vpop.f32.mrf.mxu0
    %v5484 = vadd.f32 %v5236, %v5483
    %5485 = vmatmul.f32.gmra.mxu0 %v5278
    %v5486 = vpop.f32.mrf.mxu0
    %v5487 = vadd.f32 %v5236, %v5486
    %5488 = vmatmul.f32.gmra.mxu0 %v5281
    %v5489 = vpop.f32.mrf.mxu0
    %v5490 = vadd.f32 %v5236, %v5489
    %5491 = vmatmul.f32.gmra.mxu0 %v5284
    %v5492 = vpop.f32.mrf.mxu0
    %v5493 = vadd.f32 %v5236, %v5492
    %5494 = vmatmul.f32.gmra.mxu0 %v5287
    %v5495 = vpop.f32.mrf.mxu0
    %v5496 = vadd.f32 %v5236, %v5495
    %5497 = vmatmul.f32.gmra.mxu0 %v5290
    %v5498 = vpop.f32.mrf.mxu0
    %v5499 = vadd.f32 %v5236, %v5498
    %5500 = vmatmul.f32.gmra.mxu0 %v5293
    %v5501 = vpop.f32.mrf.mxu0
    %v5502 = vadd.f32 %v5236, %v5501
    %5503 = vmatmul.f32.gmra.mxu0 %v5296
    %v5504 = vpop.f32.mrf.mxu0
    %v5505 = vadd.f32 %v5236, %v5504
    %5506 = vmatmul.f32.gmra.mxu0 %v5299
    %v5507 = vpop.f32.mrf.mxu0
    %v5508 = vadd.f32 %v5236, %v5507
    %5509 = vmatmul.f32.gmra.mxu0 %v5302
    %v5510 = vpop.f32.mrf.mxu0
    %v5511 = vadd.f32 %v5236, %v5510
    %5512 = vmatmul.f32.gmra.mxu0 %v5305
    %v5513 = vpop.f32.mrf.mxu0
    %v5514 = vadd.f32 %v5236, %v5513
    %5515 = vmatmul.f32.gmra.mxu0 %v5308
    %v5516 = vpop.f32.mrf.mxu0
    %v5517 = vadd.f32 %v5236, %v5516
    %5518 = vmatmul.f32.gmra.mxu0 %v5311
    %v5519 = vpop.f32.mrf.mxu0
    %v5520 = vadd.f32 %v5236, %v5519
    %5521 = vmatmul.f32.gmra.mxu0 %v5314
    %v5522 = vpop.f32.mrf.mxu0
    %v5523 = vadd.f32 %v5236, %v5522
    %5524 = vmatmul.f32.gmra.mxu0 %v5317
    %v5525 = vpop.f32.mrf.mxu0
    %v5526 = vadd.f32 %v5236, %v5525
    %5527 = vmatmul.f32.gmra.mxu0 %v5320
    %v5528 = vpop.f32.mrf.mxu0
    %v5529 = vadd.f32 %v5236, %v5528
    %5530 = vmatmul.f32.gmra.mxu0 %v5323
    %v5531 = vpop.f32.mrf.mxu0
    %v5532 = vadd.f32 %v5236, %v5531
    %5533 = vmatmul.f32.gmra.mxu0 %v5326
    %v5534 = vpop.f32.mrf.mxu0
    %v5535 = vadd.f32 %v5236, %v5534
    %5536 = vmatmul.f32.gmra.mxu0 %v5329
    %v5537 = vpop.f32.mrf.mxu0
    %v5538 = vadd.f32 %v5236, %v5537
    %5539 = vmatmul.f32.gmra.mxu0 %v5332
    %v5540 = vpop.f32.mrf.mxu0
    %v5541 = vadd.f32 %v5236, %v5540
    %5542 = vmatmul.f32.gmra.mxu0 %v5335
    %v5543 = vpop.f32.mrf.mxu0
    %v5544 = vadd.f32 %v5236, %v5543
    %5545 = vmatmul.f32.gmra.mxu0 %v5338
    %v5546 = vpop.f32.mrf.mxu0
    %v5547 = vadd.f32 %v5236, %v5546
    %5548 = vmatmul.f32.gmra.mxu0 %v5341
    %v5549 = vpop.f32.mrf.mxu0
    %v5550 = vadd.f32 %v5236, %v5549
    %5551 = vmatmul.f32.gmra.mxu0 %v5344
    %v5552 = vpop.f32.mrf.mxu0
    %v5553 = vadd.f32 %v5236, %v5552
    %5554 = vmatmul.f32.gmra.mxu0 %v5347
    %v5555 = vpop.f32.mrf.mxu0
    %v5556 = vadd.f32 %v5236, %v5555
    %5557 = vmatmul.f32.gmra.mxu0 %v5350
    %v5558 = vpop.f32.mrf.mxu0
    %v5559 = vadd.f32 %v5236, %v5558
    %5560 = vmatmul.f32.gmra.mxu0 %v5353
    %v5561 = vpop.f32.mrf.mxu0
    %v5562 = vadd.f32 %v5236, %v5561
    %5563 = vmatmul.f32.gmra.mxu0 %v5356
    %v5564 = vpop.f32.mrf.mxu0
    %v5565 = vadd.f32 %v5236, %v5564
    %5566 = vmatmul.f32.gmra.mxu0 %v5359
    %v5567 = vpop.f32.mrf.mxu0
    %v5568 = vadd.f32 %v5236, %v5567
    %5569 = vmatmul.f32.gmra.mxu0 %v5362
    %v5570 = vpop.f32.mrf.mxu0
    %v5571 = vadd.f32 %v5236, %v5570
    %5572 = vmatmul.f32.gmra.mxu0 %v5365
    %v5573 = vpop.f32.mrf.mxu0
    %v5574 = vadd.f32 %v5236, %v5573
    %5575 = vmatmul.f32.gmra.mxu0 %v5368
    %v5576 = vpop.f32.mrf.mxu0
    %v5577 = vadd.f32 %v5236, %v5576
    %5578 = vmatmul.f32.gmra.mxu0 %v5371
    %v5579 = vpop.f32.mrf.mxu0
    %v5580 = vadd.f32 %v5236, %v5579
    %5581 = vmatmul.f32.gmra.mxu0 %v5374
    %v5582 = vpop.f32.mrf.mxu0
    %v5583 = vadd.f32 %v5236, %v5582
    %5584 = vmatmul.f32.gmra.mxu0 %v5377
    %v5585 = vpop.f32.mrf.mxu0
    %v5586 = vadd.f32 %v5236, %v5585
    %5587 = vmatmul.f32.gmra.mxu0 %v5380
    %v5588 = vpop.f32.mrf.mxu0
    %v5589 = vadd.f32 %v5236, %v5588
    %5590 = vmatmul.f32.gmra.mxu0 %v5383
    %v5591 = vpop.f32.mrf.mxu0
    %v5592 = vadd.f32 %v5236, %v5591
    %5593 = vmatmul.f32.gmra.mxu0 %v5386
    %v5594 = vpop.f32.mrf.mxu0
    %v5595 = vadd.f32 %v5236, %v5594
    %5596 = vmatmul.f32.gmra.mxu0 %v5389
    %v5597 = vpop.f32.mrf.mxu0
    %v5598 = vadd.f32 %v5236, %v5597
    %5599 = vmatmul.f32.gmra.mxu0 %v5392
    %v5600 = vpop.f32.mrf.mxu0
    %v5601 = vadd.f32 %v5236, %v5600
    %5602 = vmatmul.f32.gmra.mxu0 %v5395
    %v5603 = vpop.f32.mrf.mxu0
    %v5604 = vadd.f32 %v5236, %v5603
    %5605 = vmatmul.f32.gmra.mxu0 %v5398
    %v5606 = vpop.f32.mrf.mxu0
    %v5607 = vadd.f32 %v5236, %v5606
    %5608 = vmatmul.f32.gmra.mxu0 %v5401
    %v5609 = vpop.f32.mrf.mxu0
    %v5610 = vadd.f32 %v5236, %v5609
    %5611 = vmatmul.f32.gmra.mxu0 %v5404
    %v5612 = vpop.f32.mrf.mxu0
    %v5613 = vadd.f32 %v5236, %v5612
    %5614 = vmatmul.f32.gmra.mxu0 %v5407
    %v5615 = vpop.f32.mrf.mxu0
    %v5616 = vadd.f32 %v5236, %v5615
    %5617 = vmatmul.f32.gmra.mxu0 %v5410
    %v5618 = vpop.f32.mrf.mxu0
    %v5619 = vadd.f32 %v5236, %v5618
    %5620 = vmatmul.f32.gmra.mxu0 %v5413
    %v5621 = vpop.f32.mrf.mxu0
    %v5622 = vadd.f32 %v5236, %v5621
    %5623 = vmatmul.f32.gmra.mxu0 %v5416
    %v5624 = vpop.f32.mrf.mxu0
    %v5625 = vadd.f32 %v5236, %v5624
    %5626 = vmatmul.f32.gmra.mxu0 %v5419
    %v5627 = vpop.f32.mrf.mxu0
    %v5628 = vadd.f32 %v5236, %v5627
    %5629 = vmatmul.f32.gmra.mxu0 %v5422
    %v5630 = vpop.f32.mrf.mxu0
    %v5631 = vadd.f32 %v5236, %v5630
    %5632 = vmatmul.f32.gmra.mxu0 %v5425
    %v5633 = vpop.f32.mrf.mxu0
    %v5634 = vadd.f32 %v5236, %v5633
    %5635 = vmatmul.f32.gmra.mxu0 %v5428
    %v5636 = vpop.f32.mrf.mxu0
    %v5637 = vadd.f32 %v5236, %v5636
    %5638 = vdwg.mxu0
    %v5640 = vperm.slane %v4761, 0
    %v5643 = vsel %vm735, %v4683, 0
    %v5646 = vsel %vm735, %v4684, 0
    %v5649 = vsel %vm735, %v4685, 0
    %v5652 = vsel %vm735, %v4686, 0
    %v5655 = vsel %vm735, %v4687, 0
    %v5658 = vsel %vm735, %v4688, 0
    %v5661 = vsel %vm735, %v4689, 0
    %v5664 = vsel %vm735, %v4690, 0
    %v5667 = vsel %vm735, %v4691, 0
    %v5670 = vsel %vm735, %v4692, 0
    %v5673 = vsel %vm735, %v4693, 0
    %v5676 = vsel %vm735, %v4694, 0
    %v5679 = vsel %vm735, %v4695, 0
    %v5682 = vsel %vm735, %v4696, 0
    %v5685 = vsel %vm735, %v4697, 0
    %v5688 = vsel %vm735, %v4698, 0
    %v5691 = vsel %vm735, %v4699, 0
    %v5694 = vsel %vm735, %v4700, 0
    %v5697 = vsel %vm735, %v4701, 0
    %v5700 = vsel %vm735, %v4702, 0
    %v5703 = vsel %vm735, %v4703, 0
    %v5706 = vsel %vm735, %v4704, 0
    %v5709 = vsel %vm735, %v4705, 0
    %v5712 = vsel %vm735, %v4706, 0
    %v5715 = vsel %vm735, %v4707, 0
    %v5718 = vsel %vm735, %v4708, 0
    %v5721 = vsel %vm735, %v4709, 0
    %v5724 = vsel %vm735, %v4710, 0
    %v5727 = vsel %vm735, %v4711, 0
    %v5730 = vsel %vm735, %v4712, 0
    %v5733 = vsel %vm735, %v4713, 0
    %v5736 = vsel %vm735, %v4714, 0
    %v5739 = vsel %vm735, %v4715, 0
    %v5742 = vsel %vm735, %v4716, 0
    %v5745 = vsel %vm735, %v4717, 0
    %v5748 = vsel %vm735, %v4718, 0
    %v5751 = vsel %vm735, %v4719, 0
    %v5754 = vsel %vm735, %v4720, 0
    %v5757 = vsel %vm735, %v4721, 0
    %v5760 = vsel %vm735, %v4722, 0
    %v5763 = vsel %vm735, %v4723, 0
    %v5766 = vsel %vm735, %v4724, 0
    %v5769 = vsel %vm735, %v4725, 0
    %v5772 = vsel %vm735, %v4726, 0
    %v5775 = vsel %vm735, %v4727, 0
    %v5778 = vsel %vm735, %v4728, 0
    %v5781 = vsel %vm735, %v4729, 0
    %v5784 = vsel %vm735, %v4730, 0
    %v5787 = vsel %vm735, %v4731, 0
    %v5790 = vsel %vm735, %v4732, 0
    %v5793 = vsel %vm735, %v4733, 0
    %v5796 = vsel %vm735, %v4734, 0
    %v5799 = vsel %vm735, %v4735, 0
    %v5802 = vsel %vm735, %v4736, 0
    %v5805 = vsel %vm735, %v4737, 0
    %v5808 = vsel %vm735, %v4738, 0
    %v5811 = vsel %vm735, %v4739, 0
    %v5814 = vsel %vm735, %v4740, 0
    %v5817 = vsel %vm735, %v4741, 0
    %v5820 = vsel %vm735, %v4742, 0
    %v5823 = vsel %vm735, %v4743, 0
    %v5826 = vsel %vm735, %v4744, 0
    %v5829 = vsel %vm735, %v4745, 0
    %v5832 = vsel %vm735, %v4746, 0
    %5834 = vmatpush.msra.mxu0 0.0
    %5835 = vmatpush.msra.mxu0 0.0
    %5836 = vmatpush.msra.mxu0 0.0
    %5837 = vmatpush.msra.mxu0 0.0
    %5838 = vmatpush.msra.mxu0 0.0
    %5839 = vmatpush.msra.mxu0 0.0
    %5840 = vmatpush.msra.mxu0 0.0
    %5841 = vmatpush.msra.mxu0 0.0
    %5842 = vmatpush.msra.mxu0 0.0
    %5843 = vmatpush.msra.mxu0 0.0
    %5844 = vmatpush.msra.mxu0 0.0
    %5845 = vmatpush.msra.mxu0 0.0
    %5846 = vmatpush.msra.mxu0 %v4760
    %5847 = vmatpush.msra.mxu0 %v4759
    %5848 = vmatpush.msra.mxu0 %v4758
    %5849 = vmatpush.msra.mxu0 %v4757
    %5850 = vmatmul.f32.gmra.mxu0 %v5643
    %v5851 = vpop.f32.mrf.mxu0
    %v5852 = vadd.f32 %v5640, %v5851
    %5853 = vmatmul.f32.gmra.mxu0 %v5646
    %v5854 = vpop.f32.mrf.mxu0
    %v5855 = vadd.f32 %v5640, %v5854
    %5856 = vmatmul.f32.gmra.mxu0 %v5649
    %v5857 = vpop.f32.mrf.mxu0
    %v5858 = vadd.f32 %v5640, %v5857
    %5859 = vmatmul.f32.gmra.mxu0 %v5652
    %v5860 = vpop.f32.mrf.mxu0
    %v5861 = vadd.f32 %v5640, %v5860
    %5862 = vmatmul.f32.gmra.mxu0 %v5655
    %v5863 = vpop.f32.mrf.mxu0
    %v5864 = vadd.f32 %v5640, %v5863
    %5865 = vmatmul.f32.gmra.mxu0 %v5658
    %v5866 = vpop.f32.mrf.mxu0
    %v5867 = vadd.f32 %v5640, %v5866
    %5868 = vmatmul.f32.gmra.mxu0 %v5661
    %v5869 = vpop.f32.mrf.mxu0
    %v5870 = vadd.f32 %v5640, %v5869
    %5871 = vmatmul.f32.gmra.mxu0 %v5664
    %v5872 = vpop.f32.mrf.mxu0
    %v5873 = vadd.f32 %v5640, %v5872
    %5874 = vmatmul.f32.gmra.mxu0 %v5667
    %v5875 = vpop.f32.mrf.mxu0
    %v5876 = vadd.f32 %v5640, %v5875
    %5877 = vmatmul.f32.gmra.mxu0 %v5670
    %v5878 = vpop.f32.mrf.mxu0
    %v5879 = vadd.f32 %v5640, %v5878
    %5880 = vmatmul.f32.gmra.mxu0 %v5673
    %v5881 = vpop.f32.mrf.mxu0
    %v5882 = vadd.f32 %v5640, %v5881
    %5883 = vmatmul.f32.gmra.mxu0 %v5676
    %v5884 = vpop.f32.mrf.mxu0
    %v5885 = vadd.f32 %v5640, %v5884
    %5886 = vmatmul.f32.gmra.mxu0 %v5679
    %v5887 = vpop.f32.mrf.mxu0
    %v5888 = vadd.f32 %v5640, %v5887
    %5889 = vmatmul.f32.gmra.mxu0 %v5682
    %v5890 = vpop.f32.mrf.mxu0
    %v5891 = vadd.f32 %v5640, %v5890
    %5892 = vmatmul.f32.gmra.mxu0 %v5685
    %v5893 = vpop.f32.mrf.mxu0
    %v5894 = vadd.f32 %v5640, %v5893
    %5895 = vmatmul.f32.gmra.mxu0 %v5688
    %v5896 = vpop.f32.mrf.mxu0
    %v5897 = vadd.f32 %v5640, %v5896
    %5898 = vmatmul.f32.gmra.mxu0 %v5691
    %v5899 = vpop.f32.mrf.mxu0
    %v5900 = vadd.f32 %v5640, %v5899
    %5901 = vmatmul.f32.gmra.mxu0 %v5694
    %v5902 = vpop.f32.mrf.mxu0
    %v5903 = vadd.f32 %v5640, %v5902
    %5904 = vmatmul.f32.gmra.mxu0 %v5697
    %v5905 = vpop.f32.mrf.mxu0
    %v5906 = vadd.f32 %v5640, %v5905
    %5907 = vmatmul.f32.gmra.mxu0 %v5700
    %v5908 = vpop.f32.mrf.mxu0
    %v5909 = vadd.f32 %v5640, %v5908
    %5910 = vmatmul.f32.gmra.mxu0 %v5703
    %v5911 = vpop.f32.mrf.mxu0
    %v5912 = vadd.f32 %v5640, %v5911
    %5913 = vmatmul.f32.gmra.mxu0 %v5706
    %v5914 = vpop.f32.mrf.mxu0
    %v5915 = vadd.f32 %v5640, %v5914
    %5916 = vmatmul.f32.gmra.mxu0 %v5709
    %v5917 = vpop.f32.mrf.mxu0
    %v5918 = vadd.f32 %v5640, %v5917
    %5919 = vmatmul.f32.gmra.mxu0 %v5712
    %v5920 = vpop.f32.mrf.mxu0
    %v5921 = vadd.f32 %v5640, %v5920
    %5922 = vmatmul.f32.gmra.mxu0 %v5715
    %v5923 = vpop.f32.mrf.mxu0
    %v5924 = vadd.f32 %v5640, %v5923
    %5925 = vmatmul.f32.gmra.mxu0 %v5718
    %v5926 = vpop.f32.mrf.mxu0
    %v5927 = vadd.f32 %v5640, %v5926
    %5928 = vmatmul.f32.gmra.mxu0 %v5721
    %v5929 = vpop.f32.mrf.mxu0
    %v5930 = vadd.f32 %v5640, %v5929
    %5931 = vmatmul.f32.gmra.mxu0 %v5724
    %v5932 = vpop.f32.mrf.mxu0
    %v5933 = vadd.f32 %v5640, %v5932
    %5934 = vmatmul.f32.gmra.mxu0 %v5727
    %v5935 = vpop.f32.mrf.mxu0
    %v5936 = vadd.f32 %v5640, %v5935
    %5937 = vmatmul.f32.gmra.mxu0 %v5730
    %v5938 = vpop.f32.mrf.mxu0
    %v5939 = vadd.f32 %v5640, %v5938
    %5940 = vmatmul.f32.gmra.mxu0 %v5733
    %v5941 = vpop.f32.mrf.mxu0
    %v5942 = vadd.f32 %v5640, %v5941
    %5943 = vmatmul.f32.gmra.mxu0 %v5736
    %v5944 = vpop.f32.mrf.mxu0
    %v5945 = vadd.f32 %v5640, %v5944
    %5946 = vmatmul.f32.gmra.mxu0 %v5739
    %v5947 = vpop.f32.mrf.mxu0
    %v5948 = vadd.f32 %v5640, %v5947
    %5949 = vmatmul.f32.gmra.mxu0 %v5742
    %v5950 = vpop.f32.mrf.mxu0
    %v5951 = vadd.f32 %v5640, %v5950
    %5952 = vmatmul.f32.gmra.mxu0 %v5745
    %v5953 = vpop.f32.mrf.mxu0
    %v5954 = vadd.f32 %v5640, %v5953
    %5955 = vmatmul.f32.gmra.mxu0 %v5748
    %v5956 = vpop.f32.mrf.mxu0
    %v5957 = vadd.f32 %v5640, %v5956
    %5958 = vmatmul.f32.gmra.mxu0 %v5751
    %v5959 = vpop.f32.mrf.mxu0
    %v5960 = vadd.f32 %v5640, %v5959
    %5961 = vmatmul.f32.gmra.mxu0 %v5754
    %v5962 = vpop.f32.mrf.mxu0
    %v5963 = vadd.f32 %v5640, %v5962
    %5964 = vmatmul.f32.gmra.mxu0 %v5757
    %v5965 = vpop.f32.mrf.mxu0
    %v5966 = vadd.f32 %v5640, %v5965
    %5967 = vmatmul.f32.gmra.mxu0 %v5760
    %v5968 = vpop.f32.mrf.mxu0
    %v5969 = vadd.f32 %v5640, %v5968
    %5970 = vmatmul.f32.gmra.mxu0 %v5763
    %v5971 = vpop.f32.mrf.mxu0
    %v5972 = vadd.f32 %v5640, %v5971
    %5973 = vmatmul.f32.gmra.mxu0 %v5766
    %v5974 = vpop.f32.mrf.mxu0
    %v5975 = vadd.f32 %v5640, %v5974
    %5976 = vmatmul.f32.gmra.mxu0 %v5769
    %v5977 = vpop.f32.mrf.mxu0
    %v5978 = vadd.f32 %v5640, %v5977
    %5979 = vmatmul.f32.gmra.mxu0 %v5772
    %v5980 = vpop.f32.mrf.mxu0
    %v5981 = vadd.f32 %v5640, %v5980
    %5982 = vmatmul.f32.gmra.mxu0 %v5775
    %v5983 = vpop.f32.mrf.mxu0
    %v5984 = vadd.f32 %v5640, %v5983
    %5985 = vmatmul.f32.gmra.mxu0 %v5778
    %v5986 = vpop.f32.mrf.mxu0
    %v5987 = vadd.f32 %v5640, %v5986
    %5988 = vmatmul.f32.gmra.mxu0 %v5781
    %v5989 = vpop.f32.mrf.mxu0
    %v5990 = vadd.f32 %v5640, %v5989
    %5991 = vmatmul.f32.gmra.mxu0 %v5784
    %v5992 = vpop.f32.mrf.mxu0
    %v5993 = vadd.f32 %v5640, %v5992
    %5994 = vmatmul.f32.gmra.mxu0 %v5787
    %v5995 = vpop.f32.mrf.mxu0
    %v5996 = vadd.f32 %v5640, %v5995
    %5997 = vmatmul.f32.gmra.mxu0 %v5790
    %v5998 = vpop.f32.mrf.mxu0
    %v5999 = vadd.f32 %v5640, %v5998
    %6000 = vmatmul.f32.gmra.mxu0 %v5793
    %v6001 = vpop.f32.mrf.mxu0
    %v6002 = vadd.f32 %v5640, %v6001
    %6003 = vmatmul.f32.gmra.mxu0 %v5796
    %v6004 = vpop.f32.mrf.mxu0
    %v6005 = vadd.f32 %v5640, %v6004
    %6006 = vmatmul.f32.gmra.mxu0 %v5799
    %v6007 = vpop.f32.mrf.mxu0
    %v6008 = vadd.f32 %v5640, %v6007
    %6009 = vmatmul.f32.gmra.mxu0 %v5802
    %v6010 = vpop.f32.mrf.mxu0
    %v6011 = vadd.f32 %v5640, %v6010
    %6012 = vmatmul.f32.gmra.mxu0 %v5805
    %v6013 = vpop.f32.mrf.mxu0
    %v6014 = vadd.f32 %v5640, %v6013
    %6015 = vmatmul.f32.gmra.mxu0 %v5808
    %v6016 = vpop.f32.mrf.mxu0
    %v6017 = vadd.f32 %v5640, %v6016
    %6018 = vmatmul.f32.gmra.mxu0 %v5811
    %v6019 = vpop.f32.mrf.mxu0
    %v6020 = vadd.f32 %v5640, %v6019
    %6021 = vmatmul.f32.gmra.mxu0 %v5814
    %v6022 = vpop.f32.mrf.mxu0
    %v6023 = vadd.f32 %v5640, %v6022
    %6024 = vmatmul.f32.gmra.mxu0 %v5817
    %v6025 = vpop.f32.mrf.mxu0
    %v6026 = vadd.f32 %v5640, %v6025
    %6027 = vmatmul.f32.gmra.mxu0 %v5820
    %v6028 = vpop.f32.mrf.mxu0
    %v6029 = vadd.f32 %v5640, %v6028
    %6030 = vmatmul.f32.gmra.mxu0 %v5823
    %v6031 = vpop.f32.mrf.mxu0
    %v6032 = vadd.f32 %v5640, %v6031
    %6033 = vmatmul.f32.gmra.mxu0 %v5826
    %v6034 = vpop.f32.mrf.mxu0
    %v6035 = vadd.f32 %v5640, %v6034
    %6036 = vmatmul.f32.gmra.mxu0 %v5829
    %v6037 = vpop.f32.mrf.mxu0
    %v6038 = vadd.f32 %v5640, %v6037
    %6039 = vmatmul.f32.gmra.mxu0 %v5832
    %v6040 = vpop.f32.mrf.mxu0
    %v6041 = vadd.f32 %v5640, %v6040
    %6042 = vdwg.mxu0
    %v6043 = vmax.f32 %v5852, 0.0
    %v6044 = vmax.f32 %v5855, 0.0
    %v6045 = vmax.f32 %v5858, 0.0
    %v6046 = vmax.f32 %v5861, 0.0
    %v6047 = vmax.f32 %v5864, 0.0
    %v6048 = vmax.f32 %v5867, 0.0
    %v6049 = vmax.f32 %v5870, 0.0
    %v6050 = vmax.f32 %v5873, 0.0
    %v6051 = vmax.f32 %v5876, 0.0
    %v6052 = vmax.f32 %v5879, 0.0
    %v6053 = vmax.f32 %v5882, 0.0
    %v6054 = vmax.f32 %v5885, 0.0
    %v6055 = vmax.f32 %v5888, 0.0
    %v6056 = vmax.f32 %v5891, 0.0
    %v6057 = vmax.f32 %v5894, 0.0
    %v6058 = vmax.f32 %v5897, 0.0
    %v6059 = vmax.f32 %v5900, 0.0
    %v6060 = vmax.f32 %v5903, 0.0
    %v6061 = vmax.f32 %v5906, 0.0
    %v6062 = vmax.f32 %v5909, 0.0
    %v6063 = vmax.f32 %v5912, 0.0
    %v6064 = vmax.f32 %v5915, 0.0
    %v6065 = vmax.f32 %v5918, 0.0
    %v6066 = vmax.f32 %v5921, 0.0
    %v6067 = vmax.f32 %v5924, 0.0
    %v6068 = vmax.f32 %v5927, 0.0
    %v6069 = vmax.f32 %v5930, 0.0
    %v6070 = vmax.f32 %v5933, 0.0
    %v6071 = vmax.f32 %v5936, 0.0
    %v6072 = vmax.f32 %v5939, 0.0
    %v6073 = vmax.f32 %v5942, 0.0
    %v6074 = vmax.f32 %v5945, 0.0
    %v6075 = vmax.f32 %v5948, 0.0
    %v6076 = vmax.f32 %v5951, 0.0
    %v6077 = vmax.f32 %v5954, 0.0
    %v6078 = vmax.f32 %v5957, 0.0
    %v6079 = vmax.f32 %v5960, 0.0
    %v6080 = vmax.f32 %v5963, 0.0
    %v6081 = vmax.f32 %v5966, 0.0
    %v6082 = vmax.f32 %v5969, 0.0
    %v6083 = vmax.f32 %v5972, 0.0
    %v6084 = vmax.f32 %v5975, 0.0
    %v6085 = vmax.f32 %v5978, 0.0
    %v6086 = vmax.f32 %v5981, 0.0
    %v6087 = vmax.f32 %v5984, 0.0
    %v6088 = vmax.f32 %v5987, 0.0
    %v6089 = vmax.f32 %v5990, 0.0
    %v6090 = vmax.f32 %v5993, 0.0
    %v6091 = vmax.f32 %v5996, 0.0
    %v6092 = vmax.f32 %v5999, 0.0
    %v6093 = vmax.f32 %v6002, 0.0
    %v6094 = vmax.f32 %v6005, 0.0
    %v6095 = vmax.f32 %v6008, 0.0
    %v6096 = vmax.f32 %v6011, 0.0
    %v6097 = vmax.f32 %v6014, 0.0
    %v6098 = vmax.f32 %v6017, 0.0
    %v6099 = vmax.f32 %v6020, 0.0
    %v6100 = vmax.f32 %v6023, 0.0
    %v6101 = vmax.f32 %v6026, 0.0
    %v6102 = vmax.f32 %v6029, 0.0
    %v6103 = vmax.f32 %v6032, 0.0
    %v6104 = vmax.f32 %v6035, 0.0
    %v6105 = vmax.f32 %v6038, 0.0
    %v6106 = vmax.f32 %v6041, 0.0
    %v6108 = vperm.slane %v4766, 0
    %v6111 = vsel %vm735, %v6043, 0
    %v6114 = vsel %vm735, %v6044, 0
    %v6117 = vsel %vm735, %v6045, 0
    %v6120 = vsel %vm735, %v6046, 0
    %v6123 = vsel %vm735, %v6047, 0
    %v6126 = vsel %vm735, %v6048, 0
    %v6129 = vsel %vm735, %v6049, 0
    %v6132 = vsel %vm735, %v6050, 0
    %v6135 = vsel %vm735, %v6051, 0
    %v6138 = vsel %vm735, %v6052, 0
    %v6141 = vsel %vm735, %v6053, 0
    %v6144 = vsel %vm735, %v6054, 0
    %v6147 = vsel %vm735, %v6055, 0
    %v6150 = vsel %vm735, %v6056, 0
    %v6153 = vsel %vm735, %v6057, 0
    %v6156 = vsel %vm735, %v6058, 0
    %v6159 = vsel %vm735, %v6059, 0
    %v6162 = vsel %vm735, %v6060, 0
    %v6165 = vsel %vm735, %v6061, 0
    %v6168 = vsel %vm735, %v6062, 0
    %v6171 = vsel %vm735, %v6063, 0
    %v6174 = vsel %vm735, %v6064, 0
    %v6177 = vsel %vm735, %v6065, 0
    %v6180 = vsel %vm735, %v6066, 0
    %v6183 = vsel %vm735, %v6067, 0
    %v6186 = vsel %vm735, %v6068, 0
    %v6189 = vsel %vm735, %v6069, 0
    %v6192 = vsel %vm735, %v6070, 0
    %v6195 = vsel %vm735, %v6071, 0
    %v6198 = vsel %vm735, %v6072, 0
    %v6201 = vsel %vm735, %v6073, 0
    %v6204 = vsel %vm735, %v6074, 0
    %v6207 = vsel %vm735, %v6075, 0
    %v6210 = vsel %vm735, %v6076, 0
    %v6213 = vsel %vm735, %v6077, 0
    %v6216 = vsel %vm735, %v6078, 0
    %v6219 = vsel %vm735, %v6079, 0
    %v6222 = vsel %vm735, %v6080, 0
    %v6225 = vsel %vm735, %v6081, 0
    %v6228 = vsel %vm735, %v6082, 0
    %v6231 = vsel %vm735, %v6083, 0
    %v6234 = vsel %vm735, %v6084, 0
    %v6237 = vsel %vm735, %v6085, 0
    %v6240 = vsel %vm735, %v6086, 0
    %v6243 = vsel %vm735, %v6087, 0
    %v6246 = vsel %vm735, %v6088, 0
    %v6249 = vsel %vm735, %v6089, 0
    %v6252 = vsel %vm735, %v6090, 0
    %v6255 = vsel %vm735, %v6091, 0
    %v6258 = vsel %vm735, %v6092, 0
    %v6261 = vsel %vm735, %v6093, 0
    %v6264 = vsel %vm735, %v6094, 0
    %v6267 = vsel %vm735, %v6095, 0
    %v6270 = vsel %vm735, %v6096, 0
    %v6273 = vsel %vm735, %v6097, 0
    %v6276 = vsel %vm735, %v6098, 0
    %v6279 = vsel %vm735, %v6099, 0
    %v6282 = vsel %vm735, %v6100, 0
    %v6285 = vsel %vm735, %v6101, 0
    %v6288 = vsel %vm735, %v6102, 0
    %v6291 = vsel %vm735, %v6103, 0
    %v6294 = vsel %vm735, %v6104, 0
    %v6297 = vsel %vm735, %v6105, 0
    %v6300 = vsel %vm735, %v6106, 0
    %6302 = vmatpush.msra.mxu0 0.0
    %6303 = vmatpush.msra.mxu0 0.0
    %6304 = vmatpush.msra.mxu0 0.0
    %6305 = vmatpush.msra.mxu0 0.0
    %6306 = vmatpush.msra.mxu0 0.0
    %6307 = vmatpush.msra.mxu0 0.0
    %6308 = vmatpush.msra.mxu0 0.0
    %6309 = vmatpush.msra.mxu0 0.0
    %6310 = vmatpush.msra.mxu0 0.0
    %6311 = vmatpush.msra.mxu0 0.0
    %6312 = vmatpush.msra.mxu0 0.0
    %6313 = vmatpush.msra.mxu0 0.0
    %6314 = vmatpush.msra.mxu0 %v4765
    %6315 = vmatpush.msra.mxu0 %v4764
    %6316 = vmatpush.msra.mxu0 %v4763
    %6317 = vmatpush.msra.mxu0 %v4762
    %6318 = vmatmul.f32.gmra.mxu0 %v6111
    %v6319 = vpop.f32.mrf.mxu0
    %v6320 = vadd.f32 %v6108, %v6319
    %6321 = vmatmul.f32.gmra.mxu0 %v6114
    %v6322 = vpop.f32.mrf.mxu0
    %v6323 = vadd.f32 %v6108, %v6322
    %6324 = vmatmul.f32.gmra.mxu0 %v6117
    %v6325 = vpop.f32.mrf.mxu0
    %v6326 = vadd.f32 %v6108, %v6325
    %6327 = vmatmul.f32.gmra.mxu0 %v6120
    %v6328 = vpop.f32.mrf.mxu0
    %v6329 = vadd.f32 %v6108, %v6328
    %6330 = vmatmul.f32.gmra.mxu0 %v6123
    %v6331 = vpop.f32.mrf.mxu0
    %v6332 = vadd.f32 %v6108, %v6331
    %6333 = vmatmul.f32.gmra.mxu0 %v6126
    %v6334 = vpop.f32.mrf.mxu0
    %v6335 = vadd.f32 %v6108, %v6334
    %6336 = vmatmul.f32.gmra.mxu0 %v6129
    %v6337 = vpop.f32.mrf.mxu0
    %v6338 = vadd.f32 %v6108, %v6337
    %6339 = vmatmul.f32.gmra.mxu0 %v6132
    %v6340 = vpop.f32.mrf.mxu0
    %v6341 = vadd.f32 %v6108, %v6340
    %6342 = vmatmul.f32.gmra.mxu0 %v6135
    %v6343 = vpop.f32.mrf.mxu0
    %v6344 = vadd.f32 %v6108, %v6343
    %6345 = vmatmul.f32.gmra.mxu0 %v6138
    %v6346 = vpop.f32.mrf.mxu0
    %v6347 = vadd.f32 %v6108, %v6346
    %6348 = vmatmul.f32.gmra.mxu0 %v6141
    %v6349 = vpop.f32.mrf.mxu0
    %v6350 = vadd.f32 %v6108, %v6349
    %6351 = vmatmul.f32.gmra.mxu0 %v6144
    %v6352 = vpop.f32.mrf.mxu0
    %v6353 = vadd.f32 %v6108, %v6352
    %6354 = vmatmul.f32.gmra.mxu0 %v6147
    %v6355 = vpop.f32.mrf.mxu0
    %v6356 = vadd.f32 %v6108, %v6355
    %6357 = vmatmul.f32.gmra.mxu0 %v6150
    %v6358 = vpop.f32.mrf.mxu0
    %v6359 = vadd.f32 %v6108, %v6358
    %6360 = vmatmul.f32.gmra.mxu0 %v6153
    %v6361 = vpop.f32.mrf.mxu0
    %v6362 = vadd.f32 %v6108, %v6361
    %6363 = vmatmul.f32.gmra.mxu0 %v6156
    %v6364 = vpop.f32.mrf.mxu0
    %v6365 = vadd.f32 %v6108, %v6364
    %6366 = vmatmul.f32.gmra.mxu0 %v6159
    %v6367 = vpop.f32.mrf.mxu0
    %v6368 = vadd.f32 %v6108, %v6367
    %6369 = vmatmul.f32.gmra.mxu0 %v6162
    %v6370 = vpop.f32.mrf.mxu0
    %v6371 = vadd.f32 %v6108, %v6370
    %6372 = vmatmul.f32.gmra.mxu0 %v6165
    %v6373 = vpop.f32.mrf.mxu0
    %v6374 = vadd.f32 %v6108, %v6373
    %6375 = vmatmul.f32.gmra.mxu0 %v6168
    %v6376 = vpop.f32.mrf.mxu0
    %v6377 = vadd.f32 %v6108, %v6376
    %6378 = vmatmul.f32.gmra.mxu0 %v6171
    %v6379 = vpop.f32.mrf.mxu0
    %v6380 = vadd.f32 %v6108, %v6379
    %6381 = vmatmul.f32.gmra.mxu0 %v6174
    %v6382 = vpop.f32.mrf.mxu0
    %v6383 = vadd.f32 %v6108, %v6382
    %6384 = vmatmul.f32.gmra.mxu0 %v6177
    %v6385 = vpop.f32.mrf.mxu0
    %v6386 = vadd.f32 %v6108, %v6385
    %6387 = vmatmul.f32.gmra.mxu0 %v6180
    %v6388 = vpop.f32.mrf.mxu0
    %v6389 = vadd.f32 %v6108, %v6388
    %6390 = vmatmul.f32.gmra.mxu0 %v6183
    %v6391 = vpop.f32.mrf.mxu0
    %v6392 = vadd.f32 %v6108, %v6391
    %6393 = vmatmul.f32.gmra.mxu0 %v6186
    %v6394 = vpop.f32.mrf.mxu0
    %v6395 = vadd.f32 %v6108, %v6394
    %6396 = vmatmul.f32.gmra.mxu0 %v6189
    %v6397 = vpop.f32.mrf.mxu0
    %v6398 = vadd.f32 %v6108, %v6397
    %6399 = vmatmul.f32.gmra.mxu0 %v6192
    %v6400 = vpop.f32.mrf.mxu0
    %v6401 = vadd.f32 %v6108, %v6400
    %6402 = vmatmul.f32.gmra.mxu0 %v6195
    %v6403 = vpop.f32.mrf.mxu0
    %v6404 = vadd.f32 %v6108, %v6403
    %6405 = vmatmul.f32.gmra.mxu0 %v6198
    %v6406 = vpop.f32.mrf.mxu0
    %v6407 = vadd.f32 %v6108, %v6406
    %6408 = vmatmul.f32.gmra.mxu0 %v6201
    %v6409 = vpop.f32.mrf.mxu0
    %v6410 = vadd.f32 %v6108, %v6409
    %6411 = vmatmul.f32.gmra.mxu0 %v6204
    %v6412 = vpop.f32.mrf.mxu0
    %v6413 = vadd.f32 %v6108, %v6412
    %6414 = vmatmul.f32.gmra.mxu0 %v6207
    %v6415 = vpop.f32.mrf.mxu0
    %v6416 = vadd.f32 %v6108, %v6415
    %6417 = vmatmul.f32.gmra.mxu0 %v6210
    %v6418 = vpop.f32.mrf.mxu0
    %v6419 = vadd.f32 %v6108, %v6418
    %6420 = vmatmul.f32.gmra.mxu0 %v6213
    %v6421 = vpop.f32.mrf.mxu0
    %v6422 = vadd.f32 %v6108, %v6421
    %6423 = vmatmul.f32.gmra.mxu0 %v6216
    %v6424 = vpop.f32.mrf.mxu0
    %v6425 = vadd.f32 %v6108, %v6424
    %6426 = vmatmul.f32.gmra.mxu0 %v6219
    %v6427 = vpop.f32.mrf.mxu0
    %v6428 = vadd.f32 %v6108, %v6427
    %6429 = vmatmul.f32.gmra.mxu0 %v6222
    %v6430 = vpop.f32.mrf.mxu0
    %v6431 = vadd.f32 %v6108, %v6430
    %6432 = vmatmul.f32.gmra.mxu0 %v6225
    %v6433 = vpop.f32.mrf.mxu0
    %v6434 = vadd.f32 %v6108, %v6433
    %6435 = vmatmul.f32.gmra.mxu0 %v6228
    %v6436 = vpop.f32.mrf.mxu0
    %v6437 = vadd.f32 %v6108, %v6436
    %6438 = vmatmul.f32.gmra.mxu0 %v6231
    %v6439 = vpop.f32.mrf.mxu0
    %v6440 = vadd.f32 %v6108, %v6439
    %6441 = vmatmul.f32.gmra.mxu0 %v6234
    %v6442 = vpop.f32.mrf.mxu0
    %v6443 = vadd.f32 %v6108, %v6442
    %6444 = vmatmul.f32.gmra.mxu0 %v6237
    %v6445 = vpop.f32.mrf.mxu0
    %v6446 = vadd.f32 %v6108, %v6445
    %6447 = vmatmul.f32.gmra.mxu0 %v6240
    %v6448 = vpop.f32.mrf.mxu0
    %v6449 = vadd.f32 %v6108, %v6448
    %6450 = vmatmul.f32.gmra.mxu0 %v6243
    %v6451 = vpop.f32.mrf.mxu0
    %v6452 = vadd.f32 %v6108, %v6451
    %6453 = vmatmul.f32.gmra.mxu0 %v6246
    %v6454 = vpop.f32.mrf.mxu0
    %v6455 = vadd.f32 %v6108, %v6454
    %6456 = vmatmul.f32.gmra.mxu0 %v6249
    %v6457 = vpop.f32.mrf.mxu0
    %v6458 = vadd.f32 %v6108, %v6457
    %6459 = vmatmul.f32.gmra.mxu0 %v6252
    %v6460 = vpop.f32.mrf.mxu0
    %v6461 = vadd.f32 %v6108, %v6460
    %6462 = vmatmul.f32.gmra.mxu0 %v6255
    %v6463 = vpop.f32.mrf.mxu0
    %v6464 = vadd.f32 %v6108, %v6463
    %6465 = vmatmul.f32.gmra.mxu0 %v6258
    %v6466 = vpop.f32.mrf.mxu0
    %v6467 = vadd.f32 %v6108, %v6466
    %6468 = vmatmul.f32.gmra.mxu0 %v6261
    %v6469 = vpop.f32.mrf.mxu0
    %v6470 = vadd.f32 %v6108, %v6469
    %6471 = vmatmul.f32.gmra.mxu0 %v6264
    %v6472 = vpop.f32.mrf.mxu0
    %v6473 = vadd.f32 %v6108, %v6472
    %6474 = vmatmul.f32.gmra.mxu0 %v6267
    %v6475 = vpop.f32.mrf.mxu0
    %v6476 = vadd.f32 %v6108, %v6475
    %6477 = vmatmul.f32.gmra.mxu0 %v6270
    %v6478 = vpop.f32.mrf.mxu0
    %v6479 = vadd.f32 %v6108, %v6478
    %6480 = vmatmul.f32.gmra.mxu0 %v6273
    %v6481 = vpop.f32.mrf.mxu0
    %v6482 = vadd.f32 %v6108, %v6481
    %6483 = vmatmul.f32.gmra.mxu0 %v6276
    %v6484 = vpop.f32.mrf.mxu0
    %v6485 = vadd.f32 %v6108, %v6484
    %6486 = vmatmul.f32.gmra.mxu0 %v6279
    %v6487 = vpop.f32.mrf.mxu0
    %v6488 = vadd.f32 %v6108, %v6487
    %6489 = vmatmul.f32.gmra.mxu0 %v6282
    %v6490 = vpop.f32.mrf.mxu0
    %v6491 = vadd.f32 %v6108, %v6490
    %6492 = vmatmul.f32.gmra.mxu0 %v6285
    %v6493 = vpop.f32.mrf.mxu0
    %v6494 = vadd.f32 %v6108, %v6493
    %6495 = vmatmul.f32.gmra.mxu0 %v6288
    %v6496 = vpop.f32.mrf.mxu0
    %v6497 = vadd.f32 %v6108, %v6496
    %6498 = vmatmul.f32.gmra.mxu0 %v6291
    %v6499 = vpop.f32.mrf.mxu0
    %v6500 = vadd.f32 %v6108, %v6499
    %6501 = vmatmul.f32.gmra.mxu0 %v6294
    %v6502 = vpop.f32.mrf.mxu0
    %v6503 = vadd.f32 %v6108, %v6502
    %6504 = vmatmul.f32.gmra.mxu0 %v6297
    %v6505 = vpop.f32.mrf.mxu0
    %v6506 = vadd.f32 %v6108, %v6505
    %6507 = vmatmul.f32.gmra.mxu0 %v6300
    %v6508 = vpop.f32.mrf.mxu0
    %v6509 = vadd.f32 %v6108, %v6508
    %6510 = vdwg.mxu0
    %v6511 = vperm.slane %v5448, 0
    %v6512 = vperm.slane %v5454, 0
    %v6513 = vperm.slane %v5460, 0
    %v6514 = vperm.slane %v5466, 0
    %v6515 = vperm.slane %v5472, 0
    %v6516 = vperm.slane %v5478, 0
    %v6517 = vperm.slane %v5484, 0
    %v6518 = vperm.slane %v5490, 0
    %v6519 = vperm.slane %v5496, 0
    %v6520 = vperm.slane %v5502, 0
    %v6521 = vperm.slane %v5508, 0
    %v6522 = vperm.slane %v5514, 0
    %v6523 = vperm.slane %v5520, 0
    %v6524 = vperm.slane %v5526, 0
    %v6525 = vperm.slane %v5532, 0
    %v6526 = vperm.slane %v5538, 0
    %v6527 = vperm.slane %v5544, 0
    %v6528 = vperm.slane %v5550, 0
    %v6529 = vperm.slane %v5556, 0
    %v6530 = vperm.slane %v5562, 0
    %v6531 = vperm.slane %v5568, 0
    %v6532 = vperm.slane %v5574, 0
    %v6533 = vperm.slane %v5580, 0
    %v6534 = vperm.slane %v5586, 0
    %v6535 = vperm.slane %v5592, 0
    %v6536 = vperm.slane %v5598, 0
    %v6537 = vperm.slane %v5604, 0
    %v6538 = vperm.slane %v5610, 0
    %v6539 = vperm.slane %v5616, 0
    %v6540 = vperm.slane %v5622, 0
    %v6541 = vperm.slane %v5628, 0
    %v6542 = vperm.slane %v5634, 0
    %v6543 = vmul.f32 %v6511, %v6320
    %v6544 = vmul.f32 %v6511, %v6323
    %v6545 = vmul.f32 %v6512, %v6320
    %v6546 = vmul.f32 %v6512, %v6323
    %v6547 = vmul.f32 %v6513, %v6320
    %v6548 = vmul.f32 %v6513, %v6323
    %v6549 = vmul.f32 %v6514, %v6320
    %v6550 = vmul.f32 %v6514, %v6323
    %v6551 = vmul.f32 %v6515, %v6320
    %v6552 = vmul.f32 %v6515, %v6323
    %v6553 = vmul.f32 %v6516, %v6320
    %v6554 = vmul.f32 %v6516, %v6323
    %v6555 = vmul.f32 %v6517, %v6320
    %v6556 = vmul.f32 %v6517, %v6323
    %v6557 = vmul.f32 %v6518, %v6320
    %v6558 = vmul.f32 %v6518, %v6323
    %v6559 = vmul.f32 %v6519, %v6320
    %v6560 = vmul.f32 %v6519, %v6323
    %v6561 = vmul.f32 %v6520, %v6320
    %v6562 = vmul.f32 %v6520, %v6323
    %v6563 = vmul.f32 %v6521, %v6320
    %v6564 = vmul.f32 %v6521, %v6323
    %v6565 = vmul.f32 %v6522, %v6320
    %v6566 = vmul.f32 %v6522, %v6323
    %v6567 = vmul.f32 %v6523, %v6320
    %v6568 = vmul.f32 %v6523, %v6323
    %v6569 = vmul.f32 %v6524, %v6320
    %v6570 = vmul.f32 %v6524, %v6323
    %v6571 = vmul.f32 %v6525, %v6320
    %v6572 = vmul.f32 %v6525, %v6323
    %v6573 = vmul.f32 %v6526, %v6320
    %v6574 = vmul.f32 %v6526, %v6323
    %v6575 = vmul.f32 %v6527, %v6416
    %v6576 = vmul.f32 %v6527, %v6419
    %v6577 = vmul.f32 %v6528, %v6416
    %v6578 = vmul.f32 %v6528, %v6419
    %v6579 = vmul.f32 %v6529, %v6416
    %v6580 = vmul.f32 %v6529, %v6419
    %v6581 = vmul.f32 %v6530, %v6416
    %v6582 = vmul.f32 %v6530, %v6419
    %v6583 = vmul.f32 %v6531, %v6416
    %v6584 = vmul.f32 %v6531, %v6419
    %v6585 = vmul.f32 %v6532, %v6416
    %v6586 = vmul.f32 %v6532, %v6419
    %v6587 = vmul.f32 %v6533, %v6416
    %v6588 = vmul.f32 %v6533, %v6419
    %v6589 = vmul.f32 %v6534, %v6416
    %v6590 = vmul.f32 %v6534, %v6419
    %v6591 = vmul.f32 %v6535, %v6416
    %v6592 = vmul.f32 %v6535, %v6419
    %v6593 = vmul.f32 %v6536, %v6416
    %v6594 = vmul.f32 %v6536, %v6419
    %v6595 = vmul.f32 %v6537, %v6416
    %v6596 = vmul.f32 %v6537, %v6419
    %v6597 = vmul.f32 %v6538, %v6416
    %v6598 = vmul.f32 %v6538, %v6419
    %v6599 = vmul.f32 %v6539, %v6416
    %v6600 = vmul.f32 %v6539, %v6419
    %v6601 = vmul.f32 %v6540, %v6416
    %v6602 = vmul.f32 %v6540, %v6419
    %v6603 = vmul.f32 %v6541, %v6416
    %v6604 = vmul.f32 %v6541, %v6419
    %v6605 = vmul.f32 %v6542, %v6416
    %v6606 = vmul.f32 %v6542, %v6419
    %v6607 = vperm.slane %v5448, 1
    %v6608 = vperm.slane %v5454, 1
    %v6609 = vperm.slane %v5460, 1
    %v6610 = vperm.slane %v5466, 1
    %v6611 = vperm.slane %v5472, 1
    %v6612 = vperm.slane %v5478, 1
    %v6613 = vperm.slane %v5484, 1
    %v6614 = vperm.slane %v5490, 1
    %v6615 = vperm.slane %v5496, 1
    %v6616 = vperm.slane %v5502, 1
    %v6617 = vperm.slane %v5508, 1
    %v6618 = vperm.slane %v5514, 1
    %v6619 = vperm.slane %v5520, 1
    %v6620 = vperm.slane %v5526, 1
    %v6621 = vperm.slane %v5532, 1
    %v6622 = vperm.slane %v5538, 1
    %v6623 = vperm.slane %v5544, 1
    %v6624 = vperm.slane %v5550, 1
    %v6625 = vperm.slane %v5556, 1
    %v6626 = vperm.slane %v5562, 1
    %v6627 = vperm.slane %v5568, 1
    %v6628 = vperm.slane %v5574, 1
    %v6629 = vperm.slane %v5580, 1
    %v6630 = vperm.slane %v5586, 1
    %v6631 = vperm.slane %v5592, 1
    %v6632 = vperm.slane %v5598, 1
    %v6633 = vperm.slane %v5604, 1
    %v6634 = vperm.slane %v5610, 1
    %v6635 = vperm.slane %v5616, 1
    %v6636 = vperm.slane %v5622, 1
    %v6637 = vperm.slane %v5628, 1
    %v6638 = vperm.slane %v5634, 1
    %v6639 = vmul.f32 %v6607, %v6326
    %v6640 = vmul.f32 %v6607, %v6329
    %v6641 = vmul.f32 %v6608, %v6326
    %v6642 = vmul.f32 %v6608, %v6329
    %v6643 = vmul.f32 %v6609, %v6326
    %v6644 = vmul.f32 %v6609, %v6329
    %v6645 = vmul.f32 %v6610, %v6326
    %v6646 = vmul.f32 %v6610, %v6329
    %v6647 = vmul.f32 %v6611, %v6326
    %v6648 = vmul.f32 %v6611, %v6329
    %v6649 = vmul.f32 %v6612, %v6326
    %v6650 = vmul.f32 %v6612, %v6329
    %v6651 = vmul.f32 %v6613, %v6326
    %v6652 = vmul.f32 %v6613, %v6329
    %v6653 = vmul.f32 %v6614, %v6326
    %v6654 = vmul.f32 %v6614, %v6329
    %v6655 = vmul.f32 %v6615, %v6326
    %v6656 = vmul.f32 %v6615, %v6329
    %v6657 = vmul.f32 %v6616, %v6326
    %v6658 = vmul.f32 %v6616, %v6329
    %v6659 = vmul.f32 %v6617, %v6326
    %v6660 = vmul.f32 %v6617, %v6329
    %v6661 = vmul.f32 %v6618, %v6326
    %v6662 = vmul.f32 %v6618, %v6329
    %v6663 = vmul.f32 %v6619, %v6326
    %v6664 = vmul.f32 %v6619, %v6329
    %v6665 = vmul.f32 %v6620, %v6326
    %v6666 = vmul.f32 %v6620, %v6329
    %v6667 = vmul.f32 %v6621, %v6326
    %v6668 = vmul.f32 %v6621, %v6329
    %v6669 = vmul.f32 %v6622, %v6326
    %v6670 = vmul.f32 %v6622, %v6329
    %v6671 = vmul.f32 %v6623, %v6422
    %v6672 = vmul.f32 %v6623, %v6425
    %v6673 = vmul.f32 %v6624, %v6422
    %v6674 = vmul.f32 %v6624, %v6425
    %v6675 = vmul.f32 %v6625, %v6422
    %v6676 = vmul.f32 %v6625, %v6425
    %v6677 = vmul.f32 %v6626, %v6422
    %v6678 = vmul.f32 %v6626, %v6425
    %v6679 = vmul.f32 %v6627, %v6422
    %v6680 = vmul.f32 %v6627, %v6425
    %v6681 = vmul.f32 %v6628, %v6422
    %v6682 = vmul.f32 %v6628, %v6425
    %v6683 = vmul.f32 %v6629, %v6422
    %v6684 = vmul.f32 %v6629, %v6425
    %v6685 = vmul.f32 %v6630, %v6422
    %v6686 = vmul.f32 %v6630, %v6425
    %v6687 = vmul.f32 %v6631, %v6422
    %v6688 = vmul.f32 %v6631, %v6425
    %v6689 = vmul.f32 %v6632, %v6422
    %v6690 = vmul.f32 %v6632, %v6425
    %v6691 = vmul.f32 %v6633, %v6422
    %v6692 = vmul.f32 %v6633, %v6425
    %v6693 = vmul.f32 %v6634, %v6422
    %v6694 = vmul.f32 %v6634, %v6425
    %v6695 = vmul.f32 %v6635, %v6422
    %v6696 = vmul.f32 %v6635, %v6425
    %v6697 = vmul.f32 %v6636, %v6422
    %v6698 = vmul.f32 %v6636, %v6425
    %v6699 = vmul.f32 %v6637, %v6422
    %v6700 = vmul.f32 %v6637, %v6425
    %v6701 = vmul.f32 %v6638, %v6422
    %v6702 = vmul.f32 %v6638, %v6425
    %v6703 = vadd.f32 %v6543, %v6639
    %v6704 = vadd.f32 %v6544, %v6640
    %v6705 = vadd.f32 %v6545, %v6641
    %v6706 = vadd.f32 %v6546, %v6642
    %v6707 = vadd.f32 %v6547, %v6643
    %v6708 = vadd.f32 %v6548, %v6644
    %v6709 = vadd.f32 %v6549, %v6645
    %v6710 = vadd.f32 %v6550, %v6646
    %v6711 = vadd.f32 %v6551, %v6647
    %v6712 = vadd.f32 %v6552, %v6648
    %v6713 = vadd.f32 %v6553, %v6649
    %v6714 = vadd.f32 %v6554, %v6650
    %v6715 = vadd.f32 %v6555, %v6651
    %v6716 = vadd.f32 %v6556, %v6652
    %v6717 = vadd.f32 %v6557, %v6653
    %v6718 = vadd.f32 %v6558, %v6654
    %v6719 = vadd.f32 %v6559, %v6655
    %v6720 = vadd.f32 %v6560, %v6656
    %v6721 = vadd.f32 %v6561, %v6657
    %v6722 = vadd.f32 %v6562, %v6658
    %v6723 = vadd.f32 %v6563, %v6659
    %v6724 = vadd.f32 %v6564, %v6660
    %v6725 = vadd.f32 %v6565, %v6661
    %v6726 = vadd.f32 %v6566, %v6662
    %v6727 = vadd.f32 %v6567, %v6663
    %v6728 = vadd.f32 %v6568, %v6664
    %v6729 = vadd.f32 %v6569, %v6665
    %v6730 = vadd.f32 %v6570, %v6666
    %v6731 = vadd.f32 %v6571, %v6667
    %v6732 = vadd.f32 %v6572, %v6668
    %v6733 = vadd.f32 %v6573, %v6669
    %v6734 = vadd.f32 %v6574, %v6670
    %v6735 = vadd.f32 %v6575, %v6671
    %v6736 = vadd.f32 %v6576, %v6672
    %v6737 = vadd.f32 %v6577, %v6673
    %v6738 = vadd.f32 %v6578, %v6674
    %v6739 = vadd.f32 %v6579, %v6675
    %v6740 = vadd.f32 %v6580, %v6676
    %v6741 = vadd.f32 %v6581, %v6677
    %v6742 = vadd.f32 %v6582, %v6678
    %v6743 = vadd.f32 %v6583, %v6679
    %v6744 = vadd.f32 %v6584, %v6680
    %v6745 = vadd.f32 %v6585, %v6681
    %v6746 = vadd.f32 %v6586, %v6682
    %v6747 = vadd.f32 %v6587, %v6683
    %v6748 = vadd.f32 %v6588, %v6684
    %v6749 = vadd.f32 %v6589, %v6685
    %v6750 = vadd.f32 %v6590, %v6686
    %v6751 = vadd.f32 %v6591, %v6687
    %v6752 = vadd.f32 %v6592, %v6688
    %v6753 = vadd.f32 %v6593, %v6689
    %v6754 = vadd.f32 %v6594, %v6690
    %v6755 = vadd.f32 %v6595, %v6691
    %v6756 = vadd.f32 %v6596, %v6692
    %v6757 = vadd.f32 %v6597, %v6693
    %v6758 = vadd.f32 %v6598, %v6694
    %v6759 = vadd.f32 %v6599, %v6695
    %v6760 = vadd.f32 %v6600, %v6696
    %v6761 = vadd.f32 %v6601, %v6697
    %v6762 = vadd.f32 %v6602, %v6698
    %v6763 = vadd.f32 %v6603, %v6699
    %v6764 = vadd.f32 %v6604, %v6700
    %v6765 = vadd.f32 %v6605, %v6701
    %v6766 = vadd.f32 %v6606, %v6702
    %v6767 = vperm.slane %v5448, 2
    %v6768 = vperm.slane %v5454, 2
    %v6769 = vperm.slane %v5460, 2
    %v6770 = vperm.slane %v5466, 2
    %v6771 = vperm.slane %v5472, 2
    %v6772 = vperm.slane %v5478, 2
    %v6773 = vperm.slane %v5484, 2
    %v6774 = vperm.slane %v5490, 2
    %v6775 = vperm.slane %v5496, 2
    %v6776 = vperm.slane %v5502, 2
    %v6777 = vperm.slane %v5508, 2
    %v6778 = vperm.slane %v5514, 2
    %v6779 = vperm.slane %v5520, 2
    %v6780 = vperm.slane %v5526, 2
    %v6781 = vperm.slane %v5532, 2
    %v6782 = vperm.slane %v5538, 2
    %v6783 = vperm.slane %v5544, 2
    %v6784 = vperm.slane %v5550, 2
    %v6785 = vperm.slane %v5556, 2
    %v6786 = vperm.slane %v5562, 2
    %v6787 = vperm.slane %v5568, 2
    %v6788 = vperm.slane %v5574, 2
    %v6789 = vperm.slane %v5580, 2
    %v6790 = vperm.slane %v5586, 2
    %v6791 = vperm.slane %v5592, 2
    %v6792 = vperm.slane %v5598, 2
    %v6793 = vperm.slane %v5604, 2
    %v6794 = vperm.slane %v5610, 2
    %v6795 = vperm.slane %v5616, 2
    %v6796 = vperm.slane %v5622, 2
    %v6797 = vperm.slane %v5628, 2
    %v6798 = vperm.slane %v5634, 2
    %v6799 = vmul.f32 %v6767, %v6332
    %v6800 = vmul.f32 %v6767, %v6335
    %v6801 = vmul.f32 %v6768, %v6332
    %v6802 = vmul.f32 %v6768, %v6335
    %v6803 = vmul.f32 %v6769, %v6332
    %v6804 = vmul.f32 %v6769, %v6335
    %v6805 = vmul.f32 %v6770, %v6332
    %v6806 = vmul.f32 %v6770, %v6335
    %v6807 = vmul.f32 %v6771, %v6332
    %v6808 = vmul.f32 %v6771, %v6335
    %v6809 = vmul.f32 %v6772, %v6332
    %v6810 = vmul.f32 %v6772, %v6335
    %v6811 = vmul.f32 %v6773, %v6332
    %v6812 = vmul.f32 %v6773, %v6335
    %v6813 = vmul.f32 %v6774, %v6332
    %v6814 = vmul.f32 %v6774, %v6335
    %v6815 = vmul.f32 %v6775, %v6332
    %v6816 = vmul.f32 %v6775, %v6335
    %v6817 = vmul.f32 %v6776, %v6332
    %v6818 = vmul.f32 %v6776, %v6335
    %v6819 = vmul.f32 %v6777, %v6332
    %v6820 = vmul.f32 %v6777, %v6335
    %v6821 = vmul.f32 %v6778, %v6332
    %v6822 = vmul.f32 %v6778, %v6335
    %v6823 = vmul.f32 %v6779, %v6332
    %v6824 = vmul.f32 %v6779, %v6335
    %v6825 = vmul.f32 %v6780, %v6332
    %v6826 = vmul.f32 %v6780, %v6335
    %v6827 = vmul.f32 %v6781, %v6332
    %v6828 = vmul.f32 %v6781, %v6335
    %v6829 = vmul.f32 %v6782, %v6332
    %v6830 = vmul.f32 %v6782, %v6335
    %v6831 = vmul.f32 %v6783, %v6428
    %v6832 = vmul.f32 %v6783, %v6431
    %v6833 = vmul.f32 %v6784, %v6428
    %v6834 = vmul.f32 %v6784, %v6431
    %v6835 = vmul.f32 %v6785, %v6428
    %v6836 = vmul.f32 %v6785, %v6431
    %v6837 = vmul.f32 %v6786, %v6428
    %v6838 = vmul.f32 %v6786, %v6431
    %v6839 = vmul.f32 %v6787, %v6428
    %v6840 = vmul.f32 %v6787, %v6431
    %v6841 = vmul.f32 %v6788, %v6428
    %v6842 = vmul.f32 %v6788, %v6431
    %v6843 = vmul.f32 %v6789, %v6428
    %v6844 = vmul.f32 %v6789, %v6431
    %v6845 = vmul.f32 %v6790, %v6428
    %v6846 = vmul.f32 %v6790, %v6431
    %v6847 = vmul.f32 %v6791, %v6428
    %v6848 = vmul.f32 %v6791, %v6431
    %v6849 = vmul.f32 %v6792, %v6428
    %v6850 = vmul.f32 %v6792, %v6431
    %v6851 = vmul.f32 %v6793, %v6428
    %v6852 = vmul.f32 %v6793, %v6431
    %v6853 = vmul.f32 %v6794, %v6428
    %v6854 = vmul.f32 %v6794, %v6431
    %v6855 = vmul.f32 %v6795, %v6428
    %v6856 = vmul.f32 %v6795, %v6431
    %v6857 = vmul.f32 %v6796, %v6428
    %v6858 = vmul.f32 %v6796, %v6431
    %v6859 = vmul.f32 %v6797, %v6428
    %v6860 = vmul.f32 %v6797, %v6431
    %v6861 = vmul.f32 %v6798, %v6428
    %v6862 = vmul.f32 %v6798, %v6431
    %v6863 = vadd.f32 %v6703, %v6799
    %v6864 = vadd.f32 %v6704, %v6800
    %v6865 = vadd.f32 %v6705, %v6801
    %v6866 = vadd.f32 %v6706, %v6802
    %v6867 = vadd.f32 %v6707, %v6803
    %v6868 = vadd.f32 %v6708, %v6804
    %v6869 = vadd.f32 %v6709, %v6805
    %v6870 = vadd.f32 %v6710, %v6806
    %v6871 = vadd.f32 %v6711, %v6807
    %v6872 = vadd.f32 %v6712, %v6808
    %v6873 = vadd.f32 %v6713, %v6809
    %v6874 = vadd.f32 %v6714, %v6810
    %v6875 = vadd.f32 %v6715, %v6811
    %v6876 = vadd.f32 %v6716, %v6812
    %v6877 = vadd.f32 %v6717, %v6813
    %v6878 = vadd.f32 %v6718, %v6814
    %v6879 = vadd.f32 %v6719, %v6815
    %v6880 = vadd.f32 %v6720, %v6816
    %v6881 = vadd.f32 %v6721, %v6817
    %v6882 = vadd.f32 %v6722, %v6818
    %v6883 = vadd.f32 %v6723, %v6819
    %v6884 = vadd.f32 %v6724, %v6820
    %v6885 = vadd.f32 %v6725, %v6821
    %v6886 = vadd.f32 %v6726, %v6822
    %v6887 = vadd.f32 %v6727, %v6823
    %v6888 = vadd.f32 %v6728, %v6824
    %v6889 = vadd.f32 %v6729, %v6825
    %v6890 = vadd.f32 %v6730, %v6826
    %v6891 = vadd.f32 %v6731, %v6827
    %v6892 = vadd.f32 %v6732, %v6828
    %v6893 = vadd.f32 %v6733, %v6829
    %v6894 = vadd.f32 %v6734, %v6830
    %v6895 = vadd.f32 %v6735, %v6831
    %v6896 = vadd.f32 %v6736, %v6832
    %v6897 = vadd.f32 %v6737, %v6833
    %v6898 = vadd.f32 %v6738, %v6834
    %v6899 = vadd.f32 %v6739, %v6835
    %v6900 = vadd.f32 %v6740, %v6836
    %v6901 = vadd.f32 %v6741, %v6837
    %v6902 = vadd.f32 %v6742, %v6838
    %v6903 = vadd.f32 %v6743, %v6839
    %v6904 = vadd.f32 %v6744, %v6840
    %v6905 = vadd.f32 %v6745, %v6841
    %v6906 = vadd.f32 %v6746, %v6842
    %v6907 = vadd.f32 %v6747, %v6843
    %v6908 = vadd.f32 %v6748, %v6844
    %v6909 = vadd.f32 %v6749, %v6845
    %v6910 = vadd.f32 %v6750, %v6846
    %v6911 = vadd.f32 %v6751, %v6847
    %v6912 = vadd.f32 %v6752, %v6848
    %v6913 = vadd.f32 %v6753, %v6849
    %v6914 = vadd.f32 %v6754, %v6850
    %v6915 = vadd.f32 %v6755, %v6851
    %v6916 = vadd.f32 %v6756, %v6852
    %v6917 = vadd.f32 %v6757, %v6853
    %v6918 = vadd.f32 %v6758, %v6854
    %v6919 = vadd.f32 %v6759, %v6855
    %v6920 = vadd.f32 %v6760, %v6856
    %v6921 = vadd.f32 %v6761, %v6857
    %v6922 = vadd.f32 %v6762, %v6858
    %v6923 = vadd.f32 %v6763, %v6859
    %v6924 = vadd.f32 %v6764, %v6860
    %v6925 = vadd.f32 %v6765, %v6861
    %v6926 = vadd.f32 %v6766, %v6862
    %v6927 = vperm.slane %v5448, 3
    %v6928 = vperm.slane %v5454, 3
    %v6929 = vperm.slane %v5460, 3
    %v6930 = vperm.slane %v5466, 3
    %v6931 = vperm.slane %v5472, 3
    %v6932 = vperm.slane %v5478, 3
    %v6933 = vperm.slane %v5484, 3
    %v6934 = vperm.slane %v5490, 3
    %v6935 = vperm.slane %v5496, 3
    %v6936 = vperm.slane %v5502, 3
    %v6937 = vperm.slane %v5508, 3
    %v6938 = vperm.slane %v5514, 3
    %v6939 = vperm.slane %v5520, 3
    %v6940 = vperm.slane %v5526, 3
    %v6941 = vperm.slane %v5532, 3
    %v6942 = vperm.slane %v5538, 3
    %v6943 = vperm.slane %v5544, 3
    %v6944 = vperm.slane %v5550, 3
    %v6945 = vperm.slane %v5556, 3
    %v6946 = vperm.slane %v5562, 3
    %v6947 = vperm.slane %v5568, 3
    %v6948 = vperm.slane %v5574, 3
    %v6949 = vperm.slane %v5580, 3
    %v6950 = vperm.slane %v5586, 3
    %v6951 = vperm.slane %v5592, 3
    %v6952 = vperm.slane %v5598, 3
    %v6953 = vperm.slane %v5604, 3
    %v6954 = vperm.slane %v5610, 3
    %v6955 = vperm.slane %v5616, 3
    %v6956 = vperm.slane %v5622, 3
    %v6957 = vperm.slane %v5628, 3
    %v6958 = vperm.slane %v5634, 3
    %v6959 = vmul.f32 %v6927, %v6338
    %v6960 = vmul.f32 %v6927, %v6341
    %v6961 = vmul.f32 %v6928, %v6338
    %v6962 = vmul.f32 %v6928, %v6341
    %v6963 = vmul.f32 %v6929, %v6338
    %v6964 = vmul.f32 %v6929, %v6341
    %v6965 = vmul.f32 %v6930, %v6338
    %v6966 = vmul.f32 %v6930, %v6341
    %v6967 = vmul.f32 %v6931, %v6338
    %v6968 = vmul.f32 %v6931, %v6341
    %v6969 = vmul.f32 %v6932, %v6338
    %v6970 = vmul.f32 %v6932, %v6341
    %v6971 = vmul.f32 %v6933, %v6338
    %v6972 = vmul.f32 %v6933, %v6341
    %v6973 = vmul.f32 %v6934, %v6338
    %v6974 = vmul.f32 %v6934, %v6341
    %v6975 = vmul.f32 %v6935, %v6338
    %v6976 = vmul.f32 %v6935, %v6341
    %v6977 = vmul.f32 %v6936, %v6338
    %v6978 = vmul.f32 %v6936, %v6341
    %v6979 = vmul.f32 %v6937, %v6338
    %v6980 = vmul.f32 %v6937, %v6341
    %v6981 = vmul.f32 %v6938, %v6338
    %v6982 = vmul.f32 %v6938, %v6341
    %v6983 = vmul.f32 %v6939, %v6338
    %v6984 = vmul.f32 %v6939, %v6341
    %v6985 = vmul.f32 %v6940, %v6338
    %v6986 = vmul.f32 %v6940, %v6341
    %v6987 = vmul.f32 %v6941, %v6338
    %v6988 = vmul.f32 %v6941, %v6341
    %v6989 = vmul.f32 %v6942, %v6338
    %v6990 = vmul.f32 %v6942, %v6341
    %v6991 = vmul.f32 %v6943, %v6434
    %v6992 = vmul.f32 %v6943, %v6437
    %v6993 = vmul.f32 %v6944, %v6434
    %v6994 = vmul.f32 %v6944, %v6437
    %v6995 = vmul.f32 %v6945, %v6434
    %v6996 = vmul.f32 %v6945, %v6437
    %v6997 = vmul.f32 %v6946, %v6434
    %v6998 = vmul.f32 %v6946, %v6437
    %v6999 = vmul.f32 %v6947, %v6434
    %v7000 = vmul.f32 %v6947, %v6437
    %v7001 = vmul.f32 %v6948, %v6434
    %v7002 = vmul.f32 %v6948, %v6437
    %v7003 = vmul.f32 %v6949, %v6434
    %v7004 = vmul.f32 %v6949, %v6437
    %v7005 = vmul.f32 %v6950, %v6434
    %v7006 = vmul.f32 %v6950, %v6437
    %v7007 = vmul.f32 %v6951, %v6434
    %v7008 = vmul.f32 %v6951, %v6437
    %v7009 = vmul.f32 %v6952, %v6434
    %v7010 = vmul.f32 %v6952, %v6437
    %v7011 = vmul.f32 %v6953, %v6434
    %v7012 = vmul.f32 %v6953, %v6437
    %v7013 = vmul.f32 %v6954, %v6434
    %v7014 = vmul.f32 %v6954, %v6437
    %v7015 = vmul.f32 %v6955, %v6434
    %v7016 = vmul.f32 %v6955, %v6437
    %v7017 = vmul.f32 %v6956, %v6434
    %v7018 = vmul.f32 %v6956, %v6437
    %v7019 = vmul.f32 %v6957, %v6434
    %v7020 = vmul.f32 %v6957, %v6437
    %v7021 = vmul.f32 %v6958, %v6434
    %v7022 = vmul.f32 %v6958, %v6437
    %v7023 = vadd.f32 %v6863, %v6959
    %v7024 = vadd.f32 %v6864, %v6960
    %v7025 = vadd.f32 %v6865, %v6961
    %v7026 = vadd.f32 %v6866, %v6962
    %v7027 = vadd.f32 %v6867, %v6963
    %v7028 = vadd.f32 %v6868, %v6964
    %v7029 = vadd.f32 %v6869, %v6965
    %v7030 = vadd.f32 %v6870, %v6966
    %v7031 = vadd.f32 %v6871, %v6967
    %v7032 = vadd.f32 %v6872, %v6968
    %v7033 = vadd.f32 %v6873, %v6969
    %v7034 = vadd.f32 %v6874, %v6970
    %v7035 = vadd.f32 %v6875, %v6971
    %v7036 = vadd.f32 %v6876, %v6972
    %v7037 = vadd.f32 %v6877, %v6973
    %v7038 = vadd.f32 %v6878, %v6974
    %v7039 = vadd.f32 %v6879, %v6975
    %v7040 = vadd.f32 %v6880, %v6976
    %v7041 = vadd.f32 %v6881, %v6977
    %v7042 = vadd.f32 %v6882, %v6978
    %v7043 = vadd.f32 %v6883, %v6979
    %v7044 = vadd.f32 %v6884, %v6980
    %v7045 = vadd.f32 %v6885, %v6981
    %v7046 = vadd.f32 %v6886, %v6982
    %v7047 = vadd.f32 %v6887, %v6983
    %v7048 = vadd.f32 %v6888, %v6984
    %v7049 = vadd.f32 %v6889, %v6985
    %v7050 = vadd.f32 %v6890, %v6986
    %v7051 = vadd.f32 %v6891, %v6987
    %v7052 = vadd.f32 %v6892, %v6988
    %v7053 = vadd.f32 %v6893, %v6989
    %v7054 = vadd.f32 %v6894, %v6990
    %v7055 = vadd.f32 %v6895, %v6991
    %v7056 = vadd.f32 %v6896, %v6992
    %v7057 = vadd.f32 %v6897, %v6993
    %v7058 = vadd.f32 %v6898, %v6994
    %v7059 = vadd.f32 %v6899, %v6995
    %v7060 = vadd.f32 %v6900, %v6996
    %v7061 = vadd.f32 %v6901, %v6997
    %v7062 = vadd.f32 %v6902, %v6998
    %v7063 = vadd.f32 %v6903, %v6999
    %v7064 = vadd.f32 %v6904, %v7000
    %v7065 = vadd.f32 %v6905, %v7001
    %v7066 = vadd.f32 %v6906, %v7002
    %v7067 = vadd.f32 %v6907, %v7003
    %v7068 = vadd.f32 %v6908, %v7004
    %v7069 = vadd.f32 %v6909, %v7005
    %v7070 = vadd.f32 %v6910, %v7006
    %v7071 = vadd.f32 %v6911, %v7007
    %v7072 = vadd.f32 %v6912, %v7008
    %v7073 = vadd.f32 %v6913, %v7009
    %v7074 = vadd.f32 %v6914, %v7010
    %v7075 = vadd.f32 %v6915, %v7011
    %v7076 = vadd.f32 %v6916, %v7012
    %v7077 = vadd.f32 %v6917, %v7013
    %v7078 = vadd.f32 %v6918, %v7014
    %v7079 = vadd.f32 %v6919, %v7015
    %v7080 = vadd.f32 %v6920, %v7016
    %v7081 = vadd.f32 %v6921, %v7017
    %v7082 = vadd.f32 %v6922, %v7018
    %v7083 = vadd.f32 %v6923, %v7019
    %v7084 = vadd.f32 %v6924, %v7020
    %v7085 = vadd.f32 %v6925, %v7021
    %v7086 = vadd.f32 %v6926, %v7022
    %v7087 = vperm.slane %v5448, 4
    %v7088 = vperm.slane %v5454, 4
    %v7089 = vperm.slane %v5460, 4
    %v7090 = vperm.slane %v5466, 4
    %v7091 = vperm.slane %v5472, 4
    %v7092 = vperm.slane %v5478, 4
    %v7093 = vperm.slane %v5484, 4
    %v7094 = vperm.slane %v5490, 4
    %v7095 = vperm.slane %v5496, 4
    %v7096 = vperm.slane %v5502, 4
    %v7097 = vperm.slane %v5508, 4
    %v7098 = vperm.slane %v5514, 4
    %v7099 = vperm.slane %v5520, 4
    %v7100 = vperm.slane %v5526, 4
    %v7101 = vperm.slane %v5532, 4
    %v7102 = vperm.slane %v5538, 4
    %v7103 = vperm.slane %v5544, 4
    %v7104 = vperm.slane %v5550, 4
    %v7105 = vperm.slane %v5556, 4
    %v7106 = vperm.slane %v5562, 4
    %v7107 = vperm.slane %v5568, 4
    %v7108 = vperm.slane %v5574, 4
    %v7109 = vperm.slane %v5580, 4
    %v7110 = vperm.slane %v5586, 4
    %v7111 = vperm.slane %v5592, 4
    %v7112 = vperm.slane %v5598, 4
    %v7113 = vperm.slane %v5604, 4
    %v7114 = vperm.slane %v5610, 4
    %v7115 = vperm.slane %v5616, 4
    %v7116 = vperm.slane %v5622, 4
    %v7117 = vperm.slane %v5628, 4
    %v7118 = vperm.slane %v5634, 4
    %v7119 = vmul.f32 %v7087, %v6344
    %v7120 = vmul.f32 %v7087, %v6347
    %v7121 = vmul.f32 %v7088, %v6344
    %v7122 = vmul.f32 %v7088, %v6347
    %v7123 = vmul.f32 %v7089, %v6344
    %v7124 = vmul.f32 %v7089, %v6347
    %v7125 = vmul.f32 %v7090, %v6344
    %v7126 = vmul.f32 %v7090, %v6347
    %v7127 = vmul.f32 %v7091, %v6344
    %v7128 = vmul.f32 %v7091, %v6347
    %v7129 = vmul.f32 %v7092, %v6344
    %v7130 = vmul.f32 %v7092, %v6347
    %v7131 = vmul.f32 %v7093, %v6344
    %v7132 = vmul.f32 %v7093, %v6347
    %v7133 = vmul.f32 %v7094, %v6344
    %v7134 = vmul.f32 %v7094, %v6347
    %v7135 = vmul.f32 %v7095, %v6344
    %v7136 = vmul.f32 %v7095, %v6347
    %v7137 = vmul.f32 %v7096, %v6344
    %v7138 = vmul.f32 %v7096, %v6347
    %v7139 = vmul.f32 %v7097, %v6344
    %v7140 = vmul.f32 %v7097, %v6347
    %v7141 = vmul.f32 %v7098, %v6344
    %v7142 = vmul.f32 %v7098, %v6347
    %v7143 = vmul.f32 %v7099, %v6344
    %v7144 = vmul.f32 %v7099, %v6347
    %v7145 = vmul.f32 %v7100, %v6344
    %v7146 = vmul.f32 %v7100, %v6347
    %v7147 = vmul.f32 %v7101, %v6344
    %v7148 = vmul.f32 %v7101, %v6347
    %v7149 = vmul.f32 %v7102, %v6344
    %v7150 = vmul.f32 %v7102, %v6347
    %v7151 = vmul.f32 %v7103, %v6440
    %v7152 = vmul.f32 %v7103, %v6443
    %v7153 = vmul.f32 %v7104, %v6440
    %v7154 = vmul.f32 %v7104, %v6443
    %v7155 = vmul.f32 %v7105, %v6440
    %v7156 = vmul.f32 %v7105, %v6443
    %v7157 = vmul.f32 %v7106, %v6440
    %v7158 = vmul.f32 %v7106, %v6443
    %v7159 = vmul.f32 %v7107, %v6440
    %v7160 = vmul.f32 %v7107, %v6443
    %v7161 = vmul.f32 %v7108, %v6440
    %v7162 = vmul.f32 %v7108, %v6443
    %v7163 = vmul.f32 %v7109, %v6440
    %v7164 = vmul.f32 %v7109, %v6443
    %v7165 = vmul.f32 %v7110, %v6440
    %v7166 = vmul.f32 %v7110, %v6443
    %v7167 = vmul.f32 %v7111, %v6440
    %v7168 = vmul.f32 %v7111, %v6443
    %v7169 = vmul.f32 %v7112, %v6440
    %v7170 = vmul.f32 %v7112, %v6443
    %v7171 = vmul.f32 %v7113, %v6440
    %v7172 = vmul.f32 %v7113, %v6443
    %v7173 = vmul.f32 %v7114, %v6440
    %v7174 = vmul.f32 %v7114, %v6443
    %v7175 = vmul.f32 %v7115, %v6440
    %v7176 = vmul.f32 %v7115, %v6443
    %v7177 = vmul.f32 %v7116, %v6440
    %v7178 = vmul.f32 %v7116, %v6443
    %v7179 = vmul.f32 %v7117, %v6440
    %v7180 = vmul.f32 %v7117, %v6443
    %v7181 = vmul.f32 %v7118, %v6440
    %v7182 = vmul.f32 %v7118, %v6443
    %v7183 = vadd.f32 %v7023, %v7119
    %v7184 = vadd.f32 %v7024, %v7120
    %v7185 = vadd.f32 %v7025, %v7121
    %v7186 = vadd.f32 %v7026, %v7122
    %v7187 = vadd.f32 %v7027, %v7123
    %v7188 = vadd.f32 %v7028, %v7124
    %v7189 = vadd.f32 %v7029, %v7125
    %v7190 = vadd.f32 %v7030, %v7126
    %v7191 = vadd.f32 %v7031, %v7127
    %v7192 = vadd.f32 %v7032, %v7128
    %v7193 = vadd.f32 %v7033, %v7129
    %v7194 = vadd.f32 %v7034, %v7130
    %v7195 = vadd.f32 %v7035, %v7131
    %v7196 = vadd.f32 %v7036, %v7132
    %v7197 = vadd.f32 %v7037, %v7133
    %v7198 = vadd.f32 %v7038, %v7134
    %v7199 = vadd.f32 %v7039, %v7135
    %v7200 = vadd.f32 %v7040, %v7136
    %v7201 = vadd.f32 %v7041, %v7137
    %v7202 = vadd.f32 %v7042, %v7138
    %v7203 = vadd.f32 %v7043, %v7139
    %v7204 = vadd.f32 %v7044, %v7140
    %v7205 = vadd.f32 %v7045, %v7141
    %v7206 = vadd.f32 %v7046, %v7142
    %v7207 = vadd.f32 %v7047, %v7143
    %v7208 = vadd.f32 %v7048, %v7144
    %v7209 = vadd.f32 %v7049, %v7145
    %v7210 = vadd.f32 %v7050, %v7146
    %v7211 = vadd.f32 %v7051, %v7147
    %v7212 = vadd.f32 %v7052, %v7148
    %v7213 = vadd.f32 %v7053, %v7149
    %v7214 = vadd.f32 %v7054, %v7150
    %v7215 = vadd.f32 %v7055, %v7151
    %v7216 = vadd.f32 %v7056, %v7152
    %v7217 = vadd.f32 %v7057, %v7153
    %v7218 = vadd.f32 %v7058, %v7154
    %v7219 = vadd.f32 %v7059, %v7155
    %v7220 = vadd.f32 %v7060, %v7156
    %v7221 = vadd.f32 %v7061, %v7157
    %v7222 = vadd.f32 %v7062, %v7158
    %v7223 = vadd.f32 %v7063, %v7159
    %v7224 = vadd.f32 %v7064, %v7160
    %v7225 = vadd.f32 %v7065, %v7161
    %v7226 = vadd.f32 %v7066, %v7162
    %v7227 = vadd.f32 %v7067, %v7163
    %v7228 = vadd.f32 %v7068, %v7164
    %v7229 = vadd.f32 %v7069, %v7165
    %v7230 = vadd.f32 %v7070, %v7166
    %v7231 = vadd.f32 %v7071, %v7167
    %v7232 = vadd.f32 %v7072, %v7168
    %v7233 = vadd.f32 %v7073, %v7169
    %v7234 = vadd.f32 %v7074, %v7170
    %v7235 = vadd.f32 %v7075, %v7171
    %v7236 = vadd.f32 %v7076, %v7172
    %v7237 = vadd.f32 %v7077, %v7173
    %v7238 = vadd.f32 %v7078, %v7174
    %v7239 = vadd.f32 %v7079, %v7175
    %v7240 = vadd.f32 %v7080, %v7176
    %v7241 = vadd.f32 %v7081, %v7177
    %v7242 = vadd.f32 %v7082, %v7178
    %v7243 = vadd.f32 %v7083, %v7179
    %v7244 = vadd.f32 %v7084, %v7180
    %v7245 = vadd.f32 %v7085, %v7181
    %v7246 = vadd.f32 %v7086, %v7182
    %v7247 = vperm.slane %v5448, 5
    %v7248 = vperm.slane %v5454, 5
    %v7249 = vperm.slane %v5460, 5
    %v7250 = vperm.slane %v5466, 5
    %v7251 = vperm.slane %v5472, 5
    %v7252 = vperm.slane %v5478, 5
    %v7253 = vperm.slane %v5484, 5
    %v7254 = vperm.slane %v5490, 5
    %v7255 = vperm.slane %v5496, 5
    %v7256 = vperm.slane %v5502, 5
    %v7257 = vperm.slane %v5508, 5
    %v7258 = vperm.slane %v5514, 5
    %v7259 = vperm.slane %v5520, 5
    %v7260 = vperm.slane %v5526, 5
    %v7261 = vperm.slane %v5532, 5
    %v7262 = vperm.slane %v5538, 5
    %v7263 = vperm.slane %v5544, 5
    %v7264 = vperm.slane %v5550, 5
    %v7265 = vperm.slane %v5556, 5
    %v7266 = vperm.slane %v5562, 5
    %v7267 = vperm.slane %v5568, 5
    %v7268 = vperm.slane %v5574, 5
    %v7269 = vperm.slane %v5580, 5
    %v7270 = vperm.slane %v5586, 5
    %v7271 = vperm.slane %v5592, 5
    %v7272 = vperm.slane %v5598, 5
    %v7273 = vperm.slane %v5604, 5
    %v7274 = vperm.slane %v5610, 5
    %v7275 = vperm.slane %v5616, 5
    %v7276 = vperm.slane %v5622, 5
    %v7277 = vperm.slane %v5628, 5
    %v7278 = vperm.slane %v5634, 5
    %v7279 = vmul.f32 %v7247, %v6350
    %v7280 = vmul.f32 %v7247, %v6353
    %v7281 = vmul.f32 %v7248, %v6350
    %v7282 = vmul.f32 %v7248, %v6353
    %v7283 = vmul.f32 %v7249, %v6350
    %v7284 = vmul.f32 %v7249, %v6353
    %v7285 = vmul.f32 %v7250, %v6350
    %v7286 = vmul.f32 %v7250, %v6353
    %v7287 = vmul.f32 %v7251, %v6350
    %v7288 = vmul.f32 %v7251, %v6353
    %v7289 = vmul.f32 %v7252, %v6350
    %v7290 = vmul.f32 %v7252, %v6353
    %v7291 = vmul.f32 %v7253, %v6350
    %v7292 = vmul.f32 %v7253, %v6353
    %v7293 = vmul.f32 %v7254, %v6350
    %v7294 = vmul.f32 %v7254, %v6353
    %v7295 = vmul.f32 %v7255, %v6350
    %v7296 = vmul.f32 %v7255, %v6353
    %v7297 = vmul.f32 %v7256, %v6350
    %v7298 = vmul.f32 %v7256, %v6353
    %v7299 = vmul.f32 %v7257, %v6350
    %v7300 = vmul.f32 %v7257, %v6353
    %v7301 = vmul.f32 %v7258, %v6350
    %v7302 = vmul.f32 %v7258, %v6353
    %v7303 = vmul.f32 %v7259, %v6350
    %v7304 = vmul.f32 %v7259, %v6353
    %v7305 = vmul.f32 %v7260, %v6350
    %v7306 = vmul.f32 %v7260, %v6353
    %v7307 = vmul.f32 %v7261, %v6350
    %v7308 = vmul.f32 %v7261, %v6353
    %v7309 = vmul.f32 %v7262, %v6350
    %v7310 = vmul.f32 %v7262, %v6353
    %v7311 = vmul.f32 %v7263, %v6446
    %v7312 = vmul.f32 %v7263, %v6449
    %v7313 = vmul.f32 %v7264, %v6446
    %v7314 = vmul.f32 %v7264, %v6449
    %v7315 = vmul.f32 %v7265, %v6446
    %v7316 = vmul.f32 %v7265, %v6449
    %v7317 = vmul.f32 %v7266, %v6446
    %v7318 = vmul.f32 %v7266, %v6449
    %v7319 = vmul.f32 %v7267, %v6446
    %v7320 = vmul.f32 %v7267, %v6449
    %v7321 = vmul.f32 %v7268, %v6446
    %v7322 = vmul.f32 %v7268, %v6449
    %v7323 = vmul.f32 %v7269, %v6446
    %v7324 = vmul.f32 %v7269, %v6449
    %v7325 = vmul.f32 %v7270, %v6446
    %v7326 = vmul.f32 %v7270, %v6449
    %v7327 = vmul.f32 %v7271, %v6446
    %v7328 = vmul.f32 %v7271, %v6449
    %v7329 = vmul.f32 %v7272, %v6446
    %v7330 = vmul.f32 %v7272, %v6449
    %v7331 = vmul.f32 %v7273, %v6446
    %v7332 = vmul.f32 %v7273, %v6449
    %v7333 = vmul.f32 %v7274, %v6446
    %v7334 = vmul.f32 %v7274, %v6449
    %v7335 = vmul.f32 %v7275, %v6446
    %v7336 = vmul.f32 %v7275, %v6449
    %v7337 = vmul.f32 %v7276, %v6446
    %v7338 = vmul.f32 %v7276, %v6449
    %v7339 = vmul.f32 %v7277, %v6446
    %v7340 = vmul.f32 %v7277, %v6449
    %v7341 = vmul.f32 %v7278, %v6446
    %v7342 = vmul.f32 %v7278, %v6449
    %v7343 = vadd.f32 %v7183, %v7279
    %v7344 = vadd.f32 %v7184, %v7280
    %v7345 = vadd.f32 %v7185, %v7281
    %v7346 = vadd.f32 %v7186, %v7282
    %v7347 = vadd.f32 %v7187, %v7283
    %v7348 = vadd.f32 %v7188, %v7284
    %v7349 = vadd.f32 %v7189, %v7285
    %v7350 = vadd.f32 %v7190, %v7286
    %v7351 = vadd.f32 %v7191, %v7287
    %v7352 = vadd.f32 %v7192, %v7288
    %v7353 = vadd.f32 %v7193, %v7289
    %v7354 = vadd.f32 %v7194, %v7290
    %v7355 = vadd.f32 %v7195, %v7291
    %v7356 = vadd.f32 %v7196, %v7292
    %v7357 = vadd.f32 %v7197, %v7293
    %v7358 = vadd.f32 %v7198, %v7294
    %v7359 = vadd.f32 %v7199, %v7295
    %v7360 = vadd.f32 %v7200, %v7296
    %v7361 = vadd.f32 %v7201, %v7297
    %v7362 = vadd.f32 %v7202, %v7298
    %v7363 = vadd.f32 %v7203, %v7299
    %v7364 = vadd.f32 %v7204, %v7300
    %v7365 = vadd.f32 %v7205, %v7301
    %v7366 = vadd.f32 %v7206, %v7302
    %v7367 = vadd.f32 %v7207, %v7303
    %v7368 = vadd.f32 %v7208, %v7304
    %v7369 = vadd.f32 %v7209, %v7305
    %v7370 = vadd.f32 %v7210, %v7306
    %v7371 = vadd.f32 %v7211, %v7307
    %v7372 = vadd.f32 %v7212, %v7308
    %v7373 = vadd.f32 %v7213, %v7309
    %v7374 = vadd.f32 %v7214, %v7310
    %v7375 = vadd.f32 %v7215, %v7311
    %v7376 = vadd.f32 %v7216, %v7312
    %v7377 = vadd.f32 %v7217, %v7313
    %v7378 = vadd.f32 %v7218, %v7314
    %v7379 = vadd.f32 %v7219, %v7315
    %v7380 = vadd.f32 %v7220, %v7316
    %v7381 = vadd.f32 %v7221, %v7317
    %v7382 = vadd.f32 %v7222, %v7318
    %v7383 = vadd.f32 %v7223, %v7319
    %v7384 = vadd.f32 %v7224, %v7320
    %v7385 = vadd.f32 %v7225, %v7321
    %v7386 = vadd.f32 %v7226, %v7322
    %v7387 = vadd.f32 %v7227, %v7323
    %v7388 = vadd.f32 %v7228, %v7324
    %v7389 = vadd.f32 %v7229, %v7325
    %v7390 = vadd.f32 %v7230, %v7326
    %v7391 = vadd.f32 %v7231, %v7327
    %v7392 = vadd.f32 %v7232, %v7328
    %v7393 = vadd.f32 %v7233, %v7329
    %v7394 = vadd.f32 %v7234, %v7330
    %v7395 = vadd.f32 %v7235, %v7331
    %v7396 = vadd.f32 %v7236, %v7332
    %v7397 = vadd.f32 %v7237, %v7333
    %v7398 = vadd.f32 %v7238, %v7334
    %v7399 = vadd.f32 %v7239, %v7335
    %v7400 = vadd.f32 %v7240, %v7336
    %v7401 = vadd.f32 %v7241, %v7337
    %v7402 = vadd.f32 %v7242, %v7338
    %v7403 = vadd.f32 %v7243, %v7339
    %v7404 = vadd.f32 %v7244, %v7340
    %v7405 = vadd.f32 %v7245, %v7341
    %v7406 = vadd.f32 %v7246, %v7342
    %v7407 = vperm.slane %v5448, 6
    %v7408 = vperm.slane %v5454, 6
    %v7409 = vperm.slane %v5460, 6
    %v7410 = vperm.slane %v5466, 6
    %v7411 = vperm.slane %v5472, 6
    %v7412 = vperm.slane %v5478, 6
    %v7413 = vperm.slane %v5484, 6
    %v7414 = vperm.slane %v5490, 6
    %v7415 = vperm.slane %v5496, 6
    %v7416 = vperm.slane %v5502, 6
    %v7417 = vperm.slane %v5508, 6
    %v7418 = vperm.slane %v5514, 6
    %v7419 = vperm.slane %v5520, 6
    %v7420 = vperm.slane %v5526, 6
    %v7421 = vperm.slane %v5532, 6
    %v7422 = vperm.slane %v5538, 6
    %v7423 = vperm.slane %v5544, 6
    %v7424 = vperm.slane %v5550, 6
    %v7425 = vperm.slane %v5556, 6
    %v7426 = vperm.slane %v5562, 6
    %v7427 = vperm.slane %v5568, 6
    %v7428 = vperm.slane %v5574, 6
    %v7429 = vperm.slane %v5580, 6
    %v7430 = vperm.slane %v5586, 6
    %v7431 = vperm.slane %v5592, 6
    %v7432 = vperm.slane %v5598, 6
    %v7433 = vperm.slane %v5604, 6
    %v7434 = vperm.slane %v5610, 6
    %v7435 = vperm.slane %v5616, 6
    %v7436 = vperm.slane %v5622, 6
    %v7437 = vperm.slane %v5628, 6
    %v7438 = vperm.slane %v5634, 6
    %v7439 = vmul.f32 %v7407, %v6356
    %v7440 = vmul.f32 %v7407, %v6359
    %v7441 = vmul.f32 %v7408, %v6356
    %v7442 = vmul.f32 %v7408, %v6359
    %v7443 = vmul.f32 %v7409, %v6356
    %v7444 = vmul.f32 %v7409, %v6359
    %v7445 = vmul.f32 %v7410, %v6356
    %v7446 = vmul.f32 %v7410, %v6359
    %v7447 = vmul.f32 %v7411, %v6356
    %v7448 = vmul.f32 %v7411, %v6359
    %v7449 = vmul.f32 %v7412, %v6356
    %v7450 = vmul.f32 %v7412, %v6359
    %v7451 = vmul.f32 %v7413, %v6356
    %v7452 = vmul.f32 %v7413, %v6359
    %v7453 = vmul.f32 %v7414, %v6356
    %v7454 = vmul.f32 %v7414, %v6359
    %v7455 = vmul.f32 %v7415, %v6356
    %v7456 = vmul.f32 %v7415, %v6359
    %v7457 = vmul.f32 %v7416, %v6356
    %v7458 = vmul.f32 %v7416, %v6359
    %v7459 = vmul.f32 %v7417, %v6356
    %v7460 = vmul.f32 %v7417, %v6359
    %v7461 = vmul.f32 %v7418, %v6356
    %v7462 = vmul.f32 %v7418, %v6359
    %v7463 = vmul.f32 %v7419, %v6356
    %v7464 = vmul.f32 %v7419, %v6359
    %v7465 = vmul.f32 %v7420, %v6356
    %v7466 = vmul.f32 %v7420, %v6359
    %v7467 = vmul.f32 %v7421, %v6356
    %v7468 = vmul.f32 %v7421, %v6359
    %v7469 = vmul.f32 %v7422, %v6356
    %v7470 = vmul.f32 %v7422, %v6359
    %v7471 = vmul.f32 %v7423, %v6452
    %v7472 = vmul.f32 %v7423, %v6455
    %v7473 = vmul.f32 %v7424, %v6452
    %v7474 = vmul.f32 %v7424, %v6455
    %v7475 = vmul.f32 %v7425, %v6452
    %v7476 = vmul.f32 %v7425, %v6455
    %v7477 = vmul.f32 %v7426, %v6452
    %v7478 = vmul.f32 %v7426, %v6455
    %v7479 = vmul.f32 %v7427, %v6452
    %v7480 = vmul.f32 %v7427, %v6455
    %v7481 = vmul.f32 %v7428, %v6452
    %v7482 = vmul.f32 %v7428, %v6455
    %v7483 = vmul.f32 %v7429, %v6452
    %v7484 = vmul.f32 %v7429, %v6455
    %v7485 = vmul.f32 %v7430, %v6452
    %v7486 = vmul.f32 %v7430, %v6455
    %v7487 = vmul.f32 %v7431, %v6452
    %v7488 = vmul.f32 %v7431, %v6455
    %v7489 = vmul.f32 %v7432, %v6452
    %v7490 = vmul.f32 %v7432, %v6455
    %v7491 = vmul.f32 %v7433, %v6452
    %v7492 = vmul.f32 %v7433, %v6455
    %v7493 = vmul.f32 %v7434, %v6452
    %v7494 = vmul.f32 %v7434, %v6455
    %v7495 = vmul.f32 %v7435, %v6452
    %v7496 = vmul.f32 %v7435, %v6455
    %v7497 = vmul.f32 %v7436, %v6452
    %v7498 = vmul.f32 %v7436, %v6455
    %v7499 = vmul.f32 %v7437, %v6452
    %v7500 = vmul.f32 %v7437, %v6455
    %v7501 = vmul.f32 %v7438, %v6452
    %v7502 = vmul.f32 %v7438, %v6455
    %v7503 = vadd.f32 %v7343, %v7439
    %v7504 = vadd.f32 %v7344, %v7440
    %v7505 = vadd.f32 %v7345, %v7441
    %v7506 = vadd.f32 %v7346, %v7442
    %v7507 = vadd.f32 %v7347, %v7443
    %v7508 = vadd.f32 %v7348, %v7444
    %v7509 = vadd.f32 %v7349, %v7445
    %v7510 = vadd.f32 %v7350, %v7446
    %v7511 = vadd.f32 %v7351, %v7447
    %v7512 = vadd.f32 %v7352, %v7448
    %v7513 = vadd.f32 %v7353, %v7449
    %v7514 = vadd.f32 %v7354, %v7450
    %v7515 = vadd.f32 %v7355, %v7451
    %v7516 = vadd.f32 %v7356, %v7452
    %v7517 = vadd.f32 %v7357, %v7453
    %v7518 = vadd.f32 %v7358, %v7454
    %v7519 = vadd.f32 %v7359, %v7455
    %v7520 = vadd.f32 %v7360, %v7456
    %v7521 = vadd.f32 %v7361, %v7457
    %v7522 = vadd.f32 %v7362, %v7458
    %v7523 = vadd.f32 %v7363, %v7459
    %v7524 = vadd.f32 %v7364, %v7460
    %v7525 = vadd.f32 %v7365, %v7461
    %v7526 = vadd.f32 %v7366, %v7462
    %v7527 = vadd.f32 %v7367, %v7463
    %v7528 = vadd.f32 %v7368, %v7464
    %v7529 = vadd.f32 %v7369, %v7465
    %v7530 = vadd.f32 %v7370, %v7466
    %v7531 = vadd.f32 %v7371, %v7467
    %v7532 = vadd.f32 %v7372, %v7468
    %v7533 = vadd.f32 %v7373, %v7469
    %v7534 = vadd.f32 %v7374, %v7470
    %v7535 = vadd.f32 %v7375, %v7471
    %v7536 = vadd.f32 %v7376, %v7472
    %v7537 = vadd.f32 %v7377, %v7473
    %v7538 = vadd.f32 %v7378, %v7474
    %v7539 = vadd.f32 %v7379, %v7475
    %v7540 = vadd.f32 %v7380, %v7476
    %v7541 = vadd.f32 %v7381, %v7477
    %v7542 = vadd.f32 %v7382, %v7478
    %v7543 = vadd.f32 %v7383, %v7479
    %v7544 = vadd.f32 %v7384, %v7480
    %v7545 = vadd.f32 %v7385, %v7481
    %v7546 = vadd.f32 %v7386, %v7482
    %v7547 = vadd.f32 %v7387, %v7483
    %v7548 = vadd.f32 %v7388, %v7484
    %v7549 = vadd.f32 %v7389, %v7485
    %v7550 = vadd.f32 %v7390, %v7486
    %v7551 = vadd.f32 %v7391, %v7487
    %v7552 = vadd.f32 %v7392, %v7488
    %v7553 = vadd.f32 %v7393, %v7489
    %v7554 = vadd.f32 %v7394, %v7490
    %v7555 = vadd.f32 %v7395, %v7491
    %v7556 = vadd.f32 %v7396, %v7492
    %v7557 = vadd.f32 %v7397, %v7493
    %v7558 = vadd.f32 %v7398, %v7494
    %v7559 = vadd.f32 %v7399, %v7495
    %v7560 = vadd.f32 %v7400, %v7496
    %v7561 = vadd.f32 %v7401, %v7497
    %v7562 = vadd.f32 %v7402, %v7498
    %v7563 = vadd.f32 %v7403, %v7499
    %v7564 = vadd.f32 %v7404, %v7500
    %v7565 = vadd.f32 %v7405, %v7501
    %v7566 = vadd.f32 %v7406, %v7502
    %v7567 = vperm.slane %v5448, 7
    %v7568 = vperm.slane %v5454, 7
    %v7569 = vperm.slane %v5460, 7
    %v7570 = vperm.slane %v5466, 7
    %v7571 = vperm.slane %v5472, 7
    %v7572 = vperm.slane %v5478, 7
    %v7573 = vperm.slane %v5484, 7
    %v7574 = vperm.slane %v5490, 7
    %v7575 = vperm.slane %v5496, 7
    %v7576 = vperm.slane %v5502, 7
    %v7577 = vperm.slane %v5508, 7
    %v7578 = vperm.slane %v5514, 7
    %v7579 = vperm.slane %v5520, 7
    %v7580 = vperm.slane %v5526, 7
    %v7581 = vperm.slane %v5532, 7
    %v7582 = vperm.slane %v5538, 7
    %v7583 = vperm.slane %v5544, 7
    %v7584 = vperm.slane %v5550, 7
    %v7585 = vperm.slane %v5556, 7
    %v7586 = vperm.slane %v5562, 7
    %v7587 = vperm.slane %v5568, 7
    %v7588 = vperm.slane %v5574, 7
    %v7589 = vperm.slane %v5580, 7
    %v7590 = vperm.slane %v5586, 7
    %v7591 = vperm.slane %v5592, 7
    %v7592 = vperm.slane %v5598, 7
    %v7593 = vperm.slane %v5604, 7
    %v7594 = vperm.slane %v5610, 7
    %v7595 = vperm.slane %v5616, 7
    %v7596 = vperm.slane %v5622, 7
    %v7597 = vperm.slane %v5628, 7
    %v7598 = vperm.slane %v5634, 7
    %v7599 = vmul.f32 %v7567, %v6362
    %v7600 = vmul.f32 %v7567, %v6365
    %v7601 = vmul.f32 %v7568, %v6362
    %v7602 = vmul.f32 %v7568, %v6365
    %v7603 = vmul.f32 %v7569, %v6362
    %v7604 = vmul.f32 %v7569, %v6365
    %v7605 = vmul.f32 %v7570, %v6362
    %v7606 = vmul.f32 %v7570, %v6365
    %v7607 = vmul.f32 %v7571, %v6362
    %v7608 = vmul.f32 %v7571, %v6365
    %v7609 = vmul.f32 %v7572, %v6362
    %v7610 = vmul.f32 %v7572, %v6365
    %v7611 = vmul.f32 %v7573, %v6362
    %v7612 = vmul.f32 %v7573, %v6365
    %v7613 = vmul.f32 %v7574, %v6362
    %v7614 = vmul.f32 %v7574, %v6365
    %v7615 = vmul.f32 %v7575, %v6362
    %v7616 = vmul.f32 %v7575, %v6365
    %v7617 = vmul.f32 %v7576, %v6362
    %v7618 = vmul.f32 %v7576, %v6365
    %v7619 = vmul.f32 %v7577, %v6362
    %v7620 = vmul.f32 %v7577, %v6365
    %v7621 = vmul.f32 %v7578, %v6362
    %v7622 = vmul.f32 %v7578, %v6365
    %v7623 = vmul.f32 %v7579, %v6362
    %v7624 = vmul.f32 %v7579, %v6365
    %v7625 = vmul.f32 %v7580, %v6362
    %v7626 = vmul.f32 %v7580, %v6365
    %v7627 = vmul.f32 %v7581, %v6362
    %v7628 = vmul.f32 %v7581, %v6365
    %v7629 = vmul.f32 %v7582, %v6362
    %v7630 = vmul.f32 %v7582, %v6365
    %v7631 = vmul.f32 %v7583, %v6458
    %v7632 = vmul.f32 %v7583, %v6461
    %v7633 = vmul.f32 %v7584, %v6458
    %v7634 = vmul.f32 %v7584, %v6461
    %v7635 = vmul.f32 %v7585, %v6458
    %v7636 = vmul.f32 %v7585, %v6461
    %v7637 = vmul.f32 %v7586, %v6458
    %v7638 = vmul.f32 %v7586, %v6461
    %v7639 = vmul.f32 %v7587, %v6458
    %v7640 = vmul.f32 %v7587, %v6461
    %v7641 = vmul.f32 %v7588, %v6458
    %v7642 = vmul.f32 %v7588, %v6461
    %v7643 = vmul.f32 %v7589, %v6458
    %v7644 = vmul.f32 %v7589, %v6461
    %v7645 = vmul.f32 %v7590, %v6458
    %v7646 = vmul.f32 %v7590, %v6461
    %v7647 = vmul.f32 %v7591, %v6458
    %v7648 = vmul.f32 %v7591, %v6461
    %v7649 = vmul.f32 %v7592, %v6458
    %v7650 = vmul.f32 %v7592, %v6461
    %v7651 = vmul.f32 %v7593, %v6458
    %v7652 = vmul.f32 %v7593, %v6461
    %v7653 = vmul.f32 %v7594, %v6458
    %v7654 = vmul.f32 %v7594, %v6461
    %v7655 = vmul.f32 %v7595, %v6458
    %v7656 = vmul.f32 %v7595, %v6461
    %v7657 = vmul.f32 %v7596, %v6458
    %v7658 = vmul.f32 %v7596, %v6461
    %v7659 = vmul.f32 %v7597, %v6458
    %v7660 = vmul.f32 %v7597, %v6461
    %v7661 = vmul.f32 %v7598, %v6458
    %v7662 = vmul.f32 %v7598, %v6461
    %v7663 = vadd.f32 %v7503, %v7599
    %v7664 = vadd.f32 %v7504, %v7600
    %v7665 = vadd.f32 %v7505, %v7601
    %v7666 = vadd.f32 %v7506, %v7602
    %v7667 = vadd.f32 %v7507, %v7603
    %v7668 = vadd.f32 %v7508, %v7604
    %v7669 = vadd.f32 %v7509, %v7605
    %v7670 = vadd.f32 %v7510, %v7606
    %v7671 = vadd.f32 %v7511, %v7607
    %v7672 = vadd.f32 %v7512, %v7608
    %v7673 = vadd.f32 %v7513, %v7609
    %v7674 = vadd.f32 %v7514, %v7610
    %v7675 = vadd.f32 %v7515, %v7611
    %v7676 = vadd.f32 %v7516, %v7612
    %v7677 = vadd.f32 %v7517, %v7613
    %v7678 = vadd.f32 %v7518, %v7614
    %v7679 = vadd.f32 %v7519, %v7615
    %v7680 = vadd.f32 %v7520, %v7616
    %v7681 = vadd.f32 %v7521, %v7617
    %v7682 = vadd.f32 %v7522, %v7618
    %v7683 = vadd.f32 %v7523, %v7619
    %v7684 = vadd.f32 %v7524, %v7620
    %v7685 = vadd.f32 %v7525, %v7621
    %v7686 = vadd.f32 %v7526, %v7622
    %v7687 = vadd.f32 %v7527, %v7623
    %v7688 = vadd.f32 %v7528, %v7624
    %v7689 = vadd.f32 %v7529, %v7625
    %v7690 = vadd.f32 %v7530, %v7626
    %v7691 = vadd.f32 %v7531, %v7627
    %v7692 = vadd.f32 %v7532, %v7628
    %v7693 = vadd.f32 %v7533, %v7629
    %v7694 = vadd.f32 %v7534, %v7630
    %v7695 = vadd.f32 %v7535, %v7631
    %v7696 = vadd.f32 %v7536, %v7632
    %v7697 = vadd.f32 %v7537, %v7633
    %v7698 = vadd.f32 %v7538, %v7634
    %v7699 = vadd.f32 %v7539, %v7635
    %v7700 = vadd.f32 %v7540, %v7636
    %v7701 = vadd.f32 %v7541, %v7637
    %v7702 = vadd.f32 %v7542, %v7638
    %v7703 = vadd.f32 %v7543, %v7639
    %v7704 = vadd.f32 %v7544, %v7640
    %v7705 = vadd.f32 %v7545, %v7641
    %v7706 = vadd.f32 %v7546, %v7642
    %v7707 = vadd.f32 %v7547, %v7643
    %v7708 = vadd.f32 %v7548, %v7644
    %v7709 = vadd.f32 %v7549, %v7645
    %v7710 = vadd.f32 %v7550, %v7646
    %v7711 = vadd.f32 %v7551, %v7647
    %v7712 = vadd.f32 %v7552, %v7648
    %v7713 = vadd.f32 %v7553, %v7649
    %v7714 = vadd.f32 %v7554, %v7650
    %v7715 = vadd.f32 %v7555, %v7651
    %v7716 = vadd.f32 %v7556, %v7652
    %v7717 = vadd.f32 %v7557, %v7653
    %v7718 = vadd.f32 %v7558, %v7654
    %v7719 = vadd.f32 %v7559, %v7655
    %v7720 = vadd.f32 %v7560, %v7656
    %v7721 = vadd.f32 %v7561, %v7657
    %v7722 = vadd.f32 %v7562, %v7658
    %v7723 = vadd.f32 %v7563, %v7659
    %v7724 = vadd.f32 %v7564, %v7660
    %v7725 = vadd.f32 %v7565, %v7661
    %v7726 = vadd.f32 %v7566, %v7662
    %v7727 = vperm.slane %v5451, 0
    %v7728 = vperm.slane %v5457, 0
    %v7729 = vperm.slane %v5463, 0
    %v7730 = vperm.slane %v5469, 0
    %v7731 = vperm.slane %v5475, 0
    %v7732 = vperm.slane %v5481, 0
    %v7733 = vperm.slane %v5487, 0
    %v7734 = vperm.slane %v5493, 0
    %v7735 = vperm.slane %v5499, 0
    %v7736 = vperm.slane %v5505, 0
    %v7737 = vperm.slane %v5511, 0
    %v7738 = vperm.slane %v5517, 0
    %v7739 = vperm.slane %v5523, 0
    %v7740 = vperm.slane %v5529, 0
    %v7741 = vperm.slane %v5535, 0
    %v7742 = vperm.slane %v5541, 0
    %v7743 = vperm.slane %v5547, 0
    %v7744 = vperm.slane %v5553, 0
    %v7745 = vperm.slane %v5559, 0
    %v7746 = vperm.slane %v5565, 0
    %v7747 = vperm.slane %v5571, 0
    %v7748 = vperm.slane %v5577, 0
    %v7749 = vperm.slane %v5583, 0
    %v7750 = vperm.slane %v5589, 0
    %v7751 = vperm.slane %v5595, 0
    %v7752 = vperm.slane %v5601, 0
    %v7753 = vperm.slane %v5607, 0
    %v7754 = vperm.slane %v5613, 0
    %v7755 = vperm.slane %v5619, 0
    %v7756 = vperm.slane %v5625, 0
    %v7757 = vperm.slane %v5631, 0
    %v7758 = vperm.slane %v5637, 0
    %v7759 = vmul.f32 %v7727, %v6368
    %v7760 = vmul.f32 %v7727, %v6371
    %v7761 = vmul.f32 %v7728, %v6368
    %v7762 = vmul.f32 %v7728, %v6371
    %v7763 = vmul.f32 %v7729, %v6368
    %v7764 = vmul.f32 %v7729, %v6371
    %v7765 = vmul.f32 %v7730, %v6368
    %v7766 = vmul.f32 %v7730, %v6371
    %v7767 = vmul.f32 %v7731, %v6368
    %v7768 = vmul.f32 %v7731, %v6371
    %v7769 = vmul.f32 %v7732, %v6368
    %v7770 = vmul.f32 %v7732, %v6371
    %v7771 = vmul.f32 %v7733, %v6368
    %v7772 = vmul.f32 %v7733, %v6371
    %v7773 = vmul.f32 %v7734, %v6368
    %v7774 = vmul.f32 %v7734, %v6371
    %v7775 = vmul.f32 %v7735, %v6368
    %v7776 = vmul.f32 %v7735, %v6371
    %v7777 = vmul.f32 %v7736, %v6368
    %v7778 = vmul.f32 %v7736, %v6371
    %v7779 = vmul.f32 %v7737, %v6368
    %v7780 = vmul.f32 %v7737, %v6371
    %v7781 = vmul.f32 %v7738, %v6368
    %v7782 = vmul.f32 %v7738, %v6371
    %v7783 = vmul.f32 %v7739, %v6368
    %v7784 = vmul.f32 %v7739, %v6371
    %v7785 = vmul.f32 %v7740, %v6368
    %v7786 = vmul.f32 %v7740, %v6371
    %v7787 = vmul.f32 %v7741, %v6368
    %v7788 = vmul.f32 %v7741, %v6371
    %v7789 = vmul.f32 %v7742, %v6368
    %v7790 = vmul.f32 %v7742, %v6371
    %v7791 = vmul.f32 %v7743, %v6464
    %v7792 = vmul.f32 %v7743, %v6467
    %v7793 = vmul.f32 %v7744, %v6464
    %v7794 = vmul.f32 %v7744, %v6467
    %v7795 = vmul.f32 %v7745, %v6464
    %v7796 = vmul.f32 %v7745, %v6467
    %v7797 = vmul.f32 %v7746, %v6464
    %v7798 = vmul.f32 %v7746, %v6467
    %v7799 = vmul.f32 %v7747, %v6464
    %v7800 = vmul.f32 %v7747, %v6467
    %v7801 = vmul.f32 %v7748, %v6464
    %v7802 = vmul.f32 %v7748, %v6467
    %v7803 = vmul.f32 %v7749, %v6464
    %v7804 = vmul.f32 %v7749, %v6467
    %v7805 = vmul.f32 %v7750, %v6464
    %v7806 = vmul.f32 %v7750, %v6467
    %v7807 = vmul.f32 %v7751, %v6464
    %v7808 = vmul.f32 %v7751, %v6467
    %v7809 = vmul.f32 %v7752, %v6464
    %v7810 = vmul.f32 %v7752, %v6467
    %v7811 = vmul.f32 %v7753, %v6464
    %v7812 = vmul.f32 %v7753, %v6467
    %v7813 = vmul.f32 %v7754, %v6464
    %v7814 = vmul.f32 %v7754, %v6467
    %v7815 = vmul.f32 %v7755, %v6464
    %v7816 = vmul.f32 %v7755, %v6467
    %v7817 = vmul.f32 %v7756, %v6464
    %v7818 = vmul.f32 %v7756, %v6467
    %v7819 = vmul.f32 %v7757, %v6464
    %v7820 = vmul.f32 %v7757, %v6467
    %v7821 = vmul.f32 %v7758, %v6464
    %v7822 = vmul.f32 %v7758, %v6467
    %v7823 = vadd.f32 %v7663, %v7759
    %v7824 = vadd.f32 %v7664, %v7760
    %v7825 = vadd.f32 %v7665, %v7761
    %v7826 = vadd.f32 %v7666, %v7762
    %v7827 = vadd.f32 %v7667, %v7763
    %v7828 = vadd.f32 %v7668, %v7764
    %v7829 = vadd.f32 %v7669, %v7765
    %v7830 = vadd.f32 %v7670, %v7766
    %v7831 = vadd.f32 %v7671, %v7767
    %v7832 = vadd.f32 %v7672, %v7768
    %v7833 = vadd.f32 %v7673, %v7769
    %v7834 = vadd.f32 %v7674, %v7770
    %v7835 = vadd.f32 %v7675, %v7771
    %v7836 = vadd.f32 %v7676, %v7772
    %v7837 = vadd.f32 %v7677, %v7773
    %v7838 = vadd.f32 %v7678, %v7774
    %v7839 = vadd.f32 %v7679, %v7775
    %v7840 = vadd.f32 %v7680, %v7776
    %v7841 = vadd.f32 %v7681, %v7777
    %v7842 = vadd.f32 %v7682, %v7778
    %v7843 = vadd.f32 %v7683, %v7779
    %v7844 = vadd.f32 %v7684, %v7780
    %v7845 = vadd.f32 %v7685, %v7781
    %v7846 = vadd.f32 %v7686, %v7782
    %v7847 = vadd.f32 %v7687, %v7783
    %v7848 = vadd.f32 %v7688, %v7784
    %v7849 = vadd.f32 %v7689, %v7785
    %v7850 = vadd.f32 %v7690, %v7786
    %v7851 = vadd.f32 %v7691, %v7787
    %v7852 = vadd.f32 %v7692, %v7788
    %v7853 = vadd.f32 %v7693, %v7789
    %v7854 = vadd.f32 %v7694, %v7790
    %v7855 = vadd.f32 %v7695, %v7791
    %v7856 = vadd.f32 %v7696, %v7792
    %v7857 = vadd.f32 %v7697, %v7793
    %v7858 = vadd.f32 %v7698, %v7794
    %v7859 = vadd.f32 %v7699, %v7795
    %v7860 = vadd.f32 %v7700, %v7796
    %v7861 = vadd.f32 %v7701, %v7797
    %v7862 = vadd.f32 %v7702, %v7798
    %v7863 = vadd.f32 %v7703, %v7799
    %v7864 = vadd.f32 %v7704, %v7800
    %v7865 = vadd.f32 %v7705, %v7801
    %v7866 = vadd.f32 %v7706, %v7802
    %v7867 = vadd.f32 %v7707, %v7803
    %v7868 = vadd.f32 %v7708, %v7804
    %v7869 = vadd.f32 %v7709, %v7805
    %v7870 = vadd.f32 %v7710, %v7806
    %v7871 = vadd.f32 %v7711, %v7807
    %v7872 = vadd.f32 %v7712, %v7808
    %v7873 = vadd.f32 %v7713, %v7809
    %v7874 = vadd.f32 %v7714, %v7810
    %v7875 = vadd.f32 %v7715, %v7811
    %v7876 = vadd.f32 %v7716, %v7812
    %v7877 = vadd.f32 %v7717, %v7813
    %v7878 = vadd.f32 %v7718, %v7814
    %v7879 = vadd.f32 %v7719, %v7815
    %v7880 = vadd.f32 %v7720, %v7816
    %v7881 = vadd.f32 %v7721, %v7817
    %v7882 = vadd.f32 %v7722, %v7818
    %v7883 = vadd.f32 %v7723, %v7819
    %v7884 = vadd.f32 %v7724, %v7820
    %v7885 = vadd.f32 %v7725, %v7821
    %v7886 = vadd.f32 %v7726, %v7822
    %v7887 = vperm.slane %v5451, 1
    %v7888 = vperm.slane %v5457, 1
    %v7889 = vperm.slane %v5463, 1
    %v7890 = vperm.slane %v5469, 1
    %v7891 = vperm.slane %v5475, 1
    %v7892 = vperm.slane %v5481, 1
    %v7893 = vperm.slane %v5487, 1
    %v7894 = vperm.slane %v5493, 1
    %v7895 = vperm.slane %v5499, 1
    %v7896 = vperm.slane %v5505, 1
    %v7897 = vperm.slane %v5511, 1
    %v7898 = vperm.slane %v5517, 1
    %v7899 = vperm.slane %v5523, 1
    %v7900 = vperm.slane %v5529, 1
    %v7901 = vperm.slane %v5535, 1
    %v7902 = vperm.slane %v5541, 1
    %v7903 = vperm.slane %v5547, 1
    %v7904 = vperm.slane %v5553, 1
    %v7905 = vperm.slane %v5559, 1
    %v7906 = vperm.slane %v5565, 1
    %v7907 = vperm.slane %v5571, 1
    %v7908 = vperm.slane %v5577, 1
    %v7909 = vperm.slane %v5583, 1
    %v7910 = vperm.slane %v5589, 1
    %v7911 = vperm.slane %v5595, 1
    %v7912 = vperm.slane %v5601, 1
    %v7913 = vperm.slane %v5607, 1
    %v7914 = vperm.slane %v5613, 1
    %v7915 = vperm.slane %v5619, 1
    %v7916 = vperm.slane %v5625, 1
    %v7917 = vperm.slane %v5631, 1
    %v7918 = vperm.slane %v5637, 1
    %v7919 = vmul.f32 %v7887, %v6374
    %v7920 = vmul.f32 %v7887, %v6377
    %v7921 = vmul.f32 %v7888, %v6374
    %v7922 = vmul.f32 %v7888, %v6377
    %v7923 = vmul.f32 %v7889, %v6374
    %v7924 = vmul.f32 %v7889, %v6377
    %v7925 = vmul.f32 %v7890, %v6374
    %v7926 = vmul.f32 %v7890, %v6377
    %v7927 = vmul.f32 %v7891, %v6374
    %v7928 = vmul.f32 %v7891, %v6377
    %v7929 = vmul.f32 %v7892, %v6374
    %v7930 = vmul.f32 %v7892, %v6377
    %v7931 = vmul.f32 %v7893, %v6374
    %v7932 = vmul.f32 %v7893, %v6377
    %v7933 = vmul.f32 %v7894, %v6374
    %v7934 = vmul.f32 %v7894, %v6377
    %v7935 = vmul.f32 %v7895, %v6374
    %v7936 = vmul.f32 %v7895, %v6377
    %v7937 = vmul.f32 %v7896, %v6374
    %v7938 = vmul.f32 %v7896, %v6377
    %v7939 = vmul.f32 %v7897, %v6374
    %v7940 = vmul.f32 %v7897, %v6377
    %v7941 = vmul.f32 %v7898, %v6374
    %v7942 = vmul.f32 %v7898, %v6377
    %v7943 = vmul.f32 %v7899, %v6374
    %v7944 = vmul.f32 %v7899, %v6377
    %v7945 = vmul.f32 %v7900, %v6374
    %v7946 = vmul.f32 %v7900, %v6377
    %v7947 = vmul.f32 %v7901, %v6374
    %v7948 = vmul.f32 %v7901, %v6377
    %v7949 = vmul.f32 %v7902, %v6374
    %v7950 = vmul.f32 %v7902, %v6377
    %v7951 = vmul.f32 %v7903, %v6470
    %v7952 = vmul.f32 %v7903, %v6473
    %v7953 = vmul.f32 %v7904, %v6470
    %v7954 = vmul.f32 %v7904, %v6473
    %v7955 = vmul.f32 %v7905, %v6470
    %v7956 = vmul.f32 %v7905, %v6473
    %v7957 = vmul.f32 %v7906, %v6470
    %v7958 = vmul.f32 %v7906, %v6473
    %v7959 = vmul.f32 %v7907, %v6470
    %v7960 = vmul.f32 %v7907, %v6473
    %v7961 = vmul.f32 %v7908, %v6470
    %v7962 = vmul.f32 %v7908, %v6473
    %v7963 = vmul.f32 %v7909, %v6470
    %v7964 = vmul.f32 %v7909, %v6473
    %v7965 = vmul.f32 %v7910, %v6470
    %v7966 = vmul.f32 %v7910, %v6473
    %v7967 = vmul.f32 %v7911, %v6470
    %v7968 = vmul.f32 %v7911, %v6473
    %v7969 = vmul.f32 %v7912, %v6470
    %v7970 = vmul.f32 %v7912, %v6473
    %v7971 = vmul.f32 %v7913, %v6470
    %v7972 = vmul.f32 %v7913, %v6473
    %v7973 = vmul.f32 %v7914, %v6470
    %v7974 = vmul.f32 %v7914, %v6473
    %v7975 = vmul.f32 %v7915, %v6470
    %v7976 = vmul.f32 %v7915, %v6473
    %v7977 = vmul.f32 %v7916, %v6470
    %v7978 = vmul.f32 %v7916, %v6473
    %v7979 = vmul.f32 %v7917, %v6470
    %v7980 = vmul.f32 %v7917, %v6473
    %v7981 = vmul.f32 %v7918, %v6470
    %v7982 = vmul.f32 %v7918, %v6473
    %v7983 = vadd.f32 %v7823, %v7919
    %v7984 = vadd.f32 %v7824, %v7920
    %v7985 = vadd.f32 %v7825, %v7921
    %v7986 = vadd.f32 %v7826, %v7922
    %v7987 = vadd.f32 %v7827, %v7923
    %v7988 = vadd.f32 %v7828, %v7924
    %v7989 = vadd.f32 %v7829, %v7925
    %v7990 = vadd.f32 %v7830, %v7926
    %v7991 = vadd.f32 %v7831, %v7927
    %v7992 = vadd.f32 %v7832, %v7928
    %v7993 = vadd.f32 %v7833, %v7929
    %v7994 = vadd.f32 %v7834, %v7930
    %v7995 = vadd.f32 %v7835, %v7931
    %v7996 = vadd.f32 %v7836, %v7932
    %v7997 = vadd.f32 %v7837, %v7933
    %v7998 = vadd.f32 %v7838, %v7934
    %v7999 = vadd.f32 %v7839, %v7935
    %v8000 = vadd.f32 %v7840, %v7936
    %v8001 = vadd.f32 %v7841, %v7937
    %v8002 = vadd.f32 %v7842, %v7938
    %v8003 = vadd.f32 %v7843, %v7939
    %v8004 = vadd.f32 %v7844, %v7940
    %v8005 = vadd.f32 %v7845, %v7941
    %v8006 = vadd.f32 %v7846, %v7942
    %v8007 = vadd.f32 %v7847, %v7943
    %v8008 = vadd.f32 %v7848, %v7944
    %v8009 = vadd.f32 %v7849, %v7945
    %v8010 = vadd.f32 %v7850, %v7946
    %v8011 = vadd.f32 %v7851, %v7947
    %v8012 = vadd.f32 %v7852, %v7948
    %v8013 = vadd.f32 %v7853, %v7949
    %v8014 = vadd.f32 %v7854, %v7950
    %v8015 = vadd.f32 %v7855, %v7951
    %v8016 = vadd.f32 %v7856, %v7952
    %v8017 = vadd.f32 %v7857, %v7953
    %v8018 = vadd.f32 %v7858, %v7954
    %v8019 = vadd.f32 %v7859, %v7955
    %v8020 = vadd.f32 %v7860, %v7956
    %v8021 = vadd.f32 %v7861, %v7957
    %v8022 = vadd.f32 %v7862, %v7958
    %v8023 = vadd.f32 %v7863, %v7959
    %v8024 = vadd.f32 %v7864, %v7960
    %v8025 = vadd.f32 %v7865, %v7961
    %v8026 = vadd.f32 %v7866, %v7962
    %v8027 = vadd.f32 %v7867, %v7963
    %v8028 = vadd.f32 %v7868, %v7964
    %v8029 = vadd.f32 %v7869, %v7965
    %v8030 = vadd.f32 %v7870, %v7966
    %v8031 = vadd.f32 %v7871, %v7967
    %v8032 = vadd.f32 %v7872, %v7968
    %v8033 = vadd.f32 %v7873, %v7969
    %v8034 = vadd.f32 %v7874, %v7970
    %v8035 = vadd.f32 %v7875, %v7971
    %v8036 = vadd.f32 %v7876, %v7972
    %v8037 = vadd.f32 %v7877, %v7973
    %v8038 = vadd.f32 %v7878, %v7974
    %v8039 = vadd.f32 %v7879, %v7975
    %v8040 = vadd.f32 %v7880, %v7976
    %v8041 = vadd.f32 %v7881, %v7977
    %v8042 = vadd.f32 %v7882, %v7978
    %v8043 = vadd.f32 %v7883, %v7979
    %v8044 = vadd.f32 %v7884, %v7980
    %v8045 = vadd.f32 %v7885, %v7981
    %v8046 = vadd.f32 %v7886, %v7982
    %v8047 = vperm.slane %v5451, 2
    %v8048 = vperm.slane %v5457, 2
    %v8049 = vperm.slane %v5463, 2
    %v8050 = vperm.slane %v5469, 2
    %v8051 = vperm.slane %v5475, 2
    %v8052 = vperm.slane %v5481, 2
    %v8053 = vperm.slane %v5487, 2
    %v8054 = vperm.slane %v5493, 2
    %v8055 = vperm.slane %v5499, 2
    %v8056 = vperm.slane %v5505, 2
    %v8057 = vperm.slane %v5511, 2
    %v8058 = vperm.slane %v5517, 2
    %v8059 = vperm.slane %v5523, 2
    %v8060 = vperm.slane %v5529, 2
    %v8061 = vperm.slane %v5535, 2
    %v8062 = vperm.slane %v5541, 2
    %v8063 = vperm.slane %v5547, 2
    %v8064 = vperm.slane %v5553, 2
    %v8065 = vperm.slane %v5559, 2
    %v8066 = vperm.slane %v5565, 2
    %v8067 = vperm.slane %v5571, 2
    %v8068 = vperm.slane %v5577, 2
    %v8069 = vperm.slane %v5583, 2
    %v8070 = vperm.slane %v5589, 2
    %v8071 = vperm.slane %v5595, 2
    %v8072 = vperm.slane %v5601, 2
    %v8073 = vperm.slane %v5607, 2
    %v8074 = vperm.slane %v5613, 2
    %v8075 = vperm.slane %v5619, 2
    %v8076 = vperm.slane %v5625, 2
    %v8077 = vperm.slane %v5631, 2
    %v8078 = vperm.slane %v5637, 2
    %v8079 = vmul.f32 %v8047, %v6380
    %v8080 = vmul.f32 %v8047, %v6383
    %v8081 = vmul.f32 %v8048, %v6380
    %v8082 = vmul.f32 %v8048, %v6383
    %v8083 = vmul.f32 %v8049, %v6380
    %v8084 = vmul.f32 %v8049, %v6383
    %v8085 = vmul.f32 %v8050, %v6380
    %v8086 = vmul.f32 %v8050, %v6383
    %v8087 = vmul.f32 %v8051, %v6380
    %v8088 = vmul.f32 %v8051, %v6383
    %v8089 = vmul.f32 %v8052, %v6380
    %v8090 = vmul.f32 %v8052, %v6383
    %v8091 = vmul.f32 %v8053, %v6380
    %v8092 = vmul.f32 %v8053, %v6383
    %v8093 = vmul.f32 %v8054, %v6380
    %v8094 = vmul.f32 %v8054, %v6383
    %v8095 = vmul.f32 %v8055, %v6380
    %v8096 = vmul.f32 %v8055, %v6383
    %v8097 = vmul.f32 %v8056, %v6380
    %v8098 = vmul.f32 %v8056, %v6383
    %v8099 = vmul.f32 %v8057, %v6380
    %v8100 = vmul.f32 %v8057, %v6383
    %v8101 = vmul.f32 %v8058, %v6380
    %v8102 = vmul.f32 %v8058, %v6383
    %v8103 = vmul.f32 %v8059, %v6380
    %v8104 = vmul.f32 %v8059, %v6383
    %v8105 = vmul.f32 %v8060, %v6380
    %v8106 = vmul.f32 %v8060, %v6383
    %v8107 = vmul.f32 %v8061, %v6380
    %v8108 = vmul.f32 %v8061, %v6383
    %v8109 = vmul.f32 %v8062, %v6380
    %v8110 = vmul.f32 %v8062, %v6383
    %v8111 = vmul.f32 %v8063, %v6476
    %v8112 = vmul.f32 %v8063, %v6479
    %v8113 = vmul.f32 %v8064, %v6476
    %v8114 = vmul.f32 %v8064, %v6479
    %v8115 = vmul.f32 %v8065, %v6476
    %v8116 = vmul.f32 %v8065, %v6479
    %v8117 = vmul.f32 %v8066, %v6476
    %v8118 = vmul.f32 %v8066, %v6479
    %v8119 = vmul.f32 %v8067, %v6476
    %v8120 = vmul.f32 %v8067, %v6479
    %v8121 = vmul.f32 %v8068, %v6476
    %v8122 = vmul.f32 %v8068, %v6479
    %v8123 = vmul.f32 %v8069, %v6476
    %v8124 = vmul.f32 %v8069, %v6479
    %v8125 = vmul.f32 %v8070, %v6476
    %v8126 = vmul.f32 %v8070, %v6479
    %v8127 = vmul.f32 %v8071, %v6476
    %v8128 = vmul.f32 %v8071, %v6479
    %v8129 = vmul.f32 %v8072, %v6476
    %v8130 = vmul.f32 %v8072, %v6479
    %v8131 = vmul.f32 %v8073, %v6476
    %v8132 = vmul.f32 %v8073, %v6479
    %v8133 = vmul.f32 %v8074, %v6476
    %v8134 = vmul.f32 %v8074, %v6479
    %v8135 = vmul.f32 %v8075, %v6476
    %v8136 = vmul.f32 %v8075, %v6479
    %v8137 = vmul.f32 %v8076, %v6476
    %v8138 = vmul.f32 %v8076, %v6479
    %v8139 = vmul.f32 %v8077, %v6476
    %v8140 = vmul.f32 %v8077, %v6479
    %v8141 = vmul.f32 %v8078, %v6476
    %v8142 = vmul.f32 %v8078, %v6479
    %v8143 = vadd.f32 %v7983, %v8079
    %v8144 = vadd.f32 %v7984, %v8080
    %v8145 = vadd.f32 %v7985, %v8081
    %v8146 = vadd.f32 %v7986, %v8082
    %v8147 = vadd.f32 %v7987, %v8083
    %v8148 = vadd.f32 %v7988, %v8084
    %v8149 = vadd.f32 %v7989, %v8085
    %v8150 = vadd.f32 %v7990, %v8086
    %v8151 = vadd.f32 %v7991, %v8087
    %v8152 = vadd.f32 %v7992, %v8088
    %v8153 = vadd.f32 %v7993, %v8089
    %v8154 = vadd.f32 %v7994, %v8090
    %v8155 = vadd.f32 %v7995, %v8091
    %v8156 = vadd.f32 %v7996, %v8092
    %v8157 = vadd.f32 %v7997, %v8093
    %v8158 = vadd.f32 %v7998, %v8094
    %v8159 = vadd.f32 %v7999, %v8095
    %v8160 = vadd.f32 %v8000, %v8096
    %v8161 = vadd.f32 %v8001, %v8097
    %v8162 = vadd.f32 %v8002, %v8098
    %v8163 = vadd.f32 %v8003, %v8099
    %v8164 = vadd.f32 %v8004, %v8100
    %v8165 = vadd.f32 %v8005, %v8101
    %v8166 = vadd.f32 %v8006, %v8102
    %v8167 = vadd.f32 %v8007, %v8103
    %v8168 = vadd.f32 %v8008, %v8104
    %v8169 = vadd.f32 %v8009, %v8105
    %v8170 = vadd.f32 %v8010, %v8106
    %v8171 = vadd.f32 %v8011, %v8107
    %v8172 = vadd.f32 %v8012, %v8108
    %v8173 = vadd.f32 %v8013, %v8109
    %v8174 = vadd.f32 %v8014, %v8110
    %v8175 = vadd.f32 %v8015, %v8111
    %v8176 = vadd.f32 %v8016, %v8112
    %v8177 = vadd.f32 %v8017, %v8113
    %v8178 = vadd.f32 %v8018, %v8114
    %v8179 = vadd.f32 %v8019, %v8115
    %v8180 = vadd.f32 %v8020, %v8116
    %v8181 = vadd.f32 %v8021, %v8117
    %v8182 = vadd.f32 %v8022, %v8118
    %v8183 = vadd.f32 %v8023, %v8119
    %v8184 = vadd.f32 %v8024, %v8120
    %v8185 = vadd.f32 %v8025, %v8121
    %v8186 = vadd.f32 %v8026, %v8122
    %v8187 = vadd.f32 %v8027, %v8123
    %v8188 = vadd.f32 %v8028, %v8124
    %v8189 = vadd.f32 %v8029, %v8125
    %v8190 = vadd.f32 %v8030, %v8126
    %v8191 = vadd.f32 %v8031, %v8127
    %v8192 = vadd.f32 %v8032, %v8128
    %v8193 = vadd.f32 %v8033, %v8129
    %v8194 = vadd.f32 %v8034, %v8130
    %v8195 = vadd.f32 %v8035, %v8131
    %v8196 = vadd.f32 %v8036, %v8132
    %v8197 = vadd.f32 %v8037, %v8133
    %v8198 = vadd.f32 %v8038, %v8134
    %v8199 = vadd.f32 %v8039, %v8135
    %v8200 = vadd.f32 %v8040, %v8136
    %v8201 = vadd.f32 %v8041, %v8137
    %v8202 = vadd.f32 %v8042, %v8138
    %v8203 = vadd.f32 %v8043, %v8139
    %v8204 = vadd.f32 %v8044, %v8140
    %v8205 = vadd.f32 %v8045, %v8141
    %v8206 = vadd.f32 %v8046, %v8142
    %v8207 = vperm.slane %v5451, 3
    %v8208 = vperm.slane %v5457, 3
    %v8209 = vperm.slane %v5463, 3
    %v8210 = vperm.slane %v5469, 3
    %v8211 = vperm.slane %v5475, 3
    %v8212 = vperm.slane %v5481, 3
    %v8213 = vperm.slane %v5487, 3
    %v8214 = vperm.slane %v5493, 3
    %v8215 = vperm.slane %v5499, 3
    %v8216 = vperm.slane %v5505, 3
    %v8217 = vperm.slane %v5511, 3
    %v8218 = vperm.slane %v5517, 3
    %v8219 = vperm.slane %v5523, 3
    %v8220 = vperm.slane %v5529, 3
    %v8221 = vperm.slane %v5535, 3
    %v8222 = vperm.slane %v5541, 3
    %v8223 = vperm.slane %v5547, 3
    %v8224 = vperm.slane %v5553, 3
    %v8225 = vperm.slane %v5559, 3
    %v8226 = vperm.slane %v5565, 3
    %v8227 = vperm.slane %v5571, 3
    %v8228 = vperm.slane %v5577, 3
    %v8229 = vperm.slane %v5583, 3
    %v8230 = vperm.slane %v5589, 3
    %v8231 = vperm.slane %v5595, 3
    %v8232 = vperm.slane %v5601, 3
    %v8233 = vperm.slane %v5607, 3
    %v8234 = vperm.slane %v5613, 3
    %v8235 = vperm.slane %v5619, 3
    %v8236 = vperm.slane %v5625, 3
    %v8237 = vperm.slane %v5631, 3
    %v8238 = vperm.slane %v5637, 3
    %v8239 = vmul.f32 %v8207, %v6386
    %v8240 = vmul.f32 %v8207, %v6389
    %v8241 = vmul.f32 %v8208, %v6386
    %v8242 = vmul.f32 %v8208, %v6389
    %v8243 = vmul.f32 %v8209, %v6386
    %v8244 = vmul.f32 %v8209, %v6389
    %v8245 = vmul.f32 %v8210, %v6386
    %v8246 = vmul.f32 %v8210, %v6389
    %v8247 = vmul.f32 %v8211, %v6386
    %v8248 = vmul.f32 %v8211, %v6389
    %v8249 = vmul.f32 %v8212, %v6386
    %v8250 = vmul.f32 %v8212, %v6389
    %v8251 = vmul.f32 %v8213, %v6386
    %v8252 = vmul.f32 %v8213, %v6389
    %v8253 = vmul.f32 %v8214, %v6386
    %v8254 = vmul.f32 %v8214, %v6389
    %v8255 = vmul.f32 %v8215, %v6386
    %v8256 = vmul.f32 %v8215, %v6389
    %v8257 = vmul.f32 %v8216, %v6386
    %v8258 = vmul.f32 %v8216, %v6389
    %v8259 = vmul.f32 %v8217, %v6386
    %v8260 = vmul.f32 %v8217, %v6389
    %v8261 = vmul.f32 %v8218, %v6386
    %v8262 = vmul.f32 %v8218, %v6389
    %v8263 = vmul.f32 %v8219, %v6386
    %v8264 = vmul.f32 %v8219, %v6389
    %v8265 = vmul.f32 %v8220, %v6386
    %v8266 = vmul.f32 %v8220, %v6389
    %v8267 = vmul.f32 %v8221, %v6386
    %v8268 = vmul.f32 %v8221, %v6389
    %v8269 = vmul.f32 %v8222, %v6386
    %v8270 = vmul.f32 %v8222, %v6389
    %v8271 = vmul.f32 %v8223, %v6482
    %v8272 = vmul.f32 %v8223, %v6485
    %v8273 = vmul.f32 %v8224, %v6482
    %v8274 = vmul.f32 %v8224, %v6485
    %v8275 = vmul.f32 %v8225, %v6482
    %v8276 = vmul.f32 %v8225, %v6485
    %v8277 = vmul.f32 %v8226, %v6482
    %v8278 = vmul.f32 %v8226, %v6485
    %v8279 = vmul.f32 %v8227, %v6482
    %v8280 = vmul.f32 %v8227, %v6485
    %v8281 = vmul.f32 %v8228, %v6482
    %v8282 = vmul.f32 %v8228, %v6485
    %v8283 = vmul.f32 %v8229, %v6482
    %v8284 = vmul.f32 %v8229, %v6485
    %v8285 = vmul.f32 %v8230, %v6482
    %v8286 = vmul.f32 %v8230, %v6485
    %v8287 = vmul.f32 %v8231, %v6482
    %v8288 = vmul.f32 %v8231, %v6485
    %v8289 = vmul.f32 %v8232, %v6482
    %v8290 = vmul.f32 %v8232, %v6485
    %v8291 = vmul.f32 %v8233, %v6482
    %v8292 = vmul.f32 %v8233, %v6485
    %v8293 = vmul.f32 %v8234, %v6482
    %v8294 = vmul.f32 %v8234, %v6485
    %v8295 = vmul.f32 %v8235, %v6482
    %v8296 = vmul.f32 %v8235, %v6485
    %v8297 = vmul.f32 %v8236, %v6482
    %v8298 = vmul.f32 %v8236, %v6485
    %v8299 = vmul.f32 %v8237, %v6482
    %v8300 = vmul.f32 %v8237, %v6485
    %v8301 = vmul.f32 %v8238, %v6482
    %v8302 = vmul.f32 %v8238, %v6485
    %v8303 = vadd.f32 %v8143, %v8239
    %v8304 = vadd.f32 %v8144, %v8240
    %v8305 = vadd.f32 %v8145, %v8241
    %v8306 = vadd.f32 %v8146, %v8242
    %v8307 = vadd.f32 %v8147, %v8243
    %v8308 = vadd.f32 %v8148, %v8244
    %v8309 = vadd.f32 %v8149, %v8245
    %v8310 = vadd.f32 %v8150, %v8246
    %v8311 = vadd.f32 %v8151, %v8247
    %v8312 = vadd.f32 %v8152, %v8248
    %v8313 = vadd.f32 %v8153, %v8249
    %v8314 = vadd.f32 %v8154, %v8250
    %v8315 = vadd.f32 %v8155, %v8251
    %v8316 = vadd.f32 %v8156, %v8252
    %v8317 = vadd.f32 %v8157, %v8253
    %v8318 = vadd.f32 %v8158, %v8254
    %v8319 = vadd.f32 %v8159, %v8255
    %v8320 = vadd.f32 %v8160, %v8256
    %v8321 = vadd.f32 %v8161, %v8257
    %v8322 = vadd.f32 %v8162, %v8258
    %v8323 = vadd.f32 %v8163, %v8259
    %v8324 = vadd.f32 %v8164, %v8260
    %v8325 = vadd.f32 %v8165, %v8261
    %v8326 = vadd.f32 %v8166, %v8262
    %v8327 = vadd.f32 %v8167, %v8263
    %v8328 = vadd.f32 %v8168, %v8264
    %v8329 = vadd.f32 %v8169, %v8265
    %v8330 = vadd.f32 %v8170, %v8266
    %v8331 = vadd.f32 %v8171, %v8267
    %v8332 = vadd.f32 %v8172, %v8268
    %v8333 = vadd.f32 %v8173, %v8269
    %v8334 = vadd.f32 %v8174, %v8270
    %v8335 = vadd.f32 %v8175, %v8271
    %v8336 = vadd.f32 %v8176, %v8272
    %v8337 = vadd.f32 %v8177, %v8273
    %v8338 = vadd.f32 %v8178, %v8274
    %v8339 = vadd.f32 %v8179, %v8275
    %v8340 = vadd.f32 %v8180, %v8276
    %v8341 = vadd.f32 %v8181, %v8277
    %v8342 = vadd.f32 %v8182, %v8278
    %v8343 = vadd.f32 %v8183, %v8279
    %v8344 = vadd.f32 %v8184, %v8280
    %v8345 = vadd.f32 %v8185, %v8281
    %v8346 = vadd.f32 %v8186, %v8282
    %v8347 = vadd.f32 %v8187, %v8283
    %v8348 = vadd.f32 %v8188, %v8284
    %v8349 = vadd.f32 %v8189, %v8285
    %v8350 = vadd.f32 %v8190, %v8286
    %v8351 = vadd.f32 %v8191, %v8287
    %v8352 = vadd.f32 %v8192, %v8288
    %v8353 = vadd.f32 %v8193, %v8289
    %v8354 = vadd.f32 %v8194, %v8290
    %v8355 = vadd.f32 %v8195, %v8291
    %v8356 = vadd.f32 %v8196, %v8292
    %v8357 = vadd.f32 %v8197, %v8293
    %v8358 = vadd.f32 %v8198, %v8294
    %v8359 = vadd.f32 %v8199, %v8295
    %v8360 = vadd.f32 %v8200, %v8296
    %v8361 = vadd.f32 %v8201, %v8297
    %v8362 = vadd.f32 %v8202, %v8298
    %v8363 = vadd.f32 %v8203, %v8299
    %v8364 = vadd.f32 %v8204, %v8300
    %v8365 = vadd.f32 %v8205, %v8301
    %v8366 = vadd.f32 %v8206, %v8302
    %v8367 = vperm.slane %v5451, 4
    %v8368 = vperm.slane %v5457, 4
    %v8369 = vperm.slane %v5463, 4
    %v8370 = vperm.slane %v5469, 4
    %v8371 = vperm.slane %v5475, 4
    %v8372 = vperm.slane %v5481, 4
    %v8373 = vperm.slane %v5487, 4
    %v8374 = vperm.slane %v5493, 4
    %v8375 = vperm.slane %v5499, 4
    %v8376 = vperm.slane %v5505, 4
    %v8377 = vperm.slane %v5511, 4
    %v8378 = vperm.slane %v5517, 4
    %v8379 = vperm.slane %v5523, 4
    %v8380 = vperm.slane %v5529, 4
    %v8381 = vperm.slane %v5535, 4
    %v8382 = vperm.slane %v5541, 4
    %v8383 = vperm.slane %v5547, 4
    %v8384 = vperm.slane %v5553, 4
    %v8385 = vperm.slane %v5559, 4
    %v8386 = vperm.slane %v5565, 4
    %v8387 = vperm.slane %v5571, 4
    %v8388 = vperm.slane %v5577, 4
    %v8389 = vperm.slane %v5583, 4
    %v8390 = vperm.slane %v5589, 4
    %v8391 = vperm.slane %v5595, 4
    %v8392 = vperm.slane %v5601, 4
    %v8393 = vperm.slane %v5607, 4
    %v8394 = vperm.slane %v5613, 4
    %v8395 = vperm.slane %v5619, 4
    %v8396 = vperm.slane %v5625, 4
    %v8397 = vperm.slane %v5631, 4
    %v8398 = vperm.slane %v5637, 4
    %v8399 = vmul.f32 %v8367, %v6392
    %v8400 = vmul.f32 %v8367, %v6395
    %v8401 = vmul.f32 %v8368, %v6392
    %v8402 = vmul.f32 %v8368, %v6395
    %v8403 = vmul.f32 %v8369, %v6392
    %v8404 = vmul.f32 %v8369, %v6395
    %v8405 = vmul.f32 %v8370, %v6392
    %v8406 = vmul.f32 %v8370, %v6395
    %v8407 = vmul.f32 %v8371, %v6392
    %v8408 = vmul.f32 %v8371, %v6395
    %v8409 = vmul.f32 %v8372, %v6392
    %v8410 = vmul.f32 %v8372, %v6395
    %v8411 = vmul.f32 %v8373, %v6392
    %v8412 = vmul.f32 %v8373, %v6395
    %v8413 = vmul.f32 %v8374, %v6392
    %v8414 = vmul.f32 %v8374, %v6395
    %v8415 = vmul.f32 %v8375, %v6392
    %v8416 = vmul.f32 %v8375, %v6395
    %v8417 = vmul.f32 %v8376, %v6392
    %v8418 = vmul.f32 %v8376, %v6395
    %v8419 = vmul.f32 %v8377, %v6392
    %v8420 = vmul.f32 %v8377, %v6395
    %v8421 = vmul.f32 %v8378, %v6392
    %v8422 = vmul.f32 %v8378, %v6395
    %v8423 = vmul.f32 %v8379, %v6392
    %v8424 = vmul.f32 %v8379, %v6395
    %v8425 = vmul.f32 %v8380, %v6392
    %v8426 = vmul.f32 %v8380, %v6395
    %v8427 = vmul.f32 %v8381, %v6392
    %v8428 = vmul.f32 %v8381, %v6395
    %v8429 = vmul.f32 %v8382, %v6392
    %v8430 = vmul.f32 %v8382, %v6395
    %v8431 = vmul.f32 %v8383, %v6488
    %v8432 = vmul.f32 %v8383, %v6491
    %v8433 = vmul.f32 %v8384, %v6488
    %v8434 = vmul.f32 %v8384, %v6491
    %v8435 = vmul.f32 %v8385, %v6488
    %v8436 = vmul.f32 %v8385, %v6491
    %v8437 = vmul.f32 %v8386, %v6488
    %v8438 = vmul.f32 %v8386, %v6491
    %v8439 = vmul.f32 %v8387, %v6488
    %v8440 = vmul.f32 %v8387, %v6491
    %v8441 = vmul.f32 %v8388, %v6488
    %v8442 = vmul.f32 %v8388, %v6491
    %v8443 = vmul.f32 %v8389, %v6488
    %v8444 = vmul.f32 %v8389, %v6491
    %v8445 = vmul.f32 %v8390, %v6488
    %v8446 = vmul.f32 %v8390, %v6491
    %v8447 = vmul.f32 %v8391, %v6488
    %v8448 = vmul.f32 %v8391, %v6491
    %v8449 = vmul.f32 %v8392, %v6488
    %v8450 = vmul.f32 %v8392, %v6491
    %v8451 = vmul.f32 %v8393, %v6488
    %v8452 = vmul.f32 %v8393, %v6491
    %v8453 = vmul.f32 %v8394, %v6488
    %v8454 = vmul.f32 %v8394, %v6491
    %v8455 = vmul.f32 %v8395, %v6488
    %v8456 = vmul.f32 %v8395, %v6491
    %v8457 = vmul.f32 %v8396, %v6488
    %v8458 = vmul.f32 %v8396, %v6491
    %v8459 = vmul.f32 %v8397, %v6488
    %v8460 = vmul.f32 %v8397, %v6491
    %v8461 = vmul.f32 %v8398, %v6488
    %v8462 = vmul.f32 %v8398, %v6491
    %v8463 = vadd.f32 %v8303, %v8399
    %v8464 = vadd.f32 %v8304, %v8400
    %v8465 = vadd.f32 %v8305, %v8401
    %v8466 = vadd.f32 %v8306, %v8402
    %v8467 = vadd.f32 %v8307, %v8403
    %v8468 = vadd.f32 %v8308, %v8404
    %v8469 = vadd.f32 %v8309, %v8405
    %v8470 = vadd.f32 %v8310, %v8406
    %v8471 = vadd.f32 %v8311, %v8407
    %v8472 = vadd.f32 %v8312, %v8408
    %v8473 = vadd.f32 %v8313, %v8409
    %v8474 = vadd.f32 %v8314, %v8410
    %v8475 = vadd.f32 %v8315, %v8411
    %v8476 = vadd.f32 %v8316, %v8412
    %v8477 = vadd.f32 %v8317, %v8413
    %v8478 = vadd.f32 %v8318, %v8414
    %v8479 = vadd.f32 %v8319, %v8415
    %v8480 = vadd.f32 %v8320, %v8416
    %v8481 = vadd.f32 %v8321, %v8417
    %v8482 = vadd.f32 %v8322, %v8418
    %v8483 = vadd.f32 %v8323, %v8419
    %v8484 = vadd.f32 %v8324, %v8420
    %v8485 = vadd.f32 %v8325, %v8421
    %v8486 = vadd.f32 %v8326, %v8422
    %v8487 = vadd.f32 %v8327, %v8423
    %v8488 = vadd.f32 %v8328, %v8424
    %v8489 = vadd.f32 %v8329, %v8425
    %v8490 = vadd.f32 %v8330, %v8426
    %v8491 = vadd.f32 %v8331, %v8427
    %v8492 = vadd.f32 %v8332, %v8428
    %v8493 = vadd.f32 %v8333, %v8429
    %v8494 = vadd.f32 %v8334, %v8430
    %v8495 = vadd.f32 %v8335, %v8431
    %v8496 = vadd.f32 %v8336, %v8432
    %v8497 = vadd.f32 %v8337, %v8433
    %v8498 = vadd.f32 %v8338, %v8434
    %v8499 = vadd.f32 %v8339, %v8435
    %v8500 = vadd.f32 %v8340, %v8436
    %v8501 = vadd.f32 %v8341, %v8437
    %v8502 = vadd.f32 %v8342, %v8438
    %v8503 = vadd.f32 %v8343, %v8439
    %v8504 = vadd.f32 %v8344, %v8440
    %v8505 = vadd.f32 %v8345, %v8441
    %v8506 = vadd.f32 %v8346, %v8442
    %v8507 = vadd.f32 %v8347, %v8443
    %v8508 = vadd.f32 %v8348, %v8444
    %v8509 = vadd.f32 %v8349, %v8445
    %v8510 = vadd.f32 %v8350, %v8446
    %v8511 = vadd.f32 %v8351, %v8447
    %v8512 = vadd.f32 %v8352, %v8448
    %v8513 = vadd.f32 %v8353, %v8449
    %v8514 = vadd.f32 %v8354, %v8450
    %v8515 = vadd.f32 %v8355, %v8451
    %v8516 = vadd.f32 %v8356, %v8452
    %v8517 = vadd.f32 %v8357, %v8453
    %v8518 = vadd.f32 %v8358, %v8454
    %v8519 = vadd.f32 %v8359, %v8455
    %v8520 = vadd.f32 %v8360, %v8456
    %v8521 = vadd.f32 %v8361, %v8457
    %v8522 = vadd.f32 %v8362, %v8458
    %v8523 = vadd.f32 %v8363, %v8459
    %v8524 = vadd.f32 %v8364, %v8460
    %v8525 = vadd.f32 %v8365, %v8461
    %v8526 = vadd.f32 %v8366, %v8462
    %v8527 = vperm.slane %v5451, 5
    %v8528 = vperm.slane %v5457, 5
    %v8529 = vperm.slane %v5463, 5
    %v8530 = vperm.slane %v5469, 5
    %v8531 = vperm.slane %v5475, 5
    %v8532 = vperm.slane %v5481, 5
    %v8533 = vperm.slane %v5487, 5
    %v8534 = vperm.slane %v5493, 5
    %v8535 = vperm.slane %v5499, 5
    %v8536 = vperm.slane %v5505, 5
    %v8537 = vperm.slane %v5511, 5
    %v8538 = vperm.slane %v5517, 5
    %v8539 = vperm.slane %v5523, 5
    %v8540 = vperm.slane %v5529, 5
    %v8541 = vperm.slane %v5535, 5
    %v8542 = vperm.slane %v5541, 5
    %v8543 = vperm.slane %v5547, 5
    %v8544 = vperm.slane %v5553, 5
    %v8545 = vperm.slane %v5559, 5
    %v8546 = vperm.slane %v5565, 5
    %v8547 = vperm.slane %v5571, 5
    %v8548 = vperm.slane %v5577, 5
    %v8549 = vperm.slane %v5583, 5
    %v8550 = vperm.slane %v5589, 5
    %v8551 = vperm.slane %v5595, 5
    %v8552 = vperm.slane %v5601, 5
    %v8553 = vperm.slane %v5607, 5
    %v8554 = vperm.slane %v5613, 5
    %v8555 = vperm.slane %v5619, 5
    %v8556 = vperm.slane %v5625, 5
    %v8557 = vperm.slane %v5631, 5
    %v8558 = vperm.slane %v5637, 5
    %v8559 = vmul.f32 %v8527, %v6398
    %v8560 = vmul.f32 %v8527, %v6401
    %v8561 = vmul.f32 %v8528, %v6398
    %v8562 = vmul.f32 %v8528, %v6401
    %v8563 = vmul.f32 %v8529, %v6398
    %v8564 = vmul.f32 %v8529, %v6401
    %v8565 = vmul.f32 %v8530, %v6398
    %v8566 = vmul.f32 %v8530, %v6401
    %v8567 = vmul.f32 %v8531, %v6398
    %v8568 = vmul.f32 %v8531, %v6401
    %v8569 = vmul.f32 %v8532, %v6398
    %v8570 = vmul.f32 %v8532, %v6401
    %v8571 = vmul.f32 %v8533, %v6398
    %v8572 = vmul.f32 %v8533, %v6401
    %v8573 = vmul.f32 %v8534, %v6398
    %v8574 = vmul.f32 %v8534, %v6401
    %v8575 = vmul.f32 %v8535, %v6398
    %v8576 = vmul.f32 %v8535, %v6401
    %v8577 = vmul.f32 %v8536, %v6398
    %v8578 = vmul.f32 %v8536, %v6401
    %v8579 = vmul.f32 %v8537, %v6398
    %v8580 = vmul.f32 %v8537, %v6401
    %v8581 = vmul.f32 %v8538, %v6398
    %v8582 = vmul.f32 %v8538, %v6401
    %v8583 = vmul.f32 %v8539, %v6398
    %v8584 = vmul.f32 %v8539, %v6401
    %v8585 = vmul.f32 %v8540, %v6398
    %v8586 = vmul.f32 %v8540, %v6401
    %v8587 = vmul.f32 %v8541, %v6398
    %v8588 = vmul.f32 %v8541, %v6401
    %v8589 = vmul.f32 %v8542, %v6398
    %v8590 = vmul.f32 %v8542, %v6401
    %v8591 = vmul.f32 %v8543, %v6494
    %v8592 = vmul.f32 %v8543, %v6497
    %v8593 = vmul.f32 %v8544, %v6494
    %v8594 = vmul.f32 %v8544, %v6497
    %v8595 = vmul.f32 %v8545, %v6494
    %v8596 = vmul.f32 %v8545, %v6497
    %v8597 = vmul.f32 %v8546, %v6494
    %v8598 = vmul.f32 %v8546, %v6497
    %v8599 = vmul.f32 %v8547, %v6494
    %v8600 = vmul.f32 %v8547, %v6497
    %v8601 = vmul.f32 %v8548, %v6494
    %v8602 = vmul.f32 %v8548, %v6497
    %v8603 = vmul.f32 %v8549, %v6494
    %v8604 = vmul.f32 %v8549, %v6497
    %v8605 = vmul.f32 %v8550, %v6494
    %v8606 = vmul.f32 %v8550, %v6497
    %v8607 = vmul.f32 %v8551, %v6494
    %v8608 = vmul.f32 %v8551, %v6497
    %v8609 = vmul.f32 %v8552, %v6494
    %v8610 = vmul.f32 %v8552, %v6497
    %v8611 = vmul.f32 %v8553, %v6494
    %v8612 = vmul.f32 %v8553, %v6497
    %v8613 = vmul.f32 %v8554, %v6494
    %v8614 = vmul.f32 %v8554, %v6497
    %v8615 = vmul.f32 %v8555, %v6494
    %v8616 = vmul.f32 %v8555, %v6497
    %v8617 = vmul.f32 %v8556, %v6494
    %v8618 = vmul.f32 %v8556, %v6497
    %v8619 = vmul.f32 %v8557, %v6494
    %v8620 = vmul.f32 %v8557, %v6497
    %v8621 = vmul.f32 %v8558, %v6494
    %v8622 = vmul.f32 %v8558, %v6497
    %v8623 = vadd.f32 %v8463, %v8559
    %v8624 = vadd.f32 %v8464, %v8560
    %v8625 = vadd.f32 %v8465, %v8561
    %v8626 = vadd.f32 %v8466, %v8562
    %v8627 = vadd.f32 %v8467, %v8563
    %v8628 = vadd.f32 %v8468, %v8564
    %v8629 = vadd.f32 %v8469, %v8565
    %v8630 = vadd.f32 %v8470, %v8566
    %v8631 = vadd.f32 %v8471, %v8567
    %v8632 = vadd.f32 %v8472, %v8568
    %v8633 = vadd.f32 %v8473, %v8569
    %v8634 = vadd.f32 %v8474, %v8570
    %v8635 = vadd.f32 %v8475, %v8571
    %v8636 = vadd.f32 %v8476, %v8572
    %v8637 = vadd.f32 %v8477, %v8573
    %v8638 = vadd.f32 %v8478, %v8574
    %v8639 = vadd.f32 %v8479, %v8575
    %v8640 = vadd.f32 %v8480, %v8576
    %v8641 = vadd.f32 %v8481, %v8577
    %v8642 = vadd.f32 %v8482, %v8578
    %v8643 = vadd.f32 %v8483, %v8579
    %v8644 = vadd.f32 %v8484, %v8580
    %v8645 = vadd.f32 %v8485, %v8581
    %v8646 = vadd.f32 %v8486, %v8582
    %v8647 = vadd.f32 %v8487, %v8583
    %v8648 = vadd.f32 %v8488, %v8584
    %v8649 = vadd.f32 %v8489, %v8585
    %v8650 = vadd.f32 %v8490, %v8586
    %v8651 = vadd.f32 %v8491, %v8587
    %v8652 = vadd.f32 %v8492, %v8588
    %v8653 = vadd.f32 %v8493, %v8589
    %v8654 = vadd.f32 %v8494, %v8590
    %v8655 = vadd.f32 %v8495, %v8591
    %v8656 = vadd.f32 %v8496, %v8592
    %v8657 = vadd.f32 %v8497, %v8593
    %v8658 = vadd.f32 %v8498, %v8594
    %v8659 = vadd.f32 %v8499, %v8595
    %v8660 = vadd.f32 %v8500, %v8596
    %v8661 = vadd.f32 %v8501, %v8597
    %v8662 = vadd.f32 %v8502, %v8598
    %v8663 = vadd.f32 %v8503, %v8599
    %v8664 = vadd.f32 %v8504, %v8600
    %v8665 = vadd.f32 %v8505, %v8601
    %v8666 = vadd.f32 %v8506, %v8602
    %v8667 = vadd.f32 %v8507, %v8603
    %v8668 = vadd.f32 %v8508, %v8604
    %v8669 = vadd.f32 %v8509, %v8605
    %v8670 = vadd.f32 %v8510, %v8606
    %v8671 = vadd.f32 %v8511, %v8607
    %v8672 = vadd.f32 %v8512, %v8608
    %v8673 = vadd.f32 %v8513, %v8609
    %v8674 = vadd.f32 %v8514, %v8610
    %v8675 = vadd.f32 %v8515, %v8611
    %v8676 = vadd.f32 %v8516, %v8612
    %v8677 = vadd.f32 %v8517, %v8613
    %v8678 = vadd.f32 %v8518, %v8614
    %v8679 = vadd.f32 %v8519, %v8615
    %v8680 = vadd.f32 %v8520, %v8616
    %v8681 = vadd.f32 %v8521, %v8617
    %v8682 = vadd.f32 %v8522, %v8618
    %v8683 = vadd.f32 %v8523, %v8619
    %v8684 = vadd.f32 %v8524, %v8620
    %v8685 = vadd.f32 %v8525, %v8621
    %v8686 = vadd.f32 %v8526, %v8622
    %v8687 = vperm.slane %v5451, 6
    %v8688 = vperm.slane %v5457, 6
    %v8689 = vperm.slane %v5463, 6
    %v8690 = vperm.slane %v5469, 6
    %v8691 = vperm.slane %v5475, 6
    %v8692 = vperm.slane %v5481, 6
    %v8693 = vperm.slane %v5487, 6
    %v8694 = vperm.slane %v5493, 6
    %v8695 = vperm.slane %v5499, 6
    %v8696 = vperm.slane %v5505, 6
    %v8697 = vperm.slane %v5511, 6
    %v8698 = vperm.slane %v5517, 6
    %v8699 = vperm.slane %v5523, 6
    %v8700 = vperm.slane %v5529, 6
    %v8701 = vperm.slane %v5535, 6
    %v8702 = vperm.slane %v5541, 6
    %v8703 = vperm.slane %v5547, 6
    %v8704 = vperm.slane %v5553, 6
    %v8705 = vperm.slane %v5559, 6
    %v8706 = vperm.slane %v5565, 6
    %v8707 = vperm.slane %v5571, 6
    %v8708 = vperm.slane %v5577, 6
    %v8709 = vperm.slane %v5583, 6
    %v8710 = vperm.slane %v5589, 6
    %v8711 = vperm.slane %v5595, 6
    %v8712 = vperm.slane %v5601, 6
    %v8713 = vperm.slane %v5607, 6
    %v8714 = vperm.slane %v5613, 6
    %v8715 = vperm.slane %v5619, 6
    %v8716 = vperm.slane %v5625, 6
    %v8717 = vperm.slane %v5631, 6
    %v8718 = vperm.slane %v5637, 6
    %v8719 = vmul.f32 %v8687, %v6404
    %v8720 = vmul.f32 %v8687, %v6407
    %v8721 = vmul.f32 %v8688, %v6404
    %v8722 = vmul.f32 %v8688, %v6407
    %v8723 = vmul.f32 %v8689, %v6404
    %v8724 = vmul.f32 %v8689, %v6407
    %v8725 = vmul.f32 %v8690, %v6404
    %v8726 = vmul.f32 %v8690, %v6407
    %v8727 = vmul.f32 %v8691, %v6404
    %v8728 = vmul.f32 %v8691, %v6407
    %v8729 = vmul.f32 %v8692, %v6404
    %v8730 = vmul.f32 %v8692, %v6407
    %v8731 = vmul.f32 %v8693, %v6404
    %v8732 = vmul.f32 %v8693, %v6407
    %v8733 = vmul.f32 %v8694, %v6404
    %v8734 = vmul.f32 %v8694, %v6407
    %v8735 = vmul.f32 %v8695, %v6404
    %v8736 = vmul.f32 %v8695, %v6407
    %v8737 = vmul.f32 %v8696, %v6404
    %v8738 = vmul.f32 %v8696, %v6407
    %v8739 = vmul.f32 %v8697, %v6404
    %v8740 = vmul.f32 %v8697, %v6407
    %v8741 = vmul.f32 %v8698, %v6404
    %v8742 = vmul.f32 %v8698, %v6407
    %v8743 = vmul.f32 %v8699, %v6404
    %v8744 = vmul.f32 %v8699, %v6407
    %v8745 = vmul.f32 %v8700, %v6404
    %v8746 = vmul.f32 %v8700, %v6407
    %v8747 = vmul.f32 %v8701, %v6404
    %v8748 = vmul.f32 %v8701, %v6407
    %v8749 = vmul.f32 %v8702, %v6404
    %v8750 = vmul.f32 %v8702, %v6407
    %v8751 = vmul.f32 %v8703, %v6500
    %v8752 = vmul.f32 %v8703, %v6503
    %v8753 = vmul.f32 %v8704, %v6500
    %v8754 = vmul.f32 %v8704, %v6503
    %v8755 = vmul.f32 %v8705, %v6500
    %v8756 = vmul.f32 %v8705, %v6503
    %v8757 = vmul.f32 %v8706, %v6500
    %v8758 = vmul.f32 %v8706, %v6503
    %v8759 = vmul.f32 %v8707, %v6500
    %v8760 = vmul.f32 %v8707, %v6503
    %v8761 = vmul.f32 %v8708, %v6500
    %v8762 = vmul.f32 %v8708, %v6503
    %v8763 = vmul.f32 %v8709, %v6500
    %v8764 = vmul.f32 %v8709, %v6503
    %v8765 = vmul.f32 %v8710, %v6500
    %v8766 = vmul.f32 %v8710, %v6503
    %v8767 = vmul.f32 %v8711, %v6500
    %v8768 = vmul.f32 %v8711, %v6503
    %v8769 = vmul.f32 %v8712, %v6500
    %v8770 = vmul.f32 %v8712, %v6503
    %v8771 = vmul.f32 %v8713, %v6500
    %v8772 = vmul.f32 %v8713, %v6503
    %v8773 = vmul.f32 %v8714, %v6500
    %v8774 = vmul.f32 %v8714, %v6503
    %v8775 = vmul.f32 %v8715, %v6500
    %v8776 = vmul.f32 %v8715, %v6503
    %v8777 = vmul.f32 %v8716, %v6500
    %v8778 = vmul.f32 %v8716, %v6503
    %v8779 = vmul.f32 %v8717, %v6500
    %v8780 = vmul.f32 %v8717, %v6503
    %v8781 = vmul.f32 %v8718, %v6500
    %v8782 = vmul.f32 %v8718, %v6503
    %v8783 = vadd.f32 %v8623, %v8719
    %v8784 = vadd.f32 %v8624, %v8720
    %v8785 = vadd.f32 %v8625, %v8721
    %v8786 = vadd.f32 %v8626, %v8722
    %v8787 = vadd.f32 %v8627, %v8723
    %v8788 = vadd.f32 %v8628, %v8724
    %v8789 = vadd.f32 %v8629, %v8725
    %v8790 = vadd.f32 %v8630, %v8726
    %v8791 = vadd.f32 %v8631, %v8727
    %v8792 = vadd.f32 %v8632, %v8728
    %v8793 = vadd.f32 %v8633, %v8729
    %v8794 = vadd.f32 %v8634, %v8730
    %v8795 = vadd.f32 %v8635, %v8731
    %v8796 = vadd.f32 %v8636, %v8732
    %v8797 = vadd.f32 %v8637, %v8733
    %v8798 = vadd.f32 %v8638, %v8734
    %v8799 = vadd.f32 %v8639, %v8735
    %v8800 = vadd.f32 %v8640, %v8736
    %v8801 = vadd.f32 %v8641, %v8737
    %v8802 = vadd.f32 %v8642, %v8738
    %v8803 = vadd.f32 %v8643, %v8739
    %v8804 = vadd.f32 %v8644, %v8740
    %v8805 = vadd.f32 %v8645, %v8741
    %v8806 = vadd.f32 %v8646, %v8742
    %v8807 = vadd.f32 %v8647, %v8743
    %v8808 = vadd.f32 %v8648, %v8744
    %v8809 = vadd.f32 %v8649, %v8745
    %v8810 = vadd.f32 %v8650, %v8746
    %v8811 = vadd.f32 %v8651, %v8747
    %v8812 = vadd.f32 %v8652, %v8748
    %v8813 = vadd.f32 %v8653, %v8749
    %v8814 = vadd.f32 %v8654, %v8750
    %v8815 = vadd.f32 %v8655, %v8751
    %v8816 = vadd.f32 %v8656, %v8752
    %v8817 = vadd.f32 %v8657, %v8753
    %v8818 = vadd.f32 %v8658, %v8754
    %v8819 = vadd.f32 %v8659, %v8755
    %v8820 = vadd.f32 %v8660, %v8756
    %v8821 = vadd.f32 %v8661, %v8757
    %v8822 = vadd.f32 %v8662, %v8758
    %v8823 = vadd.f32 %v8663, %v8759
    %v8824 = vadd.f32 %v8664, %v8760
    %v8825 = vadd.f32 %v8665, %v8761
    %v8826 = vadd.f32 %v8666, %v8762
    %v8827 = vadd.f32 %v8667, %v8763
    %v8828 = vadd.f32 %v8668, %v8764
    %v8829 = vadd.f32 %v8669, %v8765
    %v8830 = vadd.f32 %v8670, %v8766
    %v8831 = vadd.f32 %v8671, %v8767
    %v8832 = vadd.f32 %v8672, %v8768
    %v8833 = vadd.f32 %v8673, %v8769
    %v8834 = vadd.f32 %v8674, %v8770
    %v8835 = vadd.f32 %v8675, %v8771
    %v8836 = vadd.f32 %v8676, %v8772
    %v8837 = vadd.f32 %v8677, %v8773
    %v8838 = vadd.f32 %v8678, %v8774
    %v8839 = vadd.f32 %v8679, %v8775
    %v8840 = vadd.f32 %v8680, %v8776
    %v8841 = vadd.f32 %v8681, %v8777
    %v8842 = vadd.f32 %v8682, %v8778
    %v8843 = vadd.f32 %v8683, %v8779
    %v8844 = vadd.f32 %v8684, %v8780
    %v8845 = vadd.f32 %v8685, %v8781
    %v8846 = vadd.f32 %v8686, %v8782
    %v8847 = vperm.slane %v5451, 7
    %v8848 = vperm.slane %v5457, 7
    %v8849 = vperm.slane %v5463, 7
    %v8850 = vperm.slane %v5469, 7
    %v8851 = vperm.slane %v5475, 7
    %v8852 = vperm.slane %v5481, 7
    %v8853 = vperm.slane %v5487, 7
    %v8854 = vperm.slane %v5493, 7
    %v8855 = vperm.slane %v5499, 7
    %v8856 = vperm.slane %v5505, 7
    %v8857 = vperm.slane %v5511, 7
    %v8858 = vperm.slane %v5517, 7
    %v8859 = vperm.slane %v5523, 7
    %v8860 = vperm.slane %v5529, 7
    %v8861 = vperm.slane %v5535, 7
    %v8862 = vperm.slane %v5541, 7
    %v8863 = vperm.slane %v5547, 7
    %v8864 = vperm.slane %v5553, 7
    %v8865 = vperm.slane %v5559, 7
    %v8866 = vperm.slane %v5565, 7
    %v8867 = vperm.slane %v5571, 7
    %v8868 = vperm.slane %v5577, 7
    %v8869 = vperm.slane %v5583, 7
    %v8870 = vperm.slane %v5589, 7
    %v8871 = vperm.slane %v5595, 7
    %v8872 = vperm.slane %v5601, 7
    %v8873 = vperm.slane %v5607, 7
    %v8874 = vperm.slane %v5613, 7
    %v8875 = vperm.slane %v5619, 7
    %v8876 = vperm.slane %v5625, 7
    %v8877 = vperm.slane %v5631, 7
    %v8878 = vperm.slane %v5637, 7
    %v8879 = vmul.f32 %v8847, %v6410
    %v8880 = vmul.f32 %v8847, %v6413
    %v8881 = vmul.f32 %v8848, %v6410
    %v8882 = vmul.f32 %v8848, %v6413
    %v8883 = vmul.f32 %v8849, %v6410
    %v8884 = vmul.f32 %v8849, %v6413
    %v8885 = vmul.f32 %v8850, %v6410
    %v8886 = vmul.f32 %v8850, %v6413
    %v8887 = vmul.f32 %v8851, %v6410
    %v8888 = vmul.f32 %v8851, %v6413
    %v8889 = vmul.f32 %v8852, %v6410
    %v8890 = vmul.f32 %v8852, %v6413
    %v8891 = vmul.f32 %v8853, %v6410
    %v8892 = vmul.f32 %v8853, %v6413
    %v8893 = vmul.f32 %v8854, %v6410
    %v8894 = vmul.f32 %v8854, %v6413
    %v8895 = vmul.f32 %v8855, %v6410
    %v8896 = vmul.f32 %v8855, %v6413
    %v8897 = vmul.f32 %v8856, %v6410
    %v8898 = vmul.f32 %v8856, %v6413
    %v8899 = vmul.f32 %v8857, %v6410
    %v8900 = vmul.f32 %v8857, %v6413
    %v8901 = vmul.f32 %v8858, %v6410
    %v8902 = vmul.f32 %v8858, %v6413
    %v8903 = vmul.f32 %v8859, %v6410
    %v8904 = vmul.f32 %v8859, %v6413
    %v8905 = vmul.f32 %v8860, %v6410
    %v8906 = vmul.f32 %v8860, %v6413
    %v8907 = vmul.f32 %v8861, %v6410
    %v8908 = vmul.f32 %v8861, %v6413
    %v8909 = vmul.f32 %v8862, %v6410
    %v8910 = vmul.f32 %v8862, %v6413
    %v8911 = vmul.f32 %v8863, %v6506
    %v8912 = vmul.f32 %v8863, %v6509
    %v8913 = vmul.f32 %v8864, %v6506
    %v8914 = vmul.f32 %v8864, %v6509
    %v8915 = vmul.f32 %v8865, %v6506
    %v8916 = vmul.f32 %v8865, %v6509
    %v8917 = vmul.f32 %v8866, %v6506
    %v8918 = vmul.f32 %v8866, %v6509
    %v8919 = vmul.f32 %v8867, %v6506
    %v8920 = vmul.f32 %v8867, %v6509
    %v8921 = vmul.f32 %v8868, %v6506
    %v8922 = vmul.f32 %v8868, %v6509
    %v8923 = vmul.f32 %v8869, %v6506
    %v8924 = vmul.f32 %v8869, %v6509
    %v8925 = vmul.f32 %v8870, %v6506
    %v8926 = vmul.f32 %v8870, %v6509
    %v8927 = vmul.f32 %v8871, %v6506
    %v8928 = vmul.f32 %v8871, %v6509
    %v8929 = vmul.f32 %v8872, %v6506
    %v8930 = vmul.f32 %v8872, %v6509
    %v8931 = vmul.f32 %v8873, %v6506
    %v8932 = vmul.f32 %v8873, %v6509
    %v8933 = vmul.f32 %v8874, %v6506
    %v8934 = vmul.f32 %v8874, %v6509
    %v8935 = vmul.f32 %v8875, %v6506
    %v8936 = vmul.f32 %v8875, %v6509
    %v8937 = vmul.f32 %v8876, %v6506
    %v8938 = vmul.f32 %v8876, %v6509
    %v8939 = vmul.f32 %v8877, %v6506
    %v8940 = vmul.f32 %v8877, %v6509
    %v8941 = vmul.f32 %v8878, %v6506
    %v8942 = vmul.f32 %v8878, %v6509
    %v8943 = vadd.f32 %v8783, %v8879
    %v8944 = vadd.f32 %v8784, %v8880
    %v8945 = vadd.f32 %v8785, %v8881
    %v8946 = vadd.f32 %v8786, %v8882
    %v8947 = vadd.f32 %v8787, %v8883
    %v8948 = vadd.f32 %v8788, %v8884
    %v8949 = vadd.f32 %v8789, %v8885
    %v8950 = vadd.f32 %v8790, %v8886
    %v8951 = vadd.f32 %v8791, %v8887
    %v8952 = vadd.f32 %v8792, %v8888
    %v8953 = vadd.f32 %v8793, %v8889
    %v8954 = vadd.f32 %v8794, %v8890
    %v8955 = vadd.f32 %v8795, %v8891
    %v8956 = vadd.f32 %v8796, %v8892
    %v8957 = vadd.f32 %v8797, %v8893
    %v8958 = vadd.f32 %v8798, %v8894
    %v8959 = vadd.f32 %v8799, %v8895
    %v8960 = vadd.f32 %v8800, %v8896
    %v8961 = vadd.f32 %v8801, %v8897
    %v8962 = vadd.f32 %v8802, %v8898
    %v8963 = vadd.f32 %v8803, %v8899
    %v8964 = vadd.f32 %v8804, %v8900
    %v8965 = vadd.f32 %v8805, %v8901
    %v8966 = vadd.f32 %v8806, %v8902
    %v8967 = vadd.f32 %v8807, %v8903
    %v8968 = vadd.f32 %v8808, %v8904
    %v8969 = vadd.f32 %v8809, %v8905
    %v8970 = vadd.f32 %v8810, %v8906
    %v8971 = vadd.f32 %v8811, %v8907
    %v8972 = vadd.f32 %v8812, %v8908
    %v8973 = vadd.f32 %v8813, %v8909
    %v8974 = vadd.f32 %v8814, %v8910
    %v8975 = vadd.f32 %v8815, %v8911
    %v8976 = vadd.f32 %v8816, %v8912
    %v8977 = vadd.f32 %v8817, %v8913
    %v8978 = vadd.f32 %v8818, %v8914
    %v8979 = vadd.f32 %v8819, %v8915
    %v8980 = vadd.f32 %v8820, %v8916
    %v8981 = vadd.f32 %v8821, %v8917
    %v8982 = vadd.f32 %v8822, %v8918
    %v8983 = vadd.f32 %v8823, %v8919
    %v8984 = vadd.f32 %v8824, %v8920
    %v8985 = vadd.f32 %v8825, %v8921
    %v8986 = vadd.f32 %v8826, %v8922
    %v8987 = vadd.f32 %v8827, %v8923
    %v8988 = vadd.f32 %v8828, %v8924
    %v8989 = vadd.f32 %v8829, %v8925
    %v8990 = vadd.f32 %v8830, %v8926
    %v8991 = vadd.f32 %v8831, %v8927
    %v8992 = vadd.f32 %v8832, %v8928
    %v8993 = vadd.f32 %v8833, %v8929
    %v8994 = vadd.f32 %v8834, %v8930
    %v8995 = vadd.f32 %v8835, %v8931
    %v8996 = vadd.f32 %v8836, %v8932
    %v8997 = vadd.f32 %v8837, %v8933
    %v8998 = vadd.f32 %v8838, %v8934
    %v8999 = vadd.f32 %v8839, %v8935
    %v9000 = vadd.f32 %v8840, %v8936
    %v9001 = vadd.f32 %v8841, %v8937
    %v9002 = vadd.f32 %v8842, %v8938
    %v9003 = vadd.f32 %v8843, %v8939
    %v9004 = vadd.f32 %v8844, %v8940
    %v9005 = vadd.f32 %v8845, %v8941
    %v9006 = vadd.f32 %v8846, %v8942
    %v9007 = vmul.f32 %v8943, 0.0625
    %v9008 = vmul.f32 %v8944, 0.0625
    %v9009 = vmul.f32 %v8945, 0.0625
    %v9010 = vmul.f32 %v8946, 0.0625
    %v9011 = vmul.f32 %v8947, 0.0625
    %v9012 = vmul.f32 %v8948, 0.0625
    %v9013 = vmul.f32 %v8949, 0.0625
    %v9014 = vmul.f32 %v8950, 0.0625
    %v9015 = vmul.f32 %v8951, 0.0625
    %v9016 = vmul.f32 %v8952, 0.0625
    %v9017 = vmul.f32 %v8953, 0.0625
    %v9018 = vmul.f32 %v8954, 0.0625
    %v9019 = vmul.f32 %v8955, 0.0625
    %v9020 = vmul.f32 %v8956, 0.0625
    %v9021 = vmul.f32 %v8957, 0.0625
    %v9022 = vmul.f32 %v8958, 0.0625
    %v9023 = vmul.f32 %v8959, 0.0625
    %v9024 = vmul.f32 %v8960, 0.0625
    %v9025 = vmul.f32 %v8961, 0.0625
    %v9026 = vmul.f32 %v8962, 0.0625
    %v9027 = vmul.f32 %v8963, 0.0625
    %v9028 = vmul.f32 %v8964, 0.0625
    %v9029 = vmul.f32 %v8965, 0.0625
    %v9030 = vmul.f32 %v8966, 0.0625
    %v9031 = vmul.f32 %v8967, 0.0625
    %v9032 = vmul.f32 %v8968, 0.0625
    %v9033 = vmul.f32 %v8969, 0.0625
    %v9034 = vmul.f32 %v8970, 0.0625
    %v9035 = vmul.f32 %v8971, 0.0625
    %v9036 = vmul.f32 %v8972, 0.0625
    %v9037 = vmul.f32 %v8973, 0.0625
    %v9038 = vmul.f32 %v8974, 0.0625
    %v9039 = vmul.f32 %v8975, 0.0625
    %v9040 = vmul.f32 %v8976, 0.0625
    %v9041 = vmul.f32 %v8977, 0.0625
    %v9042 = vmul.f32 %v8978, 0.0625
    %v9043 = vmul.f32 %v8979, 0.0625
    %v9044 = vmul.f32 %v8980, 0.0625
    %v9045 = vmul.f32 %v8981, 0.0625
    %v9046 = vmul.f32 %v8982, 0.0625
    %v9047 = vmul.f32 %v8983, 0.0625
    %v9048 = vmul.f32 %v8984, 0.0625
    %v9049 = vmul.f32 %v8985, 0.0625
    %v9050 = vmul.f32 %v8986, 0.0625
    %v9051 = vmul.f32 %v8987, 0.0625
    %v9052 = vmul.f32 %v8988, 0.0625
    %v9053 = vmul.f32 %v8989, 0.0625
    %v9054 = vmul.f32 %v8990, 0.0625
    %v9055 = vmul.f32 %v8991, 0.0625
    %v9056 = vmul.f32 %v8992, 0.0625
    %v9057 = vmul.f32 %v8993, 0.0625
    %v9058 = vmul.f32 %v8994, 0.0625
    %v9059 = vmul.f32 %v8995, 0.0625
    %v9060 = vmul.f32 %v8996, 0.0625
    %v9061 = vmul.f32 %v8997, 0.0625
    %v9062 = vmul.f32 %v8998, 0.0625
    %v9063 = vmul.f32 %v8999, 0.0625
    %v9064 = vmul.f32 %v9000, 0.0625
    %v9065 = vmul.f32 %v9001, 0.0625
    %v9066 = vmul.f32 %v9002, 0.0625
    %v9067 = vmul.f32 %v9003, 0.0625
    %v9068 = vmul.f32 %v9004, 0.0625
    %v9069 = vmul.f32 %v9005, 0.0625
    %v9070 = vmul.f32 %v9006, 0.0625
    %v9071 = vld [vmem:[%s18] sm:$0xff]
    %v9072 = vld [vmem:[%s18 + $0x8] sm:$0xff]
    %v9073 = vld [vmem:[%s18 + $0x10] sm:$0xff]
    %v9074 = vld [vmem:[%s18 + $0x18] sm:$0xff]
    %v9075 = vld [vmem:[%s19] sm:$0x1]
    %v9076 = vld [vmem:[%s20] sm:$0xff]
    %v9077 = vld [vmem:[%s20 + $0x8] sm:$0xff]
    %v9078 = vld [vmem:[%s20 + $0x10] sm:$0xff]
    %v9079 = vld [vmem:[%s20 + $0x18] sm:$0xff]
    %v9080 = vld [vmem:[%s21] sm:$0x1]
    %v9081 = vsel %vm735, %v9007, 0.0
    %v9082 = vsel %vm735, %v9008, 0.0
    %v9083 = vadd.f32 %v9081, %v9082
    %v9084 = vsel %vm735, %v9009, 0.0
    %v9085 = vadd.f32 %v9083, %v9084
    %v9086 = vsel %vm735, %v9010, 0.0
    %v9087 = vadd.f32 %v9085, %v9086
    %v9088 = vsel %vm735, %v9011, 0.0
    %v9089 = vadd.f32 %v9087, %v9088
    %v9090 = vsel %vm735, %v9012, 0.0
    %v9091 = vadd.f32 %v9089, %v9090
    %v9092 = vsel %vm735, %v9013, 0.0
    %v9093 = vadd.f32 %v9091, %v9092
    %v9094 = vsel %vm735, %v9014, 0.0
    %v9095 = vadd.f32 %v9093, %v9094
    %v9096 = vsel %vm735, %v9015, 0.0
    %v9097 = vadd.f32 %v9095, %v9096
    %v9098 = vsel %vm735, %v9016, 0.0
    %v9099 = vadd.f32 %v9097, %v9098
    %v9100 = vsel %vm735, %v9017, 0.0
    %v9101 = vadd.f32 %v9099, %v9100
    %v9102 = vsel %vm735, %v9018, 0.0
    %v9103 = vadd.f32 %v9101, %v9102
    %v9104 = vsel %vm735, %v9019, 0.0
    %v9105 = vadd.f32 %v9103, %v9104
    %v9106 = vsel %vm735, %v9020, 0.0
    %v9107 = vadd.f32 %v9105, %v9106
    %v9108 = vsel %vm735, %v9021, 0.0
    %v9109 = vadd.f32 %v9107, %v9108
    %v9110 = vsel %vm735, %v9022, 0.0
    %v9111 = vadd.f32 %v9109, %v9110
    %v9112 = vsel %vm735, %v9023, 0.0
    %v9113 = vadd.f32 %v9111, %v9112
    %v9114 = vsel %vm735, %v9024, 0.0
    %v9115 = vadd.f32 %v9113, %v9114
    %v9116 = vsel %vm735, %v9025, 0.0
    %v9117 = vadd.f32 %v9115, %v9116
    %v9118 = vsel %vm735, %v9026, 0.0
    %v9119 = vadd.f32 %v9117, %v9118
    %v9120 = vsel %vm735, %v9027, 0.0
    %v9121 = vadd.f32 %v9119, %v9120
    %v9122 = vsel %vm735, %v9028, 0.0
    %v9123 = vadd.f32 %v9121, %v9122
    %v9124 = vsel %vm735, %v9029, 0.0
    %v9125 = vadd.f32 %v9123, %v9124
    %v9126 = vsel %vm735, %v9030, 0.0
    %v9127 = vadd.f32 %v9125, %v9126
    %v9128 = vsel %vm735, %v9031, 0.0
    %v9129 = vadd.f32 %v9127, %v9128
    %v9130 = vsel %vm735, %v9032, 0.0
    %v9131 = vadd.f32 %v9129, %v9130
    %v9132 = vsel %vm735, %v9033, 0.0
    %v9133 = vadd.f32 %v9131, %v9132
    %v9134 = vsel %vm735, %v9034, 0.0
    %v9135 = vadd.f32 %v9133, %v9134
    %v9136 = vsel %vm735, %v9035, 0.0
    %v9137 = vadd.f32 %v9135, %v9136
    %v9138 = vsel %vm735, %v9036, 0.0
    %v9139 = vadd.f32 %v9137, %v9138
    %v9140 = vsel %vm735, %v9037, 0.0
    %v9141 = vadd.f32 %v9139, %v9140
    %v9142 = vsel %vm735, %v9038, 0.0
    %v9143 = vadd.f32 %v9141, %v9142
    %v9144 = vrot.slane %v9143, 4
    %v9145 = vadd.f32 %v9143, %v9144
    %v9146 = vrot.slane %v9145, 2
    %v9147 = vadd.f32 %v9145, %v9146
    %v9148 = vrot.slane %v9147, 1
    %v9149 = vadd.f32 %v9147, %v9148
    %v9150 = vsel %vm735, %v9039, 0.0
    %v9151 = vsel %vm735, %v9040, 0.0
    %v9152 = vadd.f32 %v9150, %v9151
    %v9153 = vsel %vm735, %v9041, 0.0
    %v9154 = vadd.f32 %v9152, %v9153
    %v9155 = vsel %vm735, %v9042, 0.0
    %v9156 = vadd.f32 %v9154, %v9155
    %v9157 = vsel %vm735, %v9043, 0.0
    %v9158 = vadd.f32 %v9156, %v9157
    %v9159 = vsel %vm735, %v9044, 0.0
    %v9160 = vadd.f32 %v9158, %v9159
    %v9161 = vsel %vm735, %v9045, 0.0
    %v9162 = vadd.f32 %v9160, %v9161
    %v9163 = vsel %vm735, %v9046, 0.0
    %v9164 = vadd.f32 %v9162, %v9163
    %v9165 = vsel %vm735, %v9047, 0.0
    %v9166 = vadd.f32 %v9164, %v9165
    %v9167 = vsel %vm735, %v9048, 0.0
    %v9168 = vadd.f32 %v9166, %v9167
    %v9169 = vsel %vm735, %v9049, 0.0
    %v9170 = vadd.f32 %v9168, %v9169
    %v9171 = vsel %vm735, %v9050, 0.0
    %v9172 = vadd.f32 %v9170, %v9171
    %v9173 = vsel %vm735, %v9051, 0.0
    %v9174 = vadd.f32 %v9172, %v9173
    %v9175 = vsel %vm735, %v9052, 0.0
    %v9176 = vadd.f32 %v9174, %v9175
    %v9177 = vsel %vm735, %v9053, 0.0
    %v9178 = vadd.f32 %v9176, %v9177
    %v9179 = vsel %vm735, %v9054, 0.0
    %v9180 = vadd.f32 %v9178, %v9179
    %v9181 = vsel %vm735, %v9055, 0.0
    %v9182 = vadd.f32 %v9180, %v9181
    %v9183 = vsel %vm735, %v9056, 0.0
    %v9184 = vadd.f32 %v9182, %v9183
    %v9185 = vsel %vm735, %v9057, 0.0
    %v9186 = vadd.f32 %v9184, %v9185
    %v9187 = vsel %vm735, %v9058, 0.0
    %v9188 = vadd.f32 %v9186, %v9187
    %v9189 = vsel %vm735, %v9059, 0.0
    %v9190 = vadd.f32 %v9188, %v9189
    %v9191 = vsel %vm735, %v9060, 0.0
    %v9192 = vadd.f32 %v9190, %v9191
    %v9193 = vsel %vm735, %v9061, 0.0
    %v9194 = vadd.f32 %v9192, %v9193
    %v9195 = vsel %vm735, %v9062, 0.0
    %v9196 = vadd.f32 %v9194, %v9195
    %v9197 = vsel %vm735, %v9063, 0.0
    %v9198 = vadd.f32 %v9196, %v9197
    %v9199 = vsel %vm735, %v9064, 0.0
    %v9200 = vadd.f32 %v9198, %v9199
    %v9201 = vsel %vm735, %v9065, 0.0
    %v9202 = vadd.f32 %v9200, %v9201
    %v9203 = vsel %vm735, %v9066, 0.0
    %v9204 = vadd.f32 %v9202, %v9203
    %v9205 = vsel %vm735, %v9067, 0.0
    %v9206 = vadd.f32 %v9204, %v9205
    %v9207 = vsel %vm735, %v9068, 0.0
    %v9208 = vadd.f32 %v9206, %v9207
    %v9209 = vsel %vm735, %v9069, 0.0
    %v9210 = vadd.f32 %v9208, %v9209
    %v9211 = vsel %vm735, %v9070, 0.0
    %v9212 = vadd.f32 %v9210, %v9211
    %v9213 = vrot.slane %v9212, 4
    %v9214 = vadd.f32 %v9212, %v9213
    %v9215 = vrot.slane %v9214, 2
    %v9216 = vadd.f32 %v9214, %v9215
    %v9217 = vrot.slane %v9216, 1
    %v9218 = vadd.f32 %v9216, %v9217
    %v9220 = vperm.slane %v9075, 0
    %vm9224 = vcmask 1041409
    %v9225 = vsel %vm9224, %v9218, %v9149
    %v9226 = vsel %vm735, %v9225, 0
    %9228 = vmatpush.msra.mxu0 0.0
    %9229 = vmatpush.msra.mxu0 0.0
    %9230 = vmatpush.msra.mxu0 0.0
    %9231 = vmatpush.msra.mxu0 0.0
    %9232 = vmatpush.msra.mxu0 0.0
    %9233 = vmatpush.msra.mxu0 0.0
    %9234 = vmatpush.msra.mxu0 0.0
    %9235 = vmatpush.msra.mxu0 0.0
    %9236 = vmatpush.msra.mxu0 0.0
    %9237 = vmatpush.msra.mxu0 0.0
    %9238 = vmatpush.msra.mxu0 0.0
    %9239 = vmatpush.msra.mxu0 0.0
    %9240 = vmatpush.msra.mxu0 %v9074
    %9241 = vmatpush.msra.mxu0 %v9073
    %9242 = vmatpush.msra.mxu0 %v9072
    %9243 = vmatpush.msra.mxu0 %v9071
    %9244 = vmatmul.f32.gmra.mxu0 %v9226
    %v9245 = vpop.f32.mrf.mxu0
    %v9246 = vadd.f32 %v9220, %v9245
    %9247 = vdwg.mxu0
    %v9248 = vmax.f32 %v9246, 0.0
    %v9250 = vperm.slane %v9080, 0
    %v9253 = vsel %vm735, %v9248, 0
    %9255 = vmatpush.msra.mxu0 0.0
    %9256 = vmatpush.msra.mxu0 0.0
    %9257 = vmatpush.msra.mxu0 0.0
    %9258 = vmatpush.msra.mxu0 0.0
    %9259 = vmatpush.msra.mxu0 0.0
    %9260 = vmatpush.msra.mxu0 0.0
    %9261 = vmatpush.msra.mxu0 0.0
    %9262 = vmatpush.msra.mxu0 0.0
    %9263 = vmatpush.msra.mxu0 0.0
    %9264 = vmatpush.msra.mxu0 0.0
    %9265 = vmatpush.msra.mxu0 0.0
    %9266 = vmatpush.msra.mxu0 0.0
    %9267 = vmatpush.msra.mxu0 %v9079
    %9268 = vmatpush.msra.mxu0 %v9078
    %9269 = vmatpush.msra.mxu0 %v9077
    %9270 = vmatpush.msra.mxu0 %v9076
    %9271 = vmatmul.f32.gmra.mxu0 %v9253
    %v9272 = vpop.f32.mrf.mxu0
    %v9273 = vadd.f32 %v9250, %v9272
    %9274 = vdwg.mxu0
    %vm9275 = vcmask 58368
    %9276 = vst.msk [vmem:[#allocation2] sm:$0x3] %vm9275, %v9273
    // Predicated region
    $region90: #{tpu_custom_call.1} parent=1 // pred_check
      _
    $region91: #{tpu_custom_call.1} parent=1 // pred_check_branch
      %9278 = sbr.rel (0) target = $region93
    $region92: #{tpu_custom_call.1} parent=1 // pred_region
      %9280 = vsyncadd [#allocation3], 0
      %s9282 = sshll.u32 [#allocation2], 4
      %s9283 = int_to_ptr.vmem [resolvable:$true] %s9282
      %s9284 = sshll.u32 %s22, 4
      %s9285 = int_to_ptr.hbm [resolvable:$true] %s9284
      %9287 = dma.vmem_to_hbm [thread:$0]  %s9283, 32, %s9285, [#allocation3]
    $region93: #{tpu_custom_call.1} parent=1 // pred_fallthru
      _
    // Predicated region
    $region94: #{tpu_custom_call.1} parent=1 // pred_check
      _
    $region95: #{tpu_custom_call.1} parent=1 // pred_check_branch
      %9289 = sbr.rel (0) target = $region97
    $region96: #{tpu_custom_call.1} parent=1 // pred_region
      %9291 = dma.done [#allocation3], 32
    $region97: #{tpu_custom_call.1} parent=1 // pred_fallthru
      _
    %9292 = vsyncpa [#allocation3], 1

</llo_original>
